<compile_context>
chip_gen: v7x
topology: tpu7x:2x2x1
jax: 0.10.0
libtpu: 0.0.40
codegen_flags: <defaults>
</compile_context>

<pallas_src>
import functools

import jax
import jax.numpy as jnp
from jax.experimental import pallas as pl
from jax.experimental.pallas import tpu as pltpu


# ----------------------------- fused Pallas kernel ---------------------------

def _fused_forward_kernel(pooled_ref, wbb_ref, bbb_ref,
                          w1_ref, b1_ref, w2_ref, b2_ref,
                          w3_ref, b3_ref, w4_ref, b4_ref, o_ref):
    # --- stand-in backbones (fused): Linear(C -> 3*512) on the pre-pooled input ---
    pooled = pooled_ref[...]                                             # (B, C) f32
    feats = jnp.dot(pooled.astype(jnp.bfloat16), wbb_ref[...],
                    preferred_element_type=jnp.float32) + bbb_ref[...]   # (B, 1536)

    # --- attention(seq_len=1) + fc1 + bn1 (all pre-folded into one (1536,1024)) ---
    h = jnp.dot(feats.astype(jnp.bfloat16), w1_ref[...],
                preferred_element_type=jnp.float32) + b1_ref[...]        # (B, 1024)
    h = jnp.maximum(h, 0.0)

    # --- fc2/bn2 -> fc3/bn3 (BN folded into W/b), relu ---
    for w_ref, b_ref in ((w2_ref, b2_ref), (w3_ref, b3_ref)):
        h = jnp.dot(h.astype(jnp.bfloat16), w_ref[...],
                    preferred_element_type=jnp.float32) + b_ref[...]
        h = jnp.maximum(h, 0.0)

    # --- fc4 (output lanes padded to a multiple of 128 for dense stores) ---
    logits = jnp.dot(h.astype(jnp.bfloat16), w4_ref[...],
                     preferred_element_type=jnp.float32) + b4_ref[...]
    o_ref[...] = logits.astype(o_ref.dtype)


# ------------------------------ parameters -----------------------------------

def init_params(key, in_channels, num_classes):
    E = 512 * 3
    ks = jax.random.split(key, 18)

    def w(k, shape, scale=0.02):
        return (scale * jax.random.normal(k, shape)).astype(jnp.float32)

    def bn_fold(k, n, eps=1e-5):
        k1, k2, k3, k4 = jax.random.split(k, 4)
        gamma = (1.0 + 0.1 * jax.random.normal(k1, (n,))).astype(jnp.float32)
        beta = (0.1 * jax.random.normal(k2, (n,))).astype(jnp.float32)
        mean = (0.1 * jax.random.normal(k3, (n,))).astype(jnp.float32)
        var = (1.0 + 0.1 * jax.random.uniform(k4, (n,))).astype(jnp.float32)
        scale = gamma * jax.lax.rsqrt(var + eps)
        shift = beta - mean * scale
        return scale, shift

    p = {}

    # Stand-in backbone heads: three Linear(C -> 512) on the global-avg-pooled input,
    # concatenated into a single (C, 1536) weight (== torch.cat of the 3 outputs).
    eff_w = w(ks[0], (in_channels, 512))
    mob_w = w(ks[1], (in_channels, 512))
    res_w = w(ks[2], (in_channels, 512))
    p["bb_w"] = jnp.concatenate([eff_w, mob_w, res_w], axis=1).astype(jnp.bfloat16)
    p["bb_b"] = jnp.zeros((1, E), jnp.float32)

    # nn.MultiheadAttention(embed_dim=1536, num_heads=8) -- PyTorch weight layouts.
    in_proj_w = w(ks[3], (3 * E, E))
    in_proj_b = w(ks[4], (3 * E,))
    out_proj_w = w(ks[5], (E, E))
    out_proj_b = w(ks[6], (E,))
    # Length-1 sequence => softmax over one key == 1 => attention output == V;
    # fold V-proj and out-proj into one (E, E) linear (f32).
    wv = in_proj_w[2 * E:, :]              # (E, E); v = x @ wv.T + bv
    bv = in_proj_b[2 * E:]
    w_attn = wv.T @ out_proj_w.T           # (E, E) in (K, N) layout
    b_attn = bv @ out_proj_w.T + out_proj_b

    # fc1 + eval-mode bn1 folded, then the (linear) attention folded in as well:
    #   relu(bn1(fc1(attn(x)))) == relu(x @ (W_attn @ W_fc1') + (b_attn @ W_fc1' + b_fc1'))
    fc1_wt = w(ks[7], (1024, E))           # PyTorch (out, in)
    fc1_bt = w(ks[8], (1024,))
    s1, t1 = bn_fold(ks[15], 1024)
    w1_kn = fc1_wt.T * s1[None, :]         # (E, 1024), BN folded
    b1_n = fc1_bt * s1 + t1
    w_af = w_attn @ w1_kn                  # compose in f32, cast once
    b_af = b_attn @ w1_kn + b1_n
    p["fc1_w"] = w_af.astype(jnp.bfloat16)
    p["fc1_b"] = b_af.reshape(1, 1024).astype(jnp.float32)

    # fc2/bn2, fc3/bn3 with eval-mode BN folded into (K, N)-layout weights/biases.
    def fc_bn(kw, kb, kbn, k_in, k_out):
        wt = w(kw, (k_out, k_in))          # PyTorch (out, in)
        bt = w(kb, (k_out,))
        s, t = bn_fold(kbn, k_out)
        w_kn = wt.T * s[None, :]
        b_n = bt * s + t
        return w_kn.astype(jnp.bfloat16), b_n.reshape(1, k_out).astype(jnp.float32)

    p["fc2_w"], p["fc2_b"] = fc_bn(ks[9], ks[10], ks[16], 1024, 512)
    p["fc3_w"], p["fc3_b"] = fc_bn(ks[11], ks[12], ks[17], 512, 256)

    # fc4 (no BN); pad output columns up to a multiple of 128 for lane-dense stores.
    n_pad = max(128, ((num_classes + 127) // 128) * 128)
    fc4_w = w(ks[13], (num_classes, 256))
    fc4_b = w(ks[14], (num_classes,))
    w4 = jnp.zeros((256, n_pad), jnp.float32).at[:, :num_classes].set(fc4_w.T)
    b4 = jnp.zeros((n_pad,), jnp.float32).at[:num_classes].set(fc4_b)
    p["fc4_w"] = w4.astype(jnp.bfloat16)
    p["fc4_b"] = b4.reshape(1, n_pad).astype(jnp.float32)
    return p


# ------------------------------ forward pass ----------------------------------

def combined_model_forward(params, x, num_classes):
    B, C, H, W = x.shape
    # Global-average-pool in the XLA wrapper; the kernel only sees (B_pad, C) f32.
    pooled = jnp.mean(x.reshape(B, C, H * W), axis=2)            # (B, C)
    B_pad = ((B + 7) // 8) * 8                                   # f32 sublane multiple
    if B_pad != B:
        pooled = jnp.pad(pooled, ((0, B_pad - B), (0, 0)))
    n_pad = params["fc4_b"].shape[1]

    def full(shape):
        nd = len(shape)
        return pl.BlockSpec(tuple(shape), lambda *i, nd=nd: (0,) * nd)

    args = (pooled,
            params["bb_w"], params["bb_b"],
            params["fc1_w"], params["fc1_b"],
            params["fc2_w"], params["fc2_b"],
            params["fc3_w"], params["fc3_b"],
            params["fc4_w"], params["fc4_b"])

    out = pl.pallas_call(
        _fused_forward_kernel,
        out_shape=jax.ShapeDtypeStruct((B_pad, n_pad), jnp.float32),
        grid=(1,),
        in_specs=[full(a.shape) for a in args],
        out_specs=full((B_pad, n_pad)),
        compiler_params=pltpu.CompilerParams(
            dimension_semantics=("arbitrary",),
            # Post-fold weights are ~4.5 MB bf16 (~9 MB double-buffered): 24 MiB is
            # above v5e's 16 MiB scoped default and well under v6e/v7x limits.
            vmem_limit_bytes=24 * 1024 * 1024,
        ),
    )(*args)
    return out[:B, :num_classes]


# --------------------------------- main ----------------------------------------

if __name__ == "__main__":
    key = jax.random.PRNGKey(0)
    pkey, xkey = jax.random.split(key)

    B, C, H, W = 8, 4, 16, 16
    num_classes = 16

    params = init_params(pkey, C, num_classes)
    x = jax.random.normal(xkey, (B, C, H, W), dtype=jnp.float32)

    fwd = jax.jit(functools.partial(combined_model_forward, params,
                                    num_classes=num_classes))
    out = fwd(x)
    jax.block_until_ready(out)

    assert out.shape == (B, num_classes), out.shape
    assert bool(jnp.all(jnp.isfinite(out)))
    print("KERNEL_OK")
</pallas_src>

<mosaic_0001>
module attributes {stable_mosaic.version = 11 : i64} {
  func.func @_fused_forward_kernel(%arg0: i32, %arg1: memref<8x4xf32, #tpu.memory_space<vmem>>, %arg2: memref<4x1536xbf16, #tpu.memory_space<vmem>>, %arg3: memref<1x1536xf32, #tpu.memory_space<vmem>>, %arg4: memref<1536x1024xbf16, #tpu.memory_space<vmem>>, %arg5: memref<1x1024xf32, #tpu.memory_space<vmem>>, %arg6: memref<1024x512xbf16, #tpu.memory_space<vmem>>, %arg7: memref<1x512xf32, #tpu.memory_space<vmem>>, %arg8: memref<512x256xbf16, #tpu.memory_space<vmem>>, %arg9: memref<1x256xf32, #tpu.memory_space<vmem>>, %arg10: memref<256x128xbf16, #tpu.memory_space<vmem>>, %arg11: memref<1x128xf32, #tpu.memory_space<vmem>>, %arg12: memref<8x128xf32, #tpu.memory_space<vmem>>) attributes {dimension_semantics = [#tpu.dimension_semantics<arbitrary>], iteration_bounds = array<i64: 1>, scalar_prefetch = 0 : i64, scratch_operands = 0 : i64, tpu.core_type = #tpu.core_type<tc>, window_params = [{pipeline_mode = #tpu.pipeline_mode<synchronous>, transform_indices = @transform_0, window_bounds = array<i64: 8, 4>}, {pipeline_mode = #tpu.pipeline_mode<synchronous>, transform_indices = @transform_1, window_bounds = array<i64: 4, 1536>}, {pipeline_mode = #tpu.pipeline_mode<synchronous>, transform_indices = @transform_2, window_bounds = array<i64: 1, 1536>}, {pipeline_mode = #tpu.pipeline_mode<synchronous>, transform_indices = @transform_3, window_bounds = array<i64: 1536, 1024>}, {pipeline_mode = #tpu.pipeline_mode<synchronous>, transform_indices = @transform_4, window_bounds = array<i64: 1, 1024>}, {pipeline_mode = #tpu.pipeline_mode<synchronous>, transform_indices = @transform_5, window_bounds = array<i64: 1024, 512>}, {pipeline_mode = #tpu.pipeline_mode<synchronous>, transform_indices = @transform_6, window_bounds = array<i64: 1, 512>}, {pipeline_mode = #tpu.pipeline_mode<synchronous>, transform_indices = @transform_7, window_bounds = array<i64: 512, 256>}, {pipeline_mode = #tpu.pipeline_mode<synchronous>, transform_indices = @transform_8, window_bounds = array<i64: 1, 256>}, {pipeline_mode = #tpu.pipeline_mode<synchronous>, transform_indices = @transform_9, window_bounds = array<i64: 256, 128>}, {pipeline_mode = #tpu.pipeline_mode<synchronous>, transform_indices = @transform_10, window_bounds = array<i64: 1, 128>}, {pipeline_mode = #tpu.pipeline_mode<synchronous>, transform_indices = @transform_11, window_bounds = array<i64: 8, 128>}]} {
    %c0 = arith.constant 0 : index
    %c0_0 = arith.constant 0 : index
    %0 = vector.load %arg1[%c0, %c0_0] : memref<8x4xf32, #tpu.memory_space<vmem>>, vector<8x4xf32>
    %1 = arith.truncf %0 : vector<8x4xf32> to vector<8x4xbf16>
    %c0_1 = arith.constant 0 : index
    %c0_2 = arith.constant 0 : index
    %2 = vector.load %arg2[%c0_1, %c0_2] : memref<4x1536xbf16, #tpu.memory_space<vmem>>, vector<4x1536xbf16>
    %cst = arith.constant dense<0.000000e+00> : vector<8x1536xf32>
    %3 = tpu.matmul %1, %2, %cst {dimension_numbers = #tpu.dot_dimension_numbers<[1], [0], [0], [1], [0, 0, 1, 1], [], []>} : vector<8x4xbf16>, vector<4x1536xbf16>, vector<8x1536xf32> -> vector<8x1536xf32>
    %c0_3 = arith.constant 0 : index
    %c0_4 = arith.constant 0 : index
    %4 = vector.load %arg3[%c0_3, %c0_4] : memref<1x1536xf32, #tpu.memory_space<vmem>>, vector<1x1536xf32>
    %5 = vector.broadcast %4 : vector<1x1536xf32> to vector<8x1536xf32>
    %6 = arith.addf %3, %5 : vector<8x1536xf32>
    %7 = arith.truncf %6 : vector<8x1536xf32> to vector<8x1536xbf16>
    %c0_5 = arith.constant 0 : index
    %c0_6 = arith.constant 0 : index
    %8 = vector.load %arg4[%c0_5, %c0_6] : memref<1536x1024xbf16, #tpu.memory_space<vmem>>, vector<1536x1024xbf16>
    %cst_7 = arith.constant dense<0.000000e+00> : vector<8x1024xf32>
    %9 = tpu.matmul %7, %8, %cst_7 {dimension_numbers = #tpu.dot_dimension_numbers<[1], [0], [0], [1], [0, 0, 1, 1], [], []>} : vector<8x1536xbf16>, vector<1536x1024xbf16>, vector<8x1024xf32> -> vector<8x1024xf32>
    %c0_8 = arith.constant 0 : index
    %c0_9 = arith.constant 0 : index
    %10 = vector.load %arg5[%c0_8, %c0_9] : memref<1x1024xf32, #tpu.memory_space<vmem>>, vector<1x1024xf32>
    %11 = vector.broadcast %10 : vector<1x1024xf32> to vector<8x1024xf32>
    %12 = arith.addf %9, %11 : vector<8x1024xf32>
    %cst_10 = arith.constant 0.000000e+00 : f32
    %13 = vector.broadcast %cst_10 : f32 to vector<8x1024xf32>
    %14 = arith.maximumf %12, %13 : vector<8x1024xf32>
    %15 = arith.truncf %14 : vector<8x1024xf32> to vector<8x1024xbf16>
    %c0_11 = arith.constant 0 : index
    %c0_12 = arith.constant 0 : index
    %16 = vector.load %arg6[%c0_11, %c0_12] : memref<1024x512xbf16, #tpu.memory_space<vmem>>, vector<1024x512xbf16>
    %cst_13 = arith.constant dense<0.000000e+00> : vector<8x512xf32>
    %17 = tpu.matmul %15, %16, %cst_13 {dimension_numbers = #tpu.dot_dimension_numbers<[1], [0], [0], [1], [0, 0, 1, 1], [], []>} : vector<8x1024xbf16>, vector<1024x512xbf16>, vector<8x512xf32> -> vector<8x512xf32>
    %c0_14 = arith.constant 0 : index
    %c0_15 = arith.constant 0 : index
    %18 = vector.load %arg7[%c0_14, %c0_15] : memref<1x512xf32, #tpu.memory_space<vmem>>, vector<1x512xf32>
    %19 = vector.broadcast %18 : vector<1x512xf32> to vector<8x512xf32>
    %20 = arith.addf %17, %19 : vector<8x512xf32>
    %cst_16 = arith.constant 0.000000e+00 : f32
    %21 = vector.broadcast %cst_16 : f32 to vector<8x512xf32>
    %22 = arith.maximumf %20, %21 : vector<8x512xf32>
    %23 = arith.truncf %22 : vector<8x512xf32> to vector<8x512xbf16>
    %c0_17 = arith.constant 0 : index
    %c0_18 = arith.constant 0 : index
    %24 = vector.load %arg8[%c0_17, %c0_18] : memref<512x256xbf16, #tpu.memory_space<vmem>>, vector<512x256xbf16>
    %cst_19 = arith.constant dense<0.000000e+00> : vector<8x256xf32>
    %25 = tpu.matmul %23, %24, %cst_19 {dimension_numbers = #tpu.dot_dimension_numbers<[1], [0], [0], [1], [0, 0, 1, 1], [], []>} : vector<8x512xbf16>, vector<512x256xbf16>, vector<8x256xf32> -> vector<8x256xf32>
    %c0_20 = arith.constant 0 : index
    %c0_21 = arith.constant 0 : index
    %26 = vector.load %arg9[%c0_20, %c0_21] : memref<1x256xf32, #tpu.memory_space<vmem>>, vector<1x256xf32>
    %27 = vector.broadcast %26 : vector<1x256xf32> to vector<8x256xf32>
    %28 = arith.addf %25, %27 : vector<8x256xf32>
    %cst_22 = arith.constant 0.000000e+00 : f32
    %29 = vector.broadcast %cst_22 : f32 to vector<8x256xf32>
    %30 = arith.maximumf %28, %29 : vector<8x256xf32>
    %31 = arith.truncf %30 : vector<8x256xf32> to vector<8x256xbf16>
    %c0_23 = arith.constant 0 : index
    %c0_24 = arith.constant 0 : index
    %32 = vector.load %arg10[%c0_23, %c0_24] : memref<256x128xbf16, #tpu.memory_space<vmem>>, vector<256x128xbf16>
    %cst_25 = arith.constant dense<0.000000e+00> : vector<8x128xf32>
    %33 = tpu.matmul %31, %32, %cst_25 {dimension_numbers = #tpu.dot_dimension_numbers<[1], [0], [0], [1], [0, 0, 1, 1], [], []>} : vector<8x256xbf16>, vector<256x128xbf16>, vector<8x128xf32> -> vector<8x128xf32>
    %c0_26 = arith.constant 0 : index
    %c0_27 = arith.constant 0 : index
    %34 = vector.load %arg11[%c0_26, %c0_27] : memref<1x128xf32, #tpu.memory_space<vmem>>, vector<1x128xf32>
    %35 = vector.broadcast %34 : vector<1x128xf32> to vector<8x128xf32>
    %36 = arith.addf %33, %35 : vector<8x128xf32>
    %c0_28 = arith.constant 0 : index
    %c0_29 = arith.constant 0 : index
    %37 = vector.load %arg12[%c0_28, %c0_29] : memref<8x128xf32, #tpu.memory_space<vmem>>, vector<8x128xf32>
    tpu.vector_store %arg12[%c0_28, %c0_29], %36 {strides = array<i32>} : memref<8x128xf32, #tpu.memory_space<vmem>>, vector<8x128xf32>,
    return
  }
  func.func @transform_0(%arg0: i32) -> (i32, i32) {
    %c0_i32 = arith.constant 0 : i32
    %c0_i32_0 = arith.constant 0 : i32
    %c0_i32_1 = arith.constant 0 : i32
    return %c0_i32, %c0_i32_0 : i32, i32
  }
  func.func @transform_1(%arg0: i32) -> (i32, i32) {
    %c0_i32 = arith.constant 0 : i32
    %c0_i32_0 = arith.constant 0 : i32
    %c0_i32_1 = arith.constant 0 : i32
    return %c0_i32, %c0_i32_0 : i32, i32
  }
  func.func @transform_2(%arg0: i32) -> (i32, i32) {
    %c0_i32 = arith.constant 0 : i32
    %c0_i32_0 = arith.constant 0 : i32
    %c0_i32_1 = arith.constant 0 : i32
    return %c0_i32, %c0_i32_0 : i32, i32
  }
  func.func @transform_3(%arg0: i32) -> (i32, i32) {
    %c0_i32 = arith.constant 0 : i32
    %c0_i32_0 = arith.constant 0 : i32
    %c0_i32_1 = arith.constant 0 : i32
    return %c0_i32, %c0_i32_0 : i32, i32
  }
  func.func @transform_4(%arg0: i32) -> (i32, i32) {
    %c0_i32 = arith.constant 0 : i32
    %c0_i32_0 = arith.constant 0 : i32
    %c0_i32_1 = arith.constant 0 : i32
    return %c0_i32, %c0_i32_0 : i32, i32
  }
  func.func @transform_5(%arg0: i32) -> (i32, i32) {
    %c0_i32 = arith.constant 0 : i32
    %c0_i32_0 = arith.constant 0 : i32
    %c0_i32_1 = arith.constant 0 : i32
    return %c0_i32, %c0_i32_0 : i32, i32
  }
  func.func @transform_6(%arg0: i32) -> (i32, i32) {
    %c0_i32 = arith.constant 0 : i32
    %c0_i32_0 = arith.constant 0 : i32
    %c0_i32_1 = arith.constant 0 : i32
    return %c0_i32, %c0_i32_0 : i32, i32
  }
  func.func @transform_7(%arg0: i32) -> (i32, i32) {
    %c0_i32 = arith.constant 0 : i32
    %c0_i32_0 = arith.constant 0 : i32
    %c0_i32_1 = arith.constant 0 : i32
    return %c0_i32, %c0_i32_0 : i32, i32
  }
  func.func @transform_8(%arg0: i32) -> (i32, i32) {
    %c0_i32 = arith.constant 0 : i32
    %c0_i32_0 = arith.constant 0 : i32
    %c0_i32_1 = arith.constant 0 : i32
    return %c0_i32, %c0_i32_0 : i32, i32
  }
  func.func @transform_9(%arg0: i32) -> (i32, i32) {
    %c0_i32 = arith.constant 0 : i32
    %c0_i32_0 = arith.constant 0 : i32
    %c0_i32_1 = arith.constant 0 : i32
    return %c0_i32, %c0_i32_0 : i32, i32
  }
  func.func @transform_10(%arg0: i32) -> (i32, i32) {
    %c0_i32 = arith.constant 0 : i32
    %c0_i32_0 = arith.constant 0 : i32
    %c0_i32_1 = arith.constant 0 : i32
    return %c0_i32, %c0_i32_0 : i32, i32
  }
  func.func @transform_11(%arg0: i32) -> (i32, i32) {
    %c0_i32 = arith.constant 0 : i32
    %c0_i32_0 = arith.constant 0 : i32
    %c0_i32_1 = arith.constant 0 : i32
    return %c0_i32, %c0_i32_0 : i32, i32
  }
}

</mosaic_0001>

<llo_original>
// kernel: combined_model_forward.1
$region0: #{combined_model_forward.1}
  #allocation0 [shape = 'u32[]', space=smem, size = 0x4, offset = 0x4, fixed_abs, tag = 'smem constant byte address 0x4 - core index']
  #allocation1 [shape = 'u32[144,128]{1,0:T(1,128)}', space=vmem, size = 0x12000, scoped, tag = 'internal scratch']
  %s0 = inlined_call_operand.vmem [shape: f32[8,4], index: 0, kind: input, shape index: {}]
  %s1 = inlined_call_operand.vmem [shape: bf16[4,1536], index: 1, kind: input, shape index: {}]
  %s2 = inlined_call_operand.vmem [shape: f32[1,1536], index: 2, kind: input, shape index: {}]
  %s3 = inlined_call_operand.vmem [shape: bf16[1536,1024], index: 3, kind: input, shape index: {}]
  %s4 = inlined_call_operand.vmem [shape: f32[1,1024], index: 4, kind: input, shape index: {}]
  %s5 = inlined_call_operand.vmem [shape: bf16[1024,512], index: 5, kind: input, shape index: {}]
  %s6 = inlined_call_operand.vmem [shape: f32[1,512], index: 6, kind: input, shape index: {}]
  %s7 = inlined_call_operand.vmem [shape: bf16[512,256], index: 7, kind: input, shape index: {}]
  %s8 = inlined_call_operand.vmem [shape: f32[1,256], index: 8, kind: input, shape index: {}]
  %s9 = inlined_call_operand.vmem [shape: bf16[256,128], index: 9, kind: input, shape index: {}]
  %s10 = inlined_call_operand.vmem [shape: f32[1,128], index: 10, kind: input, shape index: {}]
  %s11 = inlined_call_operand.hbm [shape: f32[8,128], index: 11, kind: output, shape index: {}]
  %s12 = sld [smem:[#allocation0]]
  $region54: #{combined_model_forward.1} parent=0
    _
  %s14 = ssub.s32 1, %s12
  %s15 = scalar_select 0, %s14, %s12
  $region1: #{combined_model_forward.1} parent=0
    #allocation2 [shape = 'u8[4096]{0}', space=vmem, size = 0x1000, scoped, tag = 'output window, operand 0, single buffered']
    #allocation3 [shape = 's32[1]{0}', space=sflag, size = 0x4, scoped, tag = 'scoped memory for combined_model_forward.1']
    %16 = vsyncpa [#allocation3], 0
    // Predicated region
    $region2: #{combined_model_forward.1} parent=1 // pred_check
      _
    $region3: #{combined_model_forward.1} parent=1 // pred_check_branch
      %18 = sbr.rel (0) target = $region5
    $region4: #{combined_model_forward.1} parent=1 // pred_region
      _
    $region5: #{combined_model_forward.1} parent=1 // pred_fallthru
      _
    // Predicated region
    $region6: #{combined_model_forward.1} parent=1 // pred_check
      _
    $region7: #{combined_model_forward.1} parent=1 // pred_check_branch
      %20 = sbr.rel (0) target = $region9
    $region8: #{combined_model_forward.1} parent=1 // pred_region
      _
    $region9: #{combined_model_forward.1} parent=1 // pred_fallthru
      _
    // Predicated region
    $region10: #{combined_model_forward.1} parent=1 // pred_check
      _
    $region11: #{combined_model_forward.1} parent=1 // pred_check_branch
      %22 = sbr.rel (0) target = $region13
    $region12: #{combined_model_forward.1} parent=1 // pred_region
      _
    $region13: #{combined_model_forward.1} parent=1 // pred_fallthru
      _
    // Predicated region
    $region14: #{combined_model_forward.1} parent=1 // pred_check
      _
    $region15: #{combined_model_forward.1} parent=1 // pred_check_branch
      %24 = sbr.rel (0) target = $region17
    $region16: #{combined_model_forward.1} parent=1 // pred_region
      _
    $region17: #{combined_model_forward.1} parent=1 // pred_fallthru
      _
    // Predicated region
    $region18: #{combined_model_forward.1} parent=1 // pred_check
      _
    $region19: #{combined_model_forward.1} parent=1 // pred_check_branch
      %26 = sbr.rel (0) target = $region21
    $region20: #{combined_model_forward.1} parent=1 // pred_region
      _
    $region21: #{combined_model_forward.1} parent=1 // pred_fallthru
      _
    // Predicated region
    $region22: #{combined_model_forward.1} parent=1 // pred_check
      _
    $region23: #{combined_model_forward.1} parent=1 // pred_check_branch
      %28 = sbr.rel (0) target = $region25
    $region24: #{combined_model_forward.1} parent=1 // pred_region
      _
    $region25: #{combined_model_forward.1} parent=1 // pred_fallthru
      _
    // Predicated region
    $region26: #{combined_model_forward.1} parent=1 // pred_check
      _
    $region27: #{combined_model_forward.1} parent=1 // pred_check_branch
      %30 = sbr.rel (0) target = $region29
    $region28: #{combined_model_forward.1} parent=1 // pred_region
      _
    $region29: #{combined_model_forward.1} parent=1 // pred_fallthru
      _
    // Predicated region
    $region30: #{combined_model_forward.1} parent=1 // pred_check
      _
    $region31: #{combined_model_forward.1} parent=1 // pred_check_branch
      %32 = sbr.rel (0) target = $region33
    $region32: #{combined_model_forward.1} parent=1 // pred_region
      _
    $region33: #{combined_model_forward.1} parent=1 // pred_fallthru
      _
    // Predicated region
    $region34: #{combined_model_forward.1} parent=1 // pred_check
      _
    $region35: #{combined_model_forward.1} parent=1 // pred_check_branch
      %34 = sbr.rel (0) target = $region37
    $region36: #{combined_model_forward.1} parent=1 // pred_region
      _
    $region37: #{combined_model_forward.1} parent=1 // pred_fallthru
      _
    // Predicated region
    $region38: #{combined_model_forward.1} parent=1 // pred_check
      _
    $region39: #{combined_model_forward.1} parent=1 // pred_check_branch
      %36 = sbr.rel (0) target = $region41
    $region40: #{combined_model_forward.1} parent=1 // pred_region
      _
    $region41: #{combined_model_forward.1} parent=1 // pred_fallthru
      _
    // Predicated region
    $region42: #{combined_model_forward.1} parent=1 // pred_check
      _
    $region43: #{combined_model_forward.1} parent=1 // pred_check_branch
      %38 = sbr.rel (0) target = $region45
    $region44: #{combined_model_forward.1} parent=1 // pred_region
      _
    $region45: #{combined_model_forward.1} parent=1 // pred_fallthru
      _
    %v40 = vld [vmem:[%s0] sm:$0xff]
    %v41 = vpack.c.bf16 %v40, %v40
    %v42 = vld [vmem:[%s1] sm:$0xff]
    %v43 = vld [vmem:[%s1 + $0x8] sm:$0xff]
    %v44 = vld [vmem:[%s1 + $0x10] sm:$0xff]
    %v45 = vld [vmem:[%s2] sm:$0xff]
    %v46 = vld [vmem:[%s2 + $0x8] sm:$0xf]
    %v49 = vlaneseq
    %v50 = vshrl.u32 %v49, 7
    %v51 = vsub.s32 0, %v50
    %v52 = vrot.slane %v45, %v51
    %v53 = vlaneseq
    %v54 = vshrl.u32 %v53, 7
    %v55 = vsub.s32 1, %v54
    %v56 = vrot.slane %v45, %v55
    %v57 = vlaneseq
    %v58 = vshrl.u32 %v57, 7
    %v59 = vsub.s32 2, %v58
    %v60 = vrot.slane %v45, %v59
    %v61 = vlaneseq
    %v62 = vshrl.u32 %v61, 7
    %v63 = vsub.s32 3, %v62
    %v64 = vrot.slane %v45, %v63
    %v65 = vlaneseq
    %v66 = vshrl.u32 %v65, 7
    %v67 = vsub.s32 4, %v66
    %v68 = vrot.slane %v45, %v67
    %v69 = vlaneseq
    %v70 = vshrl.u32 %v69, 7
    %v71 = vsub.s32 5, %v70
    %v72 = vrot.slane %v45, %v71
    %v73 = vlaneseq
    %v74 = vshrl.u32 %v73, 7
    %v75 = vsub.s32 6, %v74
    %v76 = vrot.slane %v45, %v75
    %v77 = vlaneseq
    %v78 = vshrl.u32 %v77, 7
    %v79 = vsub.s32 7, %v78
    %v80 = vrot.slane %v45, %v79
    %v81 = vlaneseq
    %v82 = vshrl.u32 %v81, 7
    %v83 = vsub.s32 0, %v82
    %v84 = vrot.slane %v46, %v83
    %v85 = vlaneseq
    %v86 = vshrl.u32 %v85, 7
    %v87 = vsub.s32 1, %v86
    %v88 = vrot.slane %v46, %v87
    %v89 = vlaneseq
    %v90 = vshrl.u32 %v89, 7
    %v91 = vsub.s32 2, %v90
    %v92 = vrot.slane %v46, %v91
    %v93 = vlaneseq
    %v94 = vshrl.u32 %v93, 7
    %v95 = vsub.s32 3, %v94
    %v96 = vrot.slane %v46, %v95
    %v112 = vcombine.high %v42, %v42
    %v114 = vunpack.c.l.s4 1983009808
    %v115 = vunpack.c.0.s8 %v114
    %v116 = vlaneseq
    %v117 = vshrl.u32 %v116, 7
    %v118 = vsub.s32 %v115, %v117
    %v119 = vrot.slane %v42, %v118
    %v121 = vunpack.c.l.s4 1983009808
    %v122 = vunpack.c.0.s8 %v121
    %v123 = vlaneseq
    %v124 = vshrl.u32 %v123, 7
    %v125 = vsub.s32 %v122, %v124
    %v126 = vrot.slane %v112, %v125
    %v127 = vcombine.high %v119, %v119
    %v128 = vcombine.high %v126, %v126
    %v129 = vcombine.high %v43, %v43
    %v131 = vunpack.c.l.s4 1983009808
    %v132 = vunpack.c.0.s8 %v131
    %v133 = vlaneseq
    %v134 = vshrl.u32 %v133, 7
    %v135 = vsub.s32 %v132, %v134
    %v136 = vrot.slane %v43, %v135
    %v138 = vunpack.c.l.s4 1983009808
    %v139 = vunpack.c.0.s8 %v138
    %v140 = vlaneseq
    %v141 = vshrl.u32 %v140, 7
    %v142 = vsub.s32 %v139, %v141
    %v143 = vrot.slane %v129, %v142
    %v144 = vcombine.high %v136, %v136
    %v145 = vcombine.high %v143, %v143
    %v146 = vcombine.high %v44, %v44
    %v148 = vunpack.c.l.s4 1983009808
    %v149 = vunpack.c.0.s8 %v148
    %v150 = vlaneseq
    %v151 = vshrl.u32 %v150, 7
    %v152 = vsub.s32 %v149, %v151
    %v153 = vrot.slane %v44, %v152
    %v155 = vunpack.c.l.s4 1983009808
    %v156 = vunpack.c.0.s8 %v155
    %v157 = vlaneseq
    %v158 = vshrl.u32 %v157, 7
    %v159 = vsub.s32 %v156, %v158
    %v160 = vrot.slane %v146, %v159
    %v161 = vcombine.high %v153, %v153
    %v162 = vcombine.high %v160, %v160
    %vm163 = vcmask 31744
    %v165 = vsel %vm163, %v41, 0
    %vm167 = vcmask 1041408
    %v169 = vsel %vm167, %v119, 0
    %v172 = vsel %vm167, %v127, 0
    %v175 = vsel %vm167, %v126, 0
    %v178 = vsel %vm167, %v128, 0
    %v181 = vsel %vm167, %v136, 0
    %v184 = vsel %vm167, %v144, 0
    %v187 = vsel %vm167, %v143, 0
    %v190 = vsel %vm167, %v145, 0
    %v193 = vsel %vm167, %v153, 0
    %v196 = vsel %vm167, %v161, 0
    %v199 = vsel %vm167, %v160, 0
    %v202 = vsel %vm167, %v162, 0
    %204 = vmatprep.subr.bf16.mxu0 %v172
    %205 = vmatpush1.bf16.msra.mxu0 %v169
    %206 = vmatprep.subr.bf16.mxu0 0
    %207 = vmatpush1.bf16.msra.mxu0 0
    %208 = vmatprep.subr.bf16.mxu0 0
    %209 = vmatpush1.bf16.msra.mxu0 0
    %210 = vmatprep.subr.bf16.mxu0 0
    %211 = vmatpush1.bf16.msra.mxu0 0
    %212 = vmatprep.subr.bf16.mxu0 0
    %213 = vmatpush1.bf16.msra.mxu0 0
    %214 = vmatprep.subr.bf16.mxu0 0
    %215 = vmatpush1.bf16.msra.mxu0 0
    %216 = vmatprep.subr.bf16.mxu0 0
    %217 = vmatpush1.bf16.msra.mxu0 0
    %218 = vmatprep.subr.bf16.mxu0 0
    %219 = vmatpush1.bf16.msra.mxu0 0
    %220 = vmatprep.subr.bf16.mxu0 0
    %221 = vmatpush1.bf16.msra.mxu0 0
    %222 = vmatprep.subr.bf16.mxu0 0
    %223 = vmatpush1.bf16.msra.mxu0 0
    %224 = vmatprep.subr.bf16.mxu0 0
    %225 = vmatpush1.bf16.msra.mxu0 0
    %226 = vmatprep.subr.bf16.mxu0 0
    %227 = vmatpush1.bf16.msra.mxu0 0
    %228 = vmatprep.subr.bf16.mxu0 0
    %229 = vmatpush1.bf16.msra.mxu0 0
    %230 = vmatprep.subr.bf16.mxu0 0
    %231 = vmatpush1.bf16.msra.mxu0 0
    %232 = vmatprep.subr.bf16.mxu0 0
    %233 = vmatpush1.bf16.msra.mxu0 0
    %234 = vmatprep.subr.bf16.mxu0 0
    %235 = vmatpush1.bf16.msra.mxu0 0
    %236 = vmatprep.mubr.bf16.mxu0 0
    %237 = vmatmul.mubr.bf16.gmra.mrb[0].mxu0 %v165
    %v238 = vpop.f32.mrb[0].mxu0
    %v239 = vadd.f32 %v52, %v238
    %v240 = vpop.f32.mrb[0].mxu0
    %v241 = vadd.f32 %v56, %v240
    %v242 = vpop.f32.mrb[0].mxu0
    %v243 = vpop.f32.mrb[0].mxu0
    %244 = vdwg.mxu0
    %245 = vmatprep.subr.bf16.mxu0 %v178
    %246 = vmatpush1.bf16.msra.mxu0 %v175
    %247 = vmatprep.subr.bf16.mxu0 0
    %248 = vmatpush1.bf16.msra.mxu0 0
    %249 = vmatprep.subr.bf16.mxu0 0
    %250 = vmatpush1.bf16.msra.mxu0 0
    %251 = vmatprep.subr.bf16.mxu0 0
    %252 = vmatpush1.bf16.msra.mxu0 0
    %253 = vmatprep.subr.bf16.mxu0 0
    %254 = vmatpush1.bf16.msra.mxu0 0
    %255 = vmatprep.subr.bf16.mxu0 0
    %256 = vmatpush1.bf16.msra.mxu0 0
    %257 = vmatprep.subr.bf16.mxu0 0
    %258 = vmatpush1.bf16.msra.mxu0 0
    %259 = vmatprep.subr.bf16.mxu0 0
    %260 = vmatpush1.bf16.msra.mxu0 0
    %261 = vmatprep.subr.bf16.mxu0 0
    %262 = vmatpush1.bf16.msra.mxu0 0
    %263 = vmatprep.subr.bf16.mxu0 0
    %264 = vmatpush1.bf16.msra.mxu0 0
    %265 = vmatprep.subr.bf16.mxu0 0
    %266 = vmatpush1.bf16.msra.mxu0 0
    %267 = vmatprep.subr.bf16.mxu0 0
    %268 = vmatpush1.bf16.msra.mxu0 0
    %269 = vmatprep.subr.bf16.mxu0 0
    %270 = vmatpush1.bf16.msra.mxu0 0
    %271 = vmatprep.subr.bf16.mxu0 0
    %272 = vmatpush1.bf16.msra.mxu0 0
    %273 = vmatprep.subr.bf16.mxu0 0
    %274 = vmatpush1.bf16.msra.mxu0 0
    %275 = vmatprep.subr.bf16.mxu0 0
    %276 = vmatpush1.bf16.msra.mxu0 0
    %277 = vmatprep.mubr.bf16.mxu0 0
    %278 = vmatmul.mubr.bf16.gmra.mrb[0].mxu0 %v165
    %v279 = vpop.f32.mrb[0].mxu0
    %v280 = vadd.f32 %v60, %v279
    %v281 = vpop.f32.mrb[0].mxu0
    %v282 = vadd.f32 %v64, %v281
    %v283 = vpop.f32.mrb[0].mxu0
    %v284 = vpop.f32.mrb[0].mxu0
    %285 = vdwg.mxu0
    %286 = vmatprep.subr.bf16.mxu0 %v184
    %287 = vmatpush1.bf16.msra.mxu0 %v181
    %288 = vmatprep.subr.bf16.mxu0 0
    %289 = vmatpush1.bf16.msra.mxu0 0
    %290 = vmatprep.subr.bf16.mxu0 0
    %291 = vmatpush1.bf16.msra.mxu0 0
    %292 = vmatprep.subr.bf16.mxu0 0
    %293 = vmatpush1.bf16.msra.mxu0 0
    %294 = vmatprep.subr.bf16.mxu0 0
    %295 = vmatpush1.bf16.msra.mxu0 0
    %296 = vmatprep.subr.bf16.mxu0 0
    %297 = vmatpush1.bf16.msra.mxu0 0
    %298 = vmatprep.subr.bf16.mxu0 0
    %299 = vmatpush1.bf16.msra.mxu0 0
    %300 = vmatprep.subr.bf16.mxu0 0
    %301 = vmatpush1.bf16.msra.mxu0 0
    %302 = vmatprep.subr.bf16.mxu0 0
    %303 = vmatpush1.bf16.msra.mxu0 0
    %304 = vmatprep.subr.bf16.mxu0 0
    %305 = vmatpush1.bf16.msra.mxu0 0
    %306 = vmatprep.subr.bf16.mxu0 0
    %307 = vmatpush1.bf16.msra.mxu0 0
    %308 = vmatprep.subr.bf16.mxu0 0
    %309 = vmatpush1.bf16.msra.mxu0 0
    %310 = vmatprep.subr.bf16.mxu0 0
    %311 = vmatpush1.bf16.msra.mxu0 0
    %312 = vmatprep.subr.bf16.mxu0 0
    %313 = vmatpush1.bf16.msra.mxu0 0
    %314 = vmatprep.subr.bf16.mxu0 0
    %315 = vmatpush1.bf16.msra.mxu0 0
    %316 = vmatprep.subr.bf16.mxu0 0
    %317 = vmatpush1.bf16.msra.mxu0 0
    %318 = vmatprep.mubr.bf16.mxu0 0
    %319 = vmatmul.mubr.bf16.gmra.mrb[0].mxu0 %v165
    %v320 = vpop.f32.mrb[0].mxu0
    %v321 = vadd.f32 %v68, %v320
    %v322 = vpop.f32.mrb[0].mxu0
    %v323 = vadd.f32 %v72, %v322
    %v324 = vpop.f32.mrb[0].mxu0
    %v325 = vpop.f32.mrb[0].mxu0
    %326 = vdwg.mxu0
    %327 = vmatprep.subr.bf16.mxu0 %v190
    %328 = vmatpush1.bf16.msra.mxu0 %v187
    %329 = vmatprep.subr.bf16.mxu0 0
    %330 = vmatpush1.bf16.msra.mxu0 0
    %331 = vmatprep.subr.bf16.mxu0 0
    %332 = vmatpush1.bf16.msra.mxu0 0
    %333 = vmatprep.subr.bf16.mxu0 0
    %334 = vmatpush1.bf16.msra.mxu0 0
    %335 = vmatprep.subr.bf16.mxu0 0
    %336 = vmatpush1.bf16.msra.mxu0 0
    %337 = vmatprep.subr.bf16.mxu0 0
    %338 = vmatpush1.bf16.msra.mxu0 0
    %339 = vmatprep.subr.bf16.mxu0 0
    %340 = vmatpush1.bf16.msra.mxu0 0
    %341 = vmatprep.subr.bf16.mxu0 0
    %342 = vmatpush1.bf16.msra.mxu0 0
    %343 = vmatprep.subr.bf16.mxu0 0
    %344 = vmatpush1.bf16.msra.mxu0 0
    %345 = vmatprep.subr.bf16.mxu0 0
    %346 = vmatpush1.bf16.msra.mxu0 0
    %347 = vmatprep.subr.bf16.mxu0 0
    %348 = vmatpush1.bf16.msra.mxu0 0
    %349 = vmatprep.subr.bf16.mxu0 0
    %350 = vmatpush1.bf16.msra.mxu0 0
    %351 = vmatprep.subr.bf16.mxu0 0
    %352 = vmatpush1.bf16.msra.mxu0 0
    %353 = vmatprep.subr.bf16.mxu0 0
    %354 = vmatpush1.bf16.msra.mxu0 0
    %355 = vmatprep.subr.bf16.mxu0 0
    %356 = vmatpush1.bf16.msra.mxu0 0
    %357 = vmatprep.subr.bf16.mxu0 0
    %358 = vmatpush1.bf16.msra.mxu0 0
    %359 = vmatprep.mubr.bf16.mxu0 0
    %360 = vmatmul.mubr.bf16.gmra.mrb[0].mxu0 %v165
    %v361 = vpop.f32.mrb[0].mxu0
    %v362 = vadd.f32 %v76, %v361
    %v363 = vpop.f32.mrb[0].mxu0
    %v364 = vadd.f32 %v80, %v363
    %v365 = vpop.f32.mrb[0].mxu0
    %v366 = vpop.f32.mrb[0].mxu0
    %367 = vdwg.mxu0
    %368 = vmatprep.subr.bf16.mxu0 %v196
    %369 = vmatpush1.bf16.msra.mxu0 %v193
    %370 = vmatprep.subr.bf16.mxu0 0
    %371 = vmatpush1.bf16.msra.mxu0 0
    %372 = vmatprep.subr.bf16.mxu0 0
    %373 = vmatpush1.bf16.msra.mxu0 0
    %374 = vmatprep.subr.bf16.mxu0 0
    %375 = vmatpush1.bf16.msra.mxu0 0
    %376 = vmatprep.subr.bf16.mxu0 0
    %377 = vmatpush1.bf16.msra.mxu0 0
    %378 = vmatprep.subr.bf16.mxu0 0
    %379 = vmatpush1.bf16.msra.mxu0 0
    %380 = vmatprep.subr.bf16.mxu0 0
    %381 = vmatpush1.bf16.msra.mxu0 0
    %382 = vmatprep.subr.bf16.mxu0 0
    %383 = vmatpush1.bf16.msra.mxu0 0
    %384 = vmatprep.subr.bf16.mxu0 0
    %385 = vmatpush1.bf16.msra.mxu0 0
    %386 = vmatprep.subr.bf16.mxu0 0
    %387 = vmatpush1.bf16.msra.mxu0 0
    %388 = vmatprep.subr.bf16.mxu0 0
    %389 = vmatpush1.bf16.msra.mxu0 0
    %390 = vmatprep.subr.bf16.mxu0 0
    %391 = vmatpush1.bf16.msra.mxu0 0
    %392 = vmatprep.subr.bf16.mxu0 0
    %393 = vmatpush1.bf16.msra.mxu0 0
    %394 = vmatprep.subr.bf16.mxu0 0
    %395 = vmatpush1.bf16.msra.mxu0 0
    %396 = vmatprep.subr.bf16.mxu0 0
    %397 = vmatpush1.bf16.msra.mxu0 0
    %398 = vmatprep.subr.bf16.mxu0 0
    %399 = vmatpush1.bf16.msra.mxu0 0
    %400 = vmatprep.mubr.bf16.mxu0 0
    %401 = vmatmul.mubr.bf16.gmra.mrb[0].mxu0 %v165
    %v402 = vpop.f32.mrb[0].mxu0
    %v403 = vadd.f32 %v84, %v402
    %v404 = vpop.f32.mrb[0].mxu0
    %v405 = vadd.f32 %v88, %v404
    %v406 = vpop.f32.mrb[0].mxu0
    %v407 = vpop.f32.mrb[0].mxu0
    %408 = vdwg.mxu0
    %409 = vmatprep.subr.bf16.mxu0 %v202
    %410 = vmatpush1.bf16.msra.mxu0 %v199
    %411 = vmatprep.subr.bf16.mxu0 0
    %412 = vmatpush1.bf16.msra.mxu0 0
    %413 = vmatprep.subr.bf16.mxu0 0
    %414 = vmatpush1.bf16.msra.mxu0 0
    %415 = vmatprep.subr.bf16.mxu0 0
    %416 = vmatpush1.bf16.msra.mxu0 0
    %417 = vmatprep.subr.bf16.mxu0 0
    %418 = vmatpush1.bf16.msra.mxu0 0
    %419 = vmatprep.subr.bf16.mxu0 0
    %420 = vmatpush1.bf16.msra.mxu0 0
    %421 = vmatprep.subr.bf16.mxu0 0
    %422 = vmatpush1.bf16.msra.mxu0 0
    %423 = vmatprep.subr.bf16.mxu0 0
    %424 = vmatpush1.bf16.msra.mxu0 0
    %425 = vmatprep.subr.bf16.mxu0 0
    %426 = vmatpush1.bf16.msra.mxu0 0
    %427 = vmatprep.subr.bf16.mxu0 0
    %428 = vmatpush1.bf16.msra.mxu0 0
    %429 = vmatprep.subr.bf16.mxu0 0
    %430 = vmatpush1.bf16.msra.mxu0 0
    %431 = vmatprep.subr.bf16.mxu0 0
    %432 = vmatpush1.bf16.msra.mxu0 0
    %433 = vmatprep.subr.bf16.mxu0 0
    %434 = vmatpush1.bf16.msra.mxu0 0
    %435 = vmatprep.subr.bf16.mxu0 0
    %436 = vmatpush1.bf16.msra.mxu0 0
    %437 = vmatprep.subr.bf16.mxu0 0
    %438 = vmatpush1.bf16.msra.mxu0 0
    %439 = vmatprep.subr.bf16.mxu0 0
    %440 = vmatpush1.bf16.msra.mxu0 0
    %441 = vmatprep.mubr.bf16.mxu0 0
    %442 = vmatmul.mubr.bf16.gmra.mrb[0].mxu0 %v165
    %v443 = vpop.f32.mrb[0].mxu0
    %v444 = vadd.f32 %v92, %v443
    %v445 = vpop.f32.mrb[0].mxu0
    %v446 = vadd.f32 %v96, %v445
    %v447 = vpop.f32.mrb[0].mxu0
    %v448 = vpop.f32.mrb[0].mxu0
    %449 = vdwg.mxu0
    %v450 = vpack.c.bf16 %v239, %v239
    %v451 = vpack.c.bf16 %v241, %v241
    %v452 = vpack.c.bf16 %v280, %v280
    %v453 = vpack.c.bf16 %v282, %v282
    %v454 = vpack.c.bf16 %v321, %v321
    %v455 = vpack.c.bf16 %v323, %v323
    %v456 = vpack.c.bf16 %v362, %v362
    %v457 = vpack.c.bf16 %v364, %v364
    %v458 = vpack.c.bf16 %v403, %v403
    %v459 = vpack.c.bf16 %v405, %v405
    %v460 = vpack.c.bf16 %v444, %v444
    %v461 = vpack.c.bf16 %v446, %v446
    %v462 = vld [vmem:[%s3] sm:$0xff]
    %v463 = vld [vmem:[%s3 + $0x8] sm:$0xff]
    %v464 = vld [vmem:[%s3 + $0x10] sm:$0xff]
    %v465 = vld [vmem:[%s3 + $0x18] sm:$0xff]
    %v466 = vld [vmem:[%s3 + $0x20] sm:$0xff]
    %v467 = vld [vmem:[%s3 + $0x28] sm:$0xff]
    %v468 = vld [vmem:[%s3 + $0x30] sm:$0xff]
    %v469 = vld [vmem:[%s3 + $0x38] sm:$0xff]
    %v470 = vld [vmem:[%s3 + $0x40] sm:$0xff]
    %v471 = vld [vmem:[%s3 + $0x48] sm:$0xff]
    %v472 = vld [vmem:[%s3 + $0x50] sm:$0xff]
    %v473 = vld [vmem:[%s3 + $0x58] sm:$0xff]
    %v474 = vld [vmem:[%s3 + $0x60] sm:$0xff]
    %v475 = vld [vmem:[%s3 + $0x68] sm:$0xff]
    %v476 = vld [vmem:[%s3 + $0x70] sm:$0xff]
    %v477 = vld [vmem:[%s3 + $0x78] sm:$0xff]
    %v478 = vld [vmem:[%s3 + $0x80] sm:$0xff]
    %v479 = vld [vmem:[%s3 + $0x88] sm:$0xff]
    %v480 = vld [vmem:[%s3 + $0x90] sm:$0xff]
    %v481 = vld [vmem:[%s3 + $0x98] sm:$0xff]
    %v482 = vld [vmem:[%s3 + $0xa0] sm:$0xff]
    %v483 = vld [vmem:[%s3 + $0xa8] sm:$0xff]
    %v484 = vld [vmem:[%s3 + $0xb0] sm:$0xff]
    %v485 = vld [vmem:[%s3 + $0xb8] sm:$0xff]
    %v486 = vld [vmem:[%s3 + $0xc0] sm:$0xff]
    %v487 = vld [vmem:[%s3 + $0xc8] sm:$0xff]
    %v488 = vld [vmem:[%s3 + $0xd0] sm:$0xff]
    %v489 = vld [vmem:[%s3 + $0xd8] sm:$0xff]
    %v490 = vld [vmem:[%s3 + $0xe0] sm:$0xff]
    %v491 = vld [vmem:[%s3 + $0xe8] sm:$0xff]
    %v492 = vld [vmem:[%s3 + $0xf0] sm:$0xff]
    %v493 = vld [vmem:[%s3 + $0xf8] sm:$0xff]
    %v494 = vld [vmem:[%s3 + $0x100] sm:$0xff]
    %v495 = vld [vmem:[%s3 + $0x108] sm:$0xff]
    %v496 = vld [vmem:[%s3 + $0x110] sm:$0xff]
    %v497 = vld [vmem:[%s3 + $0x118] sm:$0xff]
    %v498 = vld [vmem:[%s3 + $0x120] sm:$0xff]
    %v499 = vld [vmem:[%s3 + $0x128] sm:$0xff]
    %v500 = vld [vmem:[%s3 + $0x130] sm:$0xff]
    %v501 = vld [vmem:[%s3 + $0x138] sm:$0xff]
    %v502 = vld [vmem:[%s3 + $0x140] sm:$0xff]
    %v503 = vld [vmem:[%s3 + $0x148] sm:$0xff]
    %v504 = vld [vmem:[%s3 + $0x150] sm:$0xff]
    %v505 = vld [vmem:[%s3 + $0x158] sm:$0xff]
    %v506 = vld [vmem:[%s3 + $0x160] sm:$0xff]
    %v507 = vld [vmem:[%s3 + $0x168] sm:$0xff]
    %v508 = vld [vmem:[%s3 + $0x170] sm:$0xff]
    %v509 = vld [vmem:[%s3 + $0x178] sm:$0xff]
    %v510 = vld [vmem:[%s3 + $0x180] sm:$0xff]
    %v511 = vld [vmem:[%s3 + $0x188] sm:$0xff]
    %v512 = vld [vmem:[%s3 + $0x190] sm:$0xff]
    %v513 = vld [vmem:[%s3 + $0x198] sm:$0xff]
    %v514 = vld [vmem:[%s3 + $0x1a0] sm:$0xff]
    %v515 = vld [vmem:[%s3 + $0x1a8] sm:$0xff]
    %v516 = vld [vmem:[%s3 + $0x1b0] sm:$0xff]
    %v517 = vld [vmem:[%s3 + $0x1b8] sm:$0xff]
    %v518 = vld [vmem:[%s3 + $0x1c0] sm:$0xff]
    %v519 = vld [vmem:[%s3 + $0x1c8] sm:$0xff]
    %v520 = vld [vmem:[%s3 + $0x1d0] sm:$0xff]
    %v521 = vld [vmem:[%s3 + $0x1d8] sm:$0xff]
    %v522 = vld [vmem:[%s3 + $0x1e0] sm:$0xff]
    %v523 = vld [vmem:[%s3 + $0x1e8] sm:$0xff]
    %v524 = vld [vmem:[%s3 + $0x1f0] sm:$0xff]
    %v525 = vld [vmem:[%s3 + $0x1f8] sm:$0xff]
    %v526 = vld [vmem:[%s3 + $0x200] sm:$0xff]
    %v527 = vld [vmem:[%s3 + $0x208] sm:$0xff]
    %v528 = vld [vmem:[%s3 + $0x210] sm:$0xff]
    %v529 = vld [vmem:[%s3 + $0x218] sm:$0xff]
    %v530 = vld [vmem:[%s3 + $0x220] sm:$0xff]
    %v531 = vld [vmem:[%s3 + $0x228] sm:$0xff]
    %v532 = vld [vmem:[%s3 + $0x230] sm:$0xff]
    %v533 = vld [vmem:[%s3 + $0x238] sm:$0xff]
    %v534 = vld [vmem:[%s3 + $0x240] sm:$0xff]
    %v535 = vld [vmem:[%s3 + $0x248] sm:$0xff]
    %v536 = vld [vmem:[%s3 + $0x250] sm:$0xff]
    %v537 = vld [vmem:[%s3 + $0x258] sm:$0xff]
    %v538 = vld [vmem:[%s3 + $0x260] sm:$0xff]
    %v539 = vld [vmem:[%s3 + $0x268] sm:$0xff]
    %v540 = vld [vmem:[%s3 + $0x270] sm:$0xff]
    %v541 = vld [vmem:[%s3 + $0x278] sm:$0xff]
    %v542 = vld [vmem:[%s3 + $0x280] sm:$0xff]
    %v543 = vld [vmem:[%s3 + $0x288] sm:$0xff]
    %v544 = vld [vmem:[%s3 + $0x290] sm:$0xff]
    %v545 = vld [vmem:[%s3 + $0x298] sm:$0xff]
    %v546 = vld [vmem:[%s3 + $0x2a0] sm:$0xff]
    %v547 = vld [vmem:[%s3 + $0x2a8] sm:$0xff]
    %v548 = vld [vmem:[%s3 + $0x2b0] sm:$0xff]
    %v549 = vld [vmem:[%s3 + $0x2b8] sm:$0xff]
    %v550 = vld [vmem:[%s3 + $0x2c0] sm:$0xff]
    %v551 = vld [vmem:[%s3 + $0x2c8] sm:$0xff]
    %v552 = vld [vmem:[%s3 + $0x2d0] sm:$0xff]
    %v553 = vld [vmem:[%s3 + $0x2d8] sm:$0xff]
    %v554 = vld [vmem:[%s3 + $0x2e0] sm:$0xff]
    %v555 = vld [vmem:[%s3 + $0x2e8] sm:$0xff]
    %v556 = vld [vmem:[%s3 + $0x2f0] sm:$0xff]
    %v557 = vld [vmem:[%s3 + $0x2f8] sm:$0xff]
    %v558 = vld [vmem:[%s3 + $0x300] sm:$0xff]
    %v559 = vld [vmem:[%s3 + $0x308] sm:$0xff]
    %v560 = vld [vmem:[%s3 + $0x310] sm:$0xff]
    %v561 = vld [vmem:[%s3 + $0x318] sm:$0xff]
    %v562 = vld [vmem:[%s3 + $0x320] sm:$0xff]
    %v563 = vld [vmem:[%s3 + $0x328] sm:$0xff]
    %v564 = vld [vmem:[%s3 + $0x330] sm:$0xff]
    %v565 = vld [vmem:[%s3 + $0x338] sm:$0xff]
    %v566 = vld [vmem:[%s3 + $0x340] sm:$0xff]
    %v567 = vld [vmem:[%s3 + $0x348] sm:$0xff]
    %v568 = vld [vmem:[%s3 + $0x350] sm:$0xff]
    %v569 = vld [vmem:[%s3 + $0x358] sm:$0xff]
    %v570 = vld [vmem:[%s3 + $0x360] sm:$0xff]
    %v571 = vld [vmem:[%s3 + $0x368] sm:$0xff]
    %v572 = vld [vmem:[%s3 + $0x370] sm:$0xff]
    %v573 = vld [vmem:[%s3 + $0x378] sm:$0xff]
    %v574 = vld [vmem:[%s3 + $0x380] sm:$0xff]
    %v575 = vld [vmem:[%s3 + $0x388] sm:$0xff]
    %v576 = vld [vmem:[%s3 + $0x390] sm:$0xff]
    %v577 = vld [vmem:[%s3 + $0x398] sm:$0xff]
    %v578 = vld [vmem:[%s3 + $0x3a0] sm:$0xff]
    %v579 = vld [vmem:[%s3 + $0x3a8] sm:$0xff]
    %v580 = vld [vmem:[%s3 + $0x3b0] sm:$0xff]
    %v581 = vld [vmem:[%s3 + $0x3b8] sm:$0xff]
    %v582 = vld [vmem:[%s3 + $0x3c0] sm:$0xff]
    %v583 = vld [vmem:[%s3 + $0x3c8] sm:$0xff]
    %v584 = vld [vmem:[%s3 + $0x3d0] sm:$0xff]
    %v585 = vld [vmem:[%s3 + $0x3d8] sm:$0xff]
    %v586 = vld [vmem:[%s3 + $0x3e0] sm:$0xff]
    %v587 = vld [vmem:[%s3 + $0x3e8] sm:$0xff]
    %v588 = vld [vmem:[%s3 + $0x3f0] sm:$0xff]
    %v589 = vld [vmem:[%s3 + $0x3f8] sm:$0xff]
    %v590 = vld [vmem:[%s3 + $0x400] sm:$0xff]
    %v591 = vld [vmem:[%s3 + $0x408] sm:$0xff]
    %v592 = vld [vmem:[%s3 + $0x410] sm:$0xff]
    %v593 = vld [vmem:[%s3 + $0x418] sm:$0xff]
    %v594 = vld [vmem:[%s3 + $0x420] sm:$0xff]
    %v595 = vld [vmem:[%s3 + $0x428] sm:$0xff]
    %v596 = vld [vmem:[%s3 + $0x430] sm:$0xff]
    %v597 = vld [vmem:[%s3 + $0x438] sm:$0xff]
    %v598 = vld [vmem:[%s3 + $0x440] sm:$0xff]
    %v599 = vld [vmem:[%s3 + $0x448] sm:$0xff]
    %v600 = vld [vmem:[%s3 + $0x450] sm:$0xff]
    %v601 = vld [vmem:[%s3 + $0x458] sm:$0xff]
    %v602 = vld [vmem:[%s3 + $0x460] sm:$0xff]
    %v603 = vld [vmem:[%s3 + $0x468] sm:$0xff]
    %v604 = vld [vmem:[%s3 + $0x470] sm:$0xff]
    %v605 = vld [vmem:[%s3 + $0x478] sm:$0xff]
    %v606 = vld [vmem:[%s3 + $0x480] sm:$0xff]
    %v607 = vld [vmem:[%s3 + $0x488] sm:$0xff]
    %v608 = vld [vmem:[%s3 + $0x490] sm:$0xff]
    %v609 = vld [vmem:[%s3 + $0x498] sm:$0xff]
    %v610 = vld [vmem:[%s3 + $0x4a0] sm:$0xff]
    %v611 = vld [vmem:[%s3 + $0x4a8] sm:$0xff]
    %v612 = vld [vmem:[%s3 + $0x4b0] sm:$0xff]
    %v613 = vld [vmem:[%s3 + $0x4b8] sm:$0xff]
    %v614 = vld [vmem:[%s3 + $0x4c0] sm:$0xff]
    %v615 = vld [vmem:[%s3 + $0x4c8] sm:$0xff]
    %v616 = vld [vmem:[%s3 + $0x4d0] sm:$0xff]
    %v617 = vld [vmem:[%s3 + $0x4d8] sm:$0xff]
    %v618 = vld [vmem:[%s3 + $0x4e0] sm:$0xff]
    %v619 = vld [vmem:[%s3 + $0x4e8] sm:$0xff]
    %v620 = vld [vmem:[%s3 + $0x4f0] sm:$0xff]
    %v621 = vld [vmem:[%s3 + $0x4f8] sm:$0xff]
    %v622 = vld [vmem:[%s3 + $0x500] sm:$0xff]
    %v623 = vld [vmem:[%s3 + $0x508] sm:$0xff]
    %v624 = vld [vmem:[%s3 + $0x510] sm:$0xff]
    %v625 = vld [vmem:[%s3 + $0x518] sm:$0xff]
    %v626 = vld [vmem:[%s3 + $0x520] sm:$0xff]
    %v627 = vld [vmem:[%s3 + $0x528] sm:$0xff]
    %v628 = vld [vmem:[%s3 + $0x530] sm:$0xff]
    %v629 = vld [vmem:[%s3 + $0x538] sm:$0xff]
    %v630 = vld [vmem:[%s3 + $0x540] sm:$0xff]
    %v631 = vld [vmem:[%s3 + $0x548] sm:$0xff]
    %v632 = vld [vmem:[%s3 + $0x550] sm:$0xff]
    %v633 = vld [vmem:[%s3 + $0x558] sm:$0xff]
    %v634 = vld [vmem:[%s3 + $0x560] sm:$0xff]
    %v635 = vld [vmem:[%s3 + $0x568] sm:$0xff]
    %v636 = vld [vmem:[%s3 + $0x570] sm:$0xff]
    %v637 = vld [vmem:[%s3 + $0x578] sm:$0xff]
    %v638 = vld [vmem:[%s3 + $0x580] sm:$0xff]
    %v639 = vld [vmem:[%s3 + $0x588] sm:$0xff]
    %v640 = vld [vmem:[%s3 + $0x590] sm:$0xff]
    %v641 = vld [vmem:[%s3 + $0x598] sm:$0xff]
    %v642 = vld [vmem:[%s3 + $0x5a0] sm:$0xff]
    %v643 = vld [vmem:[%s3 + $0x5a8] sm:$0xff]
    %v644 = vld [vmem:[%s3 + $0x5b0] sm:$0xff]
    %v645 = vld [vmem:[%s3 + $0x5b8] sm:$0xff]
    %v646 = vld [vmem:[%s3 + $0x5c0] sm:$0xff]
    %v647 = vld [vmem:[%s3 + $0x5c8] sm:$0xff]
    %v648 = vld [vmem:[%s3 + $0x5d0] sm:$0xff]
    %v649 = vld [vmem:[%s3 + $0x5d8] sm:$0xff]
    %v650 = vld [vmem:[%s3 + $0x5e0] sm:$0xff]
    %v651 = vld [vmem:[%s3 + $0x5e8] sm:$0xff]
    %v652 = vld [vmem:[%s3 + $0x5f0] sm:$0xff]
    %v653 = vld [vmem:[%s3 + $0x5f8] sm:$0xff]
    %v654 = vld [vmem:[%s3 + $0x600] sm:$0xff]
    %v655 = vld [vmem:[%s3 + $0x608] sm:$0xff]
    %v656 = vld [vmem:[%s3 + $0x610] sm:$0xff]
    %v657 = vld [vmem:[%s3 + $0x618] sm:$0xff]
    %v658 = vld [vmem:[%s3 + $0x620] sm:$0xff]
    %v659 = vld [vmem:[%s3 + $0x628] sm:$0xff]
    %v660 = vld [vmem:[%s3 + $0x630] sm:$0xff]
    %v661 = vld [vmem:[%s3 + $0x638] sm:$0xff]
    %v662 = vld [vmem:[%s3 + $0x640] sm:$0xff]
    %v663 = vld [vmem:[%s3 + $0x648] sm:$0xff]
    %v664 = vld [vmem:[%s3 + $0x650] sm:$0xff]
    %v665 = vld [vmem:[%s3 + $0x658] sm:$0xff]
    %v666 = vld [vmem:[%s3 + $0x660] sm:$0xff]
    %v667 = vld [vmem:[%s3 + $0x668] sm:$0xff]
    %v668 = vld [vmem:[%s3 + $0x670] sm:$0xff]
    %v669 = vld [vmem:[%s3 + $0x678] sm:$0xff]
    %v670 = vld [vmem:[%s3 + $0x680] sm:$0xff]
    %v671 = vld [vmem:[%s3 + $0x688] sm:$0xff]
    %v672 = vld [vmem:[%s3 + $0x690] sm:$0xff]
    %v673 = vld [vmem:[%s3 + $0x698] sm:$0xff]
    %v674 = vld [vmem:[%s3 + $0x6a0] sm:$0xff]
    %v675 = vld [vmem:[%s3 + $0x6a8] sm:$0xff]
    %v676 = vld [vmem:[%s3 + $0x6b0] sm:$0xff]
    %v677 = vld [vmem:[%s3 + $0x6b8] sm:$0xff]
    %v678 = vld [vmem:[%s3 + $0x6c0] sm:$0xff]
    %v679 = vld [vmem:[%s3 + $0x6c8] sm:$0xff]
    %v680 = vld [vmem:[%s3 + $0x6d0] sm:$0xff]
    %v681 = vld [vmem:[%s3 + $0x6d8] sm:$0xff]
    %v682 = vld [vmem:[%s3 + $0x6e0] sm:$0xff]
    %v683 = vld [vmem:[%s3 + $0x6e8] sm:$0xff]
    %v684 = vld [vmem:[%s3 + $0x6f0] sm:$0xff]
    %v685 = vld [vmem:[%s3 + $0x6f8] sm:$0xff]
    %v686 = vld [vmem:[%s3 + $0x700] sm:$0xff]
    %v687 = vld [vmem:[%s3 + $0x708] sm:$0xff]
    %v688 = vld [vmem:[%s3 + $0x710] sm:$0xff]
    %v689 = vld [vmem:[%s3 + $0x718] sm:$0xff]
    %v690 = vld [vmem:[%s3 + $0x720] sm:$0xff]
    %v691 = vld [vmem:[%s3 + $0x728] sm:$0xff]
    %v692 = vld [vmem:[%s3 + $0x730] sm:$0xff]
    %v693 = vld [vmem:[%s3 + $0x738] sm:$0xff]
    %v694 = vld [vmem:[%s3 + $0x740] sm:$0xff]
    %v695 = vld [vmem:[%s3 + $0x748] sm:$0xff]
    %v696 = vld [vmem:[%s3 + $0x750] sm:$0xff]
    %v697 = vld [vmem:[%s3 + $0x758] sm:$0xff]
    %v698 = vld [vmem:[%s3 + $0x760] sm:$0xff]
    %v699 = vld [vmem:[%s3 + $0x768] sm:$0xff]
    %v700 = vld [vmem:[%s3 + $0x770] sm:$0xff]
    %v701 = vld [vmem:[%s3 + $0x778] sm:$0xff]
    %v702 = vld [vmem:[%s3 + $0x780] sm:$0xff]
    %v703 = vld [vmem:[%s3 + $0x788] sm:$0xff]
    %v704 = vld [vmem:[%s3 + $0x790] sm:$0xff]
    %v705 = vld [vmem:[%s3 + $0x798] sm:$0xff]
    %v706 = vld [vmem:[%s3 + $0x7a0] sm:$0xff]
    %v707 = vld [vmem:[%s3 + $0x7a8] sm:$0xff]
    %v708 = vld [vmem:[%s3 + $0x7b0] sm:$0xff]
    %v709 = vld [vmem:[%s3 + $0x7b8] sm:$0xff]
    %v710 = vld [vmem:[%s3 + $0x7c0] sm:$0xff]
    %v711 = vld [vmem:[%s3 + $0x7c8] sm:$0xff]
    %v712 = vld [vmem:[%s3 + $0x7d0] sm:$0xff]
    %v713 = vld [vmem:[%s3 + $0x7d8] sm:$0xff]
    %v714 = vld [vmem:[%s3 + $0x7e0] sm:$0xff]
    %v715 = vld [vmem:[%s3 + $0x7e8] sm:$0xff]
    %v716 = vld [vmem:[%s3 + $0x7f0] sm:$0xff]
    %v717 = vld [vmem:[%s3 + $0x7f8] sm:$0xff]
    %v718 = vld [vmem:[%s3 + $0x800] sm:$0xff]
    %v719 = vld [vmem:[%s3 + $0x808] sm:$0xff]
    %v720 = vld [vmem:[%s3 + $0x810] sm:$0xff]
    %v721 = vld [vmem:[%s3 + $0x818] sm:$0xff]
    %v722 = vld [vmem:[%s3 + $0x820] sm:$0xff]
    %v723 = vld [vmem:[%s3 + $0x828] sm:$0xff]
    %v724 = vld [vmem:[%s3 + $0x830] sm:$0xff]
    %v725 = vld [vmem:[%s3 + $0x838] sm:$0xff]
    %v726 = vld [vmem:[%s3 + $0x840] sm:$0xff]
    %v727 = vld [vmem:[%s3 + $0x848] sm:$0xff]
    %v728 = vld [vmem:[%s3 + $0x850] sm:$0xff]
    %v729 = vld [vmem:[%s3 + $0x858] sm:$0xff]
    %v730 = vld [vmem:[%s3 + $0x860] sm:$0xff]
    %v731 = vld [vmem:[%s3 + $0x868] sm:$0xff]
    %v732 = vld [vmem:[%s3 + $0x870] sm:$0xff]
    %v733 = vld [vmem:[%s3 + $0x878] sm:$0xff]
    %v734 = vld [vmem:[%s3 + $0x880] sm:$0xff]
    %v735 = vld [vmem:[%s3 + $0x888] sm:$0xff]
    %v736 = vld [vmem:[%s3 + $0x890] sm:$0xff]
    %v737 = vld [vmem:[%s3 + $0x898] sm:$0xff]
    %v738 = vld [vmem:[%s3 + $0x8a0] sm:$0xff]
    %v739 = vld [vmem:[%s3 + $0x8a8] sm:$0xff]
    %v740 = vld [vmem:[%s3 + $0x8b0] sm:$0xff]
    %v741 = vld [vmem:[%s3 + $0x8b8] sm:$0xff]
    %v742 = vld [vmem:[%s3 + $0x8c0] sm:$0xff]
    %v743 = vld [vmem:[%s3 + $0x8c8] sm:$0xff]
    %v744 = vld [vmem:[%s3 + $0x8d0] sm:$0xff]
    %v745 = vld [vmem:[%s3 + $0x8d8] sm:$0xff]
    %v746 = vld [vmem:[%s3 + $0x8e0] sm:$0xff]
    %v747 = vld [vmem:[%s3 + $0x8e8] sm:$0xff]
    %v748 = vld [vmem:[%s3 + $0x8f0] sm:$0xff]
    %v749 = vld [vmem:[%s3 + $0x8f8] sm:$0xff]
    %v750 = vld [vmem:[%s3 + $0x900] sm:$0xff]
    %v751 = vld [vmem:[%s3 + $0x908] sm:$0xff]
    %v752 = vld [vmem:[%s3 + $0x910] sm:$0xff]
    %v753 = vld [vmem:[%s3 + $0x918] sm:$0xff]
    %v754 = vld [vmem:[%s3 + $0x920] sm:$0xff]
    %v755 = vld [vmem:[%s3 + $0x928] sm:$0xff]
    %v756 = vld [vmem:[%s3 + $0x930] sm:$0xff]
    %v757 = vld [vmem:[%s3 + $0x938] sm:$0xff]
    %v758 = vld [vmem:[%s3 + $0x940] sm:$0xff]
    %v759 = vld [vmem:[%s3 + $0x948] sm:$0xff]
    %v760 = vld [vmem:[%s3 + $0x950] sm:$0xff]
    %v761 = vld [vmem:[%s3 + $0x958] sm:$0xff]
    %v762 = vld [vmem:[%s3 + $0x960] sm:$0xff]
    %v763 = vld [vmem:[%s3 + $0x968] sm:$0xff]
    %v764 = vld [vmem:[%s3 + $0x970] sm:$0xff]
    %v765 = vld [vmem:[%s3 + $0x978] sm:$0xff]
    %v766 = vld [vmem:[%s3 + $0x980] sm:$0xff]
    %v767 = vld [vmem:[%s3 + $0x988] sm:$0xff]
    %v768 = vld [vmem:[%s3 + $0x990] sm:$0xff]
    %v769 = vld [vmem:[%s3 + $0x998] sm:$0xff]
    %v770 = vld [vmem:[%s3 + $0x9a0] sm:$0xff]
    %v771 = vld [vmem:[%s3 + $0x9a8] sm:$0xff]
    %v772 = vld [vmem:[%s3 + $0x9b0] sm:$0xff]
    %v773 = vld [vmem:[%s3 + $0x9b8] sm:$0xff]
    %v774 = vld [vmem:[%s3 + $0x9c0] sm:$0xff]
    %v775 = vld [vmem:[%s3 + $0x9c8] sm:$0xff]
    %v776 = vld [vmem:[%s3 + $0x9d0] sm:$0xff]
    %v777 = vld [vmem:[%s3 + $0x9d8] sm:$0xff]
    %v778 = vld [vmem:[%s3 + $0x9e0] sm:$0xff]
    %v779 = vld [vmem:[%s3 + $0x9e8] sm:$0xff]
    %v780 = vld [vmem:[%s3 + $0x9f0] sm:$0xff]
    %v781 = vld [vmem:[%s3 + $0x9f8] sm:$0xff]
    %v782 = vld [vmem:[%s3 + $0xa00] sm:$0xff]
    %v783 = vld [vmem:[%s3 + $0xa08] sm:$0xff]
    %v784 = vld [vmem:[%s3 + $0xa10] sm:$0xff]
    %v785 = vld [vmem:[%s3 + $0xa18] sm:$0xff]
    %v786 = vld [vmem:[%s3 + $0xa20] sm:$0xff]
    %v787 = vld [vmem:[%s3 + $0xa28] sm:$0xff]
    %v788 = vld [vmem:[%s3 + $0xa30] sm:$0xff]
    %v789 = vld [vmem:[%s3 + $0xa38] sm:$0xff]
    %v790 = vld [vmem:[%s3 + $0xa40] sm:$0xff]
    %v791 = vld [vmem:[%s3 + $0xa48] sm:$0xff]
    %v792 = vld [vmem:[%s3 + $0xa50] sm:$0xff]
    %v793 = vld [vmem:[%s3 + $0xa58] sm:$0xff]
    %v794 = vld [vmem:[%s3 + $0xa60] sm:$0xff]
    %v795 = vld [vmem:[%s3 + $0xa68] sm:$0xff]
    %v796 = vld [vmem:[%s3 + $0xa70] sm:$0xff]
    %v797 = vld [vmem:[%s3 + $0xa78] sm:$0xff]
    %v798 = vld [vmem:[%s3 + $0xa80] sm:$0xff]
    %v799 = vld [vmem:[%s3 + $0xa88] sm:$0xff]
    %v800 = vld [vmem:[%s3 + $0xa90] sm:$0xff]
    %v801 = vld [vmem:[%s3 + $0xa98] sm:$0xff]
    %v802 = vld [vmem:[%s3 + $0xaa0] sm:$0xff]
    %v803 = vld [vmem:[%s3 + $0xaa8] sm:$0xff]
    %v804 = vld [vmem:[%s3 + $0xab0] sm:$0xff]
    %v805 = vld [vmem:[%s3 + $0xab8] sm:$0xff]
    %v806 = vld [vmem:[%s3 + $0xac0] sm:$0xff]
    %v807 = vld [vmem:[%s3 + $0xac8] sm:$0xff]
    %v808 = vld [vmem:[%s3 + $0xad0] sm:$0xff]
    %v809 = vld [vmem:[%s3 + $0xad8] sm:$0xff]
    %v810 = vld [vmem:[%s3 + $0xae0] sm:$0xff]
    %v811 = vld [vmem:[%s3 + $0xae8] sm:$0xff]
    %v812 = vld [vmem:[%s3 + $0xaf0] sm:$0xff]
    %v813 = vld [vmem:[%s3 + $0xaf8] sm:$0xff]
    %v814 = vld [vmem:[%s3 + $0xb00] sm:$0xff]
    %v815 = vld [vmem:[%s3 + $0xb08] sm:$0xff]
    %v816 = vld [vmem:[%s3 + $0xb10] sm:$0xff]
    %v817 = vld [vmem:[%s3 + $0xb18] sm:$0xff]
    %v818 = vld [vmem:[%s3 + $0xb20] sm:$0xff]
    %v819 = vld [vmem:[%s3 + $0xb28] sm:$0xff]
    %v820 = vld [vmem:[%s3 + $0xb30] sm:$0xff]
    %v821 = vld [vmem:[%s3 + $0xb38] sm:$0xff]
    %v822 = vld [vmem:[%s3 + $0xb40] sm:$0xff]
    %v823 = vld [vmem:[%s3 + $0xb48] sm:$0xff]
    %v824 = vld [vmem:[%s3 + $0xb50] sm:$0xff]
    %v825 = vld [vmem:[%s3 + $0xb58] sm:$0xff]
    %v826 = vld [vmem:[%s3 + $0xb60] sm:$0xff]
    %v827 = vld [vmem:[%s3 + $0xb68] sm:$0xff]
    %v828 = vld [vmem:[%s3 + $0xb70] sm:$0xff]
    %v829 = vld [vmem:[%s3 + $0xb78] sm:$0xff]
    %v830 = vld [vmem:[%s3 + $0xb80] sm:$0xff]
    %v831 = vld [vmem:[%s3 + $0xb88] sm:$0xff]
    %v832 = vld [vmem:[%s3 + $0xb90] sm:$0xff]
    %v833 = vld [vmem:[%s3 + $0xb98] sm:$0xff]
    %v834 = vld [vmem:[%s3 + $0xba0] sm:$0xff]
    %v835 = vld [vmem:[%s3 + $0xba8] sm:$0xff]
    %v836 = vld [vmem:[%s3 + $0xbb0] sm:$0xff]
    %v837 = vld [vmem:[%s3 + $0xbb8] sm:$0xff]
    %v838 = vld [vmem:[%s3 + $0xbc0] sm:$0xff]
    %v839 = vld [vmem:[%s3 + $0xbc8] sm:$0xff]
    %v840 = vld [vmem:[%s3 + $0xbd0] sm:$0xff]
    %v841 = vld [vmem:[%s3 + $0xbd8] sm:$0xff]
    %v842 = vld [vmem:[%s3 + $0xbe0] sm:$0xff]
    %v843 = vld [vmem:[%s3 + $0xbe8] sm:$0xff]
    %v844 = vld [vmem:[%s3 + $0xbf0] sm:$0xff]
    %v845 = vld [vmem:[%s3 + $0xbf8] sm:$0xff]
    %v846 = vld [vmem:[%s3 + $0xc00] sm:$0xff]
    %v847 = vld [vmem:[%s3 + $0xc08] sm:$0xff]
    %v848 = vld [vmem:[%s3 + $0xc10] sm:$0xff]
    %v849 = vld [vmem:[%s3 + $0xc18] sm:$0xff]
    %v850 = vld [vmem:[%s3 + $0xc20] sm:$0xff]
    %v851 = vld [vmem:[%s3 + $0xc28] sm:$0xff]
    %v852 = vld [vmem:[%s3 + $0xc30] sm:$0xff]
    %v853 = vld [vmem:[%s3 + $0xc38] sm:$0xff]
    %v854 = vld [vmem:[%s3 + $0xc40] sm:$0xff]
    %v855 = vld [vmem:[%s3 + $0xc48] sm:$0xff]
    %v856 = vld [vmem:[%s3 + $0xc50] sm:$0xff]
    %v857 = vld [vmem:[%s3 + $0xc58] sm:$0xff]
    %v858 = vld [vmem:[%s3 + $0xc60] sm:$0xff]
    %v859 = vld [vmem:[%s3 + $0xc68] sm:$0xff]
    %v860 = vld [vmem:[%s3 + $0xc70] sm:$0xff]
    %v861 = vld [vmem:[%s3 + $0xc78] sm:$0xff]
    %v862 = vld [vmem:[%s3 + $0xc80] sm:$0xff]
    %v863 = vld [vmem:[%s3 + $0xc88] sm:$0xff]
    %v864 = vld [vmem:[%s3 + $0xc90] sm:$0xff]
    %v865 = vld [vmem:[%s3 + $0xc98] sm:$0xff]
    %v866 = vld [vmem:[%s3 + $0xca0] sm:$0xff]
    %v867 = vld [vmem:[%s3 + $0xca8] sm:$0xff]
    %v868 = vld [vmem:[%s3 + $0xcb0] sm:$0xff]
    %v869 = vld [vmem:[%s3 + $0xcb8] sm:$0xff]
    %v870 = vld [vmem:[%s3 + $0xcc0] sm:$0xff]
    %v871 = vld [vmem:[%s3 + $0xcc8] sm:$0xff]
    %v872 = vld [vmem:[%s3 + $0xcd0] sm:$0xff]
    %v873 = vld [vmem:[%s3 + $0xcd8] sm:$0xff]
    %v874 = vld [vmem:[%s3 + $0xce0] sm:$0xff]
    %v875 = vld [vmem:[%s3 + $0xce8] sm:$0xff]
    %v876 = vld [vmem:[%s3 + $0xcf0] sm:$0xff]
    %v877 = vld [vmem:[%s3 + $0xcf8] sm:$0xff]
    %v878 = vld [vmem:[%s3 + $0xd00] sm:$0xff]
    %v879 = vld [vmem:[%s3 + $0xd08] sm:$0xff]
    %v880 = vld [vmem:[%s3 + $0xd10] sm:$0xff]
    %v881 = vld [vmem:[%s3 + $0xd18] sm:$0xff]
    %v882 = vld [vmem:[%s3 + $0xd20] sm:$0xff]
    %v883 = vld [vmem:[%s3 + $0xd28] sm:$0xff]
    %v884 = vld [vmem:[%s3 + $0xd30] sm:$0xff]
    %v885 = vld [vmem:[%s3 + $0xd38] sm:$0xff]
    %v886 = vld [vmem:[%s3 + $0xd40] sm:$0xff]
    %v887 = vld [vmem:[%s3 + $0xd48] sm:$0xff]
    %v888 = vld [vmem:[%s3 + $0xd50] sm:$0xff]
    %v889 = vld [vmem:[%s3 + $0xd58] sm:$0xff]
    %v890 = vld [vmem:[%s3 + $0xd60] sm:$0xff]
    %v891 = vld [vmem:[%s3 + $0xd68] sm:$0xff]
    %v892 = vld [vmem:[%s3 + $0xd70] sm:$0xff]
    %v893 = vld [vmem:[%s3 + $0xd78] sm:$0xff]
    %v894 = vld [vmem:[%s3 + $0xd80] sm:$0xff]
    %v895 = vld [vmem:[%s3 + $0xd88] sm:$0xff]
    %v896 = vld [vmem:[%s3 + $0xd90] sm:$0xff]
    %v897 = vld [vmem:[%s3 + $0xd98] sm:$0xff]
    %v898 = vld [vmem:[%s3 + $0xda0] sm:$0xff]
    %v899 = vld [vmem:[%s3 + $0xda8] sm:$0xff]
    %v900 = vld [vmem:[%s3 + $0xdb0] sm:$0xff]
    %v901 = vld [vmem:[%s3 + $0xdb8] sm:$0xff]
    %v902 = vld [vmem:[%s3 + $0xdc0] sm:$0xff]
    %v903 = vld [vmem:[%s3 + $0xdc8] sm:$0xff]
    %v904 = vld [vmem:[%s3 + $0xdd0] sm:$0xff]
    %v905 = vld [vmem:[%s3 + $0xdd8] sm:$0xff]
    %v906 = vld [vmem:[%s3 + $0xde0] sm:$0xff]
    %v907 = vld [vmem:[%s3 + $0xde8] sm:$0xff]
    %v908 = vld [vmem:[%s3 + $0xdf0] sm:$0xff]
    %v909 = vld [vmem:[%s3 + $0xdf8] sm:$0xff]
    %v910 = vld [vmem:[%s3 + $0xe00] sm:$0xff]
    %v911 = vld [vmem:[%s3 + $0xe08] sm:$0xff]
    %v912 = vld [vmem:[%s3 + $0xe10] sm:$0xff]
    %v913 = vld [vmem:[%s3 + $0xe18] sm:$0xff]
    %v914 = vld [vmem:[%s3 + $0xe20] sm:$0xff]
    %v915 = vld [vmem:[%s3 + $0xe28] sm:$0xff]
    %v916 = vld [vmem:[%s3 + $0xe30] sm:$0xff]
    %v917 = vld [vmem:[%s3 + $0xe38] sm:$0xff]
    %v918 = vld [vmem:[%s3 + $0xe40] sm:$0xff]
    %v919 = vld [vmem:[%s3 + $0xe48] sm:$0xff]
    %v920 = vld [vmem:[%s3 + $0xe50] sm:$0xff]
    %v921 = vld [vmem:[%s3 + $0xe58] sm:$0xff]
    %v922 = vld [vmem:[%s3 + $0xe60] sm:$0xff]
    %v923 = vld [vmem:[%s3 + $0xe68] sm:$0xff]
    %v924 = vld [vmem:[%s3 + $0xe70] sm:$0xff]
    %v925 = vld [vmem:[%s3 + $0xe78] sm:$0xff]
    %v926 = vld [vmem:[%s3 + $0xe80] sm:$0xff]
    %v927 = vld [vmem:[%s3 + $0xe88] sm:$0xff]
    %v928 = vld [vmem:[%s3 + $0xe90] sm:$0xff]
    %v929 = vld [vmem:[%s3 + $0xe98] sm:$0xff]
    %v930 = vld [vmem:[%s3 + $0xea0] sm:$0xff]
    %v931 = vld [vmem:[%s3 + $0xea8] sm:$0xff]
    %v932 = vld [vmem:[%s3 + $0xeb0] sm:$0xff]
    %v933 = vld [vmem:[%s3 + $0xeb8] sm:$0xff]
    %v934 = vld [vmem:[%s3 + $0xec0] sm:$0xff]
    %v935 = vld [vmem:[%s3 + $0xec8] sm:$0xff]
    %v936 = vld [vmem:[%s3 + $0xed0] sm:$0xff]
    %v937 = vld [vmem:[%s3 + $0xed8] sm:$0xff]
    %v938 = vld [vmem:[%s3 + $0xee0] sm:$0xff]
    %v939 = vld [vmem:[%s3 + $0xee8] sm:$0xff]
    %v940 = vld [vmem:[%s3 + $0xef0] sm:$0xff]
    %v941 = vld [vmem:[%s3 + $0xef8] sm:$0xff]
    %v942 = vld [vmem:[%s3 + $0xf00] sm:$0xff]
    %v943 = vld [vmem:[%s3 + $0xf08] sm:$0xff]
    %v944 = vld [vmem:[%s3 + $0xf10] sm:$0xff]
    %v945 = vld [vmem:[%s3 + $0xf18] sm:$0xff]
    %v946 = vld [vmem:[%s3 + $0xf20] sm:$0xff]
    %v947 = vld [vmem:[%s3 + $0xf28] sm:$0xff]
    %v948 = vld [vmem:[%s3 + $0xf30] sm:$0xff]
    %v949 = vld [vmem:[%s3 + $0xf38] sm:$0xff]
    %v950 = vld [vmem:[%s3 + $0xf40] sm:$0xff]
    %v951 = vld [vmem:[%s3 + $0xf48] sm:$0xff]
    %v952 = vld [vmem:[%s3 + $0xf50] sm:$0xff]
    %v953 = vld [vmem:[%s3 + $0xf58] sm:$0xff]
    %v954 = vld [vmem:[%s3 + $0xf60] sm:$0xff]
    %v955 = vld [vmem:[%s3 + $0xf68] sm:$0xff]
    %v956 = vld [vmem:[%s3 + $0xf70] sm:$0xff]
    %v957 = vld [vmem:[%s3 + $0xf78] sm:$0xff]
    %v958 = vld [vmem:[%s3 + $0xf80] sm:$0xff]
    %v959 = vld [vmem:[%s3 + $0xf88] sm:$0xff]
    %v960 = vld [vmem:[%s3 + $0xf90] sm:$0xff]
    %v961 = vld [vmem:[%s3 + $0xf98] sm:$0xff]
    %v962 = vld [vmem:[%s3 + $0xfa0] sm:$0xff]
    %v963 = vld [vmem:[%s3 + $0xfa8] sm:$0xff]
    %v964 = vld [vmem:[%s3 + $0xfb0] sm:$0xff]
    %v965 = vld [vmem:[%s3 + $0xfb8] sm:$0xff]
    %v966 = vld [vmem:[%s3 + $0xfc0] sm:$0xff]
    %v967 = vld [vmem:[%s3 + $0xfc8] sm:$0xff]
    %v968 = vld [vmem:[%s3 + $0xfd0] sm:$0xff]
    %v969 = vld [vmem:[%s3 + $0xfd8] sm:$0xff]
    %v970 = vld [vmem:[%s3 + $0xfe0] sm:$0xff]
    %v971 = vld [vmem:[%s3 + $0xfe8] sm:$0xff]
    %v972 = vld [vmem:[%s3 + $0xff0] sm:$0xff]
    %v973 = vld [vmem:[%s3 + $0xff8] sm:$0xff]
    %v974 = vld [vmem:[%s3 + $0x1000] sm:$0xff]
    %v975 = vld [vmem:[%s3 + $0x1008] sm:$0xff]
    %v976 = vld [vmem:[%s3 + $0x1010] sm:$0xff]
    %v977 = vld [vmem:[%s3 + $0x1018] sm:$0xff]
    %v978 = vld [vmem:[%s3 + $0x1020] sm:$0xff]
    %v979 = vld [vmem:[%s3 + $0x1028] sm:$0xff]
    %v980 = vld [vmem:[%s3 + $0x1030] sm:$0xff]
    %v981 = vld [vmem:[%s3 + $0x1038] sm:$0xff]
    %v982 = vld [vmem:[%s3 + $0x1040] sm:$0xff]
    %v983 = vld [vmem:[%s3 + $0x1048] sm:$0xff]
    %v984 = vld [vmem:[%s3 + $0x1050] sm:$0xff]
    %v985 = vld [vmem:[%s3 + $0x1058] sm:$0xff]
    %v986 = vld [vmem:[%s3 + $0x1060] sm:$0xff]
    %v987 = vld [vmem:[%s3 + $0x1068] sm:$0xff]
    %v988 = vld [vmem:[%s3 + $0x1070] sm:$0xff]
    %v989 = vld [vmem:[%s3 + $0x1078] sm:$0xff]
    %v990 = vld [vmem:[%s3 + $0x1080] sm:$0xff]
    %v991 = vld [vmem:[%s3 + $0x1088] sm:$0xff]
    %v992 = vld [vmem:[%s3 + $0x1090] sm:$0xff]
    %v993 = vld [vmem:[%s3 + $0x1098] sm:$0xff]
    %v994 = vld [vmem:[%s3 + $0x10a0] sm:$0xff]
    %v995 = vld [vmem:[%s3 + $0x10a8] sm:$0xff]
    %v996 = vld [vmem:[%s3 + $0x10b0] sm:$0xff]
    %v997 = vld [vmem:[%s3 + $0x10b8] sm:$0xff]
    %v998 = vld [vmem:[%s3 + $0x10c0] sm:$0xff]
    %v999 = vld [vmem:[%s3 + $0x10c8] sm:$0xff]
    %v1000 = vld [vmem:[%s3 + $0x10d0] sm:$0xff]
    %v1001 = vld [vmem:[%s3 + $0x10d8] sm:$0xff]
    %v1002 = vld [vmem:[%s3 + $0x10e0] sm:$0xff]
    %v1003 = vld [vmem:[%s3 + $0x10e8] sm:$0xff]
    %v1004 = vld [vmem:[%s3 + $0x10f0] sm:$0xff]
    %v1005 = vld [vmem:[%s3 + $0x10f8] sm:$0xff]
    %v1006 = vld [vmem:[%s3 + $0x1100] sm:$0xff]
    %v1007 = vld [vmem:[%s3 + $0x1108] sm:$0xff]
    %v1008 = vld [vmem:[%s3 + $0x1110] sm:$0xff]
    %v1009 = vld [vmem:[%s3 + $0x1118] sm:$0xff]
    %v1010 = vld [vmem:[%s3 + $0x1120] sm:$0xff]
    %v1011 = vld [vmem:[%s3 + $0x1128] sm:$0xff]
    %v1012 = vld [vmem:[%s3 + $0x1130] sm:$0xff]
    %v1013 = vld [vmem:[%s3 + $0x1138] sm:$0xff]
    %v1014 = vld [vmem:[%s3 + $0x1140] sm:$0xff]
    %v1015 = vld [vmem:[%s3 + $0x1148] sm:$0xff]
    %v1016 = vld [vmem:[%s3 + $0x1150] sm:$0xff]
    %v1017 = vld [vmem:[%s3 + $0x1158] sm:$0xff]
    %v1018 = vld [vmem:[%s3 + $0x1160] sm:$0xff]
    %v1019 = vld [vmem:[%s3 + $0x1168] sm:$0xff]
    %v1020 = vld [vmem:[%s3 + $0x1170] sm:$0xff]
    %v1021 = vld [vmem:[%s3 + $0x1178] sm:$0xff]
    %v1022 = vld [vmem:[%s3 + $0x1180] sm:$0xff]
    %v1023 = vld [vmem:[%s3 + $0x1188] sm:$0xff]
    %v1024 = vld [vmem:[%s3 + $0x1190] sm:$0xff]
    %v1025 = vld [vmem:[%s3 + $0x1198] sm:$0xff]
    %v1026 = vld [vmem:[%s3 + $0x11a0] sm:$0xff]
    %v1027 = vld [vmem:[%s3 + $0x11a8] sm:$0xff]
    %v1028 = vld [vmem:[%s3 + $0x11b0] sm:$0xff]
    %v1029 = vld [vmem:[%s3 + $0x11b8] sm:$0xff]
    %v1030 = vld [vmem:[%s3 + $0x11c0] sm:$0xff]
    %v1031 = vld [vmem:[%s3 + $0x11c8] sm:$0xff]
    %v1032 = vld [vmem:[%s3 + $0x11d0] sm:$0xff]
    %v1033 = vld [vmem:[%s3 + $0x11d8] sm:$0xff]
    %v1034 = vld [vmem:[%s3 + $0x11e0] sm:$0xff]
    %v1035 = vld [vmem:[%s3 + $0x11e8] sm:$0xff]
    %v1036 = vld [vmem:[%s3 + $0x11f0] sm:$0xff]
    %v1037 = vld [vmem:[%s3 + $0x11f8] sm:$0xff]
    %v1038 = vld [vmem:[%s3 + $0x1200] sm:$0xff]
    %v1039 = vld [vmem:[%s3 + $0x1208] sm:$0xff]
    %v1040 = vld [vmem:[%s3 + $0x1210] sm:$0xff]
    %v1041 = vld [vmem:[%s3 + $0x1218] sm:$0xff]
    %v1042 = vld [vmem:[%s3 + $0x1220] sm:$0xff]
    %v1043 = vld [vmem:[%s3 + $0x1228] sm:$0xff]
    %v1044 = vld [vmem:[%s3 + $0x1230] sm:$0xff]
    %v1045 = vld [vmem:[%s3 + $0x1238] sm:$0xff]
    %v1046 = vld [vmem:[%s3 + $0x1240] sm:$0xff]
    %v1047 = vld [vmem:[%s3 + $0x1248] sm:$0xff]
    %v1048 = vld [vmem:[%s3 + $0x1250] sm:$0xff]
    %v1049 = vld [vmem:[%s3 + $0x1258] sm:$0xff]
    %v1050 = vld [vmem:[%s3 + $0x1260] sm:$0xff]
    %v1051 = vld [vmem:[%s3 + $0x1268] sm:$0xff]
    %v1052 = vld [vmem:[%s3 + $0x1270] sm:$0xff]
    %v1053 = vld [vmem:[%s3 + $0x1278] sm:$0xff]
    %v1054 = vld [vmem:[%s3 + $0x1280] sm:$0xff]
    %v1055 = vld [vmem:[%s3 + $0x1288] sm:$0xff]
    %v1056 = vld [vmem:[%s3 + $0x1290] sm:$0xff]
    %v1057 = vld [vmem:[%s3 + $0x1298] sm:$0xff]
    %v1058 = vld [vmem:[%s3 + $0x12a0] sm:$0xff]
    %v1059 = vld [vmem:[%s3 + $0x12a8] sm:$0xff]
    %v1060 = vld [vmem:[%s3 + $0x12b0] sm:$0xff]
    %v1061 = vld [vmem:[%s3 + $0x12b8] sm:$0xff]
    %v1062 = vld [vmem:[%s3 + $0x12c0] sm:$0xff]
    %v1063 = vld [vmem:[%s3 + $0x12c8] sm:$0xff]
    %v1064 = vld [vmem:[%s3 + $0x12d0] sm:$0xff]
    %v1065 = vld [vmem:[%s3 + $0x12d8] sm:$0xff]
    %v1066 = vld [vmem:[%s3 + $0x12e0] sm:$0xff]
    %v1067 = vld [vmem:[%s3 + $0x12e8] sm:$0xff]
    %v1068 = vld [vmem:[%s3 + $0x12f0] sm:$0xff]
    %v1069 = vld [vmem:[%s3 + $0x12f8] sm:$0xff]
    %v1070 = vld [vmem:[%s3 + $0x1300] sm:$0xff]
    %v1071 = vld [vmem:[%s3 + $0x1308] sm:$0xff]
    %v1072 = vld [vmem:[%s3 + $0x1310] sm:$0xff]
    %v1073 = vld [vmem:[%s3 + $0x1318] sm:$0xff]
    %v1074 = vld [vmem:[%s3 + $0x1320] sm:$0xff]
    %v1075 = vld [vmem:[%s3 + $0x1328] sm:$0xff]
    %v1076 = vld [vmem:[%s3 + $0x1330] sm:$0xff]
    %v1077 = vld [vmem:[%s3 + $0x1338] sm:$0xff]
    %v1078 = vld [vmem:[%s3 + $0x1340] sm:$0xff]
    %v1079 = vld [vmem:[%s3 + $0x1348] sm:$0xff]
    %v1080 = vld [vmem:[%s3 + $0x1350] sm:$0xff]
    %v1081 = vld [vmem:[%s3 + $0x1358] sm:$0xff]
    %v1082 = vld [vmem:[%s3 + $0x1360] sm:$0xff]
    %v1083 = vld [vmem:[%s3 + $0x1368] sm:$0xff]
    %v1084 = vld [vmem:[%s3 + $0x1370] sm:$0xff]
    %v1085 = vld [vmem:[%s3 + $0x1378] sm:$0xff]
    %v1086 = vld [vmem:[%s3 + $0x1380] sm:$0xff]
    %v1087 = vld [vmem:[%s3 + $0x1388] sm:$0xff]
    %v1088 = vld [vmem:[%s3 + $0x1390] sm:$0xff]
    %v1089 = vld [vmem:[%s3 + $0x1398] sm:$0xff]
    %v1090 = vld [vmem:[%s3 + $0x13a0] sm:$0xff]
    %v1091 = vld [vmem:[%s3 + $0x13a8] sm:$0xff]
    %v1092 = vld [vmem:[%s3 + $0x13b0] sm:$0xff]
    %v1093 = vld [vmem:[%s3 + $0x13b8] sm:$0xff]
    %v1094 = vld [vmem:[%s3 + $0x13c0] sm:$0xff]
    %v1095 = vld [vmem:[%s3 + $0x13c8] sm:$0xff]
    %v1096 = vld [vmem:[%s3 + $0x13d0] sm:$0xff]
    %v1097 = vld [vmem:[%s3 + $0x13d8] sm:$0xff]
    %v1098 = vld [vmem:[%s3 + $0x13e0] sm:$0xff]
    %v1099 = vld [vmem:[%s3 + $0x13e8] sm:$0xff]
    %v1100 = vld [vmem:[%s3 + $0x13f0] sm:$0xff]
    %v1101 = vld [vmem:[%s3 + $0x13f8] sm:$0xff]
    %v1102 = vld [vmem:[%s3 + $0x1400] sm:$0xff]
    %v1103 = vld [vmem:[%s3 + $0x1408] sm:$0xff]
    %v1104 = vld [vmem:[%s3 + $0x1410] sm:$0xff]
    %v1105 = vld [vmem:[%s3 + $0x1418] sm:$0xff]
    %v1106 = vld [vmem:[%s3 + $0x1420] sm:$0xff]
    %v1107 = vld [vmem:[%s3 + $0x1428] sm:$0xff]
    %v1108 = vld [vmem:[%s3 + $0x1430] sm:$0xff]
    %v1109 = vld [vmem:[%s3 + $0x1438] sm:$0xff]
    %v1110 = vld [vmem:[%s3 + $0x1440] sm:$0xff]
    %v1111 = vld [vmem:[%s3 + $0x1448] sm:$0xff]
    %v1112 = vld [vmem:[%s3 + $0x1450] sm:$0xff]
    %v1113 = vld [vmem:[%s3 + $0x1458] sm:$0xff]
    %v1114 = vld [vmem:[%s3 + $0x1460] sm:$0xff]
    %v1115 = vld [vmem:[%s3 + $0x1468] sm:$0xff]
    %v1116 = vld [vmem:[%s3 + $0x1470] sm:$0xff]
    %v1117 = vld [vmem:[%s3 + $0x1478] sm:$0xff]
    %v1118 = vld [vmem:[%s3 + $0x1480] sm:$0xff]
    %v1119 = vld [vmem:[%s3 + $0x1488] sm:$0xff]
    %v1120 = vld [vmem:[%s3 + $0x1490] sm:$0xff]
    %v1121 = vld [vmem:[%s3 + $0x1498] sm:$0xff]
    %v1122 = vld [vmem:[%s3 + $0x14a0] sm:$0xff]
    %v1123 = vld [vmem:[%s3 + $0x14a8] sm:$0xff]
    %v1124 = vld [vmem:[%s3 + $0x14b0] sm:$0xff]
    %v1125 = vld [vmem:[%s3 + $0x14b8] sm:$0xff]
    %v1126 = vld [vmem:[%s3 + $0x14c0] sm:$0xff]
    %v1127 = vld [vmem:[%s3 + $0x14c8] sm:$0xff]
    %v1128 = vld [vmem:[%s3 + $0x14d0] sm:$0xff]
    %v1129 = vld [vmem:[%s3 + $0x14d8] sm:$0xff]
    %v1130 = vld [vmem:[%s3 + $0x14e0] sm:$0xff]
    %v1131 = vld [vmem:[%s3 + $0x14e8] sm:$0xff]
    %v1132 = vld [vmem:[%s3 + $0x14f0] sm:$0xff]
    %v1133 = vld [vmem:[%s3 + $0x14f8] sm:$0xff]
    %v1134 = vld [vmem:[%s3 + $0x1500] sm:$0xff]
    %v1135 = vld [vmem:[%s3 + $0x1508] sm:$0xff]
    %v1136 = vld [vmem:[%s3 + $0x1510] sm:$0xff]
    %v1137 = vld [vmem:[%s3 + $0x1518] sm:$0xff]
    %v1138 = vld [vmem:[%s3 + $0x1520] sm:$0xff]
    %v1139 = vld [vmem:[%s3 + $0x1528] sm:$0xff]
    %v1140 = vld [vmem:[%s3 + $0x1530] sm:$0xff]
    %v1141 = vld [vmem:[%s3 + $0x1538] sm:$0xff]
    %v1142 = vld [vmem:[%s3 + $0x1540] sm:$0xff]
    %v1143 = vld [vmem:[%s3 + $0x1548] sm:$0xff]
    %v1144 = vld [vmem:[%s3 + $0x1550] sm:$0xff]
    %v1145 = vld [vmem:[%s3 + $0x1558] sm:$0xff]
    %v1146 = vld [vmem:[%s3 + $0x1560] sm:$0xff]
    %v1147 = vld [vmem:[%s3 + $0x1568] sm:$0xff]
    %v1148 = vld [vmem:[%s3 + $0x1570] sm:$0xff]
    %v1149 = vld [vmem:[%s3 + $0x1578] sm:$0xff]
    %v1150 = vld [vmem:[%s3 + $0x1580] sm:$0xff]
    %v1151 = vld [vmem:[%s3 + $0x1588] sm:$0xff]
    %v1152 = vld [vmem:[%s3 + $0x1590] sm:$0xff]
    %v1153 = vld [vmem:[%s3 + $0x1598] sm:$0xff]
    %v1154 = vld [vmem:[%s3 + $0x15a0] sm:$0xff]
    %v1155 = vld [vmem:[%s3 + $0x15a8] sm:$0xff]
    %v1156 = vld [vmem:[%s3 + $0x15b0] sm:$0xff]
    %v1157 = vld [vmem:[%s3 + $0x15b8] sm:$0xff]
    %v1158 = vld [vmem:[%s3 + $0x15c0] sm:$0xff]
    %v1159 = vld [vmem:[%s3 + $0x15c8] sm:$0xff]
    %v1160 = vld [vmem:[%s3 + $0x15d0] sm:$0xff]
    %v1161 = vld [vmem:[%s3 + $0x15d8] sm:$0xff]
    %v1162 = vld [vmem:[%s3 + $0x15e0] sm:$0xff]
    %v1163 = vld [vmem:[%s3 + $0x15e8] sm:$0xff]
    %v1164 = vld [vmem:[%s3 + $0x15f0] sm:$0xff]
    %v1165 = vld [vmem:[%s3 + $0x15f8] sm:$0xff]
    %v1166 = vld [vmem:[%s3 + $0x1600] sm:$0xff]
    %v1167 = vld [vmem:[%s3 + $0x1608] sm:$0xff]
    %v1168 = vld [vmem:[%s3 + $0x1610] sm:$0xff]
    %v1169 = vld [vmem:[%s3 + $0x1618] sm:$0xff]
    %v1170 = vld [vmem:[%s3 + $0x1620] sm:$0xff]
    %v1171 = vld [vmem:[%s3 + $0x1628] sm:$0xff]
    %v1172 = vld [vmem:[%s3 + $0x1630] sm:$0xff]
    %v1173 = vld [vmem:[%s3 + $0x1638] sm:$0xff]
    %v1174 = vld [vmem:[%s3 + $0x1640] sm:$0xff]
    %v1175 = vld [vmem:[%s3 + $0x1648] sm:$0xff]
    %v1176 = vld [vmem:[%s3 + $0x1650] sm:$0xff]
    %v1177 = vld [vmem:[%s3 + $0x1658] sm:$0xff]
    %v1178 = vld [vmem:[%s3 + $0x1660] sm:$0xff]
    %v1179 = vld [vmem:[%s3 + $0x1668] sm:$0xff]
    %v1180 = vld [vmem:[%s3 + $0x1670] sm:$0xff]
    %v1181 = vld [vmem:[%s3 + $0x1678] sm:$0xff]
    %v1182 = vld [vmem:[%s3 + $0x1680] sm:$0xff]
    %v1183 = vld [vmem:[%s3 + $0x1688] sm:$0xff]
    %v1184 = vld [vmem:[%s3 + $0x1690] sm:$0xff]
    %v1185 = vld [vmem:[%s3 + $0x1698] sm:$0xff]
    %v1186 = vld [vmem:[%s3 + $0x16a0] sm:$0xff]
    %v1187 = vld [vmem:[%s3 + $0x16a8] sm:$0xff]
    %v1188 = vld [vmem:[%s3 + $0x16b0] sm:$0xff]
    %v1189 = vld [vmem:[%s3 + $0x16b8] sm:$0xff]
    %v1190 = vld [vmem:[%s3 + $0x16c0] sm:$0xff]
    %v1191 = vld [vmem:[%s3 + $0x16c8] sm:$0xff]
    %v1192 = vld [vmem:[%s3 + $0x16d0] sm:$0xff]
    %v1193 = vld [vmem:[%s3 + $0x16d8] sm:$0xff]
    %v1194 = vld [vmem:[%s3 + $0x16e0] sm:$0xff]
    %v1195 = vld [vmem:[%s3 + $0x16e8] sm:$0xff]
    %v1196 = vld [vmem:[%s3 + $0x16f0] sm:$0xff]
    %v1197 = vld [vmem:[%s3 + $0x16f8] sm:$0xff]
    %v1198 = vld [vmem:[%s3 + $0x1700] sm:$0xff]
    %v1199 = vld [vmem:[%s3 + $0x1708] sm:$0xff]
    %v1200 = vld [vmem:[%s3 + $0x1710] sm:$0xff]
    %v1201 = vld [vmem:[%s3 + $0x1718] sm:$0xff]
    %v1202 = vld [vmem:[%s3 + $0x1720] sm:$0xff]
    %v1203 = vld [vmem:[%s3 + $0x1728] sm:$0xff]
    %v1204 = vld [vmem:[%s3 + $0x1730] sm:$0xff]
    %v1205 = vld [vmem:[%s3 + $0x1738] sm:$0xff]
    %v1206 = vld [vmem:[%s3 + $0x1740] sm:$0xff]
    %v1207 = vld [vmem:[%s3 + $0x1748] sm:$0xff]
    %v1208 = vld [vmem:[%s3 + $0x1750] sm:$0xff]
    %v1209 = vld [vmem:[%s3 + $0x1758] sm:$0xff]
    %v1210 = vld [vmem:[%s3 + $0x1760] sm:$0xff]
    %v1211 = vld [vmem:[%s3 + $0x1768] sm:$0xff]
    %v1212 = vld [vmem:[%s3 + $0x1770] sm:$0xff]
    %v1213 = vld [vmem:[%s3 + $0x1778] sm:$0xff]
    %v1214 = vld [vmem:[%s3 + $0x1780] sm:$0xff]
    %v1215 = vld [vmem:[%s3 + $0x1788] sm:$0xff]
    %v1216 = vld [vmem:[%s3 + $0x1790] sm:$0xff]
    %v1217 = vld [vmem:[%s3 + $0x1798] sm:$0xff]
    %v1218 = vld [vmem:[%s3 + $0x17a0] sm:$0xff]
    %v1219 = vld [vmem:[%s3 + $0x17a8] sm:$0xff]
    %v1220 = vld [vmem:[%s3 + $0x17b0] sm:$0xff]
    %v1221 = vld [vmem:[%s3 + $0x17b8] sm:$0xff]
    %v1222 = vld [vmem:[%s3 + $0x17c0] sm:$0xff]
    %v1223 = vld [vmem:[%s3 + $0x17c8] sm:$0xff]
    %v1224 = vld [vmem:[%s3 + $0x17d0] sm:$0xff]
    %v1225 = vld [vmem:[%s3 + $0x17d8] sm:$0xff]
    %v1226 = vld [vmem:[%s3 + $0x17e0] sm:$0xff]
    %v1227 = vld [vmem:[%s3 + $0x17e8] sm:$0xff]
    %v1228 = vld [vmem:[%s3 + $0x17f0] sm:$0xff]
    %v1229 = vld [vmem:[%s3 + $0x17f8] sm:$0xff]
    %v1230 = vld [vmem:[%s4] sm:$0xff]
    %v1232 = vlaneseq
    %v1233 = vshrl.u32 %v1232, 7
    %v1234 = vsub.s32 0, %v1233
    %v1235 = vrot.slane %v1230, %v1234
    %v1236 = vlaneseq
    %v1237 = vshrl.u32 %v1236, 7
    %v1238 = vsub.s32 1, %v1237
    %v1239 = vrot.slane %v1230, %v1238
    %v1240 = vlaneseq
    %v1241 = vshrl.u32 %v1240, 7
    %v1242 = vsub.s32 2, %v1241
    %v1243 = vrot.slane %v1230, %v1242
    %v1244 = vlaneseq
    %v1245 = vshrl.u32 %v1244, 7
    %v1246 = vsub.s32 3, %v1245
    %v1247 = vrot.slane %v1230, %v1246
    %v1248 = vlaneseq
    %v1249 = vshrl.u32 %v1248, 7
    %v1250 = vsub.s32 4, %v1249
    %v1251 = vrot.slane %v1230, %v1250
    %v1252 = vlaneseq
    %v1253 = vshrl.u32 %v1252, 7
    %v1254 = vsub.s32 5, %v1253
    %v1255 = vrot.slane %v1230, %v1254
    %v1256 = vlaneseq
    %v1257 = vshrl.u32 %v1256, 7
    %v1258 = vsub.s32 6, %v1257
    %v1259 = vrot.slane %v1230, %v1258
    %v1260 = vlaneseq
    %v1261 = vshrl.u32 %v1260, 7
    %v1262 = vsub.s32 7, %v1261
    %v1263 = vrot.slane %v1230, %v1262
    %v2040 = vunpack.c.l.b16 %v462
    %v2041 = vunpack.c.h.b16 %v462
    %v2042 = vunpack.c.l.b16 %v463
    %v2043 = vunpack.c.h.b16 %v463
    %v2044 = vunpack.c.l.b16 %v464
    %v2045 = vunpack.c.h.b16 %v464
    %v2046 = vunpack.c.l.b16 %v465
    %v2047 = vunpack.c.h.b16 %v465
    %v2048 = vunpack.c.l.b16 %v466
    %v2049 = vunpack.c.h.b16 %v466
    %v2050 = vunpack.c.l.b16 %v467
    %v2051 = vunpack.c.h.b16 %v467
    %v2052 = vunpack.c.l.b16 %v468
    %v2053 = vunpack.c.h.b16 %v468
    %v2054 = vunpack.c.l.b16 %v469
    %v2055 = vunpack.c.h.b16 %v469
    %v2056 = vunpack.c.l.b16 %v470
    %v2057 = vunpack.c.h.b16 %v470
    %v2058 = vunpack.c.l.b16 %v471
    %v2059 = vunpack.c.h.b16 %v471
    %v2060 = vunpack.c.l.b16 %v472
    %v2061 = vunpack.c.h.b16 %v472
    %v2062 = vunpack.c.l.b16 %v473
    %v2063 = vunpack.c.h.b16 %v473
    %v2064 = vunpack.c.l.b16 %v474
    %v2065 = vunpack.c.h.b16 %v474
    %v2066 = vunpack.c.l.b16 %v475
    %v2067 = vunpack.c.h.b16 %v475
    %v2068 = vunpack.c.l.b16 %v476
    %v2069 = vunpack.c.h.b16 %v476
    %v2070 = vunpack.c.l.b16 %v477
    %v2071 = vunpack.c.h.b16 %v477
    %v2072 = vunpack.c.l.b16 %v478
    %v2073 = vunpack.c.h.b16 %v478
    %v2074 = vunpack.c.l.b16 %v479
    %v2075 = vunpack.c.h.b16 %v479
    %v2076 = vunpack.c.l.b16 %v480
    %v2077 = vunpack.c.h.b16 %v480
    %v2078 = vunpack.c.l.b16 %v481
    %v2079 = vunpack.c.h.b16 %v481
    %v2080 = vunpack.c.l.b16 %v482
    %v2081 = vunpack.c.h.b16 %v482
    %v2082 = vunpack.c.l.b16 %v483
    %v2083 = vunpack.c.h.b16 %v483
    %v2084 = vunpack.c.l.b16 %v484
    %v2085 = vunpack.c.h.b16 %v484
    %v2086 = vunpack.c.l.b16 %v485
    %v2087 = vunpack.c.h.b16 %v485
    %v2088 = vunpack.c.l.b16 %v486
    %v2089 = vunpack.c.h.b16 %v486
    %v2090 = vunpack.c.l.b16 %v487
    %v2091 = vunpack.c.h.b16 %v487
    %v2092 = vunpack.c.l.b16 %v488
    %v2093 = vunpack.c.h.b16 %v488
    %v2094 = vunpack.c.l.b16 %v489
    %v2095 = vunpack.c.h.b16 %v489
    %v2096 = vunpack.c.l.b16 %v490
    %v2097 = vunpack.c.h.b16 %v490
    %v2098 = vunpack.c.l.b16 %v491
    %v2099 = vunpack.c.h.b16 %v491
    %v2100 = vunpack.c.l.b16 %v492
    %v2101 = vunpack.c.h.b16 %v492
    %v2102 = vunpack.c.l.b16 %v493
    %v2103 = vunpack.c.h.b16 %v493
    %v2104 = vunpack.c.l.b16 %v494
    %v2105 = vunpack.c.h.b16 %v494
    %v2106 = vunpack.c.l.b16 %v495
    %v2107 = vunpack.c.h.b16 %v495
    %v2108 = vunpack.c.l.b16 %v496
    %v2109 = vunpack.c.h.b16 %v496
    %v2110 = vunpack.c.l.b16 %v497
    %v2111 = vunpack.c.h.b16 %v497
    %v2112 = vunpack.c.l.b16 %v498
    %v2113 = vunpack.c.h.b16 %v498
    %v2114 = vunpack.c.l.b16 %v499
    %v2115 = vunpack.c.h.b16 %v499
    %v2116 = vunpack.c.l.b16 %v500
    %v2117 = vunpack.c.h.b16 %v500
    %v2118 = vunpack.c.l.b16 %v501
    %v2119 = vunpack.c.h.b16 %v501
    %v2120 = vunpack.c.l.b16 %v502
    %v2121 = vunpack.c.h.b16 %v502
    %v2122 = vunpack.c.l.b16 %v503
    %v2123 = vunpack.c.h.b16 %v503
    %v2124 = vunpack.c.l.b16 %v504
    %v2125 = vunpack.c.h.b16 %v504
    %v2126 = vunpack.c.l.b16 %v505
    %v2127 = vunpack.c.h.b16 %v505
    %v2128 = vunpack.c.l.b16 %v506
    %v2129 = vunpack.c.h.b16 %v506
    %v2130 = vunpack.c.l.b16 %v507
    %v2131 = vunpack.c.h.b16 %v507
    %v2132 = vunpack.c.l.b16 %v508
    %v2133 = vunpack.c.h.b16 %v508
    %v2134 = vunpack.c.l.b16 %v509
    %v2135 = vunpack.c.h.b16 %v509
    %v2136 = vunpack.c.l.b16 %v510
    %v2137 = vunpack.c.h.b16 %v510
    %v2138 = vunpack.c.l.b16 %v511
    %v2139 = vunpack.c.h.b16 %v511
    %v2140 = vunpack.c.l.b16 %v512
    %v2141 = vunpack.c.h.b16 %v512
    %v2142 = vunpack.c.l.b16 %v513
    %v2143 = vunpack.c.h.b16 %v513
    %v2144 = vunpack.c.l.b16 %v514
    %v2145 = vunpack.c.h.b16 %v514
    %v2146 = vunpack.c.l.b16 %v515
    %v2147 = vunpack.c.h.b16 %v515
    %v2148 = vunpack.c.l.b16 %v516
    %v2149 = vunpack.c.h.b16 %v516
    %v2150 = vunpack.c.l.b16 %v517
    %v2151 = vunpack.c.h.b16 %v517
    %v2152 = vunpack.c.l.b16 %v518
    %v2153 = vunpack.c.h.b16 %v518
    %v2154 = vunpack.c.l.b16 %v519
    %v2155 = vunpack.c.h.b16 %v519
    %v2156 = vunpack.c.l.b16 %v520
    %v2157 = vunpack.c.h.b16 %v520
    %v2158 = vunpack.c.l.b16 %v521
    %v2159 = vunpack.c.h.b16 %v521
    %v2160 = vunpack.c.l.b16 %v522
    %v2161 = vunpack.c.h.b16 %v522
    %v2162 = vunpack.c.l.b16 %v523
    %v2163 = vunpack.c.h.b16 %v523
    %v2164 = vunpack.c.l.b16 %v524
    %v2165 = vunpack.c.h.b16 %v524
    %v2166 = vunpack.c.l.b16 %v525
    %v2167 = vunpack.c.h.b16 %v525
    %v2168 = vunpack.c.l.b16 %v526
    %v2169 = vunpack.c.h.b16 %v526
    %v2170 = vunpack.c.l.b16 %v527
    %v2171 = vunpack.c.h.b16 %v527
    %v2172 = vunpack.c.l.b16 %v528
    %v2173 = vunpack.c.h.b16 %v528
    %v2174 = vunpack.c.l.b16 %v529
    %v2175 = vunpack.c.h.b16 %v529
    %v2176 = vunpack.c.l.b16 %v530
    %v2177 = vunpack.c.h.b16 %v530
    %v2178 = vunpack.c.l.b16 %v531
    %v2179 = vunpack.c.h.b16 %v531
    %v2180 = vunpack.c.l.b16 %v532
    %v2181 = vunpack.c.h.b16 %v532
    %v2182 = vunpack.c.l.b16 %v533
    %v2183 = vunpack.c.h.b16 %v533
    %v2184 = vunpack.c.l.b16 %v534
    %v2185 = vunpack.c.h.b16 %v534
    %v2186 = vunpack.c.l.b16 %v535
    %v2187 = vunpack.c.h.b16 %v535
    %v2188 = vunpack.c.l.b16 %v536
    %v2189 = vunpack.c.h.b16 %v536
    %v2190 = vunpack.c.l.b16 %v537
    %v2191 = vunpack.c.h.b16 %v537
    %v2192 = vunpack.c.l.b16 %v538
    %v2193 = vunpack.c.h.b16 %v538
    %v2194 = vunpack.c.l.b16 %v539
    %v2195 = vunpack.c.h.b16 %v539
    %v2196 = vunpack.c.l.b16 %v540
    %v2197 = vunpack.c.h.b16 %v540
    %v2198 = vunpack.c.l.b16 %v541
    %v2199 = vunpack.c.h.b16 %v541
    %v2200 = vunpack.c.l.b16 %v542
    %v2201 = vunpack.c.h.b16 %v542
    %v2202 = vunpack.c.l.b16 %v543
    %v2203 = vunpack.c.h.b16 %v543
    %v2204 = vunpack.c.l.b16 %v544
    %v2205 = vunpack.c.h.b16 %v544
    %v2206 = vunpack.c.l.b16 %v545
    %v2207 = vunpack.c.h.b16 %v545
    %v2208 = vunpack.c.l.b16 %v546
    %v2209 = vunpack.c.h.b16 %v546
    %v2210 = vunpack.c.l.b16 %v547
    %v2211 = vunpack.c.h.b16 %v547
    %v2212 = vunpack.c.l.b16 %v548
    %v2213 = vunpack.c.h.b16 %v548
    %v2214 = vunpack.c.l.b16 %v549
    %v2215 = vunpack.c.h.b16 %v549
    %v2216 = vunpack.c.l.b16 %v550
    %v2217 = vunpack.c.h.b16 %v550
    %v2218 = vunpack.c.l.b16 %v551
    %v2219 = vunpack.c.h.b16 %v551
    %v2220 = vunpack.c.l.b16 %v552
    %v2221 = vunpack.c.h.b16 %v552
    %v2222 = vunpack.c.l.b16 %v553
    %v2223 = vunpack.c.h.b16 %v553
    %v2224 = vunpack.c.l.b16 %v554
    %v2225 = vunpack.c.h.b16 %v554
    %v2226 = vunpack.c.l.b16 %v555
    %v2227 = vunpack.c.h.b16 %v555
    %v2228 = vunpack.c.l.b16 %v556
    %v2229 = vunpack.c.h.b16 %v556
    %v2230 = vunpack.c.l.b16 %v557
    %v2231 = vunpack.c.h.b16 %v557
    %v2232 = vunpack.c.l.b16 %v558
    %v2233 = vunpack.c.h.b16 %v558
    %v2234 = vunpack.c.l.b16 %v559
    %v2235 = vunpack.c.h.b16 %v559
    %v2236 = vunpack.c.l.b16 %v560
    %v2237 = vunpack.c.h.b16 %v560
    %v2238 = vunpack.c.l.b16 %v561
    %v2239 = vunpack.c.h.b16 %v561
    %v2240 = vunpack.c.l.b16 %v562
    %v2241 = vunpack.c.h.b16 %v562
    %v2242 = vunpack.c.l.b16 %v563
    %v2243 = vunpack.c.h.b16 %v563
    %v2244 = vunpack.c.l.b16 %v564
    %v2245 = vunpack.c.h.b16 %v564
    %v2246 = vunpack.c.l.b16 %v565
    %v2247 = vunpack.c.h.b16 %v565
    %v2248 = vunpack.c.l.b16 %v566
    %v2249 = vunpack.c.h.b16 %v566
    %v2250 = vunpack.c.l.b16 %v567
    %v2251 = vunpack.c.h.b16 %v567
    %v2252 = vunpack.c.l.b16 %v568
    %v2253 = vunpack.c.h.b16 %v568
    %v2254 = vunpack.c.l.b16 %v569
    %v2255 = vunpack.c.h.b16 %v569
    %v2256 = vunpack.c.l.b16 %v570
    %v2257 = vunpack.c.h.b16 %v570
    %v2258 = vunpack.c.l.b16 %v571
    %v2259 = vunpack.c.h.b16 %v571
    %v2260 = vunpack.c.l.b16 %v572
    %v2261 = vunpack.c.h.b16 %v572
    %v2262 = vunpack.c.l.b16 %v573
    %v2263 = vunpack.c.h.b16 %v573
    %v2264 = vunpack.c.l.b16 %v574
    %v2265 = vunpack.c.h.b16 %v574
    %v2266 = vunpack.c.l.b16 %v575
    %v2267 = vunpack.c.h.b16 %v575
    %v2268 = vunpack.c.l.b16 %v576
    %v2269 = vunpack.c.h.b16 %v576
    %v2270 = vunpack.c.l.b16 %v577
    %v2271 = vunpack.c.h.b16 %v577
    %v2272 = vunpack.c.l.b16 %v578
    %v2273 = vunpack.c.h.b16 %v578
    %v2274 = vunpack.c.l.b16 %v579
    %v2275 = vunpack.c.h.b16 %v579
    %v2276 = vunpack.c.l.b16 %v580
    %v2277 = vunpack.c.h.b16 %v580
    %v2278 = vunpack.c.l.b16 %v581
    %v2279 = vunpack.c.h.b16 %v581
    %v2280 = vunpack.c.l.b16 %v582
    %v2281 = vunpack.c.h.b16 %v582
    %v2282 = vunpack.c.l.b16 %v583
    %v2283 = vunpack.c.h.b16 %v583
    %v2284 = vunpack.c.l.b16 %v584
    %v2285 = vunpack.c.h.b16 %v584
    %v2286 = vunpack.c.l.b16 %v585
    %v2287 = vunpack.c.h.b16 %v585
    %v2288 = vunpack.c.l.b16 %v586
    %v2289 = vunpack.c.h.b16 %v586
    %v2290 = vunpack.c.l.b16 %v587
    %v2291 = vunpack.c.h.b16 %v587
    %v2292 = vunpack.c.l.b16 %v588
    %v2293 = vunpack.c.h.b16 %v588
    %v2294 = vunpack.c.l.b16 %v589
    %v2295 = vunpack.c.h.b16 %v589
    %v2296 = vunpack.c.l.b16 %v590
    %v2297 = vunpack.c.h.b16 %v590
    %v2298 = vunpack.c.l.b16 %v591
    %v2299 = vunpack.c.h.b16 %v591
    %v2300 = vunpack.c.l.b16 %v592
    %v2301 = vunpack.c.h.b16 %v592
    %v2302 = vunpack.c.l.b16 %v593
    %v2303 = vunpack.c.h.b16 %v593
    %v2304 = vunpack.c.l.b16 %v594
    %v2305 = vunpack.c.h.b16 %v594
    %v2306 = vunpack.c.l.b16 %v595
    %v2307 = vunpack.c.h.b16 %v595
    %v2308 = vunpack.c.l.b16 %v596
    %v2309 = vunpack.c.h.b16 %v596
    %v2310 = vunpack.c.l.b16 %v597
    %v2311 = vunpack.c.h.b16 %v597
    %v2312 = vunpack.c.l.b16 %v598
    %v2313 = vunpack.c.h.b16 %v598
    %v2314 = vunpack.c.l.b16 %v599
    %v2315 = vunpack.c.h.b16 %v599
    %v2316 = vunpack.c.l.b16 %v600
    %v2317 = vunpack.c.h.b16 %v600
    %v2318 = vunpack.c.l.b16 %v601
    %v2319 = vunpack.c.h.b16 %v601
    %v2320 = vunpack.c.l.b16 %v602
    %v2321 = vunpack.c.h.b16 %v602
    %v2322 = vunpack.c.l.b16 %v603
    %v2323 = vunpack.c.h.b16 %v603
    %v2324 = vunpack.c.l.b16 %v604
    %v2325 = vunpack.c.h.b16 %v604
    %v2326 = vunpack.c.l.b16 %v605
    %v2327 = vunpack.c.h.b16 %v605
    %v2328 = vunpack.c.l.b16 %v606
    %v2329 = vunpack.c.h.b16 %v606
    %v2330 = vunpack.c.l.b16 %v607
    %v2331 = vunpack.c.h.b16 %v607
    %v2332 = vunpack.c.l.b16 %v608
    %v2333 = vunpack.c.h.b16 %v608
    %v2334 = vunpack.c.l.b16 %v609
    %v2335 = vunpack.c.h.b16 %v609
    %v2336 = vunpack.c.l.b16 %v610
    %v2337 = vunpack.c.h.b16 %v610
    %v2338 = vunpack.c.l.b16 %v611
    %v2339 = vunpack.c.h.b16 %v611
    %v2340 = vunpack.c.l.b16 %v612
    %v2341 = vunpack.c.h.b16 %v612
    %v2342 = vunpack.c.l.b16 %v613
    %v2343 = vunpack.c.h.b16 %v613
    %v2344 = vunpack.c.l.b16 %v614
    %v2345 = vunpack.c.h.b16 %v614
    %v2346 = vunpack.c.l.b16 %v615
    %v2347 = vunpack.c.h.b16 %v615
    %v2348 = vunpack.c.l.b16 %v616
    %v2349 = vunpack.c.h.b16 %v616
    %v2350 = vunpack.c.l.b16 %v617
    %v2351 = vunpack.c.h.b16 %v617
    %v2352 = vunpack.c.l.b16 %v618
    %v2353 = vunpack.c.h.b16 %v618
    %v2354 = vunpack.c.l.b16 %v619
    %v2355 = vunpack.c.h.b16 %v619
    %v2356 = vunpack.c.l.b16 %v620
    %v2357 = vunpack.c.h.b16 %v620
    %v2358 = vunpack.c.l.b16 %v621
    %v2359 = vunpack.c.h.b16 %v621
    %v2360 = vunpack.c.l.b16 %v622
    %v2361 = vunpack.c.h.b16 %v622
    %v2362 = vunpack.c.l.b16 %v623
    %v2363 = vunpack.c.h.b16 %v623
    %v2364 = vunpack.c.l.b16 %v624
    %v2365 = vunpack.c.h.b16 %v624
    %v2366 = vunpack.c.l.b16 %v625
    %v2367 = vunpack.c.h.b16 %v625
    %v2368 = vunpack.c.l.b16 %v626
    %v2369 = vunpack.c.h.b16 %v626
    %v2370 = vunpack.c.l.b16 %v627
    %v2371 = vunpack.c.h.b16 %v627
    %v2372 = vunpack.c.l.b16 %v628
    %v2373 = vunpack.c.h.b16 %v628
    %v2374 = vunpack.c.l.b16 %v629
    %v2375 = vunpack.c.h.b16 %v629
    %v2376 = vunpack.c.l.b16 %v630
    %v2377 = vunpack.c.h.b16 %v630
    %v2378 = vunpack.c.l.b16 %v631
    %v2379 = vunpack.c.h.b16 %v631
    %v2380 = vunpack.c.l.b16 %v632
    %v2381 = vunpack.c.h.b16 %v632
    %v2382 = vunpack.c.l.b16 %v633
    %v2383 = vunpack.c.h.b16 %v633
    %v2384 = vunpack.c.l.b16 %v634
    %v2385 = vunpack.c.h.b16 %v634
    %v2386 = vunpack.c.l.b16 %v635
    %v2387 = vunpack.c.h.b16 %v635
    %v2388 = vunpack.c.l.b16 %v636
    %v2389 = vunpack.c.h.b16 %v636
    %v2390 = vunpack.c.l.b16 %v637
    %v2391 = vunpack.c.h.b16 %v637
    %v2392 = vunpack.c.l.b16 %v638
    %v2393 = vunpack.c.h.b16 %v638
    %v2394 = vunpack.c.l.b16 %v639
    %v2395 = vunpack.c.h.b16 %v639
    %v2396 = vunpack.c.l.b16 %v640
    %v2397 = vunpack.c.h.b16 %v640
    %v2398 = vunpack.c.l.b16 %v641
    %v2399 = vunpack.c.h.b16 %v641
    %v2400 = vunpack.c.l.b16 %v642
    %v2401 = vunpack.c.h.b16 %v642
    %v2402 = vunpack.c.l.b16 %v643
    %v2403 = vunpack.c.h.b16 %v643
    %v2404 = vunpack.c.l.b16 %v644
    %v2405 = vunpack.c.h.b16 %v644
    %v2406 = vunpack.c.l.b16 %v645
    %v2407 = vunpack.c.h.b16 %v645
    %v2408 = vunpack.c.l.b16 %v646
    %v2409 = vunpack.c.h.b16 %v646
    %v2410 = vunpack.c.l.b16 %v647
    %v2411 = vunpack.c.h.b16 %v647
    %v2412 = vunpack.c.l.b16 %v648
    %v2413 = vunpack.c.h.b16 %v648
    %v2414 = vunpack.c.l.b16 %v649
    %v2415 = vunpack.c.h.b16 %v649
    %v2416 = vunpack.c.l.b16 %v650
    %v2417 = vunpack.c.h.b16 %v650
    %v2418 = vunpack.c.l.b16 %v651
    %v2419 = vunpack.c.h.b16 %v651
    %v2420 = vunpack.c.l.b16 %v652
    %v2421 = vunpack.c.h.b16 %v652
    %v2422 = vunpack.c.l.b16 %v653
    %v2423 = vunpack.c.h.b16 %v653
    %v2424 = vunpack.c.l.b16 %v654
    %v2425 = vunpack.c.h.b16 %v654
    %v2426 = vunpack.c.l.b16 %v655
    %v2427 = vunpack.c.h.b16 %v655
    %v2428 = vunpack.c.l.b16 %v656
    %v2429 = vunpack.c.h.b16 %v656
    %v2430 = vunpack.c.l.b16 %v657
    %v2431 = vunpack.c.h.b16 %v657
    %v2432 = vunpack.c.l.b16 %v658
    %v2433 = vunpack.c.h.b16 %v658
    %v2434 = vunpack.c.l.b16 %v659
    %v2435 = vunpack.c.h.b16 %v659
    %v2436 = vunpack.c.l.b16 %v660
    %v2437 = vunpack.c.h.b16 %v660
    %v2438 = vunpack.c.l.b16 %v661
    %v2439 = vunpack.c.h.b16 %v661
    %v2440 = vunpack.c.l.b16 %v662
    %v2441 = vunpack.c.h.b16 %v662
    %v2442 = vunpack.c.l.b16 %v663
    %v2443 = vunpack.c.h.b16 %v663
    %v2444 = vunpack.c.l.b16 %v664
    %v2445 = vunpack.c.h.b16 %v664
    %v2446 = vunpack.c.l.b16 %v665
    %v2447 = vunpack.c.h.b16 %v665
    %v2448 = vunpack.c.l.b16 %v666
    %v2449 = vunpack.c.h.b16 %v666
    %v2450 = vunpack.c.l.b16 %v667
    %v2451 = vunpack.c.h.b16 %v667
    %v2452 = vunpack.c.l.b16 %v668
    %v2453 = vunpack.c.h.b16 %v668
    %v2454 = vunpack.c.l.b16 %v669
    %v2455 = vunpack.c.h.b16 %v669
    %v2456 = vunpack.c.l.b16 %v670
    %v2457 = vunpack.c.h.b16 %v670
    %v2458 = vunpack.c.l.b16 %v671
    %v2459 = vunpack.c.h.b16 %v671
    %v2460 = vunpack.c.l.b16 %v672
    %v2461 = vunpack.c.h.b16 %v672
    %v2462 = vunpack.c.l.b16 %v673
    %v2463 = vunpack.c.h.b16 %v673
    %v2464 = vunpack.c.l.b16 %v674
    %v2465 = vunpack.c.h.b16 %v674
    %v2466 = vunpack.c.l.b16 %v675
    %v2467 = vunpack.c.h.b16 %v675
    %v2468 = vunpack.c.l.b16 %v676
    %v2469 = vunpack.c.h.b16 %v676
    %v2470 = vunpack.c.l.b16 %v677
    %v2471 = vunpack.c.h.b16 %v677
    %v2472 = vunpack.c.l.b16 %v678
    %v2473 = vunpack.c.h.b16 %v678
    %v2474 = vunpack.c.l.b16 %v679
    %v2475 = vunpack.c.h.b16 %v679
    %v2476 = vunpack.c.l.b16 %v680
    %v2477 = vunpack.c.h.b16 %v680
    %v2478 = vunpack.c.l.b16 %v681
    %v2479 = vunpack.c.h.b16 %v681
    %v2480 = vunpack.c.l.b16 %v682
    %v2481 = vunpack.c.h.b16 %v682
    %v2482 = vunpack.c.l.b16 %v683
    %v2483 = vunpack.c.h.b16 %v683
    %v2484 = vunpack.c.l.b16 %v684
    %v2485 = vunpack.c.h.b16 %v684
    %v2486 = vunpack.c.l.b16 %v685
    %v2487 = vunpack.c.h.b16 %v685
    %v2488 = vunpack.c.l.b16 %v686
    %v2489 = vunpack.c.h.b16 %v686
    %v2490 = vunpack.c.l.b16 %v687
    %v2491 = vunpack.c.h.b16 %v687
    %v2492 = vunpack.c.l.b16 %v688
    %v2493 = vunpack.c.h.b16 %v688
    %v2494 = vunpack.c.l.b16 %v689
    %v2495 = vunpack.c.h.b16 %v689
    %v2496 = vunpack.c.l.b16 %v690
    %v2497 = vunpack.c.h.b16 %v690
    %v2498 = vunpack.c.l.b16 %v691
    %v2499 = vunpack.c.h.b16 %v691
    %v2500 = vunpack.c.l.b16 %v692
    %v2501 = vunpack.c.h.b16 %v692
    %v2502 = vunpack.c.l.b16 %v693
    %v2503 = vunpack.c.h.b16 %v693
    %v2504 = vunpack.c.l.b16 %v694
    %v2505 = vunpack.c.h.b16 %v694
    %v2506 = vunpack.c.l.b16 %v695
    %v2507 = vunpack.c.h.b16 %v695
    %v2508 = vunpack.c.l.b16 %v696
    %v2509 = vunpack.c.h.b16 %v696
    %v2510 = vunpack.c.l.b16 %v697
    %v2511 = vunpack.c.h.b16 %v697
    %v2512 = vunpack.c.l.b16 %v698
    %v2513 = vunpack.c.h.b16 %v698
    %v2514 = vunpack.c.l.b16 %v699
    %v2515 = vunpack.c.h.b16 %v699
    %v2516 = vunpack.c.l.b16 %v700
    %v2517 = vunpack.c.h.b16 %v700
    %v2518 = vunpack.c.l.b16 %v701
    %v2519 = vunpack.c.h.b16 %v701
    %v2520 = vunpack.c.l.b16 %v702
    %v2521 = vunpack.c.h.b16 %v702
    %v2522 = vunpack.c.l.b16 %v703
    %v2523 = vunpack.c.h.b16 %v703
    %v2524 = vunpack.c.l.b16 %v704
    %v2525 = vunpack.c.h.b16 %v704
    %v2526 = vunpack.c.l.b16 %v705
    %v2527 = vunpack.c.h.b16 %v705
    %v2528 = vunpack.c.l.b16 %v706
    %v2529 = vunpack.c.h.b16 %v706
    %v2530 = vunpack.c.l.b16 %v707
    %v2531 = vunpack.c.h.b16 %v707
    %v2532 = vunpack.c.l.b16 %v708
    %v2533 = vunpack.c.h.b16 %v708
    %v2534 = vunpack.c.l.b16 %v709
    %v2535 = vunpack.c.h.b16 %v709
    %v2536 = vunpack.c.l.b16 %v710
    %v2537 = vunpack.c.h.b16 %v710
    %v2538 = vunpack.c.l.b16 %v711
    %v2539 = vunpack.c.h.b16 %v711
    %v2540 = vunpack.c.l.b16 %v712
    %v2541 = vunpack.c.h.b16 %v712
    %v2542 = vunpack.c.l.b16 %v713
    %v2543 = vunpack.c.h.b16 %v713
    %v2544 = vunpack.c.l.b16 %v714
    %v2545 = vunpack.c.h.b16 %v714
    %v2546 = vunpack.c.l.b16 %v715
    %v2547 = vunpack.c.h.b16 %v715
    %v2548 = vunpack.c.l.b16 %v716
    %v2549 = vunpack.c.h.b16 %v716
    %v2550 = vunpack.c.l.b16 %v717
    %v2551 = vunpack.c.h.b16 %v717
    %v2552 = vunpack.c.l.b16 %v718
    %v2553 = vunpack.c.h.b16 %v718
    %v2554 = vunpack.c.l.b16 %v719
    %v2555 = vunpack.c.h.b16 %v719
    %v2556 = vunpack.c.l.b16 %v720
    %v2557 = vunpack.c.h.b16 %v720
    %v2558 = vunpack.c.l.b16 %v721
    %v2559 = vunpack.c.h.b16 %v721
    %v2560 = vunpack.c.l.b16 %v722
    %v2561 = vunpack.c.h.b16 %v722
    %v2562 = vunpack.c.l.b16 %v723
    %v2563 = vunpack.c.h.b16 %v723
    %v2564 = vunpack.c.l.b16 %v724
    %v2565 = vunpack.c.h.b16 %v724
    %v2566 = vunpack.c.l.b16 %v725
    %v2567 = vunpack.c.h.b16 %v725
    %v2568 = vunpack.c.l.b16 %v726
    %v2569 = vunpack.c.h.b16 %v726
    %v2570 = vunpack.c.l.b16 %v727
    %v2571 = vunpack.c.h.b16 %v727
    %v2572 = vunpack.c.l.b16 %v728
    %v2573 = vunpack.c.h.b16 %v728
    %v2574 = vunpack.c.l.b16 %v729
    %v2575 = vunpack.c.h.b16 %v729
    %v2576 = vunpack.c.l.b16 %v730
    %v2577 = vunpack.c.h.b16 %v730
    %v2578 = vunpack.c.l.b16 %v731
    %v2579 = vunpack.c.h.b16 %v731
    %v2580 = vunpack.c.l.b16 %v732
    %v2581 = vunpack.c.h.b16 %v732
    %v2582 = vunpack.c.l.b16 %v733
    %v2583 = vunpack.c.h.b16 %v733
    %v2584 = vunpack.c.l.b16 %v734
    %v2585 = vunpack.c.h.b16 %v734
    %v2586 = vunpack.c.l.b16 %v735
    %v2587 = vunpack.c.h.b16 %v735
    %v2588 = vunpack.c.l.b16 %v736
    %v2589 = vunpack.c.h.b16 %v736
    %v2590 = vunpack.c.l.b16 %v737
    %v2591 = vunpack.c.h.b16 %v737
    %v2592 = vunpack.c.l.b16 %v738
    %v2593 = vunpack.c.h.b16 %v738
    %v2594 = vunpack.c.l.b16 %v739
    %v2595 = vunpack.c.h.b16 %v739
    %v2596 = vunpack.c.l.b16 %v740
    %v2597 = vunpack.c.h.b16 %v740
    %v2598 = vunpack.c.l.b16 %v741
    %v2599 = vunpack.c.h.b16 %v741
    %v2600 = vunpack.c.l.b16 %v742
    %v2601 = vunpack.c.h.b16 %v742
    %v2602 = vunpack.c.l.b16 %v743
    %v2603 = vunpack.c.h.b16 %v743
    %v2604 = vunpack.c.l.b16 %v744
    %v2605 = vunpack.c.h.b16 %v744
    %v2606 = vunpack.c.l.b16 %v745
    %v2607 = vunpack.c.h.b16 %v745
    %v2608 = vunpack.c.l.b16 %v746
    %v2609 = vunpack.c.h.b16 %v746
    %v2610 = vunpack.c.l.b16 %v747
    %v2611 = vunpack.c.h.b16 %v747
    %v2612 = vunpack.c.l.b16 %v748
    %v2613 = vunpack.c.h.b16 %v748
    %v2614 = vunpack.c.l.b16 %v749
    %v2615 = vunpack.c.h.b16 %v749
    %v2616 = vunpack.c.l.b16 %v750
    %v2617 = vunpack.c.h.b16 %v750
    %v2618 = vunpack.c.l.b16 %v751
    %v2619 = vunpack.c.h.b16 %v751
    %v2620 = vunpack.c.l.b16 %v752
    %v2621 = vunpack.c.h.b16 %v752
    %v2622 = vunpack.c.l.b16 %v753
    %v2623 = vunpack.c.h.b16 %v753
    %v2624 = vunpack.c.l.b16 %v754
    %v2625 = vunpack.c.h.b16 %v754
    %v2626 = vunpack.c.l.b16 %v755
    %v2627 = vunpack.c.h.b16 %v755
    %v2628 = vunpack.c.l.b16 %v756
    %v2629 = vunpack.c.h.b16 %v756
    %v2630 = vunpack.c.l.b16 %v757
    %v2631 = vunpack.c.h.b16 %v757
    %v2632 = vunpack.c.l.b16 %v758
    %v2633 = vunpack.c.h.b16 %v758
    %v2634 = vunpack.c.l.b16 %v759
    %v2635 = vunpack.c.h.b16 %v759
    %v2636 = vunpack.c.l.b16 %v760
    %v2637 = vunpack.c.h.b16 %v760
    %v2638 = vunpack.c.l.b16 %v761
    %v2639 = vunpack.c.h.b16 %v761
    %v2640 = vunpack.c.l.b16 %v762
    %v2641 = vunpack.c.h.b16 %v762
    %v2642 = vunpack.c.l.b16 %v763
    %v2643 = vunpack.c.h.b16 %v763
    %v2644 = vunpack.c.l.b16 %v764
    %v2645 = vunpack.c.h.b16 %v764
    %v2646 = vunpack.c.l.b16 %v765
    %v2647 = vunpack.c.h.b16 %v765
    %v2648 = vunpack.c.l.b16 %v766
    %v2649 = vunpack.c.h.b16 %v766
    %v2650 = vunpack.c.l.b16 %v767
    %v2651 = vunpack.c.h.b16 %v767
    %v2652 = vunpack.c.l.b16 %v768
    %v2653 = vunpack.c.h.b16 %v768
    %v2654 = vunpack.c.l.b16 %v769
    %v2655 = vunpack.c.h.b16 %v769
    %v2656 = vunpack.c.l.b16 %v770
    %v2657 = vunpack.c.h.b16 %v770
    %v2658 = vunpack.c.l.b16 %v771
    %v2659 = vunpack.c.h.b16 %v771
    %v2660 = vunpack.c.l.b16 %v772
    %v2661 = vunpack.c.h.b16 %v772
    %v2662 = vunpack.c.l.b16 %v773
    %v2663 = vunpack.c.h.b16 %v773
    %v2664 = vunpack.c.l.b16 %v774
    %v2665 = vunpack.c.h.b16 %v774
    %v2666 = vunpack.c.l.b16 %v775
    %v2667 = vunpack.c.h.b16 %v775
    %v2668 = vunpack.c.l.b16 %v776
    %v2669 = vunpack.c.h.b16 %v776
    %v2670 = vunpack.c.l.b16 %v777
    %v2671 = vunpack.c.h.b16 %v777
    %v2672 = vunpack.c.l.b16 %v778
    %v2673 = vunpack.c.h.b16 %v778
    %v2674 = vunpack.c.l.b16 %v779
    %v2675 = vunpack.c.h.b16 %v779
    %v2676 = vunpack.c.l.b16 %v780
    %v2677 = vunpack.c.h.b16 %v780
    %v2678 = vunpack.c.l.b16 %v781
    %v2679 = vunpack.c.h.b16 %v781
    %v2680 = vunpack.c.l.b16 %v782
    %v2681 = vunpack.c.h.b16 %v782
    %v2682 = vunpack.c.l.b16 %v783
    %v2683 = vunpack.c.h.b16 %v783
    %v2684 = vunpack.c.l.b16 %v784
    %v2685 = vunpack.c.h.b16 %v784
    %v2686 = vunpack.c.l.b16 %v785
    %v2687 = vunpack.c.h.b16 %v785
    %v2688 = vunpack.c.l.b16 %v786
    %v2689 = vunpack.c.h.b16 %v786
    %v2690 = vunpack.c.l.b16 %v787
    %v2691 = vunpack.c.h.b16 %v787
    %v2692 = vunpack.c.l.b16 %v788
    %v2693 = vunpack.c.h.b16 %v788
    %v2694 = vunpack.c.l.b16 %v789
    %v2695 = vunpack.c.h.b16 %v789
    %v2696 = vunpack.c.l.b16 %v790
    %v2697 = vunpack.c.h.b16 %v790
    %v2698 = vunpack.c.l.b16 %v791
    %v2699 = vunpack.c.h.b16 %v791
    %v2700 = vunpack.c.l.b16 %v792
    %v2701 = vunpack.c.h.b16 %v792
    %v2702 = vunpack.c.l.b16 %v793
    %v2703 = vunpack.c.h.b16 %v793
    %v2704 = vunpack.c.l.b16 %v794
    %v2705 = vunpack.c.h.b16 %v794
    %v2706 = vunpack.c.l.b16 %v795
    %v2707 = vunpack.c.h.b16 %v795
    %v2708 = vunpack.c.l.b16 %v796
    %v2709 = vunpack.c.h.b16 %v796
    %v2710 = vunpack.c.l.b16 %v797
    %v2711 = vunpack.c.h.b16 %v797
    %v2712 = vunpack.c.l.b16 %v798
    %v2713 = vunpack.c.h.b16 %v798
    %v2714 = vunpack.c.l.b16 %v799
    %v2715 = vunpack.c.h.b16 %v799
    %v2716 = vunpack.c.l.b16 %v800
    %v2717 = vunpack.c.h.b16 %v800
    %v2718 = vunpack.c.l.b16 %v801
    %v2719 = vunpack.c.h.b16 %v801
    %v2720 = vunpack.c.l.b16 %v802
    %v2721 = vunpack.c.h.b16 %v802
    %v2722 = vunpack.c.l.b16 %v803
    %v2723 = vunpack.c.h.b16 %v803
    %v2724 = vunpack.c.l.b16 %v804
    %v2725 = vunpack.c.h.b16 %v804
    %v2726 = vunpack.c.l.b16 %v805
    %v2727 = vunpack.c.h.b16 %v805
    %v2728 = vunpack.c.l.b16 %v806
    %v2729 = vunpack.c.h.b16 %v806
    %v2730 = vunpack.c.l.b16 %v807
    %v2731 = vunpack.c.h.b16 %v807
    %v2732 = vunpack.c.l.b16 %v808
    %v2733 = vunpack.c.h.b16 %v808
    %v2734 = vunpack.c.l.b16 %v809
    %v2735 = vunpack.c.h.b16 %v809
    %v2736 = vunpack.c.l.b16 %v810
    %v2737 = vunpack.c.h.b16 %v810
    %v2738 = vunpack.c.l.b16 %v811
    %v2739 = vunpack.c.h.b16 %v811
    %v2740 = vunpack.c.l.b16 %v812
    %v2741 = vunpack.c.h.b16 %v812
    %v2742 = vunpack.c.l.b16 %v813
    %v2743 = vunpack.c.h.b16 %v813
    %v2744 = vunpack.c.l.b16 %v814
    %v2745 = vunpack.c.h.b16 %v814
    %v2746 = vunpack.c.l.b16 %v815
    %v2747 = vunpack.c.h.b16 %v815
    %v2748 = vunpack.c.l.b16 %v816
    %v2749 = vunpack.c.h.b16 %v816
    %v2750 = vunpack.c.l.b16 %v817
    %v2751 = vunpack.c.h.b16 %v817
    %v2752 = vunpack.c.l.b16 %v818
    %v2753 = vunpack.c.h.b16 %v818
    %v2754 = vunpack.c.l.b16 %v819
    %v2755 = vunpack.c.h.b16 %v819
    %v2756 = vunpack.c.l.b16 %v820
    %v2757 = vunpack.c.h.b16 %v820
    %v2758 = vunpack.c.l.b16 %v821
    %v2759 = vunpack.c.h.b16 %v821
    %v2760 = vunpack.c.l.b16 %v822
    %v2761 = vunpack.c.h.b16 %v822
    %v2762 = vunpack.c.l.b16 %v823
    %v2763 = vunpack.c.h.b16 %v823
    %v2764 = vunpack.c.l.b16 %v824
    %v2765 = vunpack.c.h.b16 %v824
    %v2766 = vunpack.c.l.b16 %v825
    %v2767 = vunpack.c.h.b16 %v825
    %v2768 = vunpack.c.l.b16 %v826
    %v2769 = vunpack.c.h.b16 %v826
    %v2770 = vunpack.c.l.b16 %v827
    %v2771 = vunpack.c.h.b16 %v827
    %v2772 = vunpack.c.l.b16 %v828
    %v2773 = vunpack.c.h.b16 %v828
    %v2774 = vunpack.c.l.b16 %v829
    %v2775 = vunpack.c.h.b16 %v829
    %v2776 = vunpack.c.l.b16 %v830
    %v2777 = vunpack.c.h.b16 %v830
    %v2778 = vunpack.c.l.b16 %v831
    %v2779 = vunpack.c.h.b16 %v831
    %v2780 = vunpack.c.l.b16 %v832
    %v2781 = vunpack.c.h.b16 %v832
    %v2782 = vunpack.c.l.b16 %v833
    %v2783 = vunpack.c.h.b16 %v833
    %v2784 = vunpack.c.l.b16 %v834
    %v2785 = vunpack.c.h.b16 %v834
    %v2786 = vunpack.c.l.b16 %v835
    %v2787 = vunpack.c.h.b16 %v835
    %v2788 = vunpack.c.l.b16 %v836
    %v2789 = vunpack.c.h.b16 %v836
    %v2790 = vunpack.c.l.b16 %v837
    %v2791 = vunpack.c.h.b16 %v837
    %v2792 = vunpack.c.l.b16 %v838
    %v2793 = vunpack.c.h.b16 %v838
    %v2794 = vunpack.c.l.b16 %v839
    %v2795 = vunpack.c.h.b16 %v839
    %v2796 = vunpack.c.l.b16 %v840
    %v2797 = vunpack.c.h.b16 %v840
    %v2798 = vunpack.c.l.b16 %v841
    %v2799 = vunpack.c.h.b16 %v841
    %v2800 = vunpack.c.l.b16 %v842
    %v2801 = vunpack.c.h.b16 %v842
    %v2802 = vunpack.c.l.b16 %v843
    %v2803 = vunpack.c.h.b16 %v843
    %v2804 = vunpack.c.l.b16 %v844
    %v2805 = vunpack.c.h.b16 %v844
    %v2806 = vunpack.c.l.b16 %v845
    %v2807 = vunpack.c.h.b16 %v845
    %v2808 = vunpack.c.l.b16 %v846
    %v2809 = vunpack.c.h.b16 %v846
    %v2810 = vunpack.c.l.b16 %v847
    %v2811 = vunpack.c.h.b16 %v847
    %v2812 = vunpack.c.l.b16 %v848
    %v2813 = vunpack.c.h.b16 %v848
    %v2814 = vunpack.c.l.b16 %v849
    %v2815 = vunpack.c.h.b16 %v849
    %v2816 = vunpack.c.l.b16 %v850
    %v2817 = vunpack.c.h.b16 %v850
    %v2818 = vunpack.c.l.b16 %v851
    %v2819 = vunpack.c.h.b16 %v851
    %v2820 = vunpack.c.l.b16 %v852
    %v2821 = vunpack.c.h.b16 %v852
    %v2822 = vunpack.c.l.b16 %v853
    %v2823 = vunpack.c.h.b16 %v853
    %v2824 = vunpack.c.l.b16 %v854
    %v2825 = vunpack.c.h.b16 %v854
    %v2826 = vunpack.c.l.b16 %v855
    %v2827 = vunpack.c.h.b16 %v855
    %v2828 = vunpack.c.l.b16 %v856
    %v2829 = vunpack.c.h.b16 %v856
    %v2830 = vunpack.c.l.b16 %v857
    %v2831 = vunpack.c.h.b16 %v857
    %v2832 = vunpack.c.l.b16 %v858
    %v2833 = vunpack.c.h.b16 %v858
    %v2834 = vunpack.c.l.b16 %v859
    %v2835 = vunpack.c.h.b16 %v859
    %v2836 = vunpack.c.l.b16 %v860
    %v2837 = vunpack.c.h.b16 %v860
    %v2838 = vunpack.c.l.b16 %v861
    %v2839 = vunpack.c.h.b16 %v861
    %v2840 = vunpack.c.l.b16 %v862
    %v2841 = vunpack.c.h.b16 %v862
    %v2842 = vunpack.c.l.b16 %v863
    %v2843 = vunpack.c.h.b16 %v863
    %v2844 = vunpack.c.l.b16 %v864
    %v2845 = vunpack.c.h.b16 %v864
    %v2846 = vunpack.c.l.b16 %v865
    %v2847 = vunpack.c.h.b16 %v865
    %v2848 = vunpack.c.l.b16 %v866
    %v2849 = vunpack.c.h.b16 %v866
    %v2850 = vunpack.c.l.b16 %v867
    %v2851 = vunpack.c.h.b16 %v867
    %v2852 = vunpack.c.l.b16 %v868
    %v2853 = vunpack.c.h.b16 %v868
    %v2854 = vunpack.c.l.b16 %v869
    %v2855 = vunpack.c.h.b16 %v869
    %v2856 = vunpack.c.l.b16 %v870
    %v2857 = vunpack.c.h.b16 %v870
    %v2858 = vunpack.c.l.b16 %v871
    %v2859 = vunpack.c.h.b16 %v871
    %v2860 = vunpack.c.l.b16 %v872
    %v2861 = vunpack.c.h.b16 %v872
    %v2862 = vunpack.c.l.b16 %v873
    %v2863 = vunpack.c.h.b16 %v873
    %v2864 = vunpack.c.l.b16 %v874
    %v2865 = vunpack.c.h.b16 %v874
    %v2866 = vunpack.c.l.b16 %v875
    %v2867 = vunpack.c.h.b16 %v875
    %v2868 = vunpack.c.l.b16 %v876
    %v2869 = vunpack.c.h.b16 %v876
    %v2870 = vunpack.c.l.b16 %v877
    %v2871 = vunpack.c.h.b16 %v877
    %v2872 = vunpack.c.l.b16 %v878
    %v2873 = vunpack.c.h.b16 %v878
    %v2874 = vunpack.c.l.b16 %v879
    %v2875 = vunpack.c.h.b16 %v879
    %v2876 = vunpack.c.l.b16 %v880
    %v2877 = vunpack.c.h.b16 %v880
    %v2878 = vunpack.c.l.b16 %v881
    %v2879 = vunpack.c.h.b16 %v881
    %v2880 = vunpack.c.l.b16 %v882
    %v2881 = vunpack.c.h.b16 %v882
    %v2882 = vunpack.c.l.b16 %v883
    %v2883 = vunpack.c.h.b16 %v883
    %v2884 = vunpack.c.l.b16 %v884
    %v2885 = vunpack.c.h.b16 %v884
    %v2886 = vunpack.c.l.b16 %v885
    %v2887 = vunpack.c.h.b16 %v885
    %v2888 = vunpack.c.l.b16 %v886
    %v2889 = vunpack.c.h.b16 %v886
    %v2890 = vunpack.c.l.b16 %v887
    %v2891 = vunpack.c.h.b16 %v887
    %v2892 = vunpack.c.l.b16 %v888
    %v2893 = vunpack.c.h.b16 %v888
    %v2894 = vunpack.c.l.b16 %v889
    %v2895 = vunpack.c.h.b16 %v889
    %v2896 = vunpack.c.l.b16 %v890
    %v2897 = vunpack.c.h.b16 %v890
    %v2898 = vunpack.c.l.b16 %v891
    %v2899 = vunpack.c.h.b16 %v891
    %v2900 = vunpack.c.l.b16 %v892
    %v2901 = vunpack.c.h.b16 %v892
    %v2902 = vunpack.c.l.b16 %v893
    %v2903 = vunpack.c.h.b16 %v893
    %v2904 = vunpack.c.l.b16 %v894
    %v2905 = vunpack.c.h.b16 %v894
    %v2906 = vunpack.c.l.b16 %v895
    %v2907 = vunpack.c.h.b16 %v895
    %v2908 = vunpack.c.l.b16 %v896
    %v2909 = vunpack.c.h.b16 %v896
    %v2910 = vunpack.c.l.b16 %v897
    %v2911 = vunpack.c.h.b16 %v897
    %v2912 = vunpack.c.l.b16 %v898
    %v2913 = vunpack.c.h.b16 %v898
    %v2914 = vunpack.c.l.b16 %v899
    %v2915 = vunpack.c.h.b16 %v899
    %v2916 = vunpack.c.l.b16 %v900
    %v2917 = vunpack.c.h.b16 %v900
    %v2918 = vunpack.c.l.b16 %v901
    %v2919 = vunpack.c.h.b16 %v901
    %v2920 = vunpack.c.l.b16 %v902
    %v2921 = vunpack.c.h.b16 %v902
    %v2922 = vunpack.c.l.b16 %v903
    %v2923 = vunpack.c.h.b16 %v903
    %v2924 = vunpack.c.l.b16 %v904
    %v2925 = vunpack.c.h.b16 %v904
    %v2926 = vunpack.c.l.b16 %v905
    %v2927 = vunpack.c.h.b16 %v905
    %v2928 = vunpack.c.l.b16 %v906
    %v2929 = vunpack.c.h.b16 %v906
    %v2930 = vunpack.c.l.b16 %v907
    %v2931 = vunpack.c.h.b16 %v907
    %v2932 = vunpack.c.l.b16 %v908
    %v2933 = vunpack.c.h.b16 %v908
    %v2934 = vunpack.c.l.b16 %v909
    %v2935 = vunpack.c.h.b16 %v909
    %v2936 = vunpack.c.l.b16 %v910
    %v2937 = vunpack.c.h.b16 %v910
    %v2938 = vunpack.c.l.b16 %v911
    %v2939 = vunpack.c.h.b16 %v911
    %v2940 = vunpack.c.l.b16 %v912
    %v2941 = vunpack.c.h.b16 %v912
    %v2942 = vunpack.c.l.b16 %v913
    %v2943 = vunpack.c.h.b16 %v913
    %v2944 = vunpack.c.l.b16 %v914
    %v2945 = vunpack.c.h.b16 %v914
    %v2946 = vunpack.c.l.b16 %v915
    %v2947 = vunpack.c.h.b16 %v915
    %v2948 = vunpack.c.l.b16 %v916
    %v2949 = vunpack.c.h.b16 %v916
    %v2950 = vunpack.c.l.b16 %v917
    %v2951 = vunpack.c.h.b16 %v917
    %v2952 = vunpack.c.l.b16 %v918
    %v2953 = vunpack.c.h.b16 %v918
    %v2954 = vunpack.c.l.b16 %v919
    %v2955 = vunpack.c.h.b16 %v919
    %v2956 = vunpack.c.l.b16 %v920
    %v2957 = vunpack.c.h.b16 %v920
    %v2958 = vunpack.c.l.b16 %v921
    %v2959 = vunpack.c.h.b16 %v921
    %v2960 = vunpack.c.l.b16 %v922
    %v2961 = vunpack.c.h.b16 %v922
    %v2962 = vunpack.c.l.b16 %v923
    %v2963 = vunpack.c.h.b16 %v923
    %v2964 = vunpack.c.l.b16 %v924
    %v2965 = vunpack.c.h.b16 %v924
    %v2966 = vunpack.c.l.b16 %v925
    %v2967 = vunpack.c.h.b16 %v925
    %v2968 = vunpack.c.l.b16 %v926
    %v2969 = vunpack.c.h.b16 %v926
    %v2970 = vunpack.c.l.b16 %v927
    %v2971 = vunpack.c.h.b16 %v927
    %v2972 = vunpack.c.l.b16 %v928
    %v2973 = vunpack.c.h.b16 %v928
    %v2974 = vunpack.c.l.b16 %v929
    %v2975 = vunpack.c.h.b16 %v929
    %v2976 = vunpack.c.l.b16 %v930
    %v2977 = vunpack.c.h.b16 %v930
    %v2978 = vunpack.c.l.b16 %v931
    %v2979 = vunpack.c.h.b16 %v931
    %v2980 = vunpack.c.l.b16 %v932
    %v2981 = vunpack.c.h.b16 %v932
    %v2982 = vunpack.c.l.b16 %v933
    %v2983 = vunpack.c.h.b16 %v933
    %v2984 = vunpack.c.l.b16 %v934
    %v2985 = vunpack.c.h.b16 %v934
    %v2986 = vunpack.c.l.b16 %v935
    %v2987 = vunpack.c.h.b16 %v935
    %v2988 = vunpack.c.l.b16 %v936
    %v2989 = vunpack.c.h.b16 %v936
    %v2990 = vunpack.c.l.b16 %v937
    %v2991 = vunpack.c.h.b16 %v937
    %v2992 = vunpack.c.l.b16 %v938
    %v2993 = vunpack.c.h.b16 %v938
    %v2994 = vunpack.c.l.b16 %v939
    %v2995 = vunpack.c.h.b16 %v939
    %v2996 = vunpack.c.l.b16 %v940
    %v2997 = vunpack.c.h.b16 %v940
    %v2998 = vunpack.c.l.b16 %v941
    %v2999 = vunpack.c.h.b16 %v941
    %v3000 = vunpack.c.l.b16 %v942
    %v3001 = vunpack.c.h.b16 %v942
    %v3002 = vunpack.c.l.b16 %v943
    %v3003 = vunpack.c.h.b16 %v943
    %v3004 = vunpack.c.l.b16 %v944
    %v3005 = vunpack.c.h.b16 %v944
    %v3006 = vunpack.c.l.b16 %v945
    %v3007 = vunpack.c.h.b16 %v945
    %v3008 = vunpack.c.l.b16 %v946
    %v3009 = vunpack.c.h.b16 %v946
    %v3010 = vunpack.c.l.b16 %v947
    %v3011 = vunpack.c.h.b16 %v947
    %v3012 = vunpack.c.l.b16 %v948
    %v3013 = vunpack.c.h.b16 %v948
    %v3014 = vunpack.c.l.b16 %v949
    %v3015 = vunpack.c.h.b16 %v949
    %v3016 = vunpack.c.l.b16 %v950
    %v3017 = vunpack.c.h.b16 %v950
    %v3018 = vunpack.c.l.b16 %v951
    %v3019 = vunpack.c.h.b16 %v951
    %v3020 = vunpack.c.l.b16 %v952
    %v3021 = vunpack.c.h.b16 %v952
    %v3022 = vunpack.c.l.b16 %v953
    %v3023 = vunpack.c.h.b16 %v953
    %v3024 = vunpack.c.l.b16 %v954
    %v3025 = vunpack.c.h.b16 %v954
    %v3026 = vunpack.c.l.b16 %v955
    %v3027 = vunpack.c.h.b16 %v955
    %v3028 = vunpack.c.l.b16 %v956
    %v3029 = vunpack.c.h.b16 %v956
    %v3030 = vunpack.c.l.b16 %v957
    %v3031 = vunpack.c.h.b16 %v957
    %v3032 = vunpack.c.l.b16 %v958
    %v3033 = vunpack.c.h.b16 %v958
    %v3034 = vunpack.c.l.b16 %v959
    %v3035 = vunpack.c.h.b16 %v959
    %v3036 = vunpack.c.l.b16 %v960
    %v3037 = vunpack.c.h.b16 %v960
    %v3038 = vunpack.c.l.b16 %v961
    %v3039 = vunpack.c.h.b16 %v961
    %v3040 = vunpack.c.l.b16 %v962
    %v3041 = vunpack.c.h.b16 %v962
    %v3042 = vunpack.c.l.b16 %v963
    %v3043 = vunpack.c.h.b16 %v963
    %v3044 = vunpack.c.l.b16 %v964
    %v3045 = vunpack.c.h.b16 %v964
    %v3046 = vunpack.c.l.b16 %v965
    %v3047 = vunpack.c.h.b16 %v965
    %v3048 = vunpack.c.l.b16 %v966
    %v3049 = vunpack.c.h.b16 %v966
    %v3050 = vunpack.c.l.b16 %v967
    %v3051 = vunpack.c.h.b16 %v967
    %v3052 = vunpack.c.l.b16 %v968
    %v3053 = vunpack.c.h.b16 %v968
    %v3054 = vunpack.c.l.b16 %v969
    %v3055 = vunpack.c.h.b16 %v969
    %v3056 = vunpack.c.l.b16 %v970
    %v3057 = vunpack.c.h.b16 %v970
    %v3058 = vunpack.c.l.b16 %v971
    %v3059 = vunpack.c.h.b16 %v971
    %v3060 = vunpack.c.l.b16 %v972
    %v3061 = vunpack.c.h.b16 %v972
    %v3062 = vunpack.c.l.b16 %v973
    %v3063 = vunpack.c.h.b16 %v973
    %v3064 = vunpack.c.l.b16 %v974
    %v3065 = vunpack.c.h.b16 %v974
    %v3066 = vunpack.c.l.b16 %v975
    %v3067 = vunpack.c.h.b16 %v975
    %v3068 = vunpack.c.l.b16 %v976
    %v3069 = vunpack.c.h.b16 %v976
    %v3070 = vunpack.c.l.b16 %v977
    %v3071 = vunpack.c.h.b16 %v977
    %v3072 = vunpack.c.l.b16 %v978
    %v3073 = vunpack.c.h.b16 %v978
    %v3074 = vunpack.c.l.b16 %v979
    %v3075 = vunpack.c.h.b16 %v979
    %v3076 = vunpack.c.l.b16 %v980
    %v3077 = vunpack.c.h.b16 %v980
    %v3078 = vunpack.c.l.b16 %v981
    %v3079 = vunpack.c.h.b16 %v981
    %v3080 = vunpack.c.l.b16 %v982
    %v3081 = vunpack.c.h.b16 %v982
    %v3082 = vunpack.c.l.b16 %v983
    %v3083 = vunpack.c.h.b16 %v983
    %v3084 = vunpack.c.l.b16 %v984
    %v3085 = vunpack.c.h.b16 %v984
    %v3086 = vunpack.c.l.b16 %v985
    %v3087 = vunpack.c.h.b16 %v985
    %v3088 = vunpack.c.l.b16 %v986
    %v3089 = vunpack.c.h.b16 %v986
    %v3090 = vunpack.c.l.b16 %v987
    %v3091 = vunpack.c.h.b16 %v987
    %v3092 = vunpack.c.l.b16 %v988
    %v3093 = vunpack.c.h.b16 %v988
    %v3094 = vunpack.c.l.b16 %v989
    %v3095 = vunpack.c.h.b16 %v989
    %v3096 = vunpack.c.l.b16 %v990
    %v3097 = vunpack.c.h.b16 %v990
    %v3098 = vunpack.c.l.b16 %v991
    %v3099 = vunpack.c.h.b16 %v991
    %v3100 = vunpack.c.l.b16 %v992
    %v3101 = vunpack.c.h.b16 %v992
    %v3102 = vunpack.c.l.b16 %v993
    %v3103 = vunpack.c.h.b16 %v993
    %v3104 = vunpack.c.l.b16 %v994
    %v3105 = vunpack.c.h.b16 %v994
    %v3106 = vunpack.c.l.b16 %v995
    %v3107 = vunpack.c.h.b16 %v995
    %v3108 = vunpack.c.l.b16 %v996
    %v3109 = vunpack.c.h.b16 %v996
    %v3110 = vunpack.c.l.b16 %v997
    %v3111 = vunpack.c.h.b16 %v997
    %v3112 = vunpack.c.l.b16 %v998
    %v3113 = vunpack.c.h.b16 %v998
    %v3114 = vunpack.c.l.b16 %v999
    %v3115 = vunpack.c.h.b16 %v999
    %v3116 = vunpack.c.l.b16 %v1000
    %v3117 = vunpack.c.h.b16 %v1000
    %v3118 = vunpack.c.l.b16 %v1001
    %v3119 = vunpack.c.h.b16 %v1001
    %v3120 = vunpack.c.l.b16 %v1002
    %v3121 = vunpack.c.h.b16 %v1002
    %v3122 = vunpack.c.l.b16 %v1003
    %v3123 = vunpack.c.h.b16 %v1003
    %v3124 = vunpack.c.l.b16 %v1004
    %v3125 = vunpack.c.h.b16 %v1004
    %v3126 = vunpack.c.l.b16 %v1005
    %v3127 = vunpack.c.h.b16 %v1005
    %v3128 = vunpack.c.l.b16 %v1006
    %v3129 = vunpack.c.h.b16 %v1006
    %v3130 = vunpack.c.l.b16 %v1007
    %v3131 = vunpack.c.h.b16 %v1007
    %v3132 = vunpack.c.l.b16 %v1008
    %v3133 = vunpack.c.h.b16 %v1008
    %v3134 = vunpack.c.l.b16 %v1009
    %v3135 = vunpack.c.h.b16 %v1009
    %v3136 = vunpack.c.l.b16 %v1010
    %v3137 = vunpack.c.h.b16 %v1010
    %v3138 = vunpack.c.l.b16 %v1011
    %v3139 = vunpack.c.h.b16 %v1011
    %v3140 = vunpack.c.l.b16 %v1012
    %v3141 = vunpack.c.h.b16 %v1012
    %v3142 = vunpack.c.l.b16 %v1013
    %v3143 = vunpack.c.h.b16 %v1013
    %v3144 = vunpack.c.l.b16 %v1014
    %v3145 = vunpack.c.h.b16 %v1014
    %v3146 = vunpack.c.l.b16 %v1015
    %v3147 = vunpack.c.h.b16 %v1015
    %v3148 = vunpack.c.l.b16 %v1016
    %v3149 = vunpack.c.h.b16 %v1016
    %v3150 = vunpack.c.l.b16 %v1017
    %v3151 = vunpack.c.h.b16 %v1017
    %v3152 = vunpack.c.l.b16 %v1018
    %v3153 = vunpack.c.h.b16 %v1018
    %v3154 = vunpack.c.l.b16 %v1019
    %v3155 = vunpack.c.h.b16 %v1019
    %v3156 = vunpack.c.l.b16 %v1020
    %v3157 = vunpack.c.h.b16 %v1020
    %v3158 = vunpack.c.l.b16 %v1021
    %v3159 = vunpack.c.h.b16 %v1021
    %v3160 = vunpack.c.l.b16 %v1022
    %v3161 = vunpack.c.h.b16 %v1022
    %v3162 = vunpack.c.l.b16 %v1023
    %v3163 = vunpack.c.h.b16 %v1023
    %v3164 = vunpack.c.l.b16 %v1024
    %v3165 = vunpack.c.h.b16 %v1024
    %v3166 = vunpack.c.l.b16 %v1025
    %v3167 = vunpack.c.h.b16 %v1025
    %v3168 = vunpack.c.l.b16 %v1026
    %v3169 = vunpack.c.h.b16 %v1026
    %v3170 = vunpack.c.l.b16 %v1027
    %v3171 = vunpack.c.h.b16 %v1027
    %v3172 = vunpack.c.l.b16 %v1028
    %v3173 = vunpack.c.h.b16 %v1028
    %v3174 = vunpack.c.l.b16 %v1029
    %v3175 = vunpack.c.h.b16 %v1029
    %v3176 = vunpack.c.l.b16 %v1030
    %v3177 = vunpack.c.h.b16 %v1030
    %v3178 = vunpack.c.l.b16 %v1031
    %v3179 = vunpack.c.h.b16 %v1031
    %v3180 = vunpack.c.l.b16 %v1032
    %v3181 = vunpack.c.h.b16 %v1032
    %v3182 = vunpack.c.l.b16 %v1033
    %v3183 = vunpack.c.h.b16 %v1033
    %v3184 = vunpack.c.l.b16 %v1034
    %v3185 = vunpack.c.h.b16 %v1034
    %v3186 = vunpack.c.l.b16 %v1035
    %v3187 = vunpack.c.h.b16 %v1035
    %v3188 = vunpack.c.l.b16 %v1036
    %v3189 = vunpack.c.h.b16 %v1036
    %v3190 = vunpack.c.l.b16 %v1037
    %v3191 = vunpack.c.h.b16 %v1037
    %v3192 = vunpack.c.l.b16 %v1038
    %v3193 = vunpack.c.h.b16 %v1038
    %v3194 = vunpack.c.l.b16 %v1039
    %v3195 = vunpack.c.h.b16 %v1039
    %v3196 = vunpack.c.l.b16 %v1040
    %v3197 = vunpack.c.h.b16 %v1040
    %v3198 = vunpack.c.l.b16 %v1041
    %v3199 = vunpack.c.h.b16 %v1041
    %v3200 = vunpack.c.l.b16 %v1042
    %v3201 = vunpack.c.h.b16 %v1042
    %v3202 = vunpack.c.l.b16 %v1043
    %v3203 = vunpack.c.h.b16 %v1043
    %v3204 = vunpack.c.l.b16 %v1044
    %v3205 = vunpack.c.h.b16 %v1044
    %v3206 = vunpack.c.l.b16 %v1045
    %v3207 = vunpack.c.h.b16 %v1045
    %v3208 = vunpack.c.l.b16 %v1046
    %v3209 = vunpack.c.h.b16 %v1046
    %v3210 = vunpack.c.l.b16 %v1047
    %v3211 = vunpack.c.h.b16 %v1047
    %v3212 = vunpack.c.l.b16 %v1048
    %v3213 = vunpack.c.h.b16 %v1048
    %v3214 = vunpack.c.l.b16 %v1049
    %v3215 = vunpack.c.h.b16 %v1049
    %v3216 = vunpack.c.l.b16 %v1050
    %v3217 = vunpack.c.h.b16 %v1050
    %v3218 = vunpack.c.l.b16 %v1051
    %v3219 = vunpack.c.h.b16 %v1051
    %v3220 = vunpack.c.l.b16 %v1052
    %v3221 = vunpack.c.h.b16 %v1052
    %v3222 = vunpack.c.l.b16 %v1053
    %v3223 = vunpack.c.h.b16 %v1053
    %v3224 = vunpack.c.l.b16 %v1054
    %v3225 = vunpack.c.h.b16 %v1054
    %v3226 = vunpack.c.l.b16 %v1055
    %v3227 = vunpack.c.h.b16 %v1055
    %v3228 = vunpack.c.l.b16 %v1056
    %v3229 = vunpack.c.h.b16 %v1056
    %v3230 = vunpack.c.l.b16 %v1057
    %v3231 = vunpack.c.h.b16 %v1057
    %v3232 = vunpack.c.l.b16 %v1058
    %v3233 = vunpack.c.h.b16 %v1058
    %v3234 = vunpack.c.l.b16 %v1059
    %v3235 = vunpack.c.h.b16 %v1059
    %v3236 = vunpack.c.l.b16 %v1060
    %v3237 = vunpack.c.h.b16 %v1060
    %v3238 = vunpack.c.l.b16 %v1061
    %v3239 = vunpack.c.h.b16 %v1061
    %v3240 = vunpack.c.l.b16 %v1062
    %v3241 = vunpack.c.h.b16 %v1062
    %v3242 = vunpack.c.l.b16 %v1063
    %v3243 = vunpack.c.h.b16 %v1063
    %v3244 = vunpack.c.l.b16 %v1064
    %v3245 = vunpack.c.h.b16 %v1064
    %v3246 = vunpack.c.l.b16 %v1065
    %v3247 = vunpack.c.h.b16 %v1065
    %v3248 = vunpack.c.l.b16 %v1066
    %v3249 = vunpack.c.h.b16 %v1066
    %v3250 = vunpack.c.l.b16 %v1067
    %v3251 = vunpack.c.h.b16 %v1067
    %v3252 = vunpack.c.l.b16 %v1068
    %v3253 = vunpack.c.h.b16 %v1068
    %v3254 = vunpack.c.l.b16 %v1069
    %v3255 = vunpack.c.h.b16 %v1069
    %v3256 = vunpack.c.l.b16 %v1070
    %v3257 = vunpack.c.h.b16 %v1070
    %v3258 = vunpack.c.l.b16 %v1071
    %v3259 = vunpack.c.h.b16 %v1071
    %v3260 = vunpack.c.l.b16 %v1072
    %v3261 = vunpack.c.h.b16 %v1072
    %v3262 = vunpack.c.l.b16 %v1073
    %v3263 = vunpack.c.h.b16 %v1073
    %v3264 = vunpack.c.l.b16 %v1074
    %v3265 = vunpack.c.h.b16 %v1074
    %v3266 = vunpack.c.l.b16 %v1075
    %v3267 = vunpack.c.h.b16 %v1075
    %v3268 = vunpack.c.l.b16 %v1076
    %v3269 = vunpack.c.h.b16 %v1076
    %v3270 = vunpack.c.l.b16 %v1077
    %v3271 = vunpack.c.h.b16 %v1077
    %v3272 = vunpack.c.l.b16 %v1078
    %v3273 = vunpack.c.h.b16 %v1078
    %v3274 = vunpack.c.l.b16 %v1079
    %v3275 = vunpack.c.h.b16 %v1079
    %v3276 = vunpack.c.l.b16 %v1080
    %v3277 = vunpack.c.h.b16 %v1080
    %v3278 = vunpack.c.l.b16 %v1081
    %v3279 = vunpack.c.h.b16 %v1081
    %v3280 = vunpack.c.l.b16 %v1082
    %v3281 = vunpack.c.h.b16 %v1082
    %v3282 = vunpack.c.l.b16 %v1083
    %v3283 = vunpack.c.h.b16 %v1083
    %v3284 = vunpack.c.l.b16 %v1084
    %v3285 = vunpack.c.h.b16 %v1084
    %v3286 = vunpack.c.l.b16 %v1085
    %v3287 = vunpack.c.h.b16 %v1085
    %v3288 = vunpack.c.l.b16 %v1086
    %v3289 = vunpack.c.h.b16 %v1086
    %v3290 = vunpack.c.l.b16 %v1087
    %v3291 = vunpack.c.h.b16 %v1087
    %v3292 = vunpack.c.l.b16 %v1088
    %v3293 = vunpack.c.h.b16 %v1088
    %v3294 = vunpack.c.l.b16 %v1089
    %v3295 = vunpack.c.h.b16 %v1089
    %v3296 = vunpack.c.l.b16 %v1090
    %v3297 = vunpack.c.h.b16 %v1090
    %v3298 = vunpack.c.l.b16 %v1091
    %v3299 = vunpack.c.h.b16 %v1091
    %v3300 = vunpack.c.l.b16 %v1092
    %v3301 = vunpack.c.h.b16 %v1092
    %v3302 = vunpack.c.l.b16 %v1093
    %v3303 = vunpack.c.h.b16 %v1093
    %v3304 = vunpack.c.l.b16 %v1094
    %v3305 = vunpack.c.h.b16 %v1094
    %v3306 = vunpack.c.l.b16 %v1095
    %v3307 = vunpack.c.h.b16 %v1095
    %v3308 = vunpack.c.l.b16 %v1096
    %v3309 = vunpack.c.h.b16 %v1096
    %v3310 = vunpack.c.l.b16 %v1097
    %v3311 = vunpack.c.h.b16 %v1097
    %v3312 = vunpack.c.l.b16 %v1098
    %v3313 = vunpack.c.h.b16 %v1098
    %v3314 = vunpack.c.l.b16 %v1099
    %v3315 = vunpack.c.h.b16 %v1099
    %v3316 = vunpack.c.l.b16 %v1100
    %v3317 = vunpack.c.h.b16 %v1100
    %v3318 = vunpack.c.l.b16 %v1101
    %v3319 = vunpack.c.h.b16 %v1101
    %v3320 = vunpack.c.l.b16 %v1102
    %v3321 = vunpack.c.h.b16 %v1102
    %v3322 = vunpack.c.l.b16 %v1103
    %v3323 = vunpack.c.h.b16 %v1103
    %v3324 = vunpack.c.l.b16 %v1104
    %v3325 = vunpack.c.h.b16 %v1104
    %v3326 = vunpack.c.l.b16 %v1105
    %v3327 = vunpack.c.h.b16 %v1105
    %v3328 = vunpack.c.l.b16 %v1106
    %v3329 = vunpack.c.h.b16 %v1106
    %v3330 = vunpack.c.l.b16 %v1107
    %v3331 = vunpack.c.h.b16 %v1107
    %v3332 = vunpack.c.l.b16 %v1108
    %v3333 = vunpack.c.h.b16 %v1108
    %v3334 = vunpack.c.l.b16 %v1109
    %v3335 = vunpack.c.h.b16 %v1109
    %v3336 = vunpack.c.l.b16 %v1110
    %v3337 = vunpack.c.h.b16 %v1110
    %v3338 = vunpack.c.l.b16 %v1111
    %v3339 = vunpack.c.h.b16 %v1111
    %v3340 = vunpack.c.l.b16 %v1112
    %v3341 = vunpack.c.h.b16 %v1112
    %v3342 = vunpack.c.l.b16 %v1113
    %v3343 = vunpack.c.h.b16 %v1113
    %v3344 = vunpack.c.l.b16 %v1114
    %v3345 = vunpack.c.h.b16 %v1114
    %v3346 = vunpack.c.l.b16 %v1115
    %v3347 = vunpack.c.h.b16 %v1115
    %v3348 = vunpack.c.l.b16 %v1116
    %v3349 = vunpack.c.h.b16 %v1116
    %v3350 = vunpack.c.l.b16 %v1117
    %v3351 = vunpack.c.h.b16 %v1117
    %v3352 = vunpack.c.l.b16 %v1118
    %v3353 = vunpack.c.h.b16 %v1118
    %v3354 = vunpack.c.l.b16 %v1119
    %v3355 = vunpack.c.h.b16 %v1119
    %v3356 = vunpack.c.l.b16 %v1120
    %v3357 = vunpack.c.h.b16 %v1120
    %v3358 = vunpack.c.l.b16 %v1121
    %v3359 = vunpack.c.h.b16 %v1121
    %v3360 = vunpack.c.l.b16 %v1122
    %v3361 = vunpack.c.h.b16 %v1122
    %v3362 = vunpack.c.l.b16 %v1123
    %v3363 = vunpack.c.h.b16 %v1123
    %v3364 = vunpack.c.l.b16 %v1124
    %v3365 = vunpack.c.h.b16 %v1124
    %v3366 = vunpack.c.l.b16 %v1125
    %v3367 = vunpack.c.h.b16 %v1125
    %v3368 = vunpack.c.l.b16 %v1126
    %v3369 = vunpack.c.h.b16 %v1126
    %v3370 = vunpack.c.l.b16 %v1127
    %v3371 = vunpack.c.h.b16 %v1127
    %v3372 = vunpack.c.l.b16 %v1128
    %v3373 = vunpack.c.h.b16 %v1128
    %v3374 = vunpack.c.l.b16 %v1129
    %v3375 = vunpack.c.h.b16 %v1129
    %v3376 = vunpack.c.l.b16 %v1130
    %v3377 = vunpack.c.h.b16 %v1130
    %v3378 = vunpack.c.l.b16 %v1131
    %v3379 = vunpack.c.h.b16 %v1131
    %v3380 = vunpack.c.l.b16 %v1132
    %v3381 = vunpack.c.h.b16 %v1132
    %v3382 = vunpack.c.l.b16 %v1133
    %v3383 = vunpack.c.h.b16 %v1133
    %v3384 = vunpack.c.l.b16 %v1134
    %v3385 = vunpack.c.h.b16 %v1134
    %v3386 = vunpack.c.l.b16 %v1135
    %v3387 = vunpack.c.h.b16 %v1135
    %v3388 = vunpack.c.l.b16 %v1136
    %v3389 = vunpack.c.h.b16 %v1136
    %v3390 = vunpack.c.l.b16 %v1137
    %v3391 = vunpack.c.h.b16 %v1137
    %v3392 = vunpack.c.l.b16 %v1138
    %v3393 = vunpack.c.h.b16 %v1138
    %v3394 = vunpack.c.l.b16 %v1139
    %v3395 = vunpack.c.h.b16 %v1139
    %v3396 = vunpack.c.l.b16 %v1140
    %v3397 = vunpack.c.h.b16 %v1140
    %v3398 = vunpack.c.l.b16 %v1141
    %v3399 = vunpack.c.h.b16 %v1141
    %v3400 = vunpack.c.l.b16 %v1142
    %v3401 = vunpack.c.h.b16 %v1142
    %v3402 = vunpack.c.l.b16 %v1143
    %v3403 = vunpack.c.h.b16 %v1143
    %v3404 = vunpack.c.l.b16 %v1144
    %v3405 = vunpack.c.h.b16 %v1144
    %v3406 = vunpack.c.l.b16 %v1145
    %v3407 = vunpack.c.h.b16 %v1145
    %v3408 = vunpack.c.l.b16 %v1146
    %v3409 = vunpack.c.h.b16 %v1146
    %v3410 = vunpack.c.l.b16 %v1147
    %v3411 = vunpack.c.h.b16 %v1147
    %v3412 = vunpack.c.l.b16 %v1148
    %v3413 = vunpack.c.h.b16 %v1148
    %v3414 = vunpack.c.l.b16 %v1149
    %v3415 = vunpack.c.h.b16 %v1149
    %v3416 = vunpack.c.l.b16 %v1150
    %v3417 = vunpack.c.h.b16 %v1150
    %v3418 = vunpack.c.l.b16 %v1151
    %v3419 = vunpack.c.h.b16 %v1151
    %v3420 = vunpack.c.l.b16 %v1152
    %v3421 = vunpack.c.h.b16 %v1152
    %v3422 = vunpack.c.l.b16 %v1153
    %v3423 = vunpack.c.h.b16 %v1153
    %v3424 = vunpack.c.l.b16 %v1154
    %v3425 = vunpack.c.h.b16 %v1154
    %v3426 = vunpack.c.l.b16 %v1155
    %v3427 = vunpack.c.h.b16 %v1155
    %v3428 = vunpack.c.l.b16 %v1156
    %v3429 = vunpack.c.h.b16 %v1156
    %v3430 = vunpack.c.l.b16 %v1157
    %v3431 = vunpack.c.h.b16 %v1157
    %v3432 = vunpack.c.l.b16 %v1158
    %v3433 = vunpack.c.h.b16 %v1158
    %v3434 = vunpack.c.l.b16 %v1159
    %v3435 = vunpack.c.h.b16 %v1159
    %v3436 = vunpack.c.l.b16 %v1160
    %v3437 = vunpack.c.h.b16 %v1160
    %v3438 = vunpack.c.l.b16 %v1161
    %v3439 = vunpack.c.h.b16 %v1161
    %v3440 = vunpack.c.l.b16 %v1162
    %v3441 = vunpack.c.h.b16 %v1162
    %v3442 = vunpack.c.l.b16 %v1163
    %v3443 = vunpack.c.h.b16 %v1163
    %v3444 = vunpack.c.l.b16 %v1164
    %v3445 = vunpack.c.h.b16 %v1164
    %v3446 = vunpack.c.l.b16 %v1165
    %v3447 = vunpack.c.h.b16 %v1165
    %v3448 = vunpack.c.l.b16 %v1166
    %v3449 = vunpack.c.h.b16 %v1166
    %v3450 = vunpack.c.l.b16 %v1167
    %v3451 = vunpack.c.h.b16 %v1167
    %v3452 = vunpack.c.l.b16 %v1168
    %v3453 = vunpack.c.h.b16 %v1168
    %v3454 = vunpack.c.l.b16 %v1169
    %v3455 = vunpack.c.h.b16 %v1169
    %v3456 = vunpack.c.l.b16 %v1170
    %v3457 = vunpack.c.h.b16 %v1170
    %v3458 = vunpack.c.l.b16 %v1171
    %v3459 = vunpack.c.h.b16 %v1171
    %v3460 = vunpack.c.l.b16 %v1172
    %v3461 = vunpack.c.h.b16 %v1172
    %v3462 = vunpack.c.l.b16 %v1173
    %v3463 = vunpack.c.h.b16 %v1173
    %v3464 = vunpack.c.l.b16 %v1174
    %v3465 = vunpack.c.h.b16 %v1174
    %v3466 = vunpack.c.l.b16 %v1175
    %v3467 = vunpack.c.h.b16 %v1175
    %v3468 = vunpack.c.l.b16 %v1176
    %v3469 = vunpack.c.h.b16 %v1176
    %v3470 = vunpack.c.l.b16 %v1177
    %v3471 = vunpack.c.h.b16 %v1177
    %v3472 = vunpack.c.l.b16 %v1178
    %v3473 = vunpack.c.h.b16 %v1178
    %v3474 = vunpack.c.l.b16 %v1179
    %v3475 = vunpack.c.h.b16 %v1179
    %v3476 = vunpack.c.l.b16 %v1180
    %v3477 = vunpack.c.h.b16 %v1180
    %v3478 = vunpack.c.l.b16 %v1181
    %v3479 = vunpack.c.h.b16 %v1181
    %v3480 = vunpack.c.l.b16 %v1182
    %v3481 = vunpack.c.h.b16 %v1182
    %v3482 = vunpack.c.l.b16 %v1183
    %v3483 = vunpack.c.h.b16 %v1183
    %v3484 = vunpack.c.l.b16 %v1184
    %v3485 = vunpack.c.h.b16 %v1184
    %v3486 = vunpack.c.l.b16 %v1185
    %v3487 = vunpack.c.h.b16 %v1185
    %v3488 = vunpack.c.l.b16 %v1186
    %v3489 = vunpack.c.h.b16 %v1186
    %v3490 = vunpack.c.l.b16 %v1187
    %v3491 = vunpack.c.h.b16 %v1187
    %v3492 = vunpack.c.l.b16 %v1188
    %v3493 = vunpack.c.h.b16 %v1188
    %v3494 = vunpack.c.l.b16 %v1189
    %v3495 = vunpack.c.h.b16 %v1189
    %v3496 = vunpack.c.l.b16 %v1190
    %v3497 = vunpack.c.h.b16 %v1190
    %v3498 = vunpack.c.l.b16 %v1191
    %v3499 = vunpack.c.h.b16 %v1191
    %v3500 = vunpack.c.l.b16 %v1192
    %v3501 = vunpack.c.h.b16 %v1192
    %v3502 = vunpack.c.l.b16 %v1193
    %v3503 = vunpack.c.h.b16 %v1193
    %v3504 = vunpack.c.l.b16 %v1194
    %v3505 = vunpack.c.h.b16 %v1194
    %v3506 = vunpack.c.l.b16 %v1195
    %v3507 = vunpack.c.h.b16 %v1195
    %v3508 = vunpack.c.l.b16 %v1196
    %v3509 = vunpack.c.h.b16 %v1196
    %v3510 = vunpack.c.l.b16 %v1197
    %v3511 = vunpack.c.h.b16 %v1197
    %v3512 = vunpack.c.l.b16 %v1198
    %v3513 = vunpack.c.h.b16 %v1198
    %v3514 = vunpack.c.l.b16 %v1199
    %v3515 = vunpack.c.h.b16 %v1199
    %v3516 = vunpack.c.l.b16 %v1200
    %v3517 = vunpack.c.h.b16 %v1200
    %v3518 = vunpack.c.l.b16 %v1201
    %v3519 = vunpack.c.h.b16 %v1201
    %v3520 = vunpack.c.l.b16 %v1202
    %v3521 = vunpack.c.h.b16 %v1202
    %v3522 = vunpack.c.l.b16 %v1203
    %v3523 = vunpack.c.h.b16 %v1203
    %v3524 = vunpack.c.l.b16 %v1204
    %v3525 = vunpack.c.h.b16 %v1204
    %v3526 = vunpack.c.l.b16 %v1205
    %v3527 = vunpack.c.h.b16 %v1205
    %v3528 = vunpack.c.l.b16 %v1206
    %v3529 = vunpack.c.h.b16 %v1206
    %v3530 = vunpack.c.l.b16 %v1207
    %v3531 = vunpack.c.h.b16 %v1207
    %v3532 = vunpack.c.l.b16 %v1208
    %v3533 = vunpack.c.h.b16 %v1208
    %v3534 = vunpack.c.l.b16 %v1209
    %v3535 = vunpack.c.h.b16 %v1209
    %v3536 = vunpack.c.l.b16 %v1210
    %v3537 = vunpack.c.h.b16 %v1210
    %v3538 = vunpack.c.l.b16 %v1211
    %v3539 = vunpack.c.h.b16 %v1211
    %v3540 = vunpack.c.l.b16 %v1212
    %v3541 = vunpack.c.h.b16 %v1212
    %v3542 = vunpack.c.l.b16 %v1213
    %v3543 = vunpack.c.h.b16 %v1213
    %v3544 = vunpack.c.l.b16 %v1214
    %v3545 = vunpack.c.h.b16 %v1214
    %v3546 = vunpack.c.l.b16 %v1215
    %v3547 = vunpack.c.h.b16 %v1215
    %v3548 = vunpack.c.l.b16 %v1216
    %v3549 = vunpack.c.h.b16 %v1216
    %v3550 = vunpack.c.l.b16 %v1217
    %v3551 = vunpack.c.h.b16 %v1217
    %v3552 = vunpack.c.l.b16 %v1218
    %v3553 = vunpack.c.h.b16 %v1218
    %v3554 = vunpack.c.l.b16 %v1219
    %v3555 = vunpack.c.h.b16 %v1219
    %v3556 = vunpack.c.l.b16 %v1220
    %v3557 = vunpack.c.h.b16 %v1220
    %v3558 = vunpack.c.l.b16 %v1221
    %v3559 = vunpack.c.h.b16 %v1221
    %v3560 = vunpack.c.l.b16 %v1222
    %v3561 = vunpack.c.h.b16 %v1222
    %v3562 = vunpack.c.l.b16 %v1223
    %v3563 = vunpack.c.h.b16 %v1223
    %v3564 = vunpack.c.l.b16 %v1224
    %v3565 = vunpack.c.h.b16 %v1224
    %v3566 = vunpack.c.l.b16 %v1225
    %v3567 = vunpack.c.h.b16 %v1225
    %v3568 = vunpack.c.l.b16 %v1226
    %v3569 = vunpack.c.h.b16 %v1226
    %v3570 = vunpack.c.l.b16 %v1227
    %v3571 = vunpack.c.h.b16 %v1227
    %v3572 = vunpack.c.l.b16 %v1228
    %v3573 = vunpack.c.h.b16 %v1228
    %v3574 = vunpack.c.l.b16 %v1229
    %v3575 = vunpack.c.h.b16 %v1229
    %v3576 = vpack.c.b16 %v2048, %v2040
    %v3577 = vpack.c.b16 %v2049, %v2041
    %v3578 = vpack.c.b16 %v2050, %v2042
    %v3579 = vpack.c.b16 %v2051, %v2043
    %v3580 = vpack.c.b16 %v2052, %v2044
    %v3581 = vpack.c.b16 %v2053, %v2045
    %v3582 = vpack.c.b16 %v2054, %v2046
    %v3583 = vpack.c.b16 %v2055, %v2047
    %v3584 = vpack.c.b16 %v2064, %v2056
    %v3585 = vpack.c.b16 %v2065, %v2057
    %v3586 = vpack.c.b16 %v2066, %v2058
    %v3587 = vpack.c.b16 %v2067, %v2059
    %v3588 = vpack.c.b16 %v2068, %v2060
    %v3589 = vpack.c.b16 %v2069, %v2061
    %v3590 = vpack.c.b16 %v2070, %v2062
    %v3591 = vpack.c.b16 %v2071, %v2063
    %v3592 = vpack.c.b16 %v2080, %v2072
    %v3593 = vpack.c.b16 %v2081, %v2073
    %v3594 = vpack.c.b16 %v2082, %v2074
    %v3595 = vpack.c.b16 %v2083, %v2075
    %v3596 = vpack.c.b16 %v2084, %v2076
    %v3597 = vpack.c.b16 %v2085, %v2077
    %v3598 = vpack.c.b16 %v2086, %v2078
    %v3599 = vpack.c.b16 %v2087, %v2079
    %v3600 = vpack.c.b16 %v2096, %v2088
    %v3601 = vpack.c.b16 %v2097, %v2089
    %v3602 = vpack.c.b16 %v2098, %v2090
    %v3603 = vpack.c.b16 %v2099, %v2091
    %v3604 = vpack.c.b16 %v2100, %v2092
    %v3605 = vpack.c.b16 %v2101, %v2093
    %v3606 = vpack.c.b16 %v2102, %v2094
    %v3607 = vpack.c.b16 %v2103, %v2095
    %v3608 = vpack.c.b16 %v2112, %v2104
    %v3609 = vpack.c.b16 %v2113, %v2105
    %v3610 = vpack.c.b16 %v2114, %v2106
    %v3611 = vpack.c.b16 %v2115, %v2107
    %v3612 = vpack.c.b16 %v2116, %v2108
    %v3613 = vpack.c.b16 %v2117, %v2109
    %v3614 = vpack.c.b16 %v2118, %v2110
    %v3615 = vpack.c.b16 %v2119, %v2111
    %v3616 = vpack.c.b16 %v2128, %v2120
    %v3617 = vpack.c.b16 %v2129, %v2121
    %v3618 = vpack.c.b16 %v2130, %v2122
    %v3619 = vpack.c.b16 %v2131, %v2123
    %v3620 = vpack.c.b16 %v2132, %v2124
    %v3621 = vpack.c.b16 %v2133, %v2125
    %v3622 = vpack.c.b16 %v2134, %v2126
    %v3623 = vpack.c.b16 %v2135, %v2127
    %v3624 = vpack.c.b16 %v2144, %v2136
    %v3625 = vpack.c.b16 %v2145, %v2137
    %v3626 = vpack.c.b16 %v2146, %v2138
    %v3627 = vpack.c.b16 %v2147, %v2139
    %v3628 = vpack.c.b16 %v2148, %v2140
    %v3629 = vpack.c.b16 %v2149, %v2141
    %v3630 = vpack.c.b16 %v2150, %v2142
    %v3631 = vpack.c.b16 %v2151, %v2143
    %v3632 = vpack.c.b16 %v2160, %v2152
    %v3633 = vpack.c.b16 %v2161, %v2153
    %v3634 = vpack.c.b16 %v2162, %v2154
    %v3635 = vpack.c.b16 %v2163, %v2155
    %v3636 = vpack.c.b16 %v2164, %v2156
    %v3637 = vpack.c.b16 %v2165, %v2157
    %v3638 = vpack.c.b16 %v2166, %v2158
    %v3639 = vpack.c.b16 %v2167, %v2159
    %v3640 = vpack.c.b16 %v2176, %v2168
    %v3641 = vpack.c.b16 %v2177, %v2169
    %v3642 = vpack.c.b16 %v2178, %v2170
    %v3643 = vpack.c.b16 %v2179, %v2171
    %v3644 = vpack.c.b16 %v2180, %v2172
    %v3645 = vpack.c.b16 %v2181, %v2173
    %v3646 = vpack.c.b16 %v2182, %v2174
    %v3647 = vpack.c.b16 %v2183, %v2175
    %v3648 = vpack.c.b16 %v2192, %v2184
    %v3649 = vpack.c.b16 %v2193, %v2185
    %v3650 = vpack.c.b16 %v2194, %v2186
    %v3651 = vpack.c.b16 %v2195, %v2187
    %v3652 = vpack.c.b16 %v2196, %v2188
    %v3653 = vpack.c.b16 %v2197, %v2189
    %v3654 = vpack.c.b16 %v2198, %v2190
    %v3655 = vpack.c.b16 %v2199, %v2191
    %v3656 = vpack.c.b16 %v2208, %v2200
    %v3657 = vpack.c.b16 %v2209, %v2201
    %v3658 = vpack.c.b16 %v2210, %v2202
    %v3659 = vpack.c.b16 %v2211, %v2203
    %v3660 = vpack.c.b16 %v2212, %v2204
    %v3661 = vpack.c.b16 %v2213, %v2205
    %v3662 = vpack.c.b16 %v2214, %v2206
    %v3663 = vpack.c.b16 %v2215, %v2207
    %v3664 = vpack.c.b16 %v2224, %v2216
    %v3665 = vpack.c.b16 %v2225, %v2217
    %v3666 = vpack.c.b16 %v2226, %v2218
    %v3667 = vpack.c.b16 %v2227, %v2219
    %v3668 = vpack.c.b16 %v2228, %v2220
    %v3669 = vpack.c.b16 %v2229, %v2221
    %v3670 = vpack.c.b16 %v2230, %v2222
    %v3671 = vpack.c.b16 %v2231, %v2223
    %v3672 = vpack.c.b16 %v2240, %v2232
    %v3673 = vpack.c.b16 %v2241, %v2233
    %v3674 = vpack.c.b16 %v2242, %v2234
    %v3675 = vpack.c.b16 %v2243, %v2235
    %v3676 = vpack.c.b16 %v2244, %v2236
    %v3677 = vpack.c.b16 %v2245, %v2237
    %v3678 = vpack.c.b16 %v2246, %v2238
    %v3679 = vpack.c.b16 %v2247, %v2239
    %v3680 = vpack.c.b16 %v2256, %v2248
    %v3681 = vpack.c.b16 %v2257, %v2249
    %v3682 = vpack.c.b16 %v2258, %v2250
    %v3683 = vpack.c.b16 %v2259, %v2251
    %v3684 = vpack.c.b16 %v2260, %v2252
    %v3685 = vpack.c.b16 %v2261, %v2253
    %v3686 = vpack.c.b16 %v2262, %v2254
    %v3687 = vpack.c.b16 %v2263, %v2255
    %v3688 = vpack.c.b16 %v2272, %v2264
    %v3689 = vpack.c.b16 %v2273, %v2265
    %v3690 = vpack.c.b16 %v2274, %v2266
    %v3691 = vpack.c.b16 %v2275, %v2267
    %v3692 = vpack.c.b16 %v2276, %v2268
    %v3693 = vpack.c.b16 %v2277, %v2269
    %v3694 = vpack.c.b16 %v2278, %v2270
    %v3695 = vpack.c.b16 %v2279, %v2271
    %v3696 = vpack.c.b16 %v2288, %v2280
    %v3697 = vpack.c.b16 %v2289, %v2281
    %v3698 = vpack.c.b16 %v2290, %v2282
    %v3699 = vpack.c.b16 %v2291, %v2283
    %v3700 = vpack.c.b16 %v2292, %v2284
    %v3701 = vpack.c.b16 %v2293, %v2285
    %v3702 = vpack.c.b16 %v2294, %v2286
    %v3703 = vpack.c.b16 %v2295, %v2287
    %v3704 = vpack.c.b16 %v2304, %v2296
    %v3705 = vpack.c.b16 %v2305, %v2297
    %v3706 = vpack.c.b16 %v2306, %v2298
    %v3707 = vpack.c.b16 %v2307, %v2299
    %v3708 = vpack.c.b16 %v2308, %v2300
    %v3709 = vpack.c.b16 %v2309, %v2301
    %v3710 = vpack.c.b16 %v2310, %v2302
    %v3711 = vpack.c.b16 %v2311, %v2303
    %v3712 = vpack.c.b16 %v2320, %v2312
    %v3713 = vpack.c.b16 %v2321, %v2313
    %v3714 = vpack.c.b16 %v2322, %v2314
    %v3715 = vpack.c.b16 %v2323, %v2315
    %v3716 = vpack.c.b16 %v2324, %v2316
    %v3717 = vpack.c.b16 %v2325, %v2317
    %v3718 = vpack.c.b16 %v2326, %v2318
    %v3719 = vpack.c.b16 %v2327, %v2319
    %v3720 = vpack.c.b16 %v2336, %v2328
    %v3721 = vpack.c.b16 %v2337, %v2329
    %v3722 = vpack.c.b16 %v2338, %v2330
    %v3723 = vpack.c.b16 %v2339, %v2331
    %v3724 = vpack.c.b16 %v2340, %v2332
    %v3725 = vpack.c.b16 %v2341, %v2333
    %v3726 = vpack.c.b16 %v2342, %v2334
    %v3727 = vpack.c.b16 %v2343, %v2335
    %v3728 = vpack.c.b16 %v2352, %v2344
    %v3729 = vpack.c.b16 %v2353, %v2345
    %v3730 = vpack.c.b16 %v2354, %v2346
    %v3731 = vpack.c.b16 %v2355, %v2347
    %v3732 = vpack.c.b16 %v2356, %v2348
    %v3733 = vpack.c.b16 %v2357, %v2349
    %v3734 = vpack.c.b16 %v2358, %v2350
    %v3735 = vpack.c.b16 %v2359, %v2351
    %v3736 = vpack.c.b16 %v2368, %v2360
    %v3737 = vpack.c.b16 %v2369, %v2361
    %v3738 = vpack.c.b16 %v2370, %v2362
    %v3739 = vpack.c.b16 %v2371, %v2363
    %v3740 = vpack.c.b16 %v2372, %v2364
    %v3741 = vpack.c.b16 %v2373, %v2365
    %v3742 = vpack.c.b16 %v2374, %v2366
    %v3743 = vpack.c.b16 %v2375, %v2367
    %v3744 = vpack.c.b16 %v2384, %v2376
    %v3745 = vpack.c.b16 %v2385, %v2377
    %v3746 = vpack.c.b16 %v2386, %v2378
    %v3747 = vpack.c.b16 %v2387, %v2379
    %v3748 = vpack.c.b16 %v2388, %v2380
    %v3749 = vpack.c.b16 %v2389, %v2381
    %v3750 = vpack.c.b16 %v2390, %v2382
    %v3751 = vpack.c.b16 %v2391, %v2383
    %v3752 = vpack.c.b16 %v2400, %v2392
    %v3753 = vpack.c.b16 %v2401, %v2393
    %v3754 = vpack.c.b16 %v2402, %v2394
    %v3755 = vpack.c.b16 %v2403, %v2395
    %v3756 = vpack.c.b16 %v2404, %v2396
    %v3757 = vpack.c.b16 %v2405, %v2397
    %v3758 = vpack.c.b16 %v2406, %v2398
    %v3759 = vpack.c.b16 %v2407, %v2399
    %v3760 = vpack.c.b16 %v2416, %v2408
    %v3761 = vpack.c.b16 %v2417, %v2409
    %v3762 = vpack.c.b16 %v2418, %v2410
    %v3763 = vpack.c.b16 %v2419, %v2411
    %v3764 = vpack.c.b16 %v2420, %v2412
    %v3765 = vpack.c.b16 %v2421, %v2413
    %v3766 = vpack.c.b16 %v2422, %v2414
    %v3767 = vpack.c.b16 %v2423, %v2415
    %v3768 = vpack.c.b16 %v2432, %v2424
    %v3769 = vpack.c.b16 %v2433, %v2425
    %v3770 = vpack.c.b16 %v2434, %v2426
    %v3771 = vpack.c.b16 %v2435, %v2427
    %v3772 = vpack.c.b16 %v2436, %v2428
    %v3773 = vpack.c.b16 %v2437, %v2429
    %v3774 = vpack.c.b16 %v2438, %v2430
    %v3775 = vpack.c.b16 %v2439, %v2431
    %v3776 = vpack.c.b16 %v2448, %v2440
    %v3777 = vpack.c.b16 %v2449, %v2441
    %v3778 = vpack.c.b16 %v2450, %v2442
    %v3779 = vpack.c.b16 %v2451, %v2443
    %v3780 = vpack.c.b16 %v2452, %v2444
    %v3781 = vpack.c.b16 %v2453, %v2445
    %v3782 = vpack.c.b16 %v2454, %v2446
    %v3783 = vpack.c.b16 %v2455, %v2447
    %v3784 = vpack.c.b16 %v2464, %v2456
    %v3785 = vpack.c.b16 %v2465, %v2457
    %v3786 = vpack.c.b16 %v2466, %v2458
    %v3787 = vpack.c.b16 %v2467, %v2459
    %v3788 = vpack.c.b16 %v2468, %v2460
    %v3789 = vpack.c.b16 %v2469, %v2461
    %v3790 = vpack.c.b16 %v2470, %v2462
    %v3791 = vpack.c.b16 %v2471, %v2463
    %v3792 = vpack.c.b16 %v2480, %v2472
    %v3793 = vpack.c.b16 %v2481, %v2473
    %v3794 = vpack.c.b16 %v2482, %v2474
    %v3795 = vpack.c.b16 %v2483, %v2475
    %v3796 = vpack.c.b16 %v2484, %v2476
    %v3797 = vpack.c.b16 %v2485, %v2477
    %v3798 = vpack.c.b16 %v2486, %v2478
    %v3799 = vpack.c.b16 %v2487, %v2479
    %v3800 = vpack.c.b16 %v2496, %v2488
    %v3801 = vpack.c.b16 %v2497, %v2489
    %v3802 = vpack.c.b16 %v2498, %v2490
    %v3803 = vpack.c.b16 %v2499, %v2491
    %v3804 = vpack.c.b16 %v2500, %v2492
    %v3805 = vpack.c.b16 %v2501, %v2493
    %v3806 = vpack.c.b16 %v2502, %v2494
    %v3807 = vpack.c.b16 %v2503, %v2495
    %v3808 = vpack.c.b16 %v2512, %v2504
    %v3809 = vpack.c.b16 %v2513, %v2505
    %v3810 = vpack.c.b16 %v2514, %v2506
    %v3811 = vpack.c.b16 %v2515, %v2507
    %v3812 = vpack.c.b16 %v2516, %v2508
    %v3813 = vpack.c.b16 %v2517, %v2509
    %v3814 = vpack.c.b16 %v2518, %v2510
    %v3815 = vpack.c.b16 %v2519, %v2511
    %v3816 = vpack.c.b16 %v2528, %v2520
    %v3817 = vpack.c.b16 %v2529, %v2521
    %v3818 = vpack.c.b16 %v2530, %v2522
    %v3819 = vpack.c.b16 %v2531, %v2523
    %v3820 = vpack.c.b16 %v2532, %v2524
    %v3821 = vpack.c.b16 %v2533, %v2525
    %v3822 = vpack.c.b16 %v2534, %v2526
    %v3823 = vpack.c.b16 %v2535, %v2527
    %v3824 = vpack.c.b16 %v2544, %v2536
    %v3825 = vpack.c.b16 %v2545, %v2537
    %v3826 = vpack.c.b16 %v2546, %v2538
    %v3827 = vpack.c.b16 %v2547, %v2539
    %v3828 = vpack.c.b16 %v2548, %v2540
    %v3829 = vpack.c.b16 %v2549, %v2541
    %v3830 = vpack.c.b16 %v2550, %v2542
    %v3831 = vpack.c.b16 %v2551, %v2543
    %v3832 = vpack.c.b16 %v2560, %v2552
    %v3833 = vpack.c.b16 %v2561, %v2553
    %v3834 = vpack.c.b16 %v2562, %v2554
    %v3835 = vpack.c.b16 %v2563, %v2555
    %v3836 = vpack.c.b16 %v2564, %v2556
    %v3837 = vpack.c.b16 %v2565, %v2557
    %v3838 = vpack.c.b16 %v2566, %v2558
    %v3839 = vpack.c.b16 %v2567, %v2559
    %v3840 = vpack.c.b16 %v2576, %v2568
    %v3841 = vpack.c.b16 %v2577, %v2569
    %v3842 = vpack.c.b16 %v2578, %v2570
    %v3843 = vpack.c.b16 %v2579, %v2571
    %v3844 = vpack.c.b16 %v2580, %v2572
    %v3845 = vpack.c.b16 %v2581, %v2573
    %v3846 = vpack.c.b16 %v2582, %v2574
    %v3847 = vpack.c.b16 %v2583, %v2575
    %v3848 = vpack.c.b16 %v2592, %v2584
    %v3849 = vpack.c.b16 %v2593, %v2585
    %v3850 = vpack.c.b16 %v2594, %v2586
    %v3851 = vpack.c.b16 %v2595, %v2587
    %v3852 = vpack.c.b16 %v2596, %v2588
    %v3853 = vpack.c.b16 %v2597, %v2589
    %v3854 = vpack.c.b16 %v2598, %v2590
    %v3855 = vpack.c.b16 %v2599, %v2591
    %v3856 = vpack.c.b16 %v2608, %v2600
    %v3857 = vpack.c.b16 %v2609, %v2601
    %v3858 = vpack.c.b16 %v2610, %v2602
    %v3859 = vpack.c.b16 %v2611, %v2603
    %v3860 = vpack.c.b16 %v2612, %v2604
    %v3861 = vpack.c.b16 %v2613, %v2605
    %v3862 = vpack.c.b16 %v2614, %v2606
    %v3863 = vpack.c.b16 %v2615, %v2607
    %v3864 = vpack.c.b16 %v2624, %v2616
    %v3865 = vpack.c.b16 %v2625, %v2617
    %v3866 = vpack.c.b16 %v2626, %v2618
    %v3867 = vpack.c.b16 %v2627, %v2619
    %v3868 = vpack.c.b16 %v2628, %v2620
    %v3869 = vpack.c.b16 %v2629, %v2621
    %v3870 = vpack.c.b16 %v2630, %v2622
    %v3871 = vpack.c.b16 %v2631, %v2623
    %v3872 = vpack.c.b16 %v2640, %v2632
    %v3873 = vpack.c.b16 %v2641, %v2633
    %v3874 = vpack.c.b16 %v2642, %v2634
    %v3875 = vpack.c.b16 %v2643, %v2635
    %v3876 = vpack.c.b16 %v2644, %v2636
    %v3877 = vpack.c.b16 %v2645, %v2637
    %v3878 = vpack.c.b16 %v2646, %v2638
    %v3879 = vpack.c.b16 %v2647, %v2639
    %v3880 = vpack.c.b16 %v2656, %v2648
    %v3881 = vpack.c.b16 %v2657, %v2649
    %v3882 = vpack.c.b16 %v2658, %v2650
    %v3883 = vpack.c.b16 %v2659, %v2651
    %v3884 = vpack.c.b16 %v2660, %v2652
    %v3885 = vpack.c.b16 %v2661, %v2653
    %v3886 = vpack.c.b16 %v2662, %v2654
    %v3887 = vpack.c.b16 %v2663, %v2655
    %v3888 = vpack.c.b16 %v2672, %v2664
    %v3889 = vpack.c.b16 %v2673, %v2665
    %v3890 = vpack.c.b16 %v2674, %v2666
    %v3891 = vpack.c.b16 %v2675, %v2667
    %v3892 = vpack.c.b16 %v2676, %v2668
    %v3893 = vpack.c.b16 %v2677, %v2669
    %v3894 = vpack.c.b16 %v2678, %v2670
    %v3895 = vpack.c.b16 %v2679, %v2671
    %v3896 = vpack.c.b16 %v2688, %v2680
    %v3897 = vpack.c.b16 %v2689, %v2681
    %v3898 = vpack.c.b16 %v2690, %v2682
    %v3899 = vpack.c.b16 %v2691, %v2683
    %v3900 = vpack.c.b16 %v2692, %v2684
    %v3901 = vpack.c.b16 %v2693, %v2685
    %v3902 = vpack.c.b16 %v2694, %v2686
    %v3903 = vpack.c.b16 %v2695, %v2687
    %v3904 = vpack.c.b16 %v2704, %v2696
    %v3905 = vpack.c.b16 %v2705, %v2697
    %v3906 = vpack.c.b16 %v2706, %v2698
    %v3907 = vpack.c.b16 %v2707, %v2699
    %v3908 = vpack.c.b16 %v2708, %v2700
    %v3909 = vpack.c.b16 %v2709, %v2701
    %v3910 = vpack.c.b16 %v2710, %v2702
    %v3911 = vpack.c.b16 %v2711, %v2703
    %v3912 = vpack.c.b16 %v2720, %v2712
    %v3913 = vpack.c.b16 %v2721, %v2713
    %v3914 = vpack.c.b16 %v2722, %v2714
    %v3915 = vpack.c.b16 %v2723, %v2715
    %v3916 = vpack.c.b16 %v2724, %v2716
    %v3917 = vpack.c.b16 %v2725, %v2717
    %v3918 = vpack.c.b16 %v2726, %v2718
    %v3919 = vpack.c.b16 %v2727, %v2719
    %v3920 = vpack.c.b16 %v2736, %v2728
    %v3921 = vpack.c.b16 %v2737, %v2729
    %v3922 = vpack.c.b16 %v2738, %v2730
    %v3923 = vpack.c.b16 %v2739, %v2731
    %v3924 = vpack.c.b16 %v2740, %v2732
    %v3925 = vpack.c.b16 %v2741, %v2733
    %v3926 = vpack.c.b16 %v2742, %v2734
    %v3927 = vpack.c.b16 %v2743, %v2735
    %v3928 = vpack.c.b16 %v2752, %v2744
    %v3929 = vpack.c.b16 %v2753, %v2745
    %v3930 = vpack.c.b16 %v2754, %v2746
    %v3931 = vpack.c.b16 %v2755, %v2747
    %v3932 = vpack.c.b16 %v2756, %v2748
    %v3933 = vpack.c.b16 %v2757, %v2749
    %v3934 = vpack.c.b16 %v2758, %v2750
    %v3935 = vpack.c.b16 %v2759, %v2751
    %v3936 = vpack.c.b16 %v2768, %v2760
    %v3937 = vpack.c.b16 %v2769, %v2761
    %v3938 = vpack.c.b16 %v2770, %v2762
    %v3939 = vpack.c.b16 %v2771, %v2763
    %v3940 = vpack.c.b16 %v2772, %v2764
    %v3941 = vpack.c.b16 %v2773, %v2765
    %v3942 = vpack.c.b16 %v2774, %v2766
    %v3943 = vpack.c.b16 %v2775, %v2767
    %v3944 = vpack.c.b16 %v2784, %v2776
    %v3945 = vpack.c.b16 %v2785, %v2777
    %v3946 = vpack.c.b16 %v2786, %v2778
    %v3947 = vpack.c.b16 %v2787, %v2779
    %v3948 = vpack.c.b16 %v2788, %v2780
    %v3949 = vpack.c.b16 %v2789, %v2781
    %v3950 = vpack.c.b16 %v2790, %v2782
    %v3951 = vpack.c.b16 %v2791, %v2783
    %v3952 = vpack.c.b16 %v2800, %v2792
    %v3953 = vpack.c.b16 %v2801, %v2793
    %v3954 = vpack.c.b16 %v2802, %v2794
    %v3955 = vpack.c.b16 %v2803, %v2795
    %v3956 = vpack.c.b16 %v2804, %v2796
    %v3957 = vpack.c.b16 %v2805, %v2797
    %v3958 = vpack.c.b16 %v2806, %v2798
    %v3959 = vpack.c.b16 %v2807, %v2799
    %v3960 = vpack.c.b16 %v2816, %v2808
    %v3961 = vpack.c.b16 %v2817, %v2809
    %v3962 = vpack.c.b16 %v2818, %v2810
    %v3963 = vpack.c.b16 %v2819, %v2811
    %v3964 = vpack.c.b16 %v2820, %v2812
    %v3965 = vpack.c.b16 %v2821, %v2813
    %v3966 = vpack.c.b16 %v2822, %v2814
    %v3967 = vpack.c.b16 %v2823, %v2815
    %v3968 = vpack.c.b16 %v2832, %v2824
    %v3969 = vpack.c.b16 %v2833, %v2825
    %v3970 = vpack.c.b16 %v2834, %v2826
    %v3971 = vpack.c.b16 %v2835, %v2827
    %v3972 = vpack.c.b16 %v2836, %v2828
    %v3973 = vpack.c.b16 %v2837, %v2829
    %v3974 = vpack.c.b16 %v2838, %v2830
    %v3975 = vpack.c.b16 %v2839, %v2831
    %v3976 = vpack.c.b16 %v2848, %v2840
    %v3977 = vpack.c.b16 %v2849, %v2841
    %v3978 = vpack.c.b16 %v2850, %v2842
    %v3979 = vpack.c.b16 %v2851, %v2843
    %v3980 = vpack.c.b16 %v2852, %v2844
    %v3981 = vpack.c.b16 %v2853, %v2845
    %v3982 = vpack.c.b16 %v2854, %v2846
    %v3983 = vpack.c.b16 %v2855, %v2847
    %v3984 = vpack.c.b16 %v2864, %v2856
    %v3985 = vpack.c.b16 %v2865, %v2857
    %v3986 = vpack.c.b16 %v2866, %v2858
    %v3987 = vpack.c.b16 %v2867, %v2859
    %v3988 = vpack.c.b16 %v2868, %v2860
    %v3989 = vpack.c.b16 %v2869, %v2861
    %v3990 = vpack.c.b16 %v2870, %v2862
    %v3991 = vpack.c.b16 %v2871, %v2863
    %v3992 = vpack.c.b16 %v2880, %v2872
    %v3993 = vpack.c.b16 %v2881, %v2873
    %v3994 = vpack.c.b16 %v2882, %v2874
    %v3995 = vpack.c.b16 %v2883, %v2875
    %v3996 = vpack.c.b16 %v2884, %v2876
    %v3997 = vpack.c.b16 %v2885, %v2877
    %v3998 = vpack.c.b16 %v2886, %v2878
    %v3999 = vpack.c.b16 %v2887, %v2879
    %v4000 = vpack.c.b16 %v2896, %v2888
    %v4001 = vpack.c.b16 %v2897, %v2889
    %v4002 = vpack.c.b16 %v2898, %v2890
    %v4003 = vpack.c.b16 %v2899, %v2891
    %v4004 = vpack.c.b16 %v2900, %v2892
    %v4005 = vpack.c.b16 %v2901, %v2893
    %v4006 = vpack.c.b16 %v2902, %v2894
    %v4007 = vpack.c.b16 %v2903, %v2895
    %v4008 = vpack.c.b16 %v2912, %v2904
    %v4009 = vpack.c.b16 %v2913, %v2905
    %v4010 = vpack.c.b16 %v2914, %v2906
    %v4011 = vpack.c.b16 %v2915, %v2907
    %v4012 = vpack.c.b16 %v2916, %v2908
    %v4013 = vpack.c.b16 %v2917, %v2909
    %v4014 = vpack.c.b16 %v2918, %v2910
    %v4015 = vpack.c.b16 %v2919, %v2911
    %v4016 = vpack.c.b16 %v2928, %v2920
    %v4017 = vpack.c.b16 %v2929, %v2921
    %v4018 = vpack.c.b16 %v2930, %v2922
    %v4019 = vpack.c.b16 %v2931, %v2923
    %v4020 = vpack.c.b16 %v2932, %v2924
    %v4021 = vpack.c.b16 %v2933, %v2925
    %v4022 = vpack.c.b16 %v2934, %v2926
    %v4023 = vpack.c.b16 %v2935, %v2927
    %v4024 = vpack.c.b16 %v2944, %v2936
    %v4025 = vpack.c.b16 %v2945, %v2937
    %v4026 = vpack.c.b16 %v2946, %v2938
    %v4027 = vpack.c.b16 %v2947, %v2939
    %v4028 = vpack.c.b16 %v2948, %v2940
    %v4029 = vpack.c.b16 %v2949, %v2941
    %v4030 = vpack.c.b16 %v2950, %v2942
    %v4031 = vpack.c.b16 %v2951, %v2943
    %v4032 = vpack.c.b16 %v2960, %v2952
    %v4033 = vpack.c.b16 %v2961, %v2953
    %v4034 = vpack.c.b16 %v2962, %v2954
    %v4035 = vpack.c.b16 %v2963, %v2955
    %v4036 = vpack.c.b16 %v2964, %v2956
    %v4037 = vpack.c.b16 %v2965, %v2957
    %v4038 = vpack.c.b16 %v2966, %v2958
    %v4039 = vpack.c.b16 %v2967, %v2959
    %v4040 = vpack.c.b16 %v2976, %v2968
    %v4041 = vpack.c.b16 %v2977, %v2969
    %v4042 = vpack.c.b16 %v2978, %v2970
    %v4043 = vpack.c.b16 %v2979, %v2971
    %v4044 = vpack.c.b16 %v2980, %v2972
    %v4045 = vpack.c.b16 %v2981, %v2973
    %v4046 = vpack.c.b16 %v2982, %v2974
    %v4047 = vpack.c.b16 %v2983, %v2975
    %v4048 = vpack.c.b16 %v2992, %v2984
    %v4049 = vpack.c.b16 %v2993, %v2985
    %v4050 = vpack.c.b16 %v2994, %v2986
    %v4051 = vpack.c.b16 %v2995, %v2987
    %v4052 = vpack.c.b16 %v2996, %v2988
    %v4053 = vpack.c.b16 %v2997, %v2989
    %v4054 = vpack.c.b16 %v2998, %v2990
    %v4055 = vpack.c.b16 %v2999, %v2991
    %v4056 = vpack.c.b16 %v3008, %v3000
    %v4057 = vpack.c.b16 %v3009, %v3001
    %v4058 = vpack.c.b16 %v3010, %v3002
    %v4059 = vpack.c.b16 %v3011, %v3003
    %v4060 = vpack.c.b16 %v3012, %v3004
    %v4061 = vpack.c.b16 %v3013, %v3005
    %v4062 = vpack.c.b16 %v3014, %v3006
    %v4063 = vpack.c.b16 %v3015, %v3007
    %v4064 = vpack.c.b16 %v3024, %v3016
    %v4065 = vpack.c.b16 %v3025, %v3017
    %v4066 = vpack.c.b16 %v3026, %v3018
    %v4067 = vpack.c.b16 %v3027, %v3019
    %v4068 = vpack.c.b16 %v3028, %v3020
    %v4069 = vpack.c.b16 %v3029, %v3021
    %v4070 = vpack.c.b16 %v3030, %v3022
    %v4071 = vpack.c.b16 %v3031, %v3023
    %v4072 = vpack.c.b16 %v3040, %v3032
    %v4073 = vpack.c.b16 %v3041, %v3033
    %v4074 = vpack.c.b16 %v3042, %v3034
    %v4075 = vpack.c.b16 %v3043, %v3035
    %v4076 = vpack.c.b16 %v3044, %v3036
    %v4077 = vpack.c.b16 %v3045, %v3037
    %v4078 = vpack.c.b16 %v3046, %v3038
    %v4079 = vpack.c.b16 %v3047, %v3039
    %v4080 = vpack.c.b16 %v3056, %v3048
    %v4081 = vpack.c.b16 %v3057, %v3049
    %v4082 = vpack.c.b16 %v3058, %v3050
    %v4083 = vpack.c.b16 %v3059, %v3051
    %v4084 = vpack.c.b16 %v3060, %v3052
    %v4085 = vpack.c.b16 %v3061, %v3053
    %v4086 = vpack.c.b16 %v3062, %v3054
    %v4087 = vpack.c.b16 %v3063, %v3055
    %v4088 = vpack.c.b16 %v3072, %v3064
    %v4089 = vpack.c.b16 %v3073, %v3065
    %v4090 = vpack.c.b16 %v3074, %v3066
    %v4091 = vpack.c.b16 %v3075, %v3067
    %v4092 = vpack.c.b16 %v3076, %v3068
    %v4093 = vpack.c.b16 %v3077, %v3069
    %v4094 = vpack.c.b16 %v3078, %v3070
    %v4095 = vpack.c.b16 %v3079, %v3071
    %v4096 = vpack.c.b16 %v3088, %v3080
    %v4097 = vpack.c.b16 %v3089, %v3081
    %v4098 = vpack.c.b16 %v3090, %v3082
    %v4099 = vpack.c.b16 %v3091, %v3083
    %v4100 = vpack.c.b16 %v3092, %v3084
    %v4101 = vpack.c.b16 %v3093, %v3085
    %v4102 = vpack.c.b16 %v3094, %v3086
    %v4103 = vpack.c.b16 %v3095, %v3087
    %v4104 = vpack.c.b16 %v3104, %v3096
    %v4105 = vpack.c.b16 %v3105, %v3097
    %v4106 = vpack.c.b16 %v3106, %v3098
    %v4107 = vpack.c.b16 %v3107, %v3099
    %v4108 = vpack.c.b16 %v3108, %v3100
    %v4109 = vpack.c.b16 %v3109, %v3101
    %v4110 = vpack.c.b16 %v3110, %v3102
    %v4111 = vpack.c.b16 %v3111, %v3103
    %v4112 = vpack.c.b16 %v3120, %v3112
    %v4113 = vpack.c.b16 %v3121, %v3113
    %v4114 = vpack.c.b16 %v3122, %v3114
    %v4115 = vpack.c.b16 %v3123, %v3115
    %v4116 = vpack.c.b16 %v3124, %v3116
    %v4117 = vpack.c.b16 %v3125, %v3117
    %v4118 = vpack.c.b16 %v3126, %v3118
    %v4119 = vpack.c.b16 %v3127, %v3119
    %v4120 = vpack.c.b16 %v3136, %v3128
    %v4121 = vpack.c.b16 %v3137, %v3129
    %v4122 = vpack.c.b16 %v3138, %v3130
    %v4123 = vpack.c.b16 %v3139, %v3131
    %v4124 = vpack.c.b16 %v3140, %v3132
    %v4125 = vpack.c.b16 %v3141, %v3133
    %v4126 = vpack.c.b16 %v3142, %v3134
    %v4127 = vpack.c.b16 %v3143, %v3135
    %v4128 = vpack.c.b16 %v3152, %v3144
    %v4129 = vpack.c.b16 %v3153, %v3145
    %v4130 = vpack.c.b16 %v3154, %v3146
    %v4131 = vpack.c.b16 %v3155, %v3147
    %v4132 = vpack.c.b16 %v3156, %v3148
    %v4133 = vpack.c.b16 %v3157, %v3149
    %v4134 = vpack.c.b16 %v3158, %v3150
    %v4135 = vpack.c.b16 %v3159, %v3151
    %v4136 = vpack.c.b16 %v3168, %v3160
    %v4137 = vpack.c.b16 %v3169, %v3161
    %v4138 = vpack.c.b16 %v3170, %v3162
    %v4139 = vpack.c.b16 %v3171, %v3163
    %v4140 = vpack.c.b16 %v3172, %v3164
    %v4141 = vpack.c.b16 %v3173, %v3165
    %v4142 = vpack.c.b16 %v3174, %v3166
    %v4143 = vpack.c.b16 %v3175, %v3167
    %v4144 = vpack.c.b16 %v3184, %v3176
    %v4145 = vpack.c.b16 %v3185, %v3177
    %v4146 = vpack.c.b16 %v3186, %v3178
    %v4147 = vpack.c.b16 %v3187, %v3179
    %v4148 = vpack.c.b16 %v3188, %v3180
    %v4149 = vpack.c.b16 %v3189, %v3181
    %v4150 = vpack.c.b16 %v3190, %v3182
    %v4151 = vpack.c.b16 %v3191, %v3183
    %v4152 = vpack.c.b16 %v3200, %v3192
    %v4153 = vpack.c.b16 %v3201, %v3193
    %v4154 = vpack.c.b16 %v3202, %v3194
    %v4155 = vpack.c.b16 %v3203, %v3195
    %v4156 = vpack.c.b16 %v3204, %v3196
    %v4157 = vpack.c.b16 %v3205, %v3197
    %v4158 = vpack.c.b16 %v3206, %v3198
    %v4159 = vpack.c.b16 %v3207, %v3199
    %v4160 = vpack.c.b16 %v3216, %v3208
    %v4161 = vpack.c.b16 %v3217, %v3209
    %v4162 = vpack.c.b16 %v3218, %v3210
    %v4163 = vpack.c.b16 %v3219, %v3211
    %v4164 = vpack.c.b16 %v3220, %v3212
    %v4165 = vpack.c.b16 %v3221, %v3213
    %v4166 = vpack.c.b16 %v3222, %v3214
    %v4167 = vpack.c.b16 %v3223, %v3215
    %v4168 = vpack.c.b16 %v3232, %v3224
    %v4169 = vpack.c.b16 %v3233, %v3225
    %v4170 = vpack.c.b16 %v3234, %v3226
    %v4171 = vpack.c.b16 %v3235, %v3227
    %v4172 = vpack.c.b16 %v3236, %v3228
    %v4173 = vpack.c.b16 %v3237, %v3229
    %v4174 = vpack.c.b16 %v3238, %v3230
    %v4175 = vpack.c.b16 %v3239, %v3231
    %v4176 = vpack.c.b16 %v3248, %v3240
    %v4177 = vpack.c.b16 %v3249, %v3241
    %v4178 = vpack.c.b16 %v3250, %v3242
    %v4179 = vpack.c.b16 %v3251, %v3243
    %v4180 = vpack.c.b16 %v3252, %v3244
    %v4181 = vpack.c.b16 %v3253, %v3245
    %v4182 = vpack.c.b16 %v3254, %v3246
    %v4183 = vpack.c.b16 %v3255, %v3247
    %v4184 = vpack.c.b16 %v3264, %v3256
    %v4185 = vpack.c.b16 %v3265, %v3257
    %v4186 = vpack.c.b16 %v3266, %v3258
    %v4187 = vpack.c.b16 %v3267, %v3259
    %v4188 = vpack.c.b16 %v3268, %v3260
    %v4189 = vpack.c.b16 %v3269, %v3261
    %v4190 = vpack.c.b16 %v3270, %v3262
    %v4191 = vpack.c.b16 %v3271, %v3263
    %v4192 = vpack.c.b16 %v3280, %v3272
    %v4193 = vpack.c.b16 %v3281, %v3273
    %v4194 = vpack.c.b16 %v3282, %v3274
    %v4195 = vpack.c.b16 %v3283, %v3275
    %v4196 = vpack.c.b16 %v3284, %v3276
    %v4197 = vpack.c.b16 %v3285, %v3277
    %v4198 = vpack.c.b16 %v3286, %v3278
    %v4199 = vpack.c.b16 %v3287, %v3279
    %v4200 = vpack.c.b16 %v3296, %v3288
    %v4201 = vpack.c.b16 %v3297, %v3289
    %v4202 = vpack.c.b16 %v3298, %v3290
    %v4203 = vpack.c.b16 %v3299, %v3291
    %v4204 = vpack.c.b16 %v3300, %v3292
    %v4205 = vpack.c.b16 %v3301, %v3293
    %v4206 = vpack.c.b16 %v3302, %v3294
    %v4207 = vpack.c.b16 %v3303, %v3295
    %v4208 = vpack.c.b16 %v3312, %v3304
    %v4209 = vpack.c.b16 %v3313, %v3305
    %v4210 = vpack.c.b16 %v3314, %v3306
    %v4211 = vpack.c.b16 %v3315, %v3307
    %v4212 = vpack.c.b16 %v3316, %v3308
    %v4213 = vpack.c.b16 %v3317, %v3309
    %v4214 = vpack.c.b16 %v3318, %v3310
    %v4215 = vpack.c.b16 %v3319, %v3311
    %v4216 = vpack.c.b16 %v3328, %v3320
    %v4217 = vpack.c.b16 %v3329, %v3321
    %v4218 = vpack.c.b16 %v3330, %v3322
    %v4219 = vpack.c.b16 %v3331, %v3323
    %v4220 = vpack.c.b16 %v3332, %v3324
    %v4221 = vpack.c.b16 %v3333, %v3325
    %v4222 = vpack.c.b16 %v3334, %v3326
    %v4223 = vpack.c.b16 %v3335, %v3327
    %v4224 = vpack.c.b16 %v3344, %v3336
    %v4225 = vpack.c.b16 %v3345, %v3337
    %v4226 = vpack.c.b16 %v3346, %v3338
    %v4227 = vpack.c.b16 %v3347, %v3339
    %v4228 = vpack.c.b16 %v3348, %v3340
    %v4229 = vpack.c.b16 %v3349, %v3341
    %v4230 = vpack.c.b16 %v3350, %v3342
    %v4231 = vpack.c.b16 %v3351, %v3343
    %v4232 = vpack.c.b16 %v3360, %v3352
    %v4233 = vpack.c.b16 %v3361, %v3353
    %v4234 = vpack.c.b16 %v3362, %v3354
    %v4235 = vpack.c.b16 %v3363, %v3355
    %v4236 = vpack.c.b16 %v3364, %v3356
    %v4237 = vpack.c.b16 %v3365, %v3357
    %v4238 = vpack.c.b16 %v3366, %v3358
    %v4239 = vpack.c.b16 %v3367, %v3359
    %v4240 = vpack.c.b16 %v3376, %v3368
    %v4241 = vpack.c.b16 %v3377, %v3369
    %v4242 = vpack.c.b16 %v3378, %v3370
    %v4243 = vpack.c.b16 %v3379, %v3371
    %v4244 = vpack.c.b16 %v3380, %v3372
    %v4245 = vpack.c.b16 %v3381, %v3373
    %v4246 = vpack.c.b16 %v3382, %v3374
    %v4247 = vpack.c.b16 %v3383, %v3375
    %v4248 = vpack.c.b16 %v3392, %v3384
    %v4249 = vpack.c.b16 %v3393, %v3385
    %v4250 = vpack.c.b16 %v3394, %v3386
    %v4251 = vpack.c.b16 %v3395, %v3387
    %v4252 = vpack.c.b16 %v3396, %v3388
    %v4253 = vpack.c.b16 %v3397, %v3389
    %v4254 = vpack.c.b16 %v3398, %v3390
    %v4255 = vpack.c.b16 %v3399, %v3391
    %v4256 = vpack.c.b16 %v3408, %v3400
    %v4257 = vpack.c.b16 %v3409, %v3401
    %v4258 = vpack.c.b16 %v3410, %v3402
    %v4259 = vpack.c.b16 %v3411, %v3403
    %v4260 = vpack.c.b16 %v3412, %v3404
    %v4261 = vpack.c.b16 %v3413, %v3405
    %v4262 = vpack.c.b16 %v3414, %v3406
    %v4263 = vpack.c.b16 %v3415, %v3407
    %v4264 = vpack.c.b16 %v3424, %v3416
    %v4265 = vpack.c.b16 %v3425, %v3417
    %v4266 = vpack.c.b16 %v3426, %v3418
    %v4267 = vpack.c.b16 %v3427, %v3419
    %v4268 = vpack.c.b16 %v3428, %v3420
    %v4269 = vpack.c.b16 %v3429, %v3421
    %v4270 = vpack.c.b16 %v3430, %v3422
    %v4271 = vpack.c.b16 %v3431, %v3423
    %v4272 = vpack.c.b16 %v3440, %v3432
    %v4273 = vpack.c.b16 %v3441, %v3433
    %v4274 = vpack.c.b16 %v3442, %v3434
    %v4275 = vpack.c.b16 %v3443, %v3435
    %v4276 = vpack.c.b16 %v3444, %v3436
    %v4277 = vpack.c.b16 %v3445, %v3437
    %v4278 = vpack.c.b16 %v3446, %v3438
    %v4279 = vpack.c.b16 %v3447, %v3439
    %v4280 = vpack.c.b16 %v3456, %v3448
    %v4281 = vpack.c.b16 %v3457, %v3449
    %v4282 = vpack.c.b16 %v3458, %v3450
    %v4283 = vpack.c.b16 %v3459, %v3451
    %v4284 = vpack.c.b16 %v3460, %v3452
    %v4285 = vpack.c.b16 %v3461, %v3453
    %v4286 = vpack.c.b16 %v3462, %v3454
    %v4287 = vpack.c.b16 %v3463, %v3455
    %v4288 = vpack.c.b16 %v3472, %v3464
    %v4289 = vpack.c.b16 %v3473, %v3465
    %v4290 = vpack.c.b16 %v3474, %v3466
    %v4291 = vpack.c.b16 %v3475, %v3467
    %v4292 = vpack.c.b16 %v3476, %v3468
    %v4293 = vpack.c.b16 %v3477, %v3469
    %v4294 = vpack.c.b16 %v3478, %v3470
    %v4295 = vpack.c.b16 %v3479, %v3471
    %v4296 = vpack.c.b16 %v3488, %v3480
    %v4297 = vpack.c.b16 %v3489, %v3481
    %v4298 = vpack.c.b16 %v3490, %v3482
    %v4299 = vpack.c.b16 %v3491, %v3483
    %v4300 = vpack.c.b16 %v3492, %v3484
    %v4301 = vpack.c.b16 %v3493, %v3485
    %v4302 = vpack.c.b16 %v3494, %v3486
    %v4303 = vpack.c.b16 %v3495, %v3487
    %v4304 = vpack.c.b16 %v3504, %v3496
    %v4305 = vpack.c.b16 %v3505, %v3497
    %v4306 = vpack.c.b16 %v3506, %v3498
    %v4307 = vpack.c.b16 %v3507, %v3499
    %v4308 = vpack.c.b16 %v3508, %v3500
    %v4309 = vpack.c.b16 %v3509, %v3501
    %v4310 = vpack.c.b16 %v3510, %v3502
    %v4311 = vpack.c.b16 %v3511, %v3503
    %v4312 = vpack.c.b16 %v3520, %v3512
    %v4313 = vpack.c.b16 %v3521, %v3513
    %v4314 = vpack.c.b16 %v3522, %v3514
    %v4315 = vpack.c.b16 %v3523, %v3515
    %v4316 = vpack.c.b16 %v3524, %v3516
    %v4317 = vpack.c.b16 %v3525, %v3517
    %v4318 = vpack.c.b16 %v3526, %v3518
    %v4319 = vpack.c.b16 %v3527, %v3519
    %v4320 = vpack.c.b16 %v3536, %v3528
    %v4321 = vpack.c.b16 %v3537, %v3529
    %v4322 = vpack.c.b16 %v3538, %v3530
    %v4323 = vpack.c.b16 %v3539, %v3531
    %v4324 = vpack.c.b16 %v3540, %v3532
    %v4325 = vpack.c.b16 %v3541, %v3533
    %v4326 = vpack.c.b16 %v3542, %v3534
    %v4327 = vpack.c.b16 %v3543, %v3535
    %v4328 = vpack.c.b16 %v3552, %v3544
    %v4329 = vpack.c.b16 %v3553, %v3545
    %v4330 = vpack.c.b16 %v3554, %v3546
    %v4331 = vpack.c.b16 %v3555, %v3547
    %v4332 = vpack.c.b16 %v3556, %v3548
    %v4333 = vpack.c.b16 %v3557, %v3549
    %v4334 = vpack.c.b16 %v3558, %v3550
    %v4335 = vpack.c.b16 %v3559, %v3551
    %v4336 = vpack.c.b16 %v3568, %v3560
    %v4337 = vpack.c.b16 %v3569, %v3561
    %v4338 = vpack.c.b16 %v3570, %v3562
    %v4339 = vpack.c.b16 %v3571, %v3563
    %v4340 = vpack.c.b16 %v3572, %v3564
    %v4341 = vpack.c.b16 %v3573, %v3565
    %v4342 = vpack.c.b16 %v3574, %v3566
    %v4343 = vpack.c.b16 %v3575, %v3567
    %5112 = vmatprep.subr.bf16.mxu0 %v3577
    %5113 = vmatpush1.bf16.msra.mxu0 %v3576
    %5114 = vmatprep.subr.bf16.mxu0 %v3585
    %5115 = vmatpush1.bf16.msra.mxu0 %v3584
    %5116 = vmatprep.subr.bf16.mxu0 %v3593
    %5117 = vmatpush1.bf16.msra.mxu0 %v3592
    %5118 = vmatprep.subr.bf16.mxu0 %v3601
    %5119 = vmatpush1.bf16.msra.mxu0 %v3600
    %5120 = vmatprep.subr.bf16.mxu0 %v3609
    %5121 = vmatpush1.bf16.msra.mxu0 %v3608
    %5122 = vmatprep.subr.bf16.mxu0 %v3617
    %5123 = vmatpush1.bf16.msra.mxu0 %v3616
    %5124 = vmatprep.subr.bf16.mxu0 %v3625
    %5125 = vmatpush1.bf16.msra.mxu0 %v3624
    %5126 = vmatprep.subr.bf16.mxu0 %v3633
    %5127 = vmatpush1.bf16.msra.mxu0 %v3632
    %5128 = vmatprep.subr.bf16.mxu0 %v3641
    %5129 = vmatpush1.bf16.msra.mxu0 %v3640
    %5130 = vmatprep.subr.bf16.mxu0 %v3649
    %5131 = vmatpush1.bf16.msra.mxu0 %v3648
    %5132 = vmatprep.subr.bf16.mxu0 %v3657
    %5133 = vmatpush1.bf16.msra.mxu0 %v3656
    %5134 = vmatprep.subr.bf16.mxu0 %v3665
    %5135 = vmatpush1.bf16.msra.mxu0 %v3664
    %5136 = vmatprep.subr.bf16.mxu0 %v3673
    %5137 = vmatpush1.bf16.msra.mxu0 %v3672
    %5138 = vmatprep.subr.bf16.mxu0 %v3681
    %5139 = vmatpush1.bf16.msra.mxu0 %v3680
    %5140 = vmatprep.subr.bf16.mxu0 %v3689
    %5141 = vmatpush1.bf16.msra.mxu0 %v3688
    %5142 = vmatprep.subr.bf16.mxu0 %v3697
    %5143 = vmatpush1.bf16.msra.mxu0 %v3696
    %5144 = vmatprep.mubr.bf16.mxu0 %v451
    %5145 = vmatmul.mubr.bf16.gmra.mrb[0].mxu0 %v450
    %v5146 = vpop.f32.mrb[0].mxu0
    %v5147 = vadd.f32 %v1235, %v5146
    %v5148 = vpop.f32.mrb[0].mxu0
    %v5149 = vadd.f32 %v1239, %v5148
    %v5150 = vpop.f32.mrb[0].mxu0
    %v5151 = vpop.f32.mrb[0].mxu0
    %5152 = vdwg.mxu0
    %5153 = vmatprep.subr.bf16.mxu0 %v3705
    %5154 = vmatpush1.bf16.msra.mxu0 %v3704
    %5155 = vmatprep.subr.bf16.mxu0 %v3713
    %5156 = vmatpush1.bf16.msra.mxu0 %v3712
    %5157 = vmatprep.subr.bf16.mxu0 %v3721
    %5158 = vmatpush1.bf16.msra.mxu0 %v3720
    %5159 = vmatprep.subr.bf16.mxu0 %v3729
    %5160 = vmatpush1.bf16.msra.mxu0 %v3728
    %5161 = vmatprep.subr.bf16.mxu0 %v3737
    %5162 = vmatpush1.bf16.msra.mxu0 %v3736
    %5163 = vmatprep.subr.bf16.mxu0 %v3745
    %5164 = vmatpush1.bf16.msra.mxu0 %v3744
    %5165 = vmatprep.subr.bf16.mxu0 %v3753
    %5166 = vmatpush1.bf16.msra.mxu0 %v3752
    %5167 = vmatprep.subr.bf16.mxu0 %v3761
    %5168 = vmatpush1.bf16.msra.mxu0 %v3760
    %5169 = vmatprep.subr.bf16.mxu0 %v3769
    %5170 = vmatpush1.bf16.msra.mxu0 %v3768
    %5171 = vmatprep.subr.bf16.mxu0 %v3777
    %5172 = vmatpush1.bf16.msra.mxu0 %v3776
    %5173 = vmatprep.subr.bf16.mxu0 %v3785
    %5174 = vmatpush1.bf16.msra.mxu0 %v3784
    %5175 = vmatprep.subr.bf16.mxu0 %v3793
    %5176 = vmatpush1.bf16.msra.mxu0 %v3792
    %5177 = vmatprep.subr.bf16.mxu0 %v3801
    %5178 = vmatpush1.bf16.msra.mxu0 %v3800
    %5179 = vmatprep.subr.bf16.mxu0 %v3809
    %5180 = vmatpush1.bf16.msra.mxu0 %v3808
    %5181 = vmatprep.subr.bf16.mxu0 %v3817
    %5182 = vmatpush1.bf16.msra.mxu0 %v3816
    %5183 = vmatprep.subr.bf16.mxu0 %v3825
    %5184 = vmatpush1.bf16.msra.mxu0 %v3824
    %5185 = vmatprep.mubr.bf16.mxu0 %v453
    %5186 = vmatmul.mubr.bf16.gmra.mrb[0].mxu0 %v452
    %v5187 = vpop.f32.mrb[0].mxu0
    %v5188 = vadd.f32 %v5147, %v5187
    %v5189 = vpop.f32.mrb[0].mxu0
    %v5190 = vadd.f32 %v5149, %v5189
    %v5191 = vpop.f32.mrb[0].mxu0
    %v5192 = vpop.f32.mrb[0].mxu0
    %5193 = vdwg.mxu0
    %5194 = vmatprep.subr.bf16.mxu0 %v3833
    %5195 = vmatpush1.bf16.msra.mxu0 %v3832
    %5196 = vmatprep.subr.bf16.mxu0 %v3841
    %5197 = vmatpush1.bf16.msra.mxu0 %v3840
    %5198 = vmatprep.subr.bf16.mxu0 %v3849
    %5199 = vmatpush1.bf16.msra.mxu0 %v3848
    %5200 = vmatprep.subr.bf16.mxu0 %v3857
    %5201 = vmatpush1.bf16.msra.mxu0 %v3856
    %5202 = vmatprep.subr.bf16.mxu0 %v3865
    %5203 = vmatpush1.bf16.msra.mxu0 %v3864
    %5204 = vmatprep.subr.bf16.mxu0 %v3873
    %5205 = vmatpush1.bf16.msra.mxu0 %v3872
    %5206 = vmatprep.subr.bf16.mxu0 %v3881
    %5207 = vmatpush1.bf16.msra.mxu0 %v3880
    %5208 = vmatprep.subr.bf16.mxu0 %v3889
    %5209 = vmatpush1.bf16.msra.mxu0 %v3888
    %5210 = vmatprep.subr.bf16.mxu0 %v3897
    %5211 = vmatpush1.bf16.msra.mxu0 %v3896
    %5212 = vmatprep.subr.bf16.mxu0 %v3905
    %5213 = vmatpush1.bf16.msra.mxu0 %v3904
    %5214 = vmatprep.subr.bf16.mxu0 %v3913
    %5215 = vmatpush1.bf16.msra.mxu0 %v3912
    %5216 = vmatprep.subr.bf16.mxu0 %v3921
    %5217 = vmatpush1.bf16.msra.mxu0 %v3920
    %5218 = vmatprep.subr.bf16.mxu0 %v3929
    %5219 = vmatpush1.bf16.msra.mxu0 %v3928
    %5220 = vmatprep.subr.bf16.mxu0 %v3937
    %5221 = vmatpush1.bf16.msra.mxu0 %v3936
    %5222 = vmatprep.subr.bf16.mxu0 %v3945
    %5223 = vmatpush1.bf16.msra.mxu0 %v3944
    %5224 = vmatprep.subr.bf16.mxu0 %v3953
    %5225 = vmatpush1.bf16.msra.mxu0 %v3952
    %5226 = vmatprep.mubr.bf16.mxu0 %v455
    %5227 = vmatmul.mubr.bf16.gmra.mrb[0].mxu0 %v454
    %v5228 = vpop.f32.mrb[0].mxu0
    %v5229 = vadd.f32 %v5188, %v5228
    %v5230 = vpop.f32.mrb[0].mxu0
    %v5231 = vadd.f32 %v5190, %v5230
    %v5232 = vpop.f32.mrb[0].mxu0
    %v5233 = vpop.f32.mrb[0].mxu0
    %5234 = vdwg.mxu0
    %5235 = vmatprep.subr.bf16.mxu0 %v3961
    %5236 = vmatpush1.bf16.msra.mxu0 %v3960
    %5237 = vmatprep.subr.bf16.mxu0 %v3969
    %5238 = vmatpush1.bf16.msra.mxu0 %v3968
    %5239 = vmatprep.subr.bf16.mxu0 %v3977
    %5240 = vmatpush1.bf16.msra.mxu0 %v3976
    %5241 = vmatprep.subr.bf16.mxu0 %v3985
    %5242 = vmatpush1.bf16.msra.mxu0 %v3984
    %5243 = vmatprep.subr.bf16.mxu0 %v3993
    %5244 = vmatpush1.bf16.msra.mxu0 %v3992
    %5245 = vmatprep.subr.bf16.mxu0 %v4001
    %5246 = vmatpush1.bf16.msra.mxu0 %v4000
    %5247 = vmatprep.subr.bf16.mxu0 %v4009
    %5248 = vmatpush1.bf16.msra.mxu0 %v4008
    %5249 = vmatprep.subr.bf16.mxu0 %v4017
    %5250 = vmatpush1.bf16.msra.mxu0 %v4016
    %5251 = vmatprep.subr.bf16.mxu0 %v4025
    %5252 = vmatpush1.bf16.msra.mxu0 %v4024
    %5253 = vmatprep.subr.bf16.mxu0 %v4033
    %5254 = vmatpush1.bf16.msra.mxu0 %v4032
    %5255 = vmatprep.subr.bf16.mxu0 %v4041
    %5256 = vmatpush1.bf16.msra.mxu0 %v4040
    %5257 = vmatprep.subr.bf16.mxu0 %v4049
    %5258 = vmatpush1.bf16.msra.mxu0 %v4048
    %5259 = vmatprep.subr.bf16.mxu0 %v4057
    %5260 = vmatpush1.bf16.msra.mxu0 %v4056
    %5261 = vmatprep.subr.bf16.mxu0 %v4065
    %5262 = vmatpush1.bf16.msra.mxu0 %v4064
    %5263 = vmatprep.subr.bf16.mxu0 %v4073
    %5264 = vmatpush1.bf16.msra.mxu0 %v4072
    %5265 = vmatprep.subr.bf16.mxu0 %v4081
    %5266 = vmatpush1.bf16.msra.mxu0 %v4080
    %5267 = vmatprep.mubr.bf16.mxu0 %v457
    %5268 = vmatmul.mubr.bf16.gmra.mrb[0].mxu0 %v456
    %v5269 = vpop.f32.mrb[0].mxu0
    %v5270 = vadd.f32 %v5229, %v5269
    %v5271 = vpop.f32.mrb[0].mxu0
    %v5272 = vadd.f32 %v5231, %v5271
    %v5273 = vpop.f32.mrb[0].mxu0
    %v5274 = vpop.f32.mrb[0].mxu0
    %5275 = vdwg.mxu0
    %5276 = vmatprep.subr.bf16.mxu0 %v4089
    %5277 = vmatpush1.bf16.msra.mxu0 %v4088
    %5278 = vmatprep.subr.bf16.mxu0 %v4097
    %5279 = vmatpush1.bf16.msra.mxu0 %v4096
    %5280 = vmatprep.subr.bf16.mxu0 %v4105
    %5281 = vmatpush1.bf16.msra.mxu0 %v4104
    %5282 = vmatprep.subr.bf16.mxu0 %v4113
    %5283 = vmatpush1.bf16.msra.mxu0 %v4112
    %5284 = vmatprep.subr.bf16.mxu0 %v4121
    %5285 = vmatpush1.bf16.msra.mxu0 %v4120
    %5286 = vmatprep.subr.bf16.mxu0 %v4129
    %5287 = vmatpush1.bf16.msra.mxu0 %v4128
    %5288 = vmatprep.subr.bf16.mxu0 %v4137
    %5289 = vmatpush1.bf16.msra.mxu0 %v4136
    %5290 = vmatprep.subr.bf16.mxu0 %v4145
    %5291 = vmatpush1.bf16.msra.mxu0 %v4144
    %5292 = vmatprep.subr.bf16.mxu0 %v4153
    %5293 = vmatpush1.bf16.msra.mxu0 %v4152
    %5294 = vmatprep.subr.bf16.mxu0 %v4161
    %5295 = vmatpush1.bf16.msra.mxu0 %v4160
    %5296 = vmatprep.subr.bf16.mxu0 %v4169
    %5297 = vmatpush1.bf16.msra.mxu0 %v4168
    %5298 = vmatprep.subr.bf16.mxu0 %v4177
    %5299 = vmatpush1.bf16.msra.mxu0 %v4176
    %5300 = vmatprep.subr.bf16.mxu0 %v4185
    %5301 = vmatpush1.bf16.msra.mxu0 %v4184
    %5302 = vmatprep.subr.bf16.mxu0 %v4193
    %5303 = vmatpush1.bf16.msra.mxu0 %v4192
    %5304 = vmatprep.subr.bf16.mxu0 %v4201
    %5305 = vmatpush1.bf16.msra.mxu0 %v4200
    %5306 = vmatprep.subr.bf16.mxu0 %v4209
    %5307 = vmatpush1.bf16.msra.mxu0 %v4208
    %5308 = vmatprep.mubr.bf16.mxu0 %v459
    %5309 = vmatmul.mubr.bf16.gmra.mrb[0].mxu0 %v458
    %v5310 = vpop.f32.mrb[0].mxu0
    %v5311 = vadd.f32 %v5270, %v5310
    %v5312 = vpop.f32.mrb[0].mxu0
    %v5313 = vadd.f32 %v5272, %v5312
    %v5314 = vpop.f32.mrb[0].mxu0
    %v5315 = vpop.f32.mrb[0].mxu0
    %5316 = vdwg.mxu0
    %5317 = vmatprep.subr.bf16.mxu0 %v4217
    %5318 = vmatpush1.bf16.msra.mxu0 %v4216
    %5319 = vmatprep.subr.bf16.mxu0 %v4225
    %5320 = vmatpush1.bf16.msra.mxu0 %v4224
    %5321 = vmatprep.subr.bf16.mxu0 %v4233
    %5322 = vmatpush1.bf16.msra.mxu0 %v4232
    %5323 = vmatprep.subr.bf16.mxu0 %v4241
    %5324 = vmatpush1.bf16.msra.mxu0 %v4240
    %5325 = vmatprep.subr.bf16.mxu0 %v4249
    %5326 = vmatpush1.bf16.msra.mxu0 %v4248
    %5327 = vmatprep.subr.bf16.mxu0 %v4257
    %5328 = vmatpush1.bf16.msra.mxu0 %v4256
    %5329 = vmatprep.subr.bf16.mxu0 %v4265
    %5330 = vmatpush1.bf16.msra.mxu0 %v4264
    %5331 = vmatprep.subr.bf16.mxu0 %v4273
    %5332 = vmatpush1.bf16.msra.mxu0 %v4272
    %5333 = vmatprep.subr.bf16.mxu0 %v4281
    %5334 = vmatpush1.bf16.msra.mxu0 %v4280
    %5335 = vmatprep.subr.bf16.mxu0 %v4289
    %5336 = vmatpush1.bf16.msra.mxu0 %v4288
    %5337 = vmatprep.subr.bf16.mxu0 %v4297
    %5338 = vmatpush1.bf16.msra.mxu0 %v4296
    %5339 = vmatprep.subr.bf16.mxu0 %v4305
    %5340 = vmatpush1.bf16.msra.mxu0 %v4304
    %5341 = vmatprep.subr.bf16.mxu0 %v4313
    %5342 = vmatpush1.bf16.msra.mxu0 %v4312
    %5343 = vmatprep.subr.bf16.mxu0 %v4321
    %5344 = vmatpush1.bf16.msra.mxu0 %v4320
    %5345 = vmatprep.subr.bf16.mxu0 %v4329
    %5346 = vmatpush1.bf16.msra.mxu0 %v4328
    %5347 = vmatprep.subr.bf16.mxu0 %v4337
    %5348 = vmatpush1.bf16.msra.mxu0 %v4336
    %5349 = vmatprep.mubr.bf16.mxu0 %v461
    %5350 = vmatmul.mubr.bf16.gmra.mrb[0].mxu0 %v460
    %v5351 = vpop.f32.mrb[0].mxu0
    %v5352 = vadd.f32 %v5311, %v5351
    %v5353 = vpop.f32.mrb[0].mxu0
    %v5354 = vadd.f32 %v5313, %v5353
    %v5355 = vpop.f32.mrb[0].mxu0
    %v5356 = vpop.f32.mrb[0].mxu0
    %5357 = vdwg.mxu0
    %5358 = vmatprep.subr.bf16.mxu0 %v3579
    %5359 = vmatpush1.bf16.msra.mxu0 %v3578
    %5360 = vmatprep.subr.bf16.mxu0 %v3587
    %5361 = vmatpush1.bf16.msra.mxu0 %v3586
    %5362 = vmatprep.subr.bf16.mxu0 %v3595
    %5363 = vmatpush1.bf16.msra.mxu0 %v3594
    %5364 = vmatprep.subr.bf16.mxu0 %v3603
    %5365 = vmatpush1.bf16.msra.mxu0 %v3602
    %5366 = vmatprep.subr.bf16.mxu0 %v3611
    %5367 = vmatpush1.bf16.msra.mxu0 %v3610
    %5368 = vmatprep.subr.bf16.mxu0 %v3619
    %5369 = vmatpush1.bf16.msra.mxu0 %v3618
    %5370 = vmatprep.subr.bf16.mxu0 %v3627
    %5371 = vmatpush1.bf16.msra.mxu0 %v3626
    %5372 = vmatprep.subr.bf16.mxu0 %v3635
    %5373 = vmatpush1.bf16.msra.mxu0 %v3634
    %5374 = vmatprep.subr.bf16.mxu0 %v3643
    %5375 = vmatpush1.bf16.msra.mxu0 %v3642
    %5376 = vmatprep.subr.bf16.mxu0 %v3651
    %5377 = vmatpush1.bf16.msra.mxu0 %v3650
    %5378 = vmatprep.subr.bf16.mxu0 %v3659
    %5379 = vmatpush1.bf16.msra.mxu0 %v3658
    %5380 = vmatprep.subr.bf16.mxu0 %v3667
    %5381 = vmatpush1.bf16.msra.mxu0 %v3666
    %5382 = vmatprep.subr.bf16.mxu0 %v3675
    %5383 = vmatpush1.bf16.msra.mxu0 %v3674
    %5384 = vmatprep.subr.bf16.mxu0 %v3683
    %5385 = vmatpush1.bf16.msra.mxu0 %v3682
    %5386 = vmatprep.subr.bf16.mxu0 %v3691
    %5387 = vmatpush1.bf16.msra.mxu0 %v3690
    %5388 = vmatprep.subr.bf16.mxu0 %v3699
    %5389 = vmatpush1.bf16.msra.mxu0 %v3698
    %5390 = vmatprep.mubr.bf16.mxu0 %v451
    %5391 = vmatmul.mubr.bf16.gmra.mrb[0].mxu0 %v450
    %v5392 = vpop.f32.mrb[0].mxu0
    %v5393 = vadd.f32 %v1243, %v5392
    %v5394 = vpop.f32.mrb[0].mxu0
    %v5395 = vadd.f32 %v1247, %v5394
    %v5396 = vpop.f32.mrb[0].mxu0
    %v5397 = vpop.f32.mrb[0].mxu0
    %5398 = vdwg.mxu0
    %5399 = vmatprep.subr.bf16.mxu0 %v3707
    %5400 = vmatpush1.bf16.msra.mxu0 %v3706
    %5401 = vmatprep.subr.bf16.mxu0 %v3715
    %5402 = vmatpush1.bf16.msra.mxu0 %v3714
    %5403 = vmatprep.subr.bf16.mxu0 %v3723
    %5404 = vmatpush1.bf16.msra.mxu0 %v3722
    %5405 = vmatprep.subr.bf16.mxu0 %v3731
    %5406 = vmatpush1.bf16.msra.mxu0 %v3730
    %5407 = vmatprep.subr.bf16.mxu0 %v3739
    %5408 = vmatpush1.bf16.msra.mxu0 %v3738
    %5409 = vmatprep.subr.bf16.mxu0 %v3747
    %5410 = vmatpush1.bf16.msra.mxu0 %v3746
    %5411 = vmatprep.subr.bf16.mxu0 %v3755
    %5412 = vmatpush1.bf16.msra.mxu0 %v3754
    %5413 = vmatprep.subr.bf16.mxu0 %v3763
    %5414 = vmatpush1.bf16.msra.mxu0 %v3762
    %5415 = vmatprep.subr.bf16.mxu0 %v3771
    %5416 = vmatpush1.bf16.msra.mxu0 %v3770
    %5417 = vmatprep.subr.bf16.mxu0 %v3779
    %5418 = vmatpush1.bf16.msra.mxu0 %v3778
    %5419 = vmatprep.subr.bf16.mxu0 %v3787
    %5420 = vmatpush1.bf16.msra.mxu0 %v3786
    %5421 = vmatprep.subr.bf16.mxu0 %v3795
    %5422 = vmatpush1.bf16.msra.mxu0 %v3794
    %5423 = vmatprep.subr.bf16.mxu0 %v3803
    %5424 = vmatpush1.bf16.msra.mxu0 %v3802
    %5425 = vmatprep.subr.bf16.mxu0 %v3811
    %5426 = vmatpush1.bf16.msra.mxu0 %v3810
    %5427 = vmatprep.subr.bf16.mxu0 %v3819
    %5428 = vmatpush1.bf16.msra.mxu0 %v3818
    %5429 = vmatprep.subr.bf16.mxu0 %v3827
    %5430 = vmatpush1.bf16.msra.mxu0 %v3826
    %5431 = vmatprep.mubr.bf16.mxu0 %v453
    %5432 = vmatmul.mubr.bf16.gmra.mrb[0].mxu0 %v452
    %v5433 = vpop.f32.mrb[0].mxu0
    %v5434 = vadd.f32 %v5393, %v5433
    %v5435 = vpop.f32.mrb[0].mxu0
    %v5436 = vadd.f32 %v5395, %v5435
    %v5437 = vpop.f32.mrb[0].mxu0
    %v5438 = vpop.f32.mrb[0].mxu0
    %5439 = vdwg.mxu0
    %5440 = vmatprep.subr.bf16.mxu0 %v3835
    %5441 = vmatpush1.bf16.msra.mxu0 %v3834
    %5442 = vmatprep.subr.bf16.mxu0 %v3843
    %5443 = vmatpush1.bf16.msra.mxu0 %v3842
    %5444 = vmatprep.subr.bf16.mxu0 %v3851
    %5445 = vmatpush1.bf16.msra.mxu0 %v3850
    %5446 = vmatprep.subr.bf16.mxu0 %v3859
    %5447 = vmatpush1.bf16.msra.mxu0 %v3858
    %5448 = vmatprep.subr.bf16.mxu0 %v3867
    %5449 = vmatpush1.bf16.msra.mxu0 %v3866
    %5450 = vmatprep.subr.bf16.mxu0 %v3875
    %5451 = vmatpush1.bf16.msra.mxu0 %v3874
    %5452 = vmatprep.subr.bf16.mxu0 %v3883
    %5453 = vmatpush1.bf16.msra.mxu0 %v3882
    %5454 = vmatprep.subr.bf16.mxu0 %v3891
    %5455 = vmatpush1.bf16.msra.mxu0 %v3890
    %5456 = vmatprep.subr.bf16.mxu0 %v3899
    %5457 = vmatpush1.bf16.msra.mxu0 %v3898
    %5458 = vmatprep.subr.bf16.mxu0 %v3907
    %5459 = vmatpush1.bf16.msra.mxu0 %v3906
    %5460 = vmatprep.subr.bf16.mxu0 %v3915
    %5461 = vmatpush1.bf16.msra.mxu0 %v3914
    %5462 = vmatprep.subr.bf16.mxu0 %v3923
    %5463 = vmatpush1.bf16.msra.mxu0 %v3922
    %5464 = vmatprep.subr.bf16.mxu0 %v3931
    %5465 = vmatpush1.bf16.msra.mxu0 %v3930
    %5466 = vmatprep.subr.bf16.mxu0 %v3939
    %5467 = vmatpush1.bf16.msra.mxu0 %v3938
    %5468 = vmatprep.subr.bf16.mxu0 %v3947
    %5469 = vmatpush1.bf16.msra.mxu0 %v3946
    %5470 = vmatprep.subr.bf16.mxu0 %v3955
    %5471 = vmatpush1.bf16.msra.mxu0 %v3954
    %5472 = vmatprep.mubr.bf16.mxu0 %v455
    %5473 = vmatmul.mubr.bf16.gmra.mrb[0].mxu0 %v454
    %v5474 = vpop.f32.mrb[0].mxu0
    %v5475 = vadd.f32 %v5434, %v5474
    %v5476 = vpop.f32.mrb[0].mxu0
    %v5477 = vadd.f32 %v5436, %v5476
    %v5478 = vpop.f32.mrb[0].mxu0
    %v5479 = vpop.f32.mrb[0].mxu0
    %5480 = vdwg.mxu0
    %5481 = vmatprep.subr.bf16.mxu0 %v3963
    %5482 = vmatpush1.bf16.msra.mxu0 %v3962
    %5483 = vmatprep.subr.bf16.mxu0 %v3971
    %5484 = vmatpush1.bf16.msra.mxu0 %v3970
    %5485 = vmatprep.subr.bf16.mxu0 %v3979
    %5486 = vmatpush1.bf16.msra.mxu0 %v3978
    %5487 = vmatprep.subr.bf16.mxu0 %v3987
    %5488 = vmatpush1.bf16.msra.mxu0 %v3986
    %5489 = vmatprep.subr.bf16.mxu0 %v3995
    %5490 = vmatpush1.bf16.msra.mxu0 %v3994
    %5491 = vmatprep.subr.bf16.mxu0 %v4003
    %5492 = vmatpush1.bf16.msra.mxu0 %v4002
    %5493 = vmatprep.subr.bf16.mxu0 %v4011
    %5494 = vmatpush1.bf16.msra.mxu0 %v4010
    %5495 = vmatprep.subr.bf16.mxu0 %v4019
    %5496 = vmatpush1.bf16.msra.mxu0 %v4018
    %5497 = vmatprep.subr.bf16.mxu0 %v4027
    %5498 = vmatpush1.bf16.msra.mxu0 %v4026
    %5499 = vmatprep.subr.bf16.mxu0 %v4035
    %5500 = vmatpush1.bf16.msra.mxu0 %v4034
    %5501 = vmatprep.subr.bf16.mxu0 %v4043
    %5502 = vmatpush1.bf16.msra.mxu0 %v4042
    %5503 = vmatprep.subr.bf16.mxu0 %v4051
    %5504 = vmatpush1.bf16.msra.mxu0 %v4050
    %5505 = vmatprep.subr.bf16.mxu0 %v4059
    %5506 = vmatpush1.bf16.msra.mxu0 %v4058
    %5507 = vmatprep.subr.bf16.mxu0 %v4067
    %5508 = vmatpush1.bf16.msra.mxu0 %v4066
    %5509 = vmatprep.subr.bf16.mxu0 %v4075
    %5510 = vmatpush1.bf16.msra.mxu0 %v4074
    %5511 = vmatprep.subr.bf16.mxu0 %v4083
    %5512 = vmatpush1.bf16.msra.mxu0 %v4082
    %5513 = vmatprep.mubr.bf16.mxu0 %v457
    %5514 = vmatmul.mubr.bf16.gmra.mrb[0].mxu0 %v456
    %v5515 = vpop.f32.mrb[0].mxu0
    %v5516 = vadd.f32 %v5475, %v5515
    %v5517 = vpop.f32.mrb[0].mxu0
    %v5518 = vadd.f32 %v5477, %v5517
    %v5519 = vpop.f32.mrb[0].mxu0
    %v5520 = vpop.f32.mrb[0].mxu0
    %5521 = vdwg.mxu0
    %5522 = vmatprep.subr.bf16.mxu0 %v4091
    %5523 = vmatpush1.bf16.msra.mxu0 %v4090
    %5524 = vmatprep.subr.bf16.mxu0 %v4099
    %5525 = vmatpush1.bf16.msra.mxu0 %v4098
    %5526 = vmatprep.subr.bf16.mxu0 %v4107
    %5527 = vmatpush1.bf16.msra.mxu0 %v4106
    %5528 = vmatprep.subr.bf16.mxu0 %v4115
    %5529 = vmatpush1.bf16.msra.mxu0 %v4114
    %5530 = vmatprep.subr.bf16.mxu0 %v4123
    %5531 = vmatpush1.bf16.msra.mxu0 %v4122
    %5532 = vmatprep.subr.bf16.mxu0 %v4131
    %5533 = vmatpush1.bf16.msra.mxu0 %v4130
    %5534 = vmatprep.subr.bf16.mxu0 %v4139
    %5535 = vmatpush1.bf16.msra.mxu0 %v4138
    %5536 = vmatprep.subr.bf16.mxu0 %v4147
    %5537 = vmatpush1.bf16.msra.mxu0 %v4146
    %5538 = vmatprep.subr.bf16.mxu0 %v4155
    %5539 = vmatpush1.bf16.msra.mxu0 %v4154
    %5540 = vmatprep.subr.bf16.mxu0 %v4163
    %5541 = vmatpush1.bf16.msra.mxu0 %v4162
    %5542 = vmatprep.subr.bf16.mxu0 %v4171
    %5543 = vmatpush1.bf16.msra.mxu0 %v4170
    %5544 = vmatprep.subr.bf16.mxu0 %v4179
    %5545 = vmatpush1.bf16.msra.mxu0 %v4178
    %5546 = vmatprep.subr.bf16.mxu0 %v4187
    %5547 = vmatpush1.bf16.msra.mxu0 %v4186
    %5548 = vmatprep.subr.bf16.mxu0 %v4195
    %5549 = vmatpush1.bf16.msra.mxu0 %v4194
    %5550 = vmatprep.subr.bf16.mxu0 %v4203
    %5551 = vmatpush1.bf16.msra.mxu0 %v4202
    %5552 = vmatprep.subr.bf16.mxu0 %v4211
    %5553 = vmatpush1.bf16.msra.mxu0 %v4210
    %5554 = vmatprep.mubr.bf16.mxu0 %v459
    %5555 = vmatmul.mubr.bf16.gmra.mrb[0].mxu0 %v458
    %v5556 = vpop.f32.mrb[0].mxu0
    %v5557 = vadd.f32 %v5516, %v5556
    %v5558 = vpop.f32.mrb[0].mxu0
    %v5559 = vadd.f32 %v5518, %v5558
    %v5560 = vpop.f32.mrb[0].mxu0
    %v5561 = vpop.f32.mrb[0].mxu0
    %5562 = vdwg.mxu0
    %5563 = vmatprep.subr.bf16.mxu0 %v4219
    %5564 = vmatpush1.bf16.msra.mxu0 %v4218
    %5565 = vmatprep.subr.bf16.mxu0 %v4227
    %5566 = vmatpush1.bf16.msra.mxu0 %v4226
    %5567 = vmatprep.subr.bf16.mxu0 %v4235
    %5568 = vmatpush1.bf16.msra.mxu0 %v4234
    %5569 = vmatprep.subr.bf16.mxu0 %v4243
    %5570 = vmatpush1.bf16.msra.mxu0 %v4242
    %5571 = vmatprep.subr.bf16.mxu0 %v4251
    %5572 = vmatpush1.bf16.msra.mxu0 %v4250
    %5573 = vmatprep.subr.bf16.mxu0 %v4259
    %5574 = vmatpush1.bf16.msra.mxu0 %v4258
    %5575 = vmatprep.subr.bf16.mxu0 %v4267
    %5576 = vmatpush1.bf16.msra.mxu0 %v4266
    %5577 = vmatprep.subr.bf16.mxu0 %v4275
    %5578 = vmatpush1.bf16.msra.mxu0 %v4274
    %5579 = vmatprep.subr.bf16.mxu0 %v4283
    %5580 = vmatpush1.bf16.msra.mxu0 %v4282
    %5581 = vmatprep.subr.bf16.mxu0 %v4291
    %5582 = vmatpush1.bf16.msra.mxu0 %v4290
    %5583 = vmatprep.subr.bf16.mxu0 %v4299
    %5584 = vmatpush1.bf16.msra.mxu0 %v4298
    %5585 = vmatprep.subr.bf16.mxu0 %v4307
    %5586 = vmatpush1.bf16.msra.mxu0 %v4306
    %5587 = vmatprep.subr.bf16.mxu0 %v4315
    %5588 = vmatpush1.bf16.msra.mxu0 %v4314
    %5589 = vmatprep.subr.bf16.mxu0 %v4323
    %5590 = vmatpush1.bf16.msra.mxu0 %v4322
    %5591 = vmatprep.subr.bf16.mxu0 %v4331
    %5592 = vmatpush1.bf16.msra.mxu0 %v4330
    %5593 = vmatprep.subr.bf16.mxu0 %v4339
    %5594 = vmatpush1.bf16.msra.mxu0 %v4338
    %5595 = vmatprep.mubr.bf16.mxu0 %v461
    %5596 = vmatmul.mubr.bf16.gmra.mrb[0].mxu0 %v460
    %v5597 = vpop.f32.mrb[0].mxu0
    %v5598 = vadd.f32 %v5557, %v5597
    %v5599 = vpop.f32.mrb[0].mxu0
    %v5600 = vadd.f32 %v5559, %v5599
    %v5601 = vpop.f32.mrb[0].mxu0
    %v5602 = vpop.f32.mrb[0].mxu0
    %5603 = vdwg.mxu0
    %5604 = vmatprep.subr.bf16.mxu0 %v3581
    %5605 = vmatpush1.bf16.msra.mxu0 %v3580
    %5606 = vmatprep.subr.bf16.mxu0 %v3589
    %5607 = vmatpush1.bf16.msra.mxu0 %v3588
    %5608 = vmatprep.subr.bf16.mxu0 %v3597
    %5609 = vmatpush1.bf16.msra.mxu0 %v3596
    %5610 = vmatprep.subr.bf16.mxu0 %v3605
    %5611 = vmatpush1.bf16.msra.mxu0 %v3604
    %5612 = vmatprep.subr.bf16.mxu0 %v3613
    %5613 = vmatpush1.bf16.msra.mxu0 %v3612
    %5614 = vmatprep.subr.bf16.mxu0 %v3621
    %5615 = vmatpush1.bf16.msra.mxu0 %v3620
    %5616 = vmatprep.subr.bf16.mxu0 %v3629
    %5617 = vmatpush1.bf16.msra.mxu0 %v3628
    %5618 = vmatprep.subr.bf16.mxu0 %v3637
    %5619 = vmatpush1.bf16.msra.mxu0 %v3636
    %5620 = vmatprep.subr.bf16.mxu0 %v3645
    %5621 = vmatpush1.bf16.msra.mxu0 %v3644
    %5622 = vmatprep.subr.bf16.mxu0 %v3653
    %5623 = vmatpush1.bf16.msra.mxu0 %v3652
    %5624 = vmatprep.subr.bf16.mxu0 %v3661
    %5625 = vmatpush1.bf16.msra.mxu0 %v3660
    %5626 = vmatprep.subr.bf16.mxu0 %v3669
    %5627 = vmatpush1.bf16.msra.mxu0 %v3668
    %5628 = vmatprep.subr.bf16.mxu0 %v3677
    %5629 = vmatpush1.bf16.msra.mxu0 %v3676
    %5630 = vmatprep.subr.bf16.mxu0 %v3685
    %5631 = vmatpush1.bf16.msra.mxu0 %v3684
    %5632 = vmatprep.subr.bf16.mxu0 %v3693
    %5633 = vmatpush1.bf16.msra.mxu0 %v3692
    %5634 = vmatprep.subr.bf16.mxu0 %v3701
    %5635 = vmatpush1.bf16.msra.mxu0 %v3700
    %5636 = vmatprep.mubr.bf16.mxu0 %v451
    %5637 = vmatmul.mubr.bf16.gmra.mrb[0].mxu0 %v450
    %v5638 = vpop.f32.mrb[0].mxu0
    %v5639 = vadd.f32 %v1251, %v5638
    %v5640 = vpop.f32.mrb[0].mxu0
    %v5641 = vadd.f32 %v1255, %v5640
    %v5642 = vpop.f32.mrb[0].mxu0
    %v5643 = vpop.f32.mrb[0].mxu0
    %5644 = vdwg.mxu0
    %5645 = vmatprep.subr.bf16.mxu0 %v3709
    %5646 = vmatpush1.bf16.msra.mxu0 %v3708
    %5647 = vmatprep.subr.bf16.mxu0 %v3717
    %5648 = vmatpush1.bf16.msra.mxu0 %v3716
    %5649 = vmatprep.subr.bf16.mxu0 %v3725
    %5650 = vmatpush1.bf16.msra.mxu0 %v3724
    %5651 = vmatprep.subr.bf16.mxu0 %v3733
    %5652 = vmatpush1.bf16.msra.mxu0 %v3732
    %5653 = vmatprep.subr.bf16.mxu0 %v3741
    %5654 = vmatpush1.bf16.msra.mxu0 %v3740
    %5655 = vmatprep.subr.bf16.mxu0 %v3749
    %5656 = vmatpush1.bf16.msra.mxu0 %v3748
    %5657 = vmatprep.subr.bf16.mxu0 %v3757
    %5658 = vmatpush1.bf16.msra.mxu0 %v3756
    %5659 = vmatprep.subr.bf16.mxu0 %v3765
    %5660 = vmatpush1.bf16.msra.mxu0 %v3764
    %5661 = vmatprep.subr.bf16.mxu0 %v3773
    %5662 = vmatpush1.bf16.msra.mxu0 %v3772
    %5663 = vmatprep.subr.bf16.mxu0 %v3781
    %5664 = vmatpush1.bf16.msra.mxu0 %v3780
    %5665 = vmatprep.subr.bf16.mxu0 %v3789
    %5666 = vmatpush1.bf16.msra.mxu0 %v3788
    %5667 = vmatprep.subr.bf16.mxu0 %v3797
    %5668 = vmatpush1.bf16.msra.mxu0 %v3796
    %5669 = vmatprep.subr.bf16.mxu0 %v3805
    %5670 = vmatpush1.bf16.msra.mxu0 %v3804
    %5671 = vmatprep.subr.bf16.mxu0 %v3813
    %5672 = vmatpush1.bf16.msra.mxu0 %v3812
    %5673 = vmatprep.subr.bf16.mxu0 %v3821
    %5674 = vmatpush1.bf16.msra.mxu0 %v3820
    %5675 = vmatprep.subr.bf16.mxu0 %v3829
    %5676 = vmatpush1.bf16.msra.mxu0 %v3828
    %5677 = vmatprep.mubr.bf16.mxu0 %v453
    %5678 = vmatmul.mubr.bf16.gmra.mrb[0].mxu0 %v452
    %v5679 = vpop.f32.mrb[0].mxu0
    %v5680 = vadd.f32 %v5639, %v5679
    %v5681 = vpop.f32.mrb[0].mxu0
    %v5682 = vadd.f32 %v5641, %v5681
    %v5683 = vpop.f32.mrb[0].mxu0
    %v5684 = vpop.f32.mrb[0].mxu0
    %5685 = vdwg.mxu0
    %5686 = vmatprep.subr.bf16.mxu0 %v3837
    %5687 = vmatpush1.bf16.msra.mxu0 %v3836
    %5688 = vmatprep.subr.bf16.mxu0 %v3845
    %5689 = vmatpush1.bf16.msra.mxu0 %v3844
    %5690 = vmatprep.subr.bf16.mxu0 %v3853
    %5691 = vmatpush1.bf16.msra.mxu0 %v3852
    %5692 = vmatprep.subr.bf16.mxu0 %v3861
    %5693 = vmatpush1.bf16.msra.mxu0 %v3860
    %5694 = vmatprep.subr.bf16.mxu0 %v3869
    %5695 = vmatpush1.bf16.msra.mxu0 %v3868
    %5696 = vmatprep.subr.bf16.mxu0 %v3877
    %5697 = vmatpush1.bf16.msra.mxu0 %v3876
    %5698 = vmatprep.subr.bf16.mxu0 %v3885
    %5699 = vmatpush1.bf16.msra.mxu0 %v3884
    %5700 = vmatprep.subr.bf16.mxu0 %v3893
    %5701 = vmatpush1.bf16.msra.mxu0 %v3892
    %5702 = vmatprep.subr.bf16.mxu0 %v3901
    %5703 = vmatpush1.bf16.msra.mxu0 %v3900
    %5704 = vmatprep.subr.bf16.mxu0 %v3909
    %5705 = vmatpush1.bf16.msra.mxu0 %v3908
    %5706 = vmatprep.subr.bf16.mxu0 %v3917
    %5707 = vmatpush1.bf16.msra.mxu0 %v3916
    %5708 = vmatprep.subr.bf16.mxu0 %v3925
    %5709 = vmatpush1.bf16.msra.mxu0 %v3924
    %5710 = vmatprep.subr.bf16.mxu0 %v3933
    %5711 = vmatpush1.bf16.msra.mxu0 %v3932
    %5712 = vmatprep.subr.bf16.mxu0 %v3941
    %5713 = vmatpush1.bf16.msra.mxu0 %v3940
    %5714 = vmatprep.subr.bf16.mxu0 %v3949
    %5715 = vmatpush1.bf16.msra.mxu0 %v3948
    %5716 = vmatprep.subr.bf16.mxu0 %v3957
    %5717 = vmatpush1.bf16.msra.mxu0 %v3956
    %5718 = vmatprep.mubr.bf16.mxu0 %v455
    %5719 = vmatmul.mubr.bf16.gmra.mrb[0].mxu0 %v454
    %v5720 = vpop.f32.mrb[0].mxu0
    %v5721 = vadd.f32 %v5680, %v5720
    %v5722 = vpop.f32.mrb[0].mxu0
    %v5723 = vadd.f32 %v5682, %v5722
    %v5724 = vpop.f32.mrb[0].mxu0
    %v5725 = vpop.f32.mrb[0].mxu0
    %5726 = vdwg.mxu0
    %5727 = vmatprep.subr.bf16.mxu0 %v3965
    %5728 = vmatpush1.bf16.msra.mxu0 %v3964
    %5729 = vmatprep.subr.bf16.mxu0 %v3973
    %5730 = vmatpush1.bf16.msra.mxu0 %v3972
    %5731 = vmatprep.subr.bf16.mxu0 %v3981
    %5732 = vmatpush1.bf16.msra.mxu0 %v3980
    %5733 = vmatprep.subr.bf16.mxu0 %v3989
    %5734 = vmatpush1.bf16.msra.mxu0 %v3988
    %5735 = vmatprep.subr.bf16.mxu0 %v3997
    %5736 = vmatpush1.bf16.msra.mxu0 %v3996
    %5737 = vmatprep.subr.bf16.mxu0 %v4005
    %5738 = vmatpush1.bf16.msra.mxu0 %v4004
    %5739 = vmatprep.subr.bf16.mxu0 %v4013
    %5740 = vmatpush1.bf16.msra.mxu0 %v4012
    %5741 = vmatprep.subr.bf16.mxu0 %v4021
    %5742 = vmatpush1.bf16.msra.mxu0 %v4020
    %5743 = vmatprep.subr.bf16.mxu0 %v4029
    %5744 = vmatpush1.bf16.msra.mxu0 %v4028
    %5745 = vmatprep.subr.bf16.mxu0 %v4037
    %5746 = vmatpush1.bf16.msra.mxu0 %v4036
    %5747 = vmatprep.subr.bf16.mxu0 %v4045
    %5748 = vmatpush1.bf16.msra.mxu0 %v4044
    %5749 = vmatprep.subr.bf16.mxu0 %v4053
    %5750 = vmatpush1.bf16.msra.mxu0 %v4052
    %5751 = vmatprep.subr.bf16.mxu0 %v4061
    %5752 = vmatpush1.bf16.msra.mxu0 %v4060
    %5753 = vmatprep.subr.bf16.mxu0 %v4069
    %5754 = vmatpush1.bf16.msra.mxu0 %v4068
    %5755 = vmatprep.subr.bf16.mxu0 %v4077
    %5756 = vmatpush1.bf16.msra.mxu0 %v4076
    %5757 = vmatprep.subr.bf16.mxu0 %v4085
    %5758 = vmatpush1.bf16.msra.mxu0 %v4084
    %5759 = vmatprep.mubr.bf16.mxu0 %v457
    %5760 = vmatmul.mubr.bf16.gmra.mrb[0].mxu0 %v456
    %v5761 = vpop.f32.mrb[0].mxu0
    %v5762 = vadd.f32 %v5721, %v5761
    %v5763 = vpop.f32.mrb[0].mxu0
    %v5764 = vadd.f32 %v5723, %v5763
    %v5765 = vpop.f32.mrb[0].mxu0
    %v5766 = vpop.f32.mrb[0].mxu0
    %5767 = vdwg.mxu0
    %5768 = vmatprep.subr.bf16.mxu0 %v4093
    %5769 = vmatpush1.bf16.msra.mxu0 %v4092
    %5770 = vmatprep.subr.bf16.mxu0 %v4101
    %5771 = vmatpush1.bf16.msra.mxu0 %v4100
    %5772 = vmatprep.subr.bf16.mxu0 %v4109
    %5773 = vmatpush1.bf16.msra.mxu0 %v4108
    %5774 = vmatprep.subr.bf16.mxu0 %v4117
    %5775 = vmatpush1.bf16.msra.mxu0 %v4116
    %5776 = vmatprep.subr.bf16.mxu0 %v4125
    %5777 = vmatpush1.bf16.msra.mxu0 %v4124
    %5778 = vmatprep.subr.bf16.mxu0 %v4133
    %5779 = vmatpush1.bf16.msra.mxu0 %v4132
    %5780 = vmatprep.subr.bf16.mxu0 %v4141
    %5781 = vmatpush1.bf16.msra.mxu0 %v4140
    %5782 = vmatprep.subr.bf16.mxu0 %v4149
    %5783 = vmatpush1.bf16.msra.mxu0 %v4148
    %5784 = vmatprep.subr.bf16.mxu0 %v4157
    %5785 = vmatpush1.bf16.msra.mxu0 %v4156
    %5786 = vmatprep.subr.bf16.mxu0 %v4165
    %5787 = vmatpush1.bf16.msra.mxu0 %v4164
    %5788 = vmatprep.subr.bf16.mxu0 %v4173
    %5789 = vmatpush1.bf16.msra.mxu0 %v4172
    %5790 = vmatprep.subr.bf16.mxu0 %v4181
    %5791 = vmatpush1.bf16.msra.mxu0 %v4180
    %5792 = vmatprep.subr.bf16.mxu0 %v4189
    %5793 = vmatpush1.bf16.msra.mxu0 %v4188
    %5794 = vmatprep.subr.bf16.mxu0 %v4197
    %5795 = vmatpush1.bf16.msra.mxu0 %v4196
    %5796 = vmatprep.subr.bf16.mxu0 %v4205
    %5797 = vmatpush1.bf16.msra.mxu0 %v4204
    %5798 = vmatprep.subr.bf16.mxu0 %v4213
    %5799 = vmatpush1.bf16.msra.mxu0 %v4212
    %5800 = vmatprep.mubr.bf16.mxu0 %v459
    %5801 = vmatmul.mubr.bf16.gmra.mrb[0].mxu0 %v458
    %v5802 = vpop.f32.mrb[0].mxu0
    %v5803 = vadd.f32 %v5762, %v5802
    %v5804 = vpop.f32.mrb[0].mxu0
    %v5805 = vadd.f32 %v5764, %v5804
    %v5806 = vpop.f32.mrb[0].mxu0
    %v5807 = vpop.f32.mrb[0].mxu0
    %5808 = vdwg.mxu0
    %5809 = vmatprep.subr.bf16.mxu0 %v4221
    %5810 = vmatpush1.bf16.msra.mxu0 %v4220
    %5811 = vmatprep.subr.bf16.mxu0 %v4229
    %5812 = vmatpush1.bf16.msra.mxu0 %v4228
    %5813 = vmatprep.subr.bf16.mxu0 %v4237
    %5814 = vmatpush1.bf16.msra.mxu0 %v4236
    %5815 = vmatprep.subr.bf16.mxu0 %v4245
    %5816 = vmatpush1.bf16.msra.mxu0 %v4244
    %5817 = vmatprep.subr.bf16.mxu0 %v4253
    %5818 = vmatpush1.bf16.msra.mxu0 %v4252
    %5819 = vmatprep.subr.bf16.mxu0 %v4261
    %5820 = vmatpush1.bf16.msra.mxu0 %v4260
    %5821 = vmatprep.subr.bf16.mxu0 %v4269
    %5822 = vmatpush1.bf16.msra.mxu0 %v4268
    %5823 = vmatprep.subr.bf16.mxu0 %v4277
    %5824 = vmatpush1.bf16.msra.mxu0 %v4276
    %5825 = vmatprep.subr.bf16.mxu0 %v4285
    %5826 = vmatpush1.bf16.msra.mxu0 %v4284
    %5827 = vmatprep.subr.bf16.mxu0 %v4293
    %5828 = vmatpush1.bf16.msra.mxu0 %v4292
    %5829 = vmatprep.subr.bf16.mxu0 %v4301
    %5830 = vmatpush1.bf16.msra.mxu0 %v4300
    %5831 = vmatprep.subr.bf16.mxu0 %v4309
    %5832 = vmatpush1.bf16.msra.mxu0 %v4308
    %5833 = vmatprep.subr.bf16.mxu0 %v4317
    %5834 = vmatpush1.bf16.msra.mxu0 %v4316
    %5835 = vmatprep.subr.bf16.mxu0 %v4325
    %5836 = vmatpush1.bf16.msra.mxu0 %v4324
    %5837 = vmatprep.subr.bf16.mxu0 %v4333
    %5838 = vmatpush1.bf16.msra.mxu0 %v4332
    %5839 = vmatprep.subr.bf16.mxu0 %v4341
    %5840 = vmatpush1.bf16.msra.mxu0 %v4340
    %5841 = vmatprep.mubr.bf16.mxu0 %v461
    %5842 = vmatmul.mubr.bf16.gmra.mrb[0].mxu0 %v460
    %v5843 = vpop.f32.mrb[0].mxu0
    %v5844 = vadd.f32 %v5803, %v5843
    %v5845 = vpop.f32.mrb[0].mxu0
    %v5846 = vadd.f32 %v5805, %v5845
    %v5847 = vpop.f32.mrb[0].mxu0
    %v5848 = vpop.f32.mrb[0].mxu0
    %5849 = vdwg.mxu0
    %5850 = vmatprep.subr.bf16.mxu0 %v3583
    %5851 = vmatpush1.bf16.msra.mxu0 %v3582
    %5852 = vmatprep.subr.bf16.mxu0 %v3591
    %5853 = vmatpush1.bf16.msra.mxu0 %v3590
    %5854 = vmatprep.subr.bf16.mxu0 %v3599
    %5855 = vmatpush1.bf16.msra.mxu0 %v3598
    %5856 = vmatprep.subr.bf16.mxu0 %v3607
    %5857 = vmatpush1.bf16.msra.mxu0 %v3606
    %5858 = vmatprep.subr.bf16.mxu0 %v3615
    %5859 = vmatpush1.bf16.msra.mxu0 %v3614
    %5860 = vmatprep.subr.bf16.mxu0 %v3623
    %5861 = vmatpush1.bf16.msra.mxu0 %v3622
    %5862 = vmatprep.subr.bf16.mxu0 %v3631
    %5863 = vmatpush1.bf16.msra.mxu0 %v3630
    %5864 = vmatprep.subr.bf16.mxu0 %v3639
    %5865 = vmatpush1.bf16.msra.mxu0 %v3638
    %5866 = vmatprep.subr.bf16.mxu0 %v3647
    %5867 = vmatpush1.bf16.msra.mxu0 %v3646
    %5868 = vmatprep.subr.bf16.mxu0 %v3655
    %5869 = vmatpush1.bf16.msra.mxu0 %v3654
    %5870 = vmatprep.subr.bf16.mxu0 %v3663
    %5871 = vmatpush1.bf16.msra.mxu0 %v3662
    %5872 = vmatprep.subr.bf16.mxu0 %v3671
    %5873 = vmatpush1.bf16.msra.mxu0 %v3670
    %5874 = vmatprep.subr.bf16.mxu0 %v3679
    %5875 = vmatpush1.bf16.msra.mxu0 %v3678
    %5876 = vmatprep.subr.bf16.mxu0 %v3687
    %5877 = vmatpush1.bf16.msra.mxu0 %v3686
    %5878 = vmatprep.subr.bf16.mxu0 %v3695
    %5879 = vmatpush1.bf16.msra.mxu0 %v3694
    %5880 = vmatprep.subr.bf16.mxu0 %v3703
    %5881 = vmatpush1.bf16.msra.mxu0 %v3702
    %5882 = vmatprep.mubr.bf16.mxu0 %v451
    %5883 = vmatmul.mubr.bf16.gmra.mrb[0].mxu0 %v450
    %v5884 = vpop.f32.mrb[0].mxu0
    %v5885 = vadd.f32 %v1259, %v5884
    %v5886 = vpop.f32.mrb[0].mxu0
    %v5887 = vadd.f32 %v1263, %v5886
    %v5888 = vpop.f32.mrb[0].mxu0
    %v5889 = vpop.f32.mrb[0].mxu0
    %5890 = vdwg.mxu0
    %5891 = vmatprep.subr.bf16.mxu0 %v3711
    %5892 = vmatpush1.bf16.msra.mxu0 %v3710
    %5893 = vmatprep.subr.bf16.mxu0 %v3719
    %5894 = vmatpush1.bf16.msra.mxu0 %v3718
    %5895 = vmatprep.subr.bf16.mxu0 %v3727
    %5896 = vmatpush1.bf16.msra.mxu0 %v3726
    %5897 = vmatprep.subr.bf16.mxu0 %v3735
    %5898 = vmatpush1.bf16.msra.mxu0 %v3734
    %5899 = vmatprep.subr.bf16.mxu0 %v3743
    %5900 = vmatpush1.bf16.msra.mxu0 %v3742
    %5901 = vmatprep.subr.bf16.mxu0 %v3751
    %5902 = vmatpush1.bf16.msra.mxu0 %v3750
    %5903 = vmatprep.subr.bf16.mxu0 %v3759
    %5904 = vmatpush1.bf16.msra.mxu0 %v3758
    %5905 = vmatprep.subr.bf16.mxu0 %v3767
    %5906 = vmatpush1.bf16.msra.mxu0 %v3766
    %5907 = vmatprep.subr.bf16.mxu0 %v3775
    %5908 = vmatpush1.bf16.msra.mxu0 %v3774
    %5909 = vmatprep.subr.bf16.mxu0 %v3783
    %5910 = vmatpush1.bf16.msra.mxu0 %v3782
    %5911 = vmatprep.subr.bf16.mxu0 %v3791
    %5912 = vmatpush1.bf16.msra.mxu0 %v3790
    %5913 = vmatprep.subr.bf16.mxu0 %v3799
    %5914 = vmatpush1.bf16.msra.mxu0 %v3798
    %5915 = vmatprep.subr.bf16.mxu0 %v3807
    %5916 = vmatpush1.bf16.msra.mxu0 %v3806
    %5917 = vmatprep.subr.bf16.mxu0 %v3815
    %5918 = vmatpush1.bf16.msra.mxu0 %v3814
    %5919 = vmatprep.subr.bf16.mxu0 %v3823
    %5920 = vmatpush1.bf16.msra.mxu0 %v3822
    %5921 = vmatprep.subr.bf16.mxu0 %v3831
    %5922 = vmatpush1.bf16.msra.mxu0 %v3830
    %5923 = vmatprep.mubr.bf16.mxu0 %v453
    %5924 = vmatmul.mubr.bf16.gmra.mrb[0].mxu0 %v452
    %v5925 = vpop.f32.mrb[0].mxu0
    %v5926 = vadd.f32 %v5885, %v5925
    %v5927 = vpop.f32.mrb[0].mxu0
    %v5928 = vadd.f32 %v5887, %v5927
    %v5929 = vpop.f32.mrb[0].mxu0
    %v5930 = vpop.f32.mrb[0].mxu0
    %5931 = vdwg.mxu0
    %5932 = vmatprep.subr.bf16.mxu0 %v3839
    %5933 = vmatpush1.bf16.msra.mxu0 %v3838
    %5934 = vmatprep.subr.bf16.mxu0 %v3847
    %5935 = vmatpush1.bf16.msra.mxu0 %v3846
    %5936 = vmatprep.subr.bf16.mxu0 %v3855
    %5937 = vmatpush1.bf16.msra.mxu0 %v3854
    %5938 = vmatprep.subr.bf16.mxu0 %v3863
    %5939 = vmatpush1.bf16.msra.mxu0 %v3862
    %5940 = vmatprep.subr.bf16.mxu0 %v3871
    %5941 = vmatpush1.bf16.msra.mxu0 %v3870
    %5942 = vmatprep.subr.bf16.mxu0 %v3879
    %5943 = vmatpush1.bf16.msra.mxu0 %v3878
    %5944 = vmatprep.subr.bf16.mxu0 %v3887
    %5945 = vmatpush1.bf16.msra.mxu0 %v3886
    %5946 = vmatprep.subr.bf16.mxu0 %v3895
    %5947 = vmatpush1.bf16.msra.mxu0 %v3894
    %5948 = vmatprep.subr.bf16.mxu0 %v3903
    %5949 = vmatpush1.bf16.msra.mxu0 %v3902
    %5950 = vmatprep.subr.bf16.mxu0 %v3911
    %5951 = vmatpush1.bf16.msra.mxu0 %v3910
    %5952 = vmatprep.subr.bf16.mxu0 %v3919
    %5953 = vmatpush1.bf16.msra.mxu0 %v3918
    %5954 = vmatprep.subr.bf16.mxu0 %v3927
    %5955 = vmatpush1.bf16.msra.mxu0 %v3926
    %5956 = vmatprep.subr.bf16.mxu0 %v3935
    %5957 = vmatpush1.bf16.msra.mxu0 %v3934
    %5958 = vmatprep.subr.bf16.mxu0 %v3943
    %5959 = vmatpush1.bf16.msra.mxu0 %v3942
    %5960 = vmatprep.subr.bf16.mxu0 %v3951
    %5961 = vmatpush1.bf16.msra.mxu0 %v3950
    %5962 = vmatprep.subr.bf16.mxu0 %v3959
    %5963 = vmatpush1.bf16.msra.mxu0 %v3958
    %5964 = vmatprep.mubr.bf16.mxu0 %v455
    %5965 = vmatmul.mubr.bf16.gmra.mrb[0].mxu0 %v454
    %v5966 = vpop.f32.mrb[0].mxu0
    %v5967 = vadd.f32 %v5926, %v5966
    %v5968 = vpop.f32.mrb[0].mxu0
    %v5969 = vadd.f32 %v5928, %v5968
    %v5970 = vpop.f32.mrb[0].mxu0
    %v5971 = vpop.f32.mrb[0].mxu0
    %5972 = vdwg.mxu0
    %5973 = vmatprep.subr.bf16.mxu0 %v3967
    %5974 = vmatpush1.bf16.msra.mxu0 %v3966
    %5975 = vmatprep.subr.bf16.mxu0 %v3975
    %5976 = vmatpush1.bf16.msra.mxu0 %v3974
    %5977 = vmatprep.subr.bf16.mxu0 %v3983
    %5978 = vmatpush1.bf16.msra.mxu0 %v3982
    %5979 = vmatprep.subr.bf16.mxu0 %v3991
    %5980 = vmatpush1.bf16.msra.mxu0 %v3990
    %5981 = vmatprep.subr.bf16.mxu0 %v3999
    %5982 = vmatpush1.bf16.msra.mxu0 %v3998
    %5983 = vmatprep.subr.bf16.mxu0 %v4007
    %5984 = vmatpush1.bf16.msra.mxu0 %v4006
    %5985 = vmatprep.subr.bf16.mxu0 %v4015
    %5986 = vmatpush1.bf16.msra.mxu0 %v4014
    %5987 = vmatprep.subr.bf16.mxu0 %v4023
    %5988 = vmatpush1.bf16.msra.mxu0 %v4022
    %5989 = vmatprep.subr.bf16.mxu0 %v4031
    %5990 = vmatpush1.bf16.msra.mxu0 %v4030
    %5991 = vmatprep.subr.bf16.mxu0 %v4039
    %5992 = vmatpush1.bf16.msra.mxu0 %v4038
    %5993 = vmatprep.subr.bf16.mxu0 %v4047
    %5994 = vmatpush1.bf16.msra.mxu0 %v4046
    %5995 = vmatprep.subr.bf16.mxu0 %v4055
    %5996 = vmatpush1.bf16.msra.mxu0 %v4054
    %5997 = vmatprep.subr.bf16.mxu0 %v4063
    %5998 = vmatpush1.bf16.msra.mxu0 %v4062
    %5999 = vmatprep.subr.bf16.mxu0 %v4071
    %6000 = vmatpush1.bf16.msra.mxu0 %v4070
    %6001 = vmatprep.subr.bf16.mxu0 %v4079
    %6002 = vmatpush1.bf16.msra.mxu0 %v4078
    %6003 = vmatprep.subr.bf16.mxu0 %v4087
    %6004 = vmatpush1.bf16.msra.mxu0 %v4086
    %6005 = vmatprep.mubr.bf16.mxu0 %v457
    %6006 = vmatmul.mubr.bf16.gmra.mrb[0].mxu0 %v456
    %v6007 = vpop.f32.mrb[0].mxu0
    %v6008 = vadd.f32 %v5967, %v6007
    %v6009 = vpop.f32.mrb[0].mxu0
    %v6010 = vadd.f32 %v5969, %v6009
    %v6011 = vpop.f32.mrb[0].mxu0
    %v6012 = vpop.f32.mrb[0].mxu0
    %6013 = vdwg.mxu0
    %6014 = vmatprep.subr.bf16.mxu0 %v4095
    %6015 = vmatpush1.bf16.msra.mxu0 %v4094
    %6016 = vmatprep.subr.bf16.mxu0 %v4103
    %6017 = vmatpush1.bf16.msra.mxu0 %v4102
    %6018 = vmatprep.subr.bf16.mxu0 %v4111
    %6019 = vmatpush1.bf16.msra.mxu0 %v4110
    %6020 = vmatprep.subr.bf16.mxu0 %v4119
    %6021 = vmatpush1.bf16.msra.mxu0 %v4118
    %6022 = vmatprep.subr.bf16.mxu0 %v4127
    %6023 = vmatpush1.bf16.msra.mxu0 %v4126
    %6024 = vmatprep.subr.bf16.mxu0 %v4135
    %6025 = vmatpush1.bf16.msra.mxu0 %v4134
    %6026 = vmatprep.subr.bf16.mxu0 %v4143
    %6027 = vmatpush1.bf16.msra.mxu0 %v4142
    %6028 = vmatprep.subr.bf16.mxu0 %v4151
    %6029 = vmatpush1.bf16.msra.mxu0 %v4150
    %6030 = vmatprep.subr.bf16.mxu0 %v4159
    %6031 = vmatpush1.bf16.msra.mxu0 %v4158
    %6032 = vmatprep.subr.bf16.mxu0 %v4167
    %6033 = vmatpush1.bf16.msra.mxu0 %v4166
    %6034 = vmatprep.subr.bf16.mxu0 %v4175
    %6035 = vmatpush1.bf16.msra.mxu0 %v4174
    %6036 = vmatprep.subr.bf16.mxu0 %v4183
    %6037 = vmatpush1.bf16.msra.mxu0 %v4182
    %6038 = vmatprep.subr.bf16.mxu0 %v4191
    %6039 = vmatpush1.bf16.msra.mxu0 %v4190
    %6040 = vmatprep.subr.bf16.mxu0 %v4199
    %6041 = vmatpush1.bf16.msra.mxu0 %v4198
    %6042 = vmatprep.subr.bf16.mxu0 %v4207
    %6043 = vmatpush1.bf16.msra.mxu0 %v4206
    %6044 = vmatprep.subr.bf16.mxu0 %v4215
    %6045 = vmatpush1.bf16.msra.mxu0 %v4214
    %6046 = vmatprep.mubr.bf16.mxu0 %v459
    %6047 = vmatmul.mubr.bf16.gmra.mrb[0].mxu0 %v458
    %v6048 = vpop.f32.mrb[0].mxu0
    %v6049 = vadd.f32 %v6008, %v6048
    %v6050 = vpop.f32.mrb[0].mxu0
    %v6051 = vadd.f32 %v6010, %v6050
    %v6052 = vpop.f32.mrb[0].mxu0
    %v6053 = vpop.f32.mrb[0].mxu0
    %6054 = vdwg.mxu0
    %6055 = vmatprep.subr.bf16.mxu0 %v4223
    %6056 = vmatpush1.bf16.msra.mxu0 %v4222
    %6057 = vmatprep.subr.bf16.mxu0 %v4231
    %6058 = vmatpush1.bf16.msra.mxu0 %v4230
    %6059 = vmatprep.subr.bf16.mxu0 %v4239
    %6060 = vmatpush1.bf16.msra.mxu0 %v4238
    %6061 = vmatprep.subr.bf16.mxu0 %v4247
    %6062 = vmatpush1.bf16.msra.mxu0 %v4246
    %6063 = vmatprep.subr.bf16.mxu0 %v4255
    %6064 = vmatpush1.bf16.msra.mxu0 %v4254
    %6065 = vmatprep.subr.bf16.mxu0 %v4263
    %6066 = vmatpush1.bf16.msra.mxu0 %v4262
    %6067 = vmatprep.subr.bf16.mxu0 %v4271
    %6068 = vmatpush1.bf16.msra.mxu0 %v4270
    %6069 = vmatprep.subr.bf16.mxu0 %v4279
    %6070 = vmatpush1.bf16.msra.mxu0 %v4278
    %6071 = vmatprep.subr.bf16.mxu0 %v4287
    %6072 = vmatpush1.bf16.msra.mxu0 %v4286
    %6073 = vmatprep.subr.bf16.mxu0 %v4295
    %6074 = vmatpush1.bf16.msra.mxu0 %v4294
    %6075 = vmatprep.subr.bf16.mxu0 %v4303
    %6076 = vmatpush1.bf16.msra.mxu0 %v4302
    %6077 = vmatprep.subr.bf16.mxu0 %v4311
    %6078 = vmatpush1.bf16.msra.mxu0 %v4310
    %6079 = vmatprep.subr.bf16.mxu0 %v4319
    %6080 = vmatpush1.bf16.msra.mxu0 %v4318
    %6081 = vmatprep.subr.bf16.mxu0 %v4327
    %6082 = vmatpush1.bf16.msra.mxu0 %v4326
    %6083 = vmatprep.subr.bf16.mxu0 %v4335
    %6084 = vmatpush1.bf16.msra.mxu0 %v4334
    %6085 = vmatprep.subr.bf16.mxu0 %v4343
    %6086 = vmatpush1.bf16.msra.mxu0 %v4342
    %6087 = vmatprep.mubr.bf16.mxu0 %v461
    %6088 = vmatmul.mubr.bf16.gmra.mrb[0].mxu0 %v460
    %v6089 = vpop.f32.mrb[0].mxu0
    %v6090 = vadd.f32 %v6049, %v6089
    %v6091 = vpop.f32.mrb[0].mxu0
    %v6092 = vadd.f32 %v6051, %v6091
    %v6093 = vpop.f32.mrb[0].mxu0
    %v6094 = vpop.f32.mrb[0].mxu0
    %6095 = vdwg.mxu0
    %v6096 = vmax.f32 %v5352, 0.0
    %v6097 = vmax.f32 %v5354, 0.0
    %v6098 = vmax.f32 %v5598, 0.0
    %v6099 = vmax.f32 %v5600, 0.0
    %v6100 = vmax.f32 %v5844, 0.0
    %v6101 = vmax.f32 %v5846, 0.0
    %v6102 = vmax.f32 %v6090, 0.0
    %v6103 = vmax.f32 %v6092, 0.0
    %v6104 = vpack.c.bf16 %v6096, %v6096
    %v6105 = vpack.c.bf16 %v6097, %v6097
    %v6106 = vpack.c.bf16 %v6098, %v6098
    %v6107 = vpack.c.bf16 %v6099, %v6099
    %v6108 = vpack.c.bf16 %v6100, %v6100
    %v6109 = vpack.c.bf16 %v6101, %v6101
    %v6110 = vpack.c.bf16 %v6102, %v6102
    %v6111 = vpack.c.bf16 %v6103, %v6103
    %v6112 = vld [vmem:[%s5] sm:$0xff]
    %v6113 = vld [vmem:[%s5 + $0x8] sm:$0xff]
    %v6114 = vld [vmem:[%s5 + $0x10] sm:$0xff]
    %v6115 = vld [vmem:[%s5 + $0x18] sm:$0xff]
    %v6116 = vld [vmem:[%s5 + $0x20] sm:$0xff]
    %v6117 = vld [vmem:[%s5 + $0x28] sm:$0xff]
    %v6118 = vld [vmem:[%s5 + $0x30] sm:$0xff]
    %v6119 = vld [vmem:[%s5 + $0x38] sm:$0xff]
    %v6120 = vld [vmem:[%s5 + $0x40] sm:$0xff]
    %v6121 = vld [vmem:[%s5 + $0x48] sm:$0xff]
    %v6122 = vld [vmem:[%s5 + $0x50] sm:$0xff]
    %v6123 = vld [vmem:[%s5 + $0x58] sm:$0xff]
    %v6124 = vld [vmem:[%s5 + $0x60] sm:$0xff]
    %v6125 = vld [vmem:[%s5 + $0x68] sm:$0xff]
    %v6126 = vld [vmem:[%s5 + $0x70] sm:$0xff]
    %v6127 = vld [vmem:[%s5 + $0x78] sm:$0xff]
    %v6128 = vld [vmem:[%s5 + $0x80] sm:$0xff]
    %v6129 = vld [vmem:[%s5 + $0x88] sm:$0xff]
    %v6130 = vld [vmem:[%s5 + $0x90] sm:$0xff]
    %v6131 = vld [vmem:[%s5 + $0x98] sm:$0xff]
    %v6132 = vld [vmem:[%s5 + $0xa0] sm:$0xff]
    %v6133 = vld [vmem:[%s5 + $0xa8] sm:$0xff]
    %v6134 = vld [vmem:[%s5 + $0xb0] sm:$0xff]
    %v6135 = vld [vmem:[%s5 + $0xb8] sm:$0xff]
    %v6136 = vld [vmem:[%s5 + $0xc0] sm:$0xff]
    %v6137 = vld [vmem:[%s5 + $0xc8] sm:$0xff]
    %v6138 = vld [vmem:[%s5 + $0xd0] sm:$0xff]
    %v6139 = vld [vmem:[%s5 + $0xd8] sm:$0xff]
    %v6140 = vld [vmem:[%s5 + $0xe0] sm:$0xff]
    %v6141 = vld [vmem:[%s5 + $0xe8] sm:$0xff]
    %v6142 = vld [vmem:[%s5 + $0xf0] sm:$0xff]
    %v6143 = vld [vmem:[%s5 + $0xf8] sm:$0xff]
    %v6144 = vld [vmem:[%s5 + $0x100] sm:$0xff]
    %v6145 = vld [vmem:[%s5 + $0x108] sm:$0xff]
    %v6146 = vld [vmem:[%s5 + $0x110] sm:$0xff]
    %v6147 = vld [vmem:[%s5 + $0x118] sm:$0xff]
    %v6148 = vld [vmem:[%s5 + $0x120] sm:$0xff]
    %v6149 = vld [vmem:[%s5 + $0x128] sm:$0xff]
    %v6150 = vld [vmem:[%s5 + $0x130] sm:$0xff]
    %v6151 = vld [vmem:[%s5 + $0x138] sm:$0xff]
    %v6152 = vld [vmem:[%s5 + $0x140] sm:$0xff]
    %v6153 = vld [vmem:[%s5 + $0x148] sm:$0xff]
    %v6154 = vld [vmem:[%s5 + $0x150] sm:$0xff]
    %v6155 = vld [vmem:[%s5 + $0x158] sm:$0xff]
    %v6156 = vld [vmem:[%s5 + $0x160] sm:$0xff]
    %v6157 = vld [vmem:[%s5 + $0x168] sm:$0xff]
    %v6158 = vld [vmem:[%s5 + $0x170] sm:$0xff]
    %v6159 = vld [vmem:[%s5 + $0x178] sm:$0xff]
    %v6160 = vld [vmem:[%s5 + $0x180] sm:$0xff]
    %v6161 = vld [vmem:[%s5 + $0x188] sm:$0xff]
    %v6162 = vld [vmem:[%s5 + $0x190] sm:$0xff]
    %v6163 = vld [vmem:[%s5 + $0x198] sm:$0xff]
    %v6164 = vld [vmem:[%s5 + $0x1a0] sm:$0xff]
    %v6165 = vld [vmem:[%s5 + $0x1a8] sm:$0xff]
    %v6166 = vld [vmem:[%s5 + $0x1b0] sm:$0xff]
    %v6167 = vld [vmem:[%s5 + $0x1b8] sm:$0xff]
    %v6168 = vld [vmem:[%s5 + $0x1c0] sm:$0xff]
    %v6169 = vld [vmem:[%s5 + $0x1c8] sm:$0xff]
    %v6170 = vld [vmem:[%s5 + $0x1d0] sm:$0xff]
    %v6171 = vld [vmem:[%s5 + $0x1d8] sm:$0xff]
    %v6172 = vld [vmem:[%s5 + $0x1e0] sm:$0xff]
    %v6173 = vld [vmem:[%s5 + $0x1e8] sm:$0xff]
    %v6174 = vld [vmem:[%s5 + $0x1f0] sm:$0xff]
    %v6175 = vld [vmem:[%s5 + $0x1f8] sm:$0xff]
    %v6176 = vld [vmem:[%s5 + $0x200] sm:$0xff]
    %v6177 = vld [vmem:[%s5 + $0x208] sm:$0xff]
    %v6178 = vld [vmem:[%s5 + $0x210] sm:$0xff]
    %v6179 = vld [vmem:[%s5 + $0x218] sm:$0xff]
    %v6180 = vld [vmem:[%s5 + $0x220] sm:$0xff]
    %v6181 = vld [vmem:[%s5 + $0x228] sm:$0xff]
    %v6182 = vld [vmem:[%s5 + $0x230] sm:$0xff]
    %v6183 = vld [vmem:[%s5 + $0x238] sm:$0xff]
    %v6184 = vld [vmem:[%s5 + $0x240] sm:$0xff]
    %v6185 = vld [vmem:[%s5 + $0x248] sm:$0xff]
    %v6186 = vld [vmem:[%s5 + $0x250] sm:$0xff]
    %v6187 = vld [vmem:[%s5 + $0x258] sm:$0xff]
    %v6188 = vld [vmem:[%s5 + $0x260] sm:$0xff]
    %v6189 = vld [vmem:[%s5 + $0x268] sm:$0xff]
    %v6190 = vld [vmem:[%s5 + $0x270] sm:$0xff]
    %v6191 = vld [vmem:[%s5 + $0x278] sm:$0xff]
    %v6192 = vld [vmem:[%s5 + $0x280] sm:$0xff]
    %v6193 = vld [vmem:[%s5 + $0x288] sm:$0xff]
    %v6194 = vld [vmem:[%s5 + $0x290] sm:$0xff]
    %v6195 = vld [vmem:[%s5 + $0x298] sm:$0xff]
    %v6196 = vld [vmem:[%s5 + $0x2a0] sm:$0xff]
    %v6197 = vld [vmem:[%s5 + $0x2a8] sm:$0xff]
    %v6198 = vld [vmem:[%s5 + $0x2b0] sm:$0xff]
    %v6199 = vld [vmem:[%s5 + $0x2b8] sm:$0xff]
    %v6200 = vld [vmem:[%s5 + $0x2c0] sm:$0xff]
    %v6201 = vld [vmem:[%s5 + $0x2c8] sm:$0xff]
    %v6202 = vld [vmem:[%s5 + $0x2d0] sm:$0xff]
    %v6203 = vld [vmem:[%s5 + $0x2d8] sm:$0xff]
    %v6204 = vld [vmem:[%s5 + $0x2e0] sm:$0xff]
    %v6205 = vld [vmem:[%s5 + $0x2e8] sm:$0xff]
    %v6206 = vld [vmem:[%s5 + $0x2f0] sm:$0xff]
    %v6207 = vld [vmem:[%s5 + $0x2f8] sm:$0xff]
    %v6208 = vld [vmem:[%s5 + $0x300] sm:$0xff]
    %v6209 = vld [vmem:[%s5 + $0x308] sm:$0xff]
    %v6210 = vld [vmem:[%s5 + $0x310] sm:$0xff]
    %v6211 = vld [vmem:[%s5 + $0x318] sm:$0xff]
    %v6212 = vld [vmem:[%s5 + $0x320] sm:$0xff]
    %v6213 = vld [vmem:[%s5 + $0x328] sm:$0xff]
    %v6214 = vld [vmem:[%s5 + $0x330] sm:$0xff]
    %v6215 = vld [vmem:[%s5 + $0x338] sm:$0xff]
    %v6216 = vld [vmem:[%s5 + $0x340] sm:$0xff]
    %v6217 = vld [vmem:[%s5 + $0x348] sm:$0xff]
    %v6218 = vld [vmem:[%s5 + $0x350] sm:$0xff]
    %v6219 = vld [vmem:[%s5 + $0x358] sm:$0xff]
    %v6220 = vld [vmem:[%s5 + $0x360] sm:$0xff]
    %v6221 = vld [vmem:[%s5 + $0x368] sm:$0xff]
    %v6222 = vld [vmem:[%s5 + $0x370] sm:$0xff]
    %v6223 = vld [vmem:[%s5 + $0x378] sm:$0xff]
    %v6224 = vld [vmem:[%s5 + $0x380] sm:$0xff]
    %v6225 = vld [vmem:[%s5 + $0x388] sm:$0xff]
    %v6226 = vld [vmem:[%s5 + $0x390] sm:$0xff]
    %v6227 = vld [vmem:[%s5 + $0x398] sm:$0xff]
    %v6228 = vld [vmem:[%s5 + $0x3a0] sm:$0xff]
    %v6229 = vld [vmem:[%s5 + $0x3a8] sm:$0xff]
    %v6230 = vld [vmem:[%s5 + $0x3b0] sm:$0xff]
    %v6231 = vld [vmem:[%s5 + $0x3b8] sm:$0xff]
    %v6232 = vld [vmem:[%s5 + $0x3c0] sm:$0xff]
    %v6233 = vld [vmem:[%s5 + $0x3c8] sm:$0xff]
    %v6234 = vld [vmem:[%s5 + $0x3d0] sm:$0xff]
    %v6235 = vld [vmem:[%s5 + $0x3d8] sm:$0xff]
    %v6236 = vld [vmem:[%s5 + $0x3e0] sm:$0xff]
    %v6237 = vld [vmem:[%s5 + $0x3e8] sm:$0xff]
    %v6238 = vld [vmem:[%s5 + $0x3f0] sm:$0xff]
    %v6239 = vld [vmem:[%s5 + $0x3f8] sm:$0xff]
    %v6240 = vld [vmem:[%s5 + $0x400] sm:$0xff]
    %v6241 = vld [vmem:[%s5 + $0x408] sm:$0xff]
    %v6242 = vld [vmem:[%s5 + $0x410] sm:$0xff]
    %v6243 = vld [vmem:[%s5 + $0x418] sm:$0xff]
    %v6244 = vld [vmem:[%s5 + $0x420] sm:$0xff]
    %v6245 = vld [vmem:[%s5 + $0x428] sm:$0xff]
    %v6246 = vld [vmem:[%s5 + $0x430] sm:$0xff]
    %v6247 = vld [vmem:[%s5 + $0x438] sm:$0xff]
    %v6248 = vld [vmem:[%s5 + $0x440] sm:$0xff]
    %v6249 = vld [vmem:[%s5 + $0x448] sm:$0xff]
    %v6250 = vld [vmem:[%s5 + $0x450] sm:$0xff]
    %v6251 = vld [vmem:[%s5 + $0x458] sm:$0xff]
    %v6252 = vld [vmem:[%s5 + $0x460] sm:$0xff]
    %v6253 = vld [vmem:[%s5 + $0x468] sm:$0xff]
    %v6254 = vld [vmem:[%s5 + $0x470] sm:$0xff]
    %v6255 = vld [vmem:[%s5 + $0x478] sm:$0xff]
    %v6256 = vld [vmem:[%s5 + $0x480] sm:$0xff]
    %v6257 = vld [vmem:[%s5 + $0x488] sm:$0xff]
    %v6258 = vld [vmem:[%s5 + $0x490] sm:$0xff]
    %v6259 = vld [vmem:[%s5 + $0x498] sm:$0xff]
    %v6260 = vld [vmem:[%s5 + $0x4a0] sm:$0xff]
    %v6261 = vld [vmem:[%s5 + $0x4a8] sm:$0xff]
    %v6262 = vld [vmem:[%s5 + $0x4b0] sm:$0xff]
    %v6263 = vld [vmem:[%s5 + $0x4b8] sm:$0xff]
    %v6264 = vld [vmem:[%s5 + $0x4c0] sm:$0xff]
    %v6265 = vld [vmem:[%s5 + $0x4c8] sm:$0xff]
    %v6266 = vld [vmem:[%s5 + $0x4d0] sm:$0xff]
    %v6267 = vld [vmem:[%s5 + $0x4d8] sm:$0xff]
    %v6268 = vld [vmem:[%s5 + $0x4e0] sm:$0xff]
    %v6269 = vld [vmem:[%s5 + $0x4e8] sm:$0xff]
    %v6270 = vld [vmem:[%s5 + $0x4f0] sm:$0xff]
    %v6271 = vld [vmem:[%s5 + $0x4f8] sm:$0xff]
    %v6272 = vld [vmem:[%s5 + $0x500] sm:$0xff]
    %v6273 = vld [vmem:[%s5 + $0x508] sm:$0xff]
    %v6274 = vld [vmem:[%s5 + $0x510] sm:$0xff]
    %v6275 = vld [vmem:[%s5 + $0x518] sm:$0xff]
    %v6276 = vld [vmem:[%s5 + $0x520] sm:$0xff]
    %v6277 = vld [vmem:[%s5 + $0x528] sm:$0xff]
    %v6278 = vld [vmem:[%s5 + $0x530] sm:$0xff]
    %v6279 = vld [vmem:[%s5 + $0x538] sm:$0xff]
    %v6280 = vld [vmem:[%s5 + $0x540] sm:$0xff]
    %v6281 = vld [vmem:[%s5 + $0x548] sm:$0xff]
    %v6282 = vld [vmem:[%s5 + $0x550] sm:$0xff]
    %v6283 = vld [vmem:[%s5 + $0x558] sm:$0xff]
    %v6284 = vld [vmem:[%s5 + $0x560] sm:$0xff]
    %v6285 = vld [vmem:[%s5 + $0x568] sm:$0xff]
    %v6286 = vld [vmem:[%s5 + $0x570] sm:$0xff]
    %v6287 = vld [vmem:[%s5 + $0x578] sm:$0xff]
    %v6288 = vld [vmem:[%s5 + $0x580] sm:$0xff]
    %v6289 = vld [vmem:[%s5 + $0x588] sm:$0xff]
    %v6290 = vld [vmem:[%s5 + $0x590] sm:$0xff]
    %v6291 = vld [vmem:[%s5 + $0x598] sm:$0xff]
    %v6292 = vld [vmem:[%s5 + $0x5a0] sm:$0xff]
    %v6293 = vld [vmem:[%s5 + $0x5a8] sm:$0xff]
    %v6294 = vld [vmem:[%s5 + $0x5b0] sm:$0xff]
    %v6295 = vld [vmem:[%s5 + $0x5b8] sm:$0xff]
    %v6296 = vld [vmem:[%s5 + $0x5c0] sm:$0xff]
    %v6297 = vld [vmem:[%s5 + $0x5c8] sm:$0xff]
    %v6298 = vld [vmem:[%s5 + $0x5d0] sm:$0xff]
    %v6299 = vld [vmem:[%s5 + $0x5d8] sm:$0xff]
    %v6300 = vld [vmem:[%s5 + $0x5e0] sm:$0xff]
    %v6301 = vld [vmem:[%s5 + $0x5e8] sm:$0xff]
    %v6302 = vld [vmem:[%s5 + $0x5f0] sm:$0xff]
    %v6303 = vld [vmem:[%s5 + $0x5f8] sm:$0xff]
    %v6304 = vld [vmem:[%s5 + $0x600] sm:$0xff]
    %v6305 = vld [vmem:[%s5 + $0x608] sm:$0xff]
    %v6306 = vld [vmem:[%s5 + $0x610] sm:$0xff]
    %v6307 = vld [vmem:[%s5 + $0x618] sm:$0xff]
    %v6308 = vld [vmem:[%s5 + $0x620] sm:$0xff]
    %v6309 = vld [vmem:[%s5 + $0x628] sm:$0xff]
    %v6310 = vld [vmem:[%s5 + $0x630] sm:$0xff]
    %v6311 = vld [vmem:[%s5 + $0x638] sm:$0xff]
    %v6312 = vld [vmem:[%s5 + $0x640] sm:$0xff]
    %v6313 = vld [vmem:[%s5 + $0x648] sm:$0xff]
    %v6314 = vld [vmem:[%s5 + $0x650] sm:$0xff]
    %v6315 = vld [vmem:[%s5 + $0x658] sm:$0xff]
    %v6316 = vld [vmem:[%s5 + $0x660] sm:$0xff]
    %v6317 = vld [vmem:[%s5 + $0x668] sm:$0xff]
    %v6318 = vld [vmem:[%s5 + $0x670] sm:$0xff]
    %v6319 = vld [vmem:[%s5 + $0x678] sm:$0xff]
    %v6320 = vld [vmem:[%s5 + $0x680] sm:$0xff]
    %v6321 = vld [vmem:[%s5 + $0x688] sm:$0xff]
    %v6322 = vld [vmem:[%s5 + $0x690] sm:$0xff]
    %v6323 = vld [vmem:[%s5 + $0x698] sm:$0xff]
    %v6324 = vld [vmem:[%s5 + $0x6a0] sm:$0xff]
    %v6325 = vld [vmem:[%s5 + $0x6a8] sm:$0xff]
    %v6326 = vld [vmem:[%s5 + $0x6b0] sm:$0xff]
    %v6327 = vld [vmem:[%s5 + $0x6b8] sm:$0xff]
    %v6328 = vld [vmem:[%s5 + $0x6c0] sm:$0xff]
    %v6329 = vld [vmem:[%s5 + $0x6c8] sm:$0xff]
    %v6330 = vld [vmem:[%s5 + $0x6d0] sm:$0xff]
    %v6331 = vld [vmem:[%s5 + $0x6d8] sm:$0xff]
    %v6332 = vld [vmem:[%s5 + $0x6e0] sm:$0xff]
    %v6333 = vld [vmem:[%s5 + $0x6e8] sm:$0xff]
    %v6334 = vld [vmem:[%s5 + $0x6f0] sm:$0xff]
    %v6335 = vld [vmem:[%s5 + $0x6f8] sm:$0xff]
    %v6336 = vld [vmem:[%s5 + $0x700] sm:$0xff]
    %v6337 = vld [vmem:[%s5 + $0x708] sm:$0xff]
    %v6338 = vld [vmem:[%s5 + $0x710] sm:$0xff]
    %v6339 = vld [vmem:[%s5 + $0x718] sm:$0xff]
    %v6340 = vld [vmem:[%s5 + $0x720] sm:$0xff]
    %v6341 = vld [vmem:[%s5 + $0x728] sm:$0xff]
    %v6342 = vld [vmem:[%s5 + $0x730] sm:$0xff]
    %v6343 = vld [vmem:[%s5 + $0x738] sm:$0xff]
    %v6344 = vld [vmem:[%s5 + $0x740] sm:$0xff]
    %v6345 = vld [vmem:[%s5 + $0x748] sm:$0xff]
    %v6346 = vld [vmem:[%s5 + $0x750] sm:$0xff]
    %v6347 = vld [vmem:[%s5 + $0x758] sm:$0xff]
    %v6348 = vld [vmem:[%s5 + $0x760] sm:$0xff]
    %v6349 = vld [vmem:[%s5 + $0x768] sm:$0xff]
    %v6350 = vld [vmem:[%s5 + $0x770] sm:$0xff]
    %v6351 = vld [vmem:[%s5 + $0x778] sm:$0xff]
    %v6352 = vld [vmem:[%s5 + $0x780] sm:$0xff]
    %v6353 = vld [vmem:[%s5 + $0x788] sm:$0xff]
    %v6354 = vld [vmem:[%s5 + $0x790] sm:$0xff]
    %v6355 = vld [vmem:[%s5 + $0x798] sm:$0xff]
    %v6356 = vld [vmem:[%s5 + $0x7a0] sm:$0xff]
    %v6357 = vld [vmem:[%s5 + $0x7a8] sm:$0xff]
    %v6358 = vld [vmem:[%s5 + $0x7b0] sm:$0xff]
    %v6359 = vld [vmem:[%s5 + $0x7b8] sm:$0xff]
    %v6360 = vld [vmem:[%s5 + $0x7c0] sm:$0xff]
    %v6361 = vld [vmem:[%s5 + $0x7c8] sm:$0xff]
    %v6362 = vld [vmem:[%s5 + $0x7d0] sm:$0xff]
    %v6363 = vld [vmem:[%s5 + $0x7d8] sm:$0xff]
    %v6364 = vld [vmem:[%s5 + $0x7e0] sm:$0xff]
    %v6365 = vld [vmem:[%s5 + $0x7e8] sm:$0xff]
    %v6366 = vld [vmem:[%s5 + $0x7f0] sm:$0xff]
    %v6367 = vld [vmem:[%s5 + $0x7f8] sm:$0xff]
    %v6368 = vld [vmem:[%s6] sm:$0xf]
    %v6370 = vlaneseq
    %v6371 = vshrl.u32 %v6370, 7
    %v6372 = vsub.s32 0, %v6371
    %v6373 = vrot.slane %v6368, %v6372
    %v6374 = vlaneseq
    %v6375 = vshrl.u32 %v6374, 7
    %v6376 = vsub.s32 1, %v6375
    %v6377 = vrot.slane %v6368, %v6376
    %v6378 = vlaneseq
    %v6379 = vshrl.u32 %v6378, 7
    %v6380 = vsub.s32 2, %v6379
    %v6381 = vrot.slane %v6368, %v6380
    %v6382 = vlaneseq
    %v6383 = vshrl.u32 %v6382, 7
    %v6384 = vsub.s32 3, %v6383
    %v6385 = vrot.slane %v6368, %v6384
    %v6646 = vunpack.c.l.b16 %v6112
    %v6647 = vunpack.c.h.b16 %v6112
    %v6648 = vunpack.c.l.b16 %v6113
    %v6649 = vunpack.c.h.b16 %v6113
    %v6650 = vunpack.c.l.b16 %v6114
    %v6651 = vunpack.c.h.b16 %v6114
    %v6652 = vunpack.c.l.b16 %v6115
    %v6653 = vunpack.c.h.b16 %v6115
    %v6654 = vunpack.c.l.b16 %v6116
    %v6655 = vunpack.c.h.b16 %v6116
    %v6656 = vunpack.c.l.b16 %v6117
    %v6657 = vunpack.c.h.b16 %v6117
    %v6658 = vunpack.c.l.b16 %v6118
    %v6659 = vunpack.c.h.b16 %v6118
    %v6660 = vunpack.c.l.b16 %v6119
    %v6661 = vunpack.c.h.b16 %v6119
    %v6662 = vunpack.c.l.b16 %v6120
    %v6663 = vunpack.c.h.b16 %v6120
    %v6664 = vunpack.c.l.b16 %v6121
    %v6665 = vunpack.c.h.b16 %v6121
    %v6666 = vunpack.c.l.b16 %v6122
    %v6667 = vunpack.c.h.b16 %v6122
    %v6668 = vunpack.c.l.b16 %v6123
    %v6669 = vunpack.c.h.b16 %v6123
    %v6670 = vunpack.c.l.b16 %v6124
    %v6671 = vunpack.c.h.b16 %v6124
    %v6672 = vunpack.c.l.b16 %v6125
    %v6673 = vunpack.c.h.b16 %v6125
    %v6674 = vunpack.c.l.b16 %v6126
    %v6675 = vunpack.c.h.b16 %v6126
    %v6676 = vunpack.c.l.b16 %v6127
    %v6677 = vunpack.c.h.b16 %v6127
    %v6678 = vunpack.c.l.b16 %v6128
    %v6679 = vunpack.c.h.b16 %v6128
    %v6680 = vunpack.c.l.b16 %v6129
    %v6681 = vunpack.c.h.b16 %v6129
    %v6682 = vunpack.c.l.b16 %v6130
    %v6683 = vunpack.c.h.b16 %v6130
    %v6684 = vunpack.c.l.b16 %v6131
    %v6685 = vunpack.c.h.b16 %v6131
    %v6686 = vunpack.c.l.b16 %v6132
    %v6687 = vunpack.c.h.b16 %v6132
    %v6688 = vunpack.c.l.b16 %v6133
    %v6689 = vunpack.c.h.b16 %v6133
    %v6690 = vunpack.c.l.b16 %v6134
    %v6691 = vunpack.c.h.b16 %v6134
    %v6692 = vunpack.c.l.b16 %v6135
    %v6693 = vunpack.c.h.b16 %v6135
    %v6694 = vunpack.c.l.b16 %v6136
    %v6695 = vunpack.c.h.b16 %v6136
    %v6696 = vunpack.c.l.b16 %v6137
    %v6697 = vunpack.c.h.b16 %v6137
    %v6698 = vunpack.c.l.b16 %v6138
    %v6699 = vunpack.c.h.b16 %v6138
    %v6700 = vunpack.c.l.b16 %v6139
    %v6701 = vunpack.c.h.b16 %v6139
    %v6702 = vunpack.c.l.b16 %v6140
    %v6703 = vunpack.c.h.b16 %v6140
    %v6704 = vunpack.c.l.b16 %v6141
    %v6705 = vunpack.c.h.b16 %v6141
    %v6706 = vunpack.c.l.b16 %v6142
    %v6707 = vunpack.c.h.b16 %v6142
    %v6708 = vunpack.c.l.b16 %v6143
    %v6709 = vunpack.c.h.b16 %v6143
    %v6710 = vunpack.c.l.b16 %v6144
    %v6711 = vunpack.c.h.b16 %v6144
    %v6712 = vunpack.c.l.b16 %v6145
    %v6713 = vunpack.c.h.b16 %v6145
    %v6714 = vunpack.c.l.b16 %v6146
    %v6715 = vunpack.c.h.b16 %v6146
    %v6716 = vunpack.c.l.b16 %v6147
    %v6717 = vunpack.c.h.b16 %v6147
    %v6718 = vunpack.c.l.b16 %v6148
    %v6719 = vunpack.c.h.b16 %v6148
    %v6720 = vunpack.c.l.b16 %v6149
    %v6721 = vunpack.c.h.b16 %v6149
    %v6722 = vunpack.c.l.b16 %v6150
    %v6723 = vunpack.c.h.b16 %v6150
    %v6724 = vunpack.c.l.b16 %v6151
    %v6725 = vunpack.c.h.b16 %v6151
    %v6726 = vunpack.c.l.b16 %v6152
    %v6727 = vunpack.c.h.b16 %v6152
    %v6728 = vunpack.c.l.b16 %v6153
    %v6729 = vunpack.c.h.b16 %v6153
    %v6730 = vunpack.c.l.b16 %v6154
    %v6731 = vunpack.c.h.b16 %v6154
    %v6732 = vunpack.c.l.b16 %v6155
    %v6733 = vunpack.c.h.b16 %v6155
    %v6734 = vunpack.c.l.b16 %v6156
    %v6735 = vunpack.c.h.b16 %v6156
    %v6736 = vunpack.c.l.b16 %v6157
    %v6737 = vunpack.c.h.b16 %v6157
    %v6738 = vunpack.c.l.b16 %v6158
    %v6739 = vunpack.c.h.b16 %v6158
    %v6740 = vunpack.c.l.b16 %v6159
    %v6741 = vunpack.c.h.b16 %v6159
    %v6742 = vunpack.c.l.b16 %v6160
    %v6743 = vunpack.c.h.b16 %v6160
    %v6744 = vunpack.c.l.b16 %v6161
    %v6745 = vunpack.c.h.b16 %v6161
    %v6746 = vunpack.c.l.b16 %v6162
    %v6747 = vunpack.c.h.b16 %v6162
    %v6748 = vunpack.c.l.b16 %v6163
    %v6749 = vunpack.c.h.b16 %v6163
    %v6750 = vunpack.c.l.b16 %v6164
    %v6751 = vunpack.c.h.b16 %v6164
    %v6752 = vunpack.c.l.b16 %v6165
    %v6753 = vunpack.c.h.b16 %v6165
    %v6754 = vunpack.c.l.b16 %v6166
    %v6755 = vunpack.c.h.b16 %v6166
    %v6756 = vunpack.c.l.b16 %v6167
    %v6757 = vunpack.c.h.b16 %v6167
    %v6758 = vunpack.c.l.b16 %v6168
    %v6759 = vunpack.c.h.b16 %v6168
    %v6760 = vunpack.c.l.b16 %v6169
    %v6761 = vunpack.c.h.b16 %v6169
    %v6762 = vunpack.c.l.b16 %v6170
    %v6763 = vunpack.c.h.b16 %v6170
    %v6764 = vunpack.c.l.b16 %v6171
    %v6765 = vunpack.c.h.b16 %v6171
    %v6766 = vunpack.c.l.b16 %v6172
    %v6767 = vunpack.c.h.b16 %v6172
    %v6768 = vunpack.c.l.b16 %v6173
    %v6769 = vunpack.c.h.b16 %v6173
    %v6770 = vunpack.c.l.b16 %v6174
    %v6771 = vunpack.c.h.b16 %v6174
    %v6772 = vunpack.c.l.b16 %v6175
    %v6773 = vunpack.c.h.b16 %v6175
    %v6774 = vunpack.c.l.b16 %v6176
    %v6775 = vunpack.c.h.b16 %v6176
    %v6776 = vunpack.c.l.b16 %v6177
    %v6777 = vunpack.c.h.b16 %v6177
    %v6778 = vunpack.c.l.b16 %v6178
    %v6779 = vunpack.c.h.b16 %v6178
    %v6780 = vunpack.c.l.b16 %v6179
    %v6781 = vunpack.c.h.b16 %v6179
    %v6782 = vunpack.c.l.b16 %v6180
    %v6783 = vunpack.c.h.b16 %v6180
    %v6784 = vunpack.c.l.b16 %v6181
    %v6785 = vunpack.c.h.b16 %v6181
    %v6786 = vunpack.c.l.b16 %v6182
    %v6787 = vunpack.c.h.b16 %v6182
    %v6788 = vunpack.c.l.b16 %v6183
    %v6789 = vunpack.c.h.b16 %v6183
    %v6790 = vunpack.c.l.b16 %v6184
    %v6791 = vunpack.c.h.b16 %v6184
    %v6792 = vunpack.c.l.b16 %v6185
    %v6793 = vunpack.c.h.b16 %v6185
    %v6794 = vunpack.c.l.b16 %v6186
    %v6795 = vunpack.c.h.b16 %v6186
    %v6796 = vunpack.c.l.b16 %v6187
    %v6797 = vunpack.c.h.b16 %v6187
    %v6798 = vunpack.c.l.b16 %v6188
    %v6799 = vunpack.c.h.b16 %v6188
    %v6800 = vunpack.c.l.b16 %v6189
    %v6801 = vunpack.c.h.b16 %v6189
    %v6802 = vunpack.c.l.b16 %v6190
    %v6803 = vunpack.c.h.b16 %v6190
    %v6804 = vunpack.c.l.b16 %v6191
    %v6805 = vunpack.c.h.b16 %v6191
    %v6806 = vunpack.c.l.b16 %v6192
    %v6807 = vunpack.c.h.b16 %v6192
    %v6808 = vunpack.c.l.b16 %v6193
    %v6809 = vunpack.c.h.b16 %v6193
    %v6810 = vunpack.c.l.b16 %v6194
    %v6811 = vunpack.c.h.b16 %v6194
    %v6812 = vunpack.c.l.b16 %v6195
    %v6813 = vunpack.c.h.b16 %v6195
    %v6814 = vunpack.c.l.b16 %v6196
    %v6815 = vunpack.c.h.b16 %v6196
    %v6816 = vunpack.c.l.b16 %v6197
    %v6817 = vunpack.c.h.b16 %v6197
    %v6818 = vunpack.c.l.b16 %v6198
    %v6819 = vunpack.c.h.b16 %v6198
    %v6820 = vunpack.c.l.b16 %v6199
    %v6821 = vunpack.c.h.b16 %v6199
    %v6822 = vunpack.c.l.b16 %v6200
    %v6823 = vunpack.c.h.b16 %v6200
    %v6824 = vunpack.c.l.b16 %v6201
    %v6825 = vunpack.c.h.b16 %v6201
    %v6826 = vunpack.c.l.b16 %v6202
    %v6827 = vunpack.c.h.b16 %v6202
    %v6828 = vunpack.c.l.b16 %v6203
    %v6829 = vunpack.c.h.b16 %v6203
    %v6830 = vunpack.c.l.b16 %v6204
    %v6831 = vunpack.c.h.b16 %v6204
    %v6832 = vunpack.c.l.b16 %v6205
    %v6833 = vunpack.c.h.b16 %v6205
    %v6834 = vunpack.c.l.b16 %v6206
    %v6835 = vunpack.c.h.b16 %v6206
    %v6836 = vunpack.c.l.b16 %v6207
    %v6837 = vunpack.c.h.b16 %v6207
    %v6838 = vunpack.c.l.b16 %v6208
    %v6839 = vunpack.c.h.b16 %v6208
    %v6840 = vunpack.c.l.b16 %v6209
    %v6841 = vunpack.c.h.b16 %v6209
    %v6842 = vunpack.c.l.b16 %v6210
    %v6843 = vunpack.c.h.b16 %v6210
    %v6844 = vunpack.c.l.b16 %v6211
    %v6845 = vunpack.c.h.b16 %v6211
    %v6846 = vunpack.c.l.b16 %v6212
    %v6847 = vunpack.c.h.b16 %v6212
    %v6848 = vunpack.c.l.b16 %v6213
    %v6849 = vunpack.c.h.b16 %v6213
    %v6850 = vunpack.c.l.b16 %v6214
    %v6851 = vunpack.c.h.b16 %v6214
    %v6852 = vunpack.c.l.b16 %v6215
    %v6853 = vunpack.c.h.b16 %v6215
    %v6854 = vunpack.c.l.b16 %v6216
    %v6855 = vunpack.c.h.b16 %v6216
    %v6856 = vunpack.c.l.b16 %v6217
    %v6857 = vunpack.c.h.b16 %v6217
    %v6858 = vunpack.c.l.b16 %v6218
    %v6859 = vunpack.c.h.b16 %v6218
    %v6860 = vunpack.c.l.b16 %v6219
    %v6861 = vunpack.c.h.b16 %v6219
    %v6862 = vunpack.c.l.b16 %v6220
    %v6863 = vunpack.c.h.b16 %v6220
    %v6864 = vunpack.c.l.b16 %v6221
    %v6865 = vunpack.c.h.b16 %v6221
    %v6866 = vunpack.c.l.b16 %v6222
    %v6867 = vunpack.c.h.b16 %v6222
    %v6868 = vunpack.c.l.b16 %v6223
    %v6869 = vunpack.c.h.b16 %v6223
    %v6870 = vunpack.c.l.b16 %v6224
    %v6871 = vunpack.c.h.b16 %v6224
    %v6872 = vunpack.c.l.b16 %v6225
    %v6873 = vunpack.c.h.b16 %v6225
    %v6874 = vunpack.c.l.b16 %v6226
    %v6875 = vunpack.c.h.b16 %v6226
    %v6876 = vunpack.c.l.b16 %v6227
    %v6877 = vunpack.c.h.b16 %v6227
    %v6878 = vunpack.c.l.b16 %v6228
    %v6879 = vunpack.c.h.b16 %v6228
    %v6880 = vunpack.c.l.b16 %v6229
    %v6881 = vunpack.c.h.b16 %v6229
    %v6882 = vunpack.c.l.b16 %v6230
    %v6883 = vunpack.c.h.b16 %v6230
    %v6884 = vunpack.c.l.b16 %v6231
    %v6885 = vunpack.c.h.b16 %v6231
    %v6886 = vunpack.c.l.b16 %v6232
    %v6887 = vunpack.c.h.b16 %v6232
    %v6888 = vunpack.c.l.b16 %v6233
    %v6889 = vunpack.c.h.b16 %v6233
    %v6890 = vunpack.c.l.b16 %v6234
    %v6891 = vunpack.c.h.b16 %v6234
    %v6892 = vunpack.c.l.b16 %v6235
    %v6893 = vunpack.c.h.b16 %v6235
    %v6894 = vunpack.c.l.b16 %v6236
    %v6895 = vunpack.c.h.b16 %v6236
    %v6896 = vunpack.c.l.b16 %v6237
    %v6897 = vunpack.c.h.b16 %v6237
    %v6898 = vunpack.c.l.b16 %v6238
    %v6899 = vunpack.c.h.b16 %v6238
    %v6900 = vunpack.c.l.b16 %v6239
    %v6901 = vunpack.c.h.b16 %v6239
    %v6902 = vunpack.c.l.b16 %v6240
    %v6903 = vunpack.c.h.b16 %v6240
    %v6904 = vunpack.c.l.b16 %v6241
    %v6905 = vunpack.c.h.b16 %v6241
    %v6906 = vunpack.c.l.b16 %v6242
    %v6907 = vunpack.c.h.b16 %v6242
    %v6908 = vunpack.c.l.b16 %v6243
    %v6909 = vunpack.c.h.b16 %v6243
    %v6910 = vunpack.c.l.b16 %v6244
    %v6911 = vunpack.c.h.b16 %v6244
    %v6912 = vunpack.c.l.b16 %v6245
    %v6913 = vunpack.c.h.b16 %v6245
    %v6914 = vunpack.c.l.b16 %v6246
    %v6915 = vunpack.c.h.b16 %v6246
    %v6916 = vunpack.c.l.b16 %v6247
    %v6917 = vunpack.c.h.b16 %v6247
    %v6918 = vunpack.c.l.b16 %v6248
    %v6919 = vunpack.c.h.b16 %v6248
    %v6920 = vunpack.c.l.b16 %v6249
    %v6921 = vunpack.c.h.b16 %v6249
    %v6922 = vunpack.c.l.b16 %v6250
    %v6923 = vunpack.c.h.b16 %v6250
    %v6924 = vunpack.c.l.b16 %v6251
    %v6925 = vunpack.c.h.b16 %v6251
    %v6926 = vunpack.c.l.b16 %v6252
    %v6927 = vunpack.c.h.b16 %v6252
    %v6928 = vunpack.c.l.b16 %v6253
    %v6929 = vunpack.c.h.b16 %v6253
    %v6930 = vunpack.c.l.b16 %v6254
    %v6931 = vunpack.c.h.b16 %v6254
    %v6932 = vunpack.c.l.b16 %v6255
    %v6933 = vunpack.c.h.b16 %v6255
    %v6934 = vunpack.c.l.b16 %v6256
    %v6935 = vunpack.c.h.b16 %v6256
    %v6936 = vunpack.c.l.b16 %v6257
    %v6937 = vunpack.c.h.b16 %v6257
    %v6938 = vunpack.c.l.b16 %v6258
    %v6939 = vunpack.c.h.b16 %v6258
    %v6940 = vunpack.c.l.b16 %v6259
    %v6941 = vunpack.c.h.b16 %v6259
    %v6942 = vunpack.c.l.b16 %v6260
    %v6943 = vunpack.c.h.b16 %v6260
    %v6944 = vunpack.c.l.b16 %v6261
    %v6945 = vunpack.c.h.b16 %v6261
    %v6946 = vunpack.c.l.b16 %v6262
    %v6947 = vunpack.c.h.b16 %v6262
    %v6948 = vunpack.c.l.b16 %v6263
    %v6949 = vunpack.c.h.b16 %v6263
    %v6950 = vunpack.c.l.b16 %v6264
    %v6951 = vunpack.c.h.b16 %v6264
    %v6952 = vunpack.c.l.b16 %v6265
    %v6953 = vunpack.c.h.b16 %v6265
    %v6954 = vunpack.c.l.b16 %v6266
    %v6955 = vunpack.c.h.b16 %v6266
    %v6956 = vunpack.c.l.b16 %v6267
    %v6957 = vunpack.c.h.b16 %v6267
    %v6958 = vunpack.c.l.b16 %v6268
    %v6959 = vunpack.c.h.b16 %v6268
    %v6960 = vunpack.c.l.b16 %v6269
    %v6961 = vunpack.c.h.b16 %v6269
    %v6962 = vunpack.c.l.b16 %v6270
    %v6963 = vunpack.c.h.b16 %v6270
    %v6964 = vunpack.c.l.b16 %v6271
    %v6965 = vunpack.c.h.b16 %v6271
    %v6966 = vunpack.c.l.b16 %v6272
    %v6967 = vunpack.c.h.b16 %v6272
    %v6968 = vunpack.c.l.b16 %v6273
    %v6969 = vunpack.c.h.b16 %v6273
    %v6970 = vunpack.c.l.b16 %v6274
    %v6971 = vunpack.c.h.b16 %v6274
    %v6972 = vunpack.c.l.b16 %v6275
    %v6973 = vunpack.c.h.b16 %v6275
    %v6974 = vunpack.c.l.b16 %v6276
    %v6975 = vunpack.c.h.b16 %v6276
    %v6976 = vunpack.c.l.b16 %v6277
    %v6977 = vunpack.c.h.b16 %v6277
    %v6978 = vunpack.c.l.b16 %v6278
    %v6979 = vunpack.c.h.b16 %v6278
    %v6980 = vunpack.c.l.b16 %v6279
    %v6981 = vunpack.c.h.b16 %v6279
    %v6982 = vunpack.c.l.b16 %v6280
    %v6983 = vunpack.c.h.b16 %v6280
    %v6984 = vunpack.c.l.b16 %v6281
    %v6985 = vunpack.c.h.b16 %v6281
    %v6986 = vunpack.c.l.b16 %v6282
    %v6987 = vunpack.c.h.b16 %v6282
    %v6988 = vunpack.c.l.b16 %v6283
    %v6989 = vunpack.c.h.b16 %v6283
    %v6990 = vunpack.c.l.b16 %v6284
    %v6991 = vunpack.c.h.b16 %v6284
    %v6992 = vunpack.c.l.b16 %v6285
    %v6993 = vunpack.c.h.b16 %v6285
    %v6994 = vunpack.c.l.b16 %v6286
    %v6995 = vunpack.c.h.b16 %v6286
    %v6996 = vunpack.c.l.b16 %v6287
    %v6997 = vunpack.c.h.b16 %v6287
    %v6998 = vunpack.c.l.b16 %v6288
    %v6999 = vunpack.c.h.b16 %v6288
    %v7000 = vunpack.c.l.b16 %v6289
    %v7001 = vunpack.c.h.b16 %v6289
    %v7002 = vunpack.c.l.b16 %v6290
    %v7003 = vunpack.c.h.b16 %v6290
    %v7004 = vunpack.c.l.b16 %v6291
    %v7005 = vunpack.c.h.b16 %v6291
    %v7006 = vunpack.c.l.b16 %v6292
    %v7007 = vunpack.c.h.b16 %v6292
    %v7008 = vunpack.c.l.b16 %v6293
    %v7009 = vunpack.c.h.b16 %v6293
    %v7010 = vunpack.c.l.b16 %v6294
    %v7011 = vunpack.c.h.b16 %v6294
    %v7012 = vunpack.c.l.b16 %v6295
    %v7013 = vunpack.c.h.b16 %v6295
    %v7014 = vunpack.c.l.b16 %v6296
    %v7015 = vunpack.c.h.b16 %v6296
    %v7016 = vunpack.c.l.b16 %v6297
    %v7017 = vunpack.c.h.b16 %v6297
    %v7018 = vunpack.c.l.b16 %v6298
    %v7019 = vunpack.c.h.b16 %v6298
    %v7020 = vunpack.c.l.b16 %v6299
    %v7021 = vunpack.c.h.b16 %v6299
    %v7022 = vunpack.c.l.b16 %v6300
    %v7023 = vunpack.c.h.b16 %v6300
    %v7024 = vunpack.c.l.b16 %v6301
    %v7025 = vunpack.c.h.b16 %v6301
    %v7026 = vunpack.c.l.b16 %v6302
    %v7027 = vunpack.c.h.b16 %v6302
    %v7028 = vunpack.c.l.b16 %v6303
    %v7029 = vunpack.c.h.b16 %v6303
    %v7030 = vunpack.c.l.b16 %v6304
    %v7031 = vunpack.c.h.b16 %v6304
    %v7032 = vunpack.c.l.b16 %v6305
    %v7033 = vunpack.c.h.b16 %v6305
    %v7034 = vunpack.c.l.b16 %v6306
    %v7035 = vunpack.c.h.b16 %v6306
    %v7036 = vunpack.c.l.b16 %v6307
    %v7037 = vunpack.c.h.b16 %v6307
    %v7038 = vunpack.c.l.b16 %v6308
    %v7039 = vunpack.c.h.b16 %v6308
    %v7040 = vunpack.c.l.b16 %v6309
    %v7041 = vunpack.c.h.b16 %v6309
    %v7042 = vunpack.c.l.b16 %v6310
    %v7043 = vunpack.c.h.b16 %v6310
    %v7044 = vunpack.c.l.b16 %v6311
    %v7045 = vunpack.c.h.b16 %v6311
    %v7046 = vunpack.c.l.b16 %v6312
    %v7047 = vunpack.c.h.b16 %v6312
    %v7048 = vunpack.c.l.b16 %v6313
    %v7049 = vunpack.c.h.b16 %v6313
    %v7050 = vunpack.c.l.b16 %v6314
    %v7051 = vunpack.c.h.b16 %v6314
    %v7052 = vunpack.c.l.b16 %v6315
    %v7053 = vunpack.c.h.b16 %v6315
    %v7054 = vunpack.c.l.b16 %v6316
    %v7055 = vunpack.c.h.b16 %v6316
    %v7056 = vunpack.c.l.b16 %v6317
    %v7057 = vunpack.c.h.b16 %v6317
    %v7058 = vunpack.c.l.b16 %v6318
    %v7059 = vunpack.c.h.b16 %v6318
    %v7060 = vunpack.c.l.b16 %v6319
    %v7061 = vunpack.c.h.b16 %v6319
    %v7062 = vunpack.c.l.b16 %v6320
    %v7063 = vunpack.c.h.b16 %v6320
    %v7064 = vunpack.c.l.b16 %v6321
    %v7065 = vunpack.c.h.b16 %v6321
    %v7066 = vunpack.c.l.b16 %v6322
    %v7067 = vunpack.c.h.b16 %v6322
    %v7068 = vunpack.c.l.b16 %v6323
    %v7069 = vunpack.c.h.b16 %v6323
    %v7070 = vunpack.c.l.b16 %v6324
    %v7071 = vunpack.c.h.b16 %v6324
    %v7072 = vunpack.c.l.b16 %v6325
    %v7073 = vunpack.c.h.b16 %v6325
    %v7074 = vunpack.c.l.b16 %v6326
    %v7075 = vunpack.c.h.b16 %v6326
    %v7076 = vunpack.c.l.b16 %v6327
    %v7077 = vunpack.c.h.b16 %v6327
    %v7078 = vunpack.c.l.b16 %v6328
    %v7079 = vunpack.c.h.b16 %v6328
    %v7080 = vunpack.c.l.b16 %v6329
    %v7081 = vunpack.c.h.b16 %v6329
    %v7082 = vunpack.c.l.b16 %v6330
    %v7083 = vunpack.c.h.b16 %v6330
    %v7084 = vunpack.c.l.b16 %v6331
    %v7085 = vunpack.c.h.b16 %v6331
    %v7086 = vunpack.c.l.b16 %v6332
    %v7087 = vunpack.c.h.b16 %v6332
    %v7088 = vunpack.c.l.b16 %v6333
    %v7089 = vunpack.c.h.b16 %v6333
    %v7090 = vunpack.c.l.b16 %v6334
    %v7091 = vunpack.c.h.b16 %v6334
    %v7092 = vunpack.c.l.b16 %v6335
    %v7093 = vunpack.c.h.b16 %v6335
    %v7094 = vunpack.c.l.b16 %v6336
    %v7095 = vunpack.c.h.b16 %v6336
    %v7096 = vunpack.c.l.b16 %v6337
    %v7097 = vunpack.c.h.b16 %v6337
    %v7098 = vunpack.c.l.b16 %v6338
    %v7099 = vunpack.c.h.b16 %v6338
    %v7100 = vunpack.c.l.b16 %v6339
    %v7101 = vunpack.c.h.b16 %v6339
    %v7102 = vunpack.c.l.b16 %v6340
    %v7103 = vunpack.c.h.b16 %v6340
    %v7104 = vunpack.c.l.b16 %v6341
    %v7105 = vunpack.c.h.b16 %v6341
    %v7106 = vunpack.c.l.b16 %v6342
    %v7107 = vunpack.c.h.b16 %v6342
    %v7108 = vunpack.c.l.b16 %v6343
    %v7109 = vunpack.c.h.b16 %v6343
    %v7110 = vunpack.c.l.b16 %v6344
    %v7111 = vunpack.c.h.b16 %v6344
    %v7112 = vunpack.c.l.b16 %v6345
    %v7113 = vunpack.c.h.b16 %v6345
    %v7114 = vunpack.c.l.b16 %v6346
    %v7115 = vunpack.c.h.b16 %v6346
    %v7116 = vunpack.c.l.b16 %v6347
    %v7117 = vunpack.c.h.b16 %v6347
    %v7118 = vunpack.c.l.b16 %v6348
    %v7119 = vunpack.c.h.b16 %v6348
    %v7120 = vunpack.c.l.b16 %v6349
    %v7121 = vunpack.c.h.b16 %v6349
    %v7122 = vunpack.c.l.b16 %v6350
    %v7123 = vunpack.c.h.b16 %v6350
    %v7124 = vunpack.c.l.b16 %v6351
    %v7125 = vunpack.c.h.b16 %v6351
    %v7126 = vunpack.c.l.b16 %v6352
    %v7127 = vunpack.c.h.b16 %v6352
    %v7128 = vunpack.c.l.b16 %v6353
    %v7129 = vunpack.c.h.b16 %v6353
    %v7130 = vunpack.c.l.b16 %v6354
    %v7131 = vunpack.c.h.b16 %v6354
    %v7132 = vunpack.c.l.b16 %v6355
    %v7133 = vunpack.c.h.b16 %v6355
    %v7134 = vunpack.c.l.b16 %v6356
    %v7135 = vunpack.c.h.b16 %v6356
    %v7136 = vunpack.c.l.b16 %v6357
    %v7137 = vunpack.c.h.b16 %v6357
    %v7138 = vunpack.c.l.b16 %v6358
    %v7139 = vunpack.c.h.b16 %v6358
    %v7140 = vunpack.c.l.b16 %v6359
    %v7141 = vunpack.c.h.b16 %v6359
    %v7142 = vunpack.c.l.b16 %v6360
    %v7143 = vunpack.c.h.b16 %v6360
    %v7144 = vunpack.c.l.b16 %v6361
    %v7145 = vunpack.c.h.b16 %v6361
    %v7146 = vunpack.c.l.b16 %v6362
    %v7147 = vunpack.c.h.b16 %v6362
    %v7148 = vunpack.c.l.b16 %v6363
    %v7149 = vunpack.c.h.b16 %v6363
    %v7150 = vunpack.c.l.b16 %v6364
    %v7151 = vunpack.c.h.b16 %v6364
    %v7152 = vunpack.c.l.b16 %v6365
    %v7153 = vunpack.c.h.b16 %v6365
    %v7154 = vunpack.c.l.b16 %v6366
    %v7155 = vunpack.c.h.b16 %v6366
    %v7156 = vunpack.c.l.b16 %v6367
    %v7157 = vunpack.c.h.b16 %v6367
    %v7158 = vpack.c.b16 %v6650, %v6646
    %v7159 = vpack.c.b16 %v6651, %v6647
    %v7160 = vpack.c.b16 %v6652, %v6648
    %v7161 = vpack.c.b16 %v6653, %v6649
    %v7162 = vpack.c.b16 %v6658, %v6654
    %v7163 = vpack.c.b16 %v6659, %v6655
    %v7164 = vpack.c.b16 %v6660, %v6656
    %v7165 = vpack.c.b16 %v6661, %v6657
    %v7166 = vpack.c.b16 %v6666, %v6662
    %v7167 = vpack.c.b16 %v6667, %v6663
    %v7168 = vpack.c.b16 %v6668, %v6664
    %v7169 = vpack.c.b16 %v6669, %v6665
    %v7170 = vpack.c.b16 %v6674, %v6670
    %v7171 = vpack.c.b16 %v6675, %v6671
    %v7172 = vpack.c.b16 %v6676, %v6672
    %v7173 = vpack.c.b16 %v6677, %v6673
    %v7174 = vpack.c.b16 %v6682, %v6678
    %v7175 = vpack.c.b16 %v6683, %v6679
    %v7176 = vpack.c.b16 %v6684, %v6680
    %v7177 = vpack.c.b16 %v6685, %v6681
    %v7178 = vpack.c.b16 %v6690, %v6686
    %v7179 = vpack.c.b16 %v6691, %v6687
    %v7180 = vpack.c.b16 %v6692, %v6688
    %v7181 = vpack.c.b16 %v6693, %v6689
    %v7182 = vpack.c.b16 %v6698, %v6694
    %v7183 = vpack.c.b16 %v6699, %v6695
    %v7184 = vpack.c.b16 %v6700, %v6696
    %v7185 = vpack.c.b16 %v6701, %v6697
    %v7186 = vpack.c.b16 %v6706, %v6702
    %v7187 = vpack.c.b16 %v6707, %v6703
    %v7188 = vpack.c.b16 %v6708, %v6704
    %v7189 = vpack.c.b16 %v6709, %v6705
    %v7190 = vpack.c.b16 %v6714, %v6710
    %v7191 = vpack.c.b16 %v6715, %v6711
    %v7192 = vpack.c.b16 %v6716, %v6712
    %v7193 = vpack.c.b16 %v6717, %v6713
    %v7194 = vpack.c.b16 %v6722, %v6718
    %v7195 = vpack.c.b16 %v6723, %v6719
    %v7196 = vpack.c.b16 %v6724, %v6720
    %v7197 = vpack.c.b16 %v6725, %v6721
    %v7198 = vpack.c.b16 %v6730, %v6726
    %v7199 = vpack.c.b16 %v6731, %v6727
    %v7200 = vpack.c.b16 %v6732, %v6728
    %v7201 = vpack.c.b16 %v6733, %v6729
    %v7202 = vpack.c.b16 %v6738, %v6734
    %v7203 = vpack.c.b16 %v6739, %v6735
    %v7204 = vpack.c.b16 %v6740, %v6736
    %v7205 = vpack.c.b16 %v6741, %v6737
    %v7206 = vpack.c.b16 %v6746, %v6742
    %v7207 = vpack.c.b16 %v6747, %v6743
    %v7208 = vpack.c.b16 %v6748, %v6744
    %v7209 = vpack.c.b16 %v6749, %v6745
    %v7210 = vpack.c.b16 %v6754, %v6750
    %v7211 = vpack.c.b16 %v6755, %v6751
    %v7212 = vpack.c.b16 %v6756, %v6752
    %v7213 = vpack.c.b16 %v6757, %v6753
    %v7214 = vpack.c.b16 %v6762, %v6758
    %v7215 = vpack.c.b16 %v6763, %v6759
    %v7216 = vpack.c.b16 %v6764, %v6760
    %v7217 = vpack.c.b16 %v6765, %v6761
    %v7218 = vpack.c.b16 %v6770, %v6766
    %v7219 = vpack.c.b16 %v6771, %v6767
    %v7220 = vpack.c.b16 %v6772, %v6768
    %v7221 = vpack.c.b16 %v6773, %v6769
    %v7222 = vpack.c.b16 %v6778, %v6774
    %v7223 = vpack.c.b16 %v6779, %v6775
    %v7224 = vpack.c.b16 %v6780, %v6776
    %v7225 = vpack.c.b16 %v6781, %v6777
    %v7226 = vpack.c.b16 %v6786, %v6782
    %v7227 = vpack.c.b16 %v6787, %v6783
    %v7228 = vpack.c.b16 %v6788, %v6784
    %v7229 = vpack.c.b16 %v6789, %v6785
    %v7230 = vpack.c.b16 %v6794, %v6790
    %v7231 = vpack.c.b16 %v6795, %v6791
    %v7232 = vpack.c.b16 %v6796, %v6792
    %v7233 = vpack.c.b16 %v6797, %v6793
    %v7234 = vpack.c.b16 %v6802, %v6798
    %v7235 = vpack.c.b16 %v6803, %v6799
    %v7236 = vpack.c.b16 %v6804, %v6800
    %v7237 = vpack.c.b16 %v6805, %v6801
    %v7238 = vpack.c.b16 %v6810, %v6806
    %v7239 = vpack.c.b16 %v6811, %v6807
    %v7240 = vpack.c.b16 %v6812, %v6808
    %v7241 = vpack.c.b16 %v6813, %v6809
    %v7242 = vpack.c.b16 %v6818, %v6814
    %v7243 = vpack.c.b16 %v6819, %v6815
    %v7244 = vpack.c.b16 %v6820, %v6816
    %v7245 = vpack.c.b16 %v6821, %v6817
    %v7246 = vpack.c.b16 %v6826, %v6822
    %v7247 = vpack.c.b16 %v6827, %v6823
    %v7248 = vpack.c.b16 %v6828, %v6824
    %v7249 = vpack.c.b16 %v6829, %v6825
    %v7250 = vpack.c.b16 %v6834, %v6830
    %v7251 = vpack.c.b16 %v6835, %v6831
    %v7252 = vpack.c.b16 %v6836, %v6832
    %v7253 = vpack.c.b16 %v6837, %v6833
    %v7254 = vpack.c.b16 %v6842, %v6838
    %v7255 = vpack.c.b16 %v6843, %v6839
    %v7256 = vpack.c.b16 %v6844, %v6840
    %v7257 = vpack.c.b16 %v6845, %v6841
    %v7258 = vpack.c.b16 %v6850, %v6846
    %v7259 = vpack.c.b16 %v6851, %v6847
    %v7260 = vpack.c.b16 %v6852, %v6848
    %v7261 = vpack.c.b16 %v6853, %v6849
    %v7262 = vpack.c.b16 %v6858, %v6854
    %v7263 = vpack.c.b16 %v6859, %v6855
    %v7264 = vpack.c.b16 %v6860, %v6856
    %v7265 = vpack.c.b16 %v6861, %v6857
    %v7266 = vpack.c.b16 %v6866, %v6862
    %v7267 = vpack.c.b16 %v6867, %v6863
    %v7268 = vpack.c.b16 %v6868, %v6864
    %v7269 = vpack.c.b16 %v6869, %v6865
    %v7270 = vpack.c.b16 %v6874, %v6870
    %v7271 = vpack.c.b16 %v6875, %v6871
    %v7272 = vpack.c.b16 %v6876, %v6872
    %v7273 = vpack.c.b16 %v6877, %v6873
    %v7274 = vpack.c.b16 %v6882, %v6878
    %v7275 = vpack.c.b16 %v6883, %v6879
    %v7276 = vpack.c.b16 %v6884, %v6880
    %v7277 = vpack.c.b16 %v6885, %v6881
    %v7278 = vpack.c.b16 %v6890, %v6886
    %v7279 = vpack.c.b16 %v6891, %v6887
    %v7280 = vpack.c.b16 %v6892, %v6888
    %v7281 = vpack.c.b16 %v6893, %v6889
    %v7282 = vpack.c.b16 %v6898, %v6894
    %v7283 = vpack.c.b16 %v6899, %v6895
    %v7284 = vpack.c.b16 %v6900, %v6896
    %v7285 = vpack.c.b16 %v6901, %v6897
    %v7286 = vpack.c.b16 %v6906, %v6902
    %v7287 = vpack.c.b16 %v6907, %v6903
    %v7288 = vpack.c.b16 %v6908, %v6904
    %v7289 = vpack.c.b16 %v6909, %v6905
    %v7290 = vpack.c.b16 %v6914, %v6910
    %v7291 = vpack.c.b16 %v6915, %v6911
    %v7292 = vpack.c.b16 %v6916, %v6912
    %v7293 = vpack.c.b16 %v6917, %v6913
    %v7294 = vpack.c.b16 %v6922, %v6918
    %v7295 = vpack.c.b16 %v6923, %v6919
    %v7296 = vpack.c.b16 %v6924, %v6920
    %v7297 = vpack.c.b16 %v6925, %v6921
    %v7298 = vpack.c.b16 %v6930, %v6926
    %v7299 = vpack.c.b16 %v6931, %v6927
    %v7300 = vpack.c.b16 %v6932, %v6928
    %v7301 = vpack.c.b16 %v6933, %v6929
    %v7302 = vpack.c.b16 %v6938, %v6934
    %v7303 = vpack.c.b16 %v6939, %v6935
    %v7304 = vpack.c.b16 %v6940, %v6936
    %v7305 = vpack.c.b16 %v6941, %v6937
    %v7306 = vpack.c.b16 %v6946, %v6942
    %v7307 = vpack.c.b16 %v6947, %v6943
    %v7308 = vpack.c.b16 %v6948, %v6944
    %v7309 = vpack.c.b16 %v6949, %v6945
    %v7310 = vpack.c.b16 %v6954, %v6950
    %v7311 = vpack.c.b16 %v6955, %v6951
    %v7312 = vpack.c.b16 %v6956, %v6952
    %v7313 = vpack.c.b16 %v6957, %v6953
    %v7314 = vpack.c.b16 %v6962, %v6958
    %v7315 = vpack.c.b16 %v6963, %v6959
    %v7316 = vpack.c.b16 %v6964, %v6960
    %v7317 = vpack.c.b16 %v6965, %v6961
    %v7318 = vpack.c.b16 %v6970, %v6966
    %v7319 = vpack.c.b16 %v6971, %v6967
    %v7320 = vpack.c.b16 %v6972, %v6968
    %v7321 = vpack.c.b16 %v6973, %v6969
    %v7322 = vpack.c.b16 %v6978, %v6974
    %v7323 = vpack.c.b16 %v6979, %v6975
    %v7324 = vpack.c.b16 %v6980, %v6976
    %v7325 = vpack.c.b16 %v6981, %v6977
    %v7326 = vpack.c.b16 %v6986, %v6982
    %v7327 = vpack.c.b16 %v6987, %v6983
    %v7328 = vpack.c.b16 %v6988, %v6984
    %v7329 = vpack.c.b16 %v6989, %v6985
    %v7330 = vpack.c.b16 %v6994, %v6990
    %v7331 = vpack.c.b16 %v6995, %v6991
    %v7332 = vpack.c.b16 %v6996, %v6992
    %v7333 = vpack.c.b16 %v6997, %v6993
    %v7334 = vpack.c.b16 %v7002, %v6998
    %v7335 = vpack.c.b16 %v7003, %v6999
    %v7336 = vpack.c.b16 %v7004, %v7000
    %v7337 = vpack.c.b16 %v7005, %v7001
    %v7338 = vpack.c.b16 %v7010, %v7006
    %v7339 = vpack.c.b16 %v7011, %v7007
    %v7340 = vpack.c.b16 %v7012, %v7008
    %v7341 = vpack.c.b16 %v7013, %v7009
    %v7342 = vpack.c.b16 %v7018, %v7014
    %v7343 = vpack.c.b16 %v7019, %v7015
    %v7344 = vpack.c.b16 %v7020, %v7016
    %v7345 = vpack.c.b16 %v7021, %v7017
    %v7346 = vpack.c.b16 %v7026, %v7022
    %v7347 = vpack.c.b16 %v7027, %v7023
    %v7348 = vpack.c.b16 %v7028, %v7024
    %v7349 = vpack.c.b16 %v7029, %v7025
    %v7350 = vpack.c.b16 %v7034, %v7030
    %v7351 = vpack.c.b16 %v7035, %v7031
    %v7352 = vpack.c.b16 %v7036, %v7032
    %v7353 = vpack.c.b16 %v7037, %v7033
    %v7354 = vpack.c.b16 %v7042, %v7038
    %v7355 = vpack.c.b16 %v7043, %v7039
    %v7356 = vpack.c.b16 %v7044, %v7040
    %v7357 = vpack.c.b16 %v7045, %v7041
    %v7358 = vpack.c.b16 %v7050, %v7046
    %v7359 = vpack.c.b16 %v7051, %v7047
    %v7360 = vpack.c.b16 %v7052, %v7048
    %v7361 = vpack.c.b16 %v7053, %v7049
    %v7362 = vpack.c.b16 %v7058, %v7054
    %v7363 = vpack.c.b16 %v7059, %v7055
    %v7364 = vpack.c.b16 %v7060, %v7056
    %v7365 = vpack.c.b16 %v7061, %v7057
    %v7366 = vpack.c.b16 %v7066, %v7062
    %v7367 = vpack.c.b16 %v7067, %v7063
    %v7368 = vpack.c.b16 %v7068, %v7064
    %v7369 = vpack.c.b16 %v7069, %v7065
    %v7370 = vpack.c.b16 %v7074, %v7070
    %v7371 = vpack.c.b16 %v7075, %v7071
    %v7372 = vpack.c.b16 %v7076, %v7072
    %v7373 = vpack.c.b16 %v7077, %v7073
    %v7374 = vpack.c.b16 %v7082, %v7078
    %v7375 = vpack.c.b16 %v7083, %v7079
    %v7376 = vpack.c.b16 %v7084, %v7080
    %v7377 = vpack.c.b16 %v7085, %v7081
    %v7378 = vpack.c.b16 %v7090, %v7086
    %v7379 = vpack.c.b16 %v7091, %v7087
    %v7380 = vpack.c.b16 %v7092, %v7088
    %v7381 = vpack.c.b16 %v7093, %v7089
    %v7382 = vpack.c.b16 %v7098, %v7094
    %v7383 = vpack.c.b16 %v7099, %v7095
    %v7384 = vpack.c.b16 %v7100, %v7096
    %v7385 = vpack.c.b16 %v7101, %v7097
    %v7386 = vpack.c.b16 %v7106, %v7102
    %v7387 = vpack.c.b16 %v7107, %v7103
    %v7388 = vpack.c.b16 %v7108, %v7104
    %v7389 = vpack.c.b16 %v7109, %v7105
    %v7390 = vpack.c.b16 %v7114, %v7110
    %v7391 = vpack.c.b16 %v7115, %v7111
    %v7392 = vpack.c.b16 %v7116, %v7112
    %v7393 = vpack.c.b16 %v7117, %v7113
    %v7394 = vpack.c.b16 %v7122, %v7118
    %v7395 = vpack.c.b16 %v7123, %v7119
    %v7396 = vpack.c.b16 %v7124, %v7120
    %v7397 = vpack.c.b16 %v7125, %v7121
    %v7398 = vpack.c.b16 %v7130, %v7126
    %v7399 = vpack.c.b16 %v7131, %v7127
    %v7400 = vpack.c.b16 %v7132, %v7128
    %v7401 = vpack.c.b16 %v7133, %v7129
    %v7402 = vpack.c.b16 %v7138, %v7134
    %v7403 = vpack.c.b16 %v7139, %v7135
    %v7404 = vpack.c.b16 %v7140, %v7136
    %v7405 = vpack.c.b16 %v7141, %v7137
    %v7406 = vpack.c.b16 %v7146, %v7142
    %v7407 = vpack.c.b16 %v7147, %v7143
    %v7408 = vpack.c.b16 %v7148, %v7144
    %v7409 = vpack.c.b16 %v7149, %v7145
    %v7410 = vpack.c.b16 %v7154, %v7150
    %v7411 = vpack.c.b16 %v7155, %v7151
    %v7412 = vpack.c.b16 %v7156, %v7152
    %v7413 = vpack.c.b16 %v7157, %v7153
    %7670 = vmatprep.subr.bf16.mxu0 %v7159
    %7671 = vmatpush1.bf16.msra.mxu0 %v7158
    %7672 = vmatprep.subr.bf16.mxu0 %v7163
    %7673 = vmatpush1.bf16.msra.mxu0 %v7162
    %7674 = vmatprep.subr.bf16.mxu0 %v7167
    %7675 = vmatpush1.bf16.msra.mxu0 %v7166
    %7676 = vmatprep.subr.bf16.mxu0 %v7171
    %7677 = vmatpush1.bf16.msra.mxu0 %v7170
    %7678 = vmatprep.subr.bf16.mxu0 %v7175
    %7679 = vmatpush1.bf16.msra.mxu0 %v7174
    %7680 = vmatprep.subr.bf16.mxu0 %v7179
    %7681 = vmatpush1.bf16.msra.mxu0 %v7178
    %7682 = vmatprep.subr.bf16.mxu0 %v7183
    %7683 = vmatpush1.bf16.msra.mxu0 %v7182
    %7684 = vmatprep.subr.bf16.mxu0 %v7187
    %7685 = vmatpush1.bf16.msra.mxu0 %v7186
    %7686 = vmatprep.subr.bf16.mxu0 %v7191
    %7687 = vmatpush1.bf16.msra.mxu0 %v7190
    %7688 = vmatprep.subr.bf16.mxu0 %v7195
    %7689 = vmatpush1.bf16.msra.mxu0 %v7194
    %7690 = vmatprep.subr.bf16.mxu0 %v7199
    %7691 = vmatpush1.bf16.msra.mxu0 %v7198
    %7692 = vmatprep.subr.bf16.mxu0 %v7203
    %7693 = vmatpush1.bf16.msra.mxu0 %v7202
    %7694 = vmatprep.subr.bf16.mxu0 %v7207
    %7695 = vmatpush1.bf16.msra.mxu0 %v7206
    %7696 = vmatprep.subr.bf16.mxu0 %v7211
    %7697 = vmatpush1.bf16.msra.mxu0 %v7210
    %7698 = vmatprep.subr.bf16.mxu0 %v7215
    %7699 = vmatpush1.bf16.msra.mxu0 %v7214
    %7700 = vmatprep.subr.bf16.mxu0 %v7219
    %7701 = vmatpush1.bf16.msra.mxu0 %v7218
    %7702 = vmatprep.mubr.bf16.mxu0 %v6105
    %7703 = vmatmul.mubr.bf16.gmra.mrb[0].mxu0 %v6104
    %v7704 = vpop.f32.mrb[0].mxu0
    %v7705 = vadd.f32 %v6373, %v7704
    %v7706 = vpop.f32.mrb[0].mxu0
    %v7707 = vadd.f32 %v6377, %v7706
    %v7708 = vpop.f32.mrb[0].mxu0
    %v7709 = vpop.f32.mrb[0].mxu0
    %7710 = vdwg.mxu0
    %7711 = vmatprep.subr.bf16.mxu0 %v7223
    %7712 = vmatpush1.bf16.msra.mxu0 %v7222
    %7713 = vmatprep.subr.bf16.mxu0 %v7227
    %7714 = vmatpush1.bf16.msra.mxu0 %v7226
    %7715 = vmatprep.subr.bf16.mxu0 %v7231
    %7716 = vmatpush1.bf16.msra.mxu0 %v7230
    %7717 = vmatprep.subr.bf16.mxu0 %v7235
    %7718 = vmatpush1.bf16.msra.mxu0 %v7234
    %7719 = vmatprep.subr.bf16.mxu0 %v7239
    %7720 = vmatpush1.bf16.msra.mxu0 %v7238
    %7721 = vmatprep.subr.bf16.mxu0 %v7243
    %7722 = vmatpush1.bf16.msra.mxu0 %v7242
    %7723 = vmatprep.subr.bf16.mxu0 %v7247
    %7724 = vmatpush1.bf16.msra.mxu0 %v7246
    %7725 = vmatprep.subr.bf16.mxu0 %v7251
    %7726 = vmatpush1.bf16.msra.mxu0 %v7250
    %7727 = vmatprep.subr.bf16.mxu0 %v7255
    %7728 = vmatpush1.bf16.msra.mxu0 %v7254
    %7729 = vmatprep.subr.bf16.mxu0 %v7259
    %7730 = vmatpush1.bf16.msra.mxu0 %v7258
    %7731 = vmatprep.subr.bf16.mxu0 %v7263
    %7732 = vmatpush1.bf16.msra.mxu0 %v7262
    %7733 = vmatprep.subr.bf16.mxu0 %v7267
    %7734 = vmatpush1.bf16.msra.mxu0 %v7266
    %7735 = vmatprep.subr.bf16.mxu0 %v7271
    %7736 = vmatpush1.bf16.msra.mxu0 %v7270
    %7737 = vmatprep.subr.bf16.mxu0 %v7275
    %7738 = vmatpush1.bf16.msra.mxu0 %v7274
    %7739 = vmatprep.subr.bf16.mxu0 %v7279
    %7740 = vmatpush1.bf16.msra.mxu0 %v7278
    %7741 = vmatprep.subr.bf16.mxu0 %v7283
    %7742 = vmatpush1.bf16.msra.mxu0 %v7282
    %7743 = vmatprep.mubr.bf16.mxu0 %v6107
    %7744 = vmatmul.mubr.bf16.gmra.mrb[0].mxu0 %v6106
    %v7745 = vpop.f32.mrb[0].mxu0
    %v7746 = vadd.f32 %v7705, %v7745
    %v7747 = vpop.f32.mrb[0].mxu0
    %v7748 = vadd.f32 %v7707, %v7747
    %v7749 = vpop.f32.mrb[0].mxu0
    %v7750 = vpop.f32.mrb[0].mxu0
    %7751 = vdwg.mxu0
    %7752 = vmatprep.subr.bf16.mxu0 %v7287
    %7753 = vmatpush1.bf16.msra.mxu0 %v7286
    %7754 = vmatprep.subr.bf16.mxu0 %v7291
    %7755 = vmatpush1.bf16.msra.mxu0 %v7290
    %7756 = vmatprep.subr.bf16.mxu0 %v7295
    %7757 = vmatpush1.bf16.msra.mxu0 %v7294
    %7758 = vmatprep.subr.bf16.mxu0 %v7299
    %7759 = vmatpush1.bf16.msra.mxu0 %v7298
    %7760 = vmatprep.subr.bf16.mxu0 %v7303
    %7761 = vmatpush1.bf16.msra.mxu0 %v7302
    %7762 = vmatprep.subr.bf16.mxu0 %v7307
    %7763 = vmatpush1.bf16.msra.mxu0 %v7306
    %7764 = vmatprep.subr.bf16.mxu0 %v7311
    %7765 = vmatpush1.bf16.msra.mxu0 %v7310
    %7766 = vmatprep.subr.bf16.mxu0 %v7315
    %7767 = vmatpush1.bf16.msra.mxu0 %v7314
    %7768 = vmatprep.subr.bf16.mxu0 %v7319
    %7769 = vmatpush1.bf16.msra.mxu0 %v7318
    %7770 = vmatprep.subr.bf16.mxu0 %v7323
    %7771 = vmatpush1.bf16.msra.mxu0 %v7322
    %7772 = vmatprep.subr.bf16.mxu0 %v7327
    %7773 = vmatpush1.bf16.msra.mxu0 %v7326
    %7774 = vmatprep.subr.bf16.mxu0 %v7331
    %7775 = vmatpush1.bf16.msra.mxu0 %v7330
    %7776 = vmatprep.subr.bf16.mxu0 %v7335
    %7777 = vmatpush1.bf16.msra.mxu0 %v7334
    %7778 = vmatprep.subr.bf16.mxu0 %v7339
    %7779 = vmatpush1.bf16.msra.mxu0 %v7338
    %7780 = vmatprep.subr.bf16.mxu0 %v7343
    %7781 = vmatpush1.bf16.msra.mxu0 %v7342
    %7782 = vmatprep.subr.bf16.mxu0 %v7347
    %7783 = vmatpush1.bf16.msra.mxu0 %v7346
    %7784 = vmatprep.mubr.bf16.mxu0 %v6109
    %7785 = vmatmul.mubr.bf16.gmra.mrb[0].mxu0 %v6108
    %v7786 = vpop.f32.mrb[0].mxu0
    %v7787 = vadd.f32 %v7746, %v7786
    %v7788 = vpop.f32.mrb[0].mxu0
    %v7789 = vadd.f32 %v7748, %v7788
    %v7790 = vpop.f32.mrb[0].mxu0
    %v7791 = vpop.f32.mrb[0].mxu0
    %7792 = vdwg.mxu0
    %7793 = vmatprep.subr.bf16.mxu0 %v7351
    %7794 = vmatpush1.bf16.msra.mxu0 %v7350
    %7795 = vmatprep.subr.bf16.mxu0 %v7355
    %7796 = vmatpush1.bf16.msra.mxu0 %v7354
    %7797 = vmatprep.subr.bf16.mxu0 %v7359
    %7798 = vmatpush1.bf16.msra.mxu0 %v7358
    %7799 = vmatprep.subr.bf16.mxu0 %v7363
    %7800 = vmatpush1.bf16.msra.mxu0 %v7362
    %7801 = vmatprep.subr.bf16.mxu0 %v7367
    %7802 = vmatpush1.bf16.msra.mxu0 %v7366
    %7803 = vmatprep.subr.bf16.mxu0 %v7371
    %7804 = vmatpush1.bf16.msra.mxu0 %v7370
    %7805 = vmatprep.subr.bf16.mxu0 %v7375
    %7806 = vmatpush1.bf16.msra.mxu0 %v7374
    %7807 = vmatprep.subr.bf16.mxu0 %v7379
    %7808 = vmatpush1.bf16.msra.mxu0 %v7378
    %7809 = vmatprep.subr.bf16.mxu0 %v7383
    %7810 = vmatpush1.bf16.msra.mxu0 %v7382
    %7811 = vmatprep.subr.bf16.mxu0 %v7387
    %7812 = vmatpush1.bf16.msra.mxu0 %v7386
    %7813 = vmatprep.subr.bf16.mxu0 %v7391
    %7814 = vmatpush1.bf16.msra.mxu0 %v7390
    %7815 = vmatprep.subr.bf16.mxu0 %v7395
    %7816 = vmatpush1.bf16.msra.mxu0 %v7394
    %7817 = vmatprep.subr.bf16.mxu0 %v7399
    %7818 = vmatpush1.bf16.msra.mxu0 %v7398
    %7819 = vmatprep.subr.bf16.mxu0 %v7403
    %7820 = vmatpush1.bf16.msra.mxu0 %v7402
    %7821 = vmatprep.subr.bf16.mxu0 %v7407
    %7822 = vmatpush1.bf16.msra.mxu0 %v7406
    %7823 = vmatprep.subr.bf16.mxu0 %v7411
    %7824 = vmatpush1.bf16.msra.mxu0 %v7410
    %7825 = vmatprep.mubr.bf16.mxu0 %v6111
    %7826 = vmatmul.mubr.bf16.gmra.mrb[0].mxu0 %v6110
    %v7827 = vpop.f32.mrb[0].mxu0
    %v7828 = vadd.f32 %v7787, %v7827
    %v7829 = vpop.f32.mrb[0].mxu0
    %v7830 = vadd.f32 %v7789, %v7829
    %v7831 = vpop.f32.mrb[0].mxu0
    %v7832 = vpop.f32.mrb[0].mxu0
    %7833 = vdwg.mxu0
    %7834 = vmatprep.subr.bf16.mxu0 %v7161
    %7835 = vmatpush1.bf16.msra.mxu0 %v7160
    %7836 = vmatprep.subr.bf16.mxu0 %v7165
    %7837 = vmatpush1.bf16.msra.mxu0 %v7164
    %7838 = vmatprep.subr.bf16.mxu0 %v7169
    %7839 = vmatpush1.bf16.msra.mxu0 %v7168
    %7840 = vmatprep.subr.bf16.mxu0 %v7173
    %7841 = vmatpush1.bf16.msra.mxu0 %v7172
    %7842 = vmatprep.subr.bf16.mxu0 %v7177
    %7843 = vmatpush1.bf16.msra.mxu0 %v7176
    %7844 = vmatprep.subr.bf16.mxu0 %v7181
    %7845 = vmatpush1.bf16.msra.mxu0 %v7180
    %7846 = vmatprep.subr.bf16.mxu0 %v7185
    %7847 = vmatpush1.bf16.msra.mxu0 %v7184
    %7848 = vmatprep.subr.bf16.mxu0 %v7189
    %7849 = vmatpush1.bf16.msra.mxu0 %v7188
    %7850 = vmatprep.subr.bf16.mxu0 %v7193
    %7851 = vmatpush1.bf16.msra.mxu0 %v7192
    %7852 = vmatprep.subr.bf16.mxu0 %v7197
    %7853 = vmatpush1.bf16.msra.mxu0 %v7196
    %7854 = vmatprep.subr.bf16.mxu0 %v7201
    %7855 = vmatpush1.bf16.msra.mxu0 %v7200
    %7856 = vmatprep.subr.bf16.mxu0 %v7205
    %7857 = vmatpush1.bf16.msra.mxu0 %v7204
    %7858 = vmatprep.subr.bf16.mxu0 %v7209
    %7859 = vmatpush1.bf16.msra.mxu0 %v7208
    %7860 = vmatprep.subr.bf16.mxu0 %v7213
    %7861 = vmatpush1.bf16.msra.mxu0 %v7212
    %7862 = vmatprep.subr.bf16.mxu0 %v7217
    %7863 = vmatpush1.bf16.msra.mxu0 %v7216
    %7864 = vmatprep.subr.bf16.mxu0 %v7221
    %7865 = vmatpush1.bf16.msra.mxu0 %v7220
    %7866 = vmatprep.mubr.bf16.mxu0 %v6105
    %7867 = vmatmul.mubr.bf16.gmra.mrb[0].mxu0 %v6104
    %v7868 = vpop.f32.mrb[0].mxu0
    %v7869 = vadd.f32 %v6381, %v7868
    %v7870 = vpop.f32.mrb[0].mxu0
    %v7871 = vadd.f32 %v6385, %v7870
    %v7872 = vpop.f32.mrb[0].mxu0
    %v7873 = vpop.f32.mrb[0].mxu0
    %7874 = vdwg.mxu0
    %7875 = vmatprep.subr.bf16.mxu0 %v7225
    %7876 = vmatpush1.bf16.msra.mxu0 %v7224
    %7877 = vmatprep.subr.bf16.mxu0 %v7229
    %7878 = vmatpush1.bf16.msra.mxu0 %v7228
    %7879 = vmatprep.subr.bf16.mxu0 %v7233
    %7880 = vmatpush1.bf16.msra.mxu0 %v7232
    %7881 = vmatprep.subr.bf16.mxu0 %v7237
    %7882 = vmatpush1.bf16.msra.mxu0 %v7236
    %7883 = vmatprep.subr.bf16.mxu0 %v7241
    %7884 = vmatpush1.bf16.msra.mxu0 %v7240
    %7885 = vmatprep.subr.bf16.mxu0 %v7245
    %7886 = vmatpush1.bf16.msra.mxu0 %v7244
    %7887 = vmatprep.subr.bf16.mxu0 %v7249
    %7888 = vmatpush1.bf16.msra.mxu0 %v7248
    %7889 = vmatprep.subr.bf16.mxu0 %v7253
    %7890 = vmatpush1.bf16.msra.mxu0 %v7252
    %7891 = vmatprep.subr.bf16.mxu0 %v7257
    %7892 = vmatpush1.bf16.msra.mxu0 %v7256
    %7893 = vmatprep.subr.bf16.mxu0 %v7261
    %7894 = vmatpush1.bf16.msra.mxu0 %v7260
    %7895 = vmatprep.subr.bf16.mxu0 %v7265
    %7896 = vmatpush1.bf16.msra.mxu0 %v7264
    %7897 = vmatprep.subr.bf16.mxu0 %v7269
    %7898 = vmatpush1.bf16.msra.mxu0 %v7268
    %7899 = vmatprep.subr.bf16.mxu0 %v7273
    %7900 = vmatpush1.bf16.msra.mxu0 %v7272
    %7901 = vmatprep.subr.bf16.mxu0 %v7277
    %7902 = vmatpush1.bf16.msra.mxu0 %v7276
    %7903 = vmatprep.subr.bf16.mxu0 %v7281
    %7904 = vmatpush1.bf16.msra.mxu0 %v7280
    %7905 = vmatprep.subr.bf16.mxu0 %v7285
    %7906 = vmatpush1.bf16.msra.mxu0 %v7284
    %7907 = vmatprep.mubr.bf16.mxu0 %v6107
    %7908 = vmatmul.mubr.bf16.gmra.mrb[0].mxu0 %v6106
    %v7909 = vpop.f32.mrb[0].mxu0
    %v7910 = vadd.f32 %v7869, %v7909
    %v7911 = vpop.f32.mrb[0].mxu0
    %v7912 = vadd.f32 %v7871, %v7911
    %v7913 = vpop.f32.mrb[0].mxu0
    %v7914 = vpop.f32.mrb[0].mxu0
    %7915 = vdwg.mxu0
    %7916 = vmatprep.subr.bf16.mxu0 %v7289
    %7917 = vmatpush1.bf16.msra.mxu0 %v7288
    %7918 = vmatprep.subr.bf16.mxu0 %v7293
    %7919 = vmatpush1.bf16.msra.mxu0 %v7292
    %7920 = vmatprep.subr.bf16.mxu0 %v7297
    %7921 = vmatpush1.bf16.msra.mxu0 %v7296
    %7922 = vmatprep.subr.bf16.mxu0 %v7301
    %7923 = vmatpush1.bf16.msra.mxu0 %v7300
    %7924 = vmatprep.subr.bf16.mxu0 %v7305
    %7925 = vmatpush1.bf16.msra.mxu0 %v7304
    %7926 = vmatprep.subr.bf16.mxu0 %v7309
    %7927 = vmatpush1.bf16.msra.mxu0 %v7308
    %7928 = vmatprep.subr.bf16.mxu0 %v7313
    %7929 = vmatpush1.bf16.msra.mxu0 %v7312
    %7930 = vmatprep.subr.bf16.mxu0 %v7317
    %7931 = vmatpush1.bf16.msra.mxu0 %v7316
    %7932 = vmatprep.subr.bf16.mxu0 %v7321
    %7933 = vmatpush1.bf16.msra.mxu0 %v7320
    %7934 = vmatprep.subr.bf16.mxu0 %v7325
    %7935 = vmatpush1.bf16.msra.mxu0 %v7324
    %7936 = vmatprep.subr.bf16.mxu0 %v7329
    %7937 = vmatpush1.bf16.msra.mxu0 %v7328
    %7938 = vmatprep.subr.bf16.mxu0 %v7333
    %7939 = vmatpush1.bf16.msra.mxu0 %v7332
    %7940 = vmatprep.subr.bf16.mxu0 %v7337
    %7941 = vmatpush1.bf16.msra.mxu0 %v7336
    %7942 = vmatprep.subr.bf16.mxu0 %v7341
    %7943 = vmatpush1.bf16.msra.mxu0 %v7340
    %7944 = vmatprep.subr.bf16.mxu0 %v7345
    %7945 = vmatpush1.bf16.msra.mxu0 %v7344
    %7946 = vmatprep.subr.bf16.mxu0 %v7349
    %7947 = vmatpush1.bf16.msra.mxu0 %v7348
    %7948 = vmatprep.mubr.bf16.mxu0 %v6109
    %7949 = vmatmul.mubr.bf16.gmra.mrb[0].mxu0 %v6108
    %v7950 = vpop.f32.mrb[0].mxu0
    %v7951 = vadd.f32 %v7910, %v7950
    %v7952 = vpop.f32.mrb[0].mxu0
    %v7953 = vadd.f32 %v7912, %v7952
    %v7954 = vpop.f32.mrb[0].mxu0
    %v7955 = vpop.f32.mrb[0].mxu0
    %7956 = vdwg.mxu0
    %7957 = vmatprep.subr.bf16.mxu0 %v7353
    %7958 = vmatpush1.bf16.msra.mxu0 %v7352
    %7959 = vmatprep.subr.bf16.mxu0 %v7357
    %7960 = vmatpush1.bf16.msra.mxu0 %v7356
    %7961 = vmatprep.subr.bf16.mxu0 %v7361
    %7962 = vmatpush1.bf16.msra.mxu0 %v7360
    %7963 = vmatprep.subr.bf16.mxu0 %v7365
    %7964 = vmatpush1.bf16.msra.mxu0 %v7364
    %7965 = vmatprep.subr.bf16.mxu0 %v7369
    %7966 = vmatpush1.bf16.msra.mxu0 %v7368
    %7967 = vmatprep.subr.bf16.mxu0 %v7373
    %7968 = vmatpush1.bf16.msra.mxu0 %v7372
    %7969 = vmatprep.subr.bf16.mxu0 %v7377
    %7970 = vmatpush1.bf16.msra.mxu0 %v7376
    %7971 = vmatprep.subr.bf16.mxu0 %v7381
    %7972 = vmatpush1.bf16.msra.mxu0 %v7380
    %7973 = vmatprep.subr.bf16.mxu0 %v7385
    %7974 = vmatpush1.bf16.msra.mxu0 %v7384
    %7975 = vmatprep.subr.bf16.mxu0 %v7389
    %7976 = vmatpush1.bf16.msra.mxu0 %v7388
    %7977 = vmatprep.subr.bf16.mxu0 %v7393
    %7978 = vmatpush1.bf16.msra.mxu0 %v7392
    %7979 = vmatprep.subr.bf16.mxu0 %v7397
    %7980 = vmatpush1.bf16.msra.mxu0 %v7396
    %7981 = vmatprep.subr.bf16.mxu0 %v7401
    %7982 = vmatpush1.bf16.msra.mxu0 %v7400
    %7983 = vmatprep.subr.bf16.mxu0 %v7405
    %7984 = vmatpush1.bf16.msra.mxu0 %v7404
    %7985 = vmatprep.subr.bf16.mxu0 %v7409
    %7986 = vmatpush1.bf16.msra.mxu0 %v7408
    %7987 = vmatprep.subr.bf16.mxu0 %v7413
    %7988 = vmatpush1.bf16.msra.mxu0 %v7412
    %7989 = vmatprep.mubr.bf16.mxu0 %v6111
    %7990 = vmatmul.mubr.bf16.gmra.mrb[0].mxu0 %v6110
    %v7991 = vpop.f32.mrb[0].mxu0
    %v7992 = vadd.f32 %v7951, %v7991
    %v7993 = vpop.f32.mrb[0].mxu0
    %v7994 = vadd.f32 %v7953, %v7993
    %v7995 = vpop.f32.mrb[0].mxu0
    %v7996 = vpop.f32.mrb[0].mxu0
    %7997 = vdwg.mxu0
    %v7998 = vmax.f32 %v7828, 0.0
    %v7999 = vmax.f32 %v7830, 0.0
    %v8000 = vmax.f32 %v7992, 0.0
    %v8001 = vmax.f32 %v7994, 0.0
    %v8002 = vpack.c.bf16 %v7998, %v7998
    %v8003 = vpack.c.bf16 %v7999, %v7999
    %v8004 = vpack.c.bf16 %v8000, %v8000
    %v8005 = vpack.c.bf16 %v8001, %v8001
    %v8006 = vld [vmem:[%s7] sm:$0xff]
    %v8007 = vld [vmem:[%s7 + $0x8] sm:$0xff]
    %v8008 = vld [vmem:[%s7 + $0x10] sm:$0xff]
    %v8009 = vld [vmem:[%s7 + $0x18] sm:$0xff]
    %v8010 = vld [vmem:[%s7 + $0x20] sm:$0xff]
    %v8011 = vld [vmem:[%s7 + $0x28] sm:$0xff]
    %v8012 = vld [vmem:[%s7 + $0x30] sm:$0xff]
    %v8013 = vld [vmem:[%s7 + $0x38] sm:$0xff]
    %v8014 = vld [vmem:[%s7 + $0x40] sm:$0xff]
    %v8015 = vld [vmem:[%s7 + $0x48] sm:$0xff]
    %v8016 = vld [vmem:[%s7 + $0x50] sm:$0xff]
    %v8017 = vld [vmem:[%s7 + $0x58] sm:$0xff]
    %v8018 = vld [vmem:[%s7 + $0x60] sm:$0xff]
    %v8019 = vld [vmem:[%s7 + $0x68] sm:$0xff]
    %v8020 = vld [vmem:[%s7 + $0x70] sm:$0xff]
    %v8021 = vld [vmem:[%s7 + $0x78] sm:$0xff]
    %v8022 = vld [vmem:[%s7 + $0x80] sm:$0xff]
    %v8023 = vld [vmem:[%s7 + $0x88] sm:$0xff]
    %v8024 = vld [vmem:[%s7 + $0x90] sm:$0xff]
    %v8025 = vld [vmem:[%s7 + $0x98] sm:$0xff]
    %v8026 = vld [vmem:[%s7 + $0xa0] sm:$0xff]
    %v8027 = vld [vmem:[%s7 + $0xa8] sm:$0xff]
    %v8028 = vld [vmem:[%s7 + $0xb0] sm:$0xff]
    %v8029 = vld [vmem:[%s7 + $0xb8] sm:$0xff]
    %v8030 = vld [vmem:[%s7 + $0xc0] sm:$0xff]
    %v8031 = vld [vmem:[%s7 + $0xc8] sm:$0xff]
    %v8032 = vld [vmem:[%s7 + $0xd0] sm:$0xff]
    %v8033 = vld [vmem:[%s7 + $0xd8] sm:$0xff]
    %v8034 = vld [vmem:[%s7 + $0xe0] sm:$0xff]
    %v8035 = vld [vmem:[%s7 + $0xe8] sm:$0xff]
    %v8036 = vld [vmem:[%s7 + $0xf0] sm:$0xff]
    %v8037 = vld [vmem:[%s7 + $0xf8] sm:$0xff]
    %v8038 = vld [vmem:[%s7 + $0x100] sm:$0xff]
    %v8039 = vld [vmem:[%s7 + $0x108] sm:$0xff]
    %v8040 = vld [vmem:[%s7 + $0x110] sm:$0xff]
    %v8041 = vld [vmem:[%s7 + $0x118] sm:$0xff]
    %v8042 = vld [vmem:[%s7 + $0x120] sm:$0xff]
    %v8043 = vld [vmem:[%s7 + $0x128] sm:$0xff]
    %v8044 = vld [vmem:[%s7 + $0x130] sm:$0xff]
    %v8045 = vld [vmem:[%s7 + $0x138] sm:$0xff]
    %v8046 = vld [vmem:[%s7 + $0x140] sm:$0xff]
    %v8047 = vld [vmem:[%s7 + $0x148] sm:$0xff]
    %v8048 = vld [vmem:[%s7 + $0x150] sm:$0xff]
    %v8049 = vld [vmem:[%s7 + $0x158] sm:$0xff]
    %v8050 = vld [vmem:[%s7 + $0x160] sm:$0xff]
    %v8051 = vld [vmem:[%s7 + $0x168] sm:$0xff]
    %v8052 = vld [vmem:[%s7 + $0x170] sm:$0xff]
    %v8053 = vld [vmem:[%s7 + $0x178] sm:$0xff]
    %v8054 = vld [vmem:[%s7 + $0x180] sm:$0xff]
    %v8055 = vld [vmem:[%s7 + $0x188] sm:$0xff]
    %v8056 = vld [vmem:[%s7 + $0x190] sm:$0xff]
    %v8057 = vld [vmem:[%s7 + $0x198] sm:$0xff]
    %v8058 = vld [vmem:[%s7 + $0x1a0] sm:$0xff]
    %v8059 = vld [vmem:[%s7 + $0x1a8] sm:$0xff]
    %v8060 = vld [vmem:[%s7 + $0x1b0] sm:$0xff]
    %v8061 = vld [vmem:[%s7 + $0x1b8] sm:$0xff]
    %v8062 = vld [vmem:[%s7 + $0x1c0] sm:$0xff]
    %v8063 = vld [vmem:[%s7 + $0x1c8] sm:$0xff]
    %v8064 = vld [vmem:[%s7 + $0x1d0] sm:$0xff]
    %v8065 = vld [vmem:[%s7 + $0x1d8] sm:$0xff]
    %v8066 = vld [vmem:[%s7 + $0x1e0] sm:$0xff]
    %v8067 = vld [vmem:[%s7 + $0x1e8] sm:$0xff]
    %v8068 = vld [vmem:[%s7 + $0x1f0] sm:$0xff]
    %v8069 = vld [vmem:[%s7 + $0x1f8] sm:$0xff]
    %v8070 = vld [vmem:[%s8] sm:$0x3]
    %v8072 = vlaneseq
    %v8073 = vshrl.u32 %v8072, 7
    %v8074 = vsub.s32 0, %v8073
    %v8075 = vrot.slane %v8070, %v8074
    %v8076 = vlaneseq
    %v8077 = vshrl.u32 %v8076, 7
    %v8078 = vsub.s32 1, %v8077
    %v8079 = vrot.slane %v8070, %v8078
    %v8146 = vunpack.c.l.b16 %v8006
    %v8147 = vunpack.c.h.b16 %v8006
    %v8148 = vunpack.c.l.b16 %v8007
    %v8149 = vunpack.c.h.b16 %v8007
    %v8150 = vunpack.c.l.b16 %v8008
    %v8151 = vunpack.c.h.b16 %v8008
    %v8152 = vunpack.c.l.b16 %v8009
    %v8153 = vunpack.c.h.b16 %v8009
    %v8154 = vunpack.c.l.b16 %v8010
    %v8155 = vunpack.c.h.b16 %v8010
    %v8156 = vunpack.c.l.b16 %v8011
    %v8157 = vunpack.c.h.b16 %v8011
    %v8158 = vunpack.c.l.b16 %v8012
    %v8159 = vunpack.c.h.b16 %v8012
    %v8160 = vunpack.c.l.b16 %v8013
    %v8161 = vunpack.c.h.b16 %v8013
    %v8162 = vunpack.c.l.b16 %v8014
    %v8163 = vunpack.c.h.b16 %v8014
    %v8164 = vunpack.c.l.b16 %v8015
    %v8165 = vunpack.c.h.b16 %v8015
    %v8166 = vunpack.c.l.b16 %v8016
    %v8167 = vunpack.c.h.b16 %v8016
    %v8168 = vunpack.c.l.b16 %v8017
    %v8169 = vunpack.c.h.b16 %v8017
    %v8170 = vunpack.c.l.b16 %v8018
    %v8171 = vunpack.c.h.b16 %v8018
    %v8172 = vunpack.c.l.b16 %v8019
    %v8173 = vunpack.c.h.b16 %v8019
    %v8174 = vunpack.c.l.b16 %v8020
    %v8175 = vunpack.c.h.b16 %v8020
    %v8176 = vunpack.c.l.b16 %v8021
    %v8177 = vunpack.c.h.b16 %v8021
    %v8178 = vunpack.c.l.b16 %v8022
    %v8179 = vunpack.c.h.b16 %v8022
    %v8180 = vunpack.c.l.b16 %v8023
    %v8181 = vunpack.c.h.b16 %v8023
    %v8182 = vunpack.c.l.b16 %v8024
    %v8183 = vunpack.c.h.b16 %v8024
    %v8184 = vunpack.c.l.b16 %v8025
    %v8185 = vunpack.c.h.b16 %v8025
    %v8186 = vunpack.c.l.b16 %v8026
    %v8187 = vunpack.c.h.b16 %v8026
    %v8188 = vunpack.c.l.b16 %v8027
    %v8189 = vunpack.c.h.b16 %v8027
    %v8190 = vunpack.c.l.b16 %v8028
    %v8191 = vunpack.c.h.b16 %v8028
    %v8192 = vunpack.c.l.b16 %v8029
    %v8193 = vunpack.c.h.b16 %v8029
    %v8194 = vunpack.c.l.b16 %v8030
    %v8195 = vunpack.c.h.b16 %v8030
    %v8196 = vunpack.c.l.b16 %v8031
    %v8197 = vunpack.c.h.b16 %v8031
    %v8198 = vunpack.c.l.b16 %v8032
    %v8199 = vunpack.c.h.b16 %v8032
    %v8200 = vunpack.c.l.b16 %v8033
    %v8201 = vunpack.c.h.b16 %v8033
    %v8202 = vunpack.c.l.b16 %v8034
    %v8203 = vunpack.c.h.b16 %v8034
    %v8204 = vunpack.c.l.b16 %v8035
    %v8205 = vunpack.c.h.b16 %v8035
    %v8206 = vunpack.c.l.b16 %v8036
    %v8207 = vunpack.c.h.b16 %v8036
    %v8208 = vunpack.c.l.b16 %v8037
    %v8209 = vunpack.c.h.b16 %v8037
    %v8210 = vunpack.c.l.b16 %v8038
    %v8211 = vunpack.c.h.b16 %v8038
    %v8212 = vunpack.c.l.b16 %v8039
    %v8213 = vunpack.c.h.b16 %v8039
    %v8214 = vunpack.c.l.b16 %v8040
    %v8215 = vunpack.c.h.b16 %v8040
    %v8216 = vunpack.c.l.b16 %v8041
    %v8217 = vunpack.c.h.b16 %v8041
    %v8218 = vunpack.c.l.b16 %v8042
    %v8219 = vunpack.c.h.b16 %v8042
    %v8220 = vunpack.c.l.b16 %v8043
    %v8221 = vunpack.c.h.b16 %v8043
    %v8222 = vunpack.c.l.b16 %v8044
    %v8223 = vunpack.c.h.b16 %v8044
    %v8224 = vunpack.c.l.b16 %v8045
    %v8225 = vunpack.c.h.b16 %v8045
    %v8226 = vunpack.c.l.b16 %v8046
    %v8227 = vunpack.c.h.b16 %v8046
    %v8228 = vunpack.c.l.b16 %v8047
    %v8229 = vunpack.c.h.b16 %v8047
    %v8230 = vunpack.c.l.b16 %v8048
    %v8231 = vunpack.c.h.b16 %v8048
    %v8232 = vunpack.c.l.b16 %v8049
    %v8233 = vunpack.c.h.b16 %v8049
    %v8234 = vunpack.c.l.b16 %v8050
    %v8235 = vunpack.c.h.b16 %v8050
    %v8236 = vunpack.c.l.b16 %v8051
    %v8237 = vunpack.c.h.b16 %v8051
    %v8238 = vunpack.c.l.b16 %v8052
    %v8239 = vunpack.c.h.b16 %v8052
    %v8240 = vunpack.c.l.b16 %v8053
    %v8241 = vunpack.c.h.b16 %v8053
    %v8242 = vunpack.c.l.b16 %v8054
    %v8243 = vunpack.c.h.b16 %v8054
    %v8244 = vunpack.c.l.b16 %v8055
    %v8245 = vunpack.c.h.b16 %v8055
    %v8246 = vunpack.c.l.b16 %v8056
    %v8247 = vunpack.c.h.b16 %v8056
    %v8248 = vunpack.c.l.b16 %v8057
    %v8249 = vunpack.c.h.b16 %v8057
    %v8250 = vunpack.c.l.b16 %v8058
    %v8251 = vunpack.c.h.b16 %v8058
    %v8252 = vunpack.c.l.b16 %v8059
    %v8253 = vunpack.c.h.b16 %v8059
    %v8254 = vunpack.c.l.b16 %v8060
    %v8255 = vunpack.c.h.b16 %v8060
    %v8256 = vunpack.c.l.b16 %v8061
    %v8257 = vunpack.c.h.b16 %v8061
    %v8258 = vunpack.c.l.b16 %v8062
    %v8259 = vunpack.c.h.b16 %v8062
    %v8260 = vunpack.c.l.b16 %v8063
    %v8261 = vunpack.c.h.b16 %v8063
    %v8262 = vunpack.c.l.b16 %v8064
    %v8263 = vunpack.c.h.b16 %v8064
    %v8264 = vunpack.c.l.b16 %v8065
    %v8265 = vunpack.c.h.b16 %v8065
    %v8266 = vunpack.c.l.b16 %v8066
    %v8267 = vunpack.c.h.b16 %v8066
    %v8268 = vunpack.c.l.b16 %v8067
    %v8269 = vunpack.c.h.b16 %v8067
    %v8270 = vunpack.c.l.b16 %v8068
    %v8271 = vunpack.c.h.b16 %v8068
    %v8272 = vunpack.c.l.b16 %v8069
    %v8273 = vunpack.c.h.b16 %v8069
    %v8274 = vpack.c.b16 %v8148, %v8146
    %v8275 = vpack.c.b16 %v8149, %v8147
    %v8276 = vpack.c.b16 %v8152, %v8150
    %v8277 = vpack.c.b16 %v8153, %v8151
    %v8278 = vpack.c.b16 %v8156, %v8154
    %v8279 = vpack.c.b16 %v8157, %v8155
    %v8280 = vpack.c.b16 %v8160, %v8158
    %v8281 = vpack.c.b16 %v8161, %v8159
    %v8282 = vpack.c.b16 %v8164, %v8162
    %v8283 = vpack.c.b16 %v8165, %v8163
    %v8284 = vpack.c.b16 %v8168, %v8166
    %v8285 = vpack.c.b16 %v8169, %v8167
    %v8286 = vpack.c.b16 %v8172, %v8170
    %v8287 = vpack.c.b16 %v8173, %v8171
    %v8288 = vpack.c.b16 %v8176, %v8174
    %v8289 = vpack.c.b16 %v8177, %v8175
    %v8290 = vpack.c.b16 %v8180, %v8178
    %v8291 = vpack.c.b16 %v8181, %v8179
    %v8292 = vpack.c.b16 %v8184, %v8182
    %v8293 = vpack.c.b16 %v8185, %v8183
    %v8294 = vpack.c.b16 %v8188, %v8186
    %v8295 = vpack.c.b16 %v8189, %v8187
    %v8296 = vpack.c.b16 %v8192, %v8190
    %v8297 = vpack.c.b16 %v8193, %v8191
    %v8298 = vpack.c.b16 %v8196, %v8194
    %v8299 = vpack.c.b16 %v8197, %v8195
    %v8300 = vpack.c.b16 %v8200, %v8198
    %v8301 = vpack.c.b16 %v8201, %v8199
    %v8302 = vpack.c.b16 %v8204, %v8202
    %v8303 = vpack.c.b16 %v8205, %v8203
    %v8304 = vpack.c.b16 %v8208, %v8206
    %v8305 = vpack.c.b16 %v8209, %v8207
    %v8306 = vpack.c.b16 %v8212, %v8210
    %v8307 = vpack.c.b16 %v8213, %v8211
    %v8308 = vpack.c.b16 %v8216, %v8214
    %v8309 = vpack.c.b16 %v8217, %v8215
    %v8310 = vpack.c.b16 %v8220, %v8218
    %v8311 = vpack.c.b16 %v8221, %v8219
    %v8312 = vpack.c.b16 %v8224, %v8222
    %v8313 = vpack.c.b16 %v8225, %v8223
    %v8314 = vpack.c.b16 %v8228, %v8226
    %v8315 = vpack.c.b16 %v8229, %v8227
    %v8316 = vpack.c.b16 %v8232, %v8230
    %v8317 = vpack.c.b16 %v8233, %v8231
    %v8318 = vpack.c.b16 %v8236, %v8234
    %v8319 = vpack.c.b16 %v8237, %v8235
    %v8320 = vpack.c.b16 %v8240, %v8238
    %v8321 = vpack.c.b16 %v8241, %v8239
    %v8322 = vpack.c.b16 %v8244, %v8242
    %v8323 = vpack.c.b16 %v8245, %v8243
    %v8324 = vpack.c.b16 %v8248, %v8246
    %v8325 = vpack.c.b16 %v8249, %v8247
    %v8326 = vpack.c.b16 %v8252, %v8250
    %v8327 = vpack.c.b16 %v8253, %v8251
    %v8328 = vpack.c.b16 %v8256, %v8254
    %v8329 = vpack.c.b16 %v8257, %v8255
    %v8330 = vpack.c.b16 %v8260, %v8258
    %v8331 = vpack.c.b16 %v8261, %v8259
    %v8332 = vpack.c.b16 %v8264, %v8262
    %v8333 = vpack.c.b16 %v8265, %v8263
    %v8334 = vpack.c.b16 %v8268, %v8266
    %v8335 = vpack.c.b16 %v8269, %v8267
    %v8336 = vpack.c.b16 %v8272, %v8270
    %v8337 = vpack.c.b16 %v8273, %v8271
    %8402 = vmatprep.subr.bf16.mxu0 %v8275
    %8403 = vmatpush1.bf16.msra.mxu0 %v8274
    %8404 = vmatprep.subr.bf16.mxu0 %v8277
    %8405 = vmatpush1.bf16.msra.mxu0 %v8276
    %8406 = vmatprep.subr.bf16.mxu0 %v8279
    %8407 = vmatpush1.bf16.msra.mxu0 %v8278
    %8408 = vmatprep.subr.bf16.mxu0 %v8281
    %8409 = vmatpush1.bf16.msra.mxu0 %v8280
    %8410 = vmatprep.subr.bf16.mxu0 %v8283
    %8411 = vmatpush1.bf16.msra.mxu0 %v8282
    %8412 = vmatprep.subr.bf16.mxu0 %v8285
    %8413 = vmatpush1.bf16.msra.mxu0 %v8284
    %8414 = vmatprep.subr.bf16.mxu0 %v8287
    %8415 = vmatpush1.bf16.msra.mxu0 %v8286
    %8416 = vmatprep.subr.bf16.mxu0 %v8289
    %8417 = vmatpush1.bf16.msra.mxu0 %v8288
    %8418 = vmatprep.subr.bf16.mxu0 %v8291
    %8419 = vmatpush1.bf16.msra.mxu0 %v8290
    %8420 = vmatprep.subr.bf16.mxu0 %v8293
    %8421 = vmatpush1.bf16.msra.mxu0 %v8292
    %8422 = vmatprep.subr.bf16.mxu0 %v8295
    %8423 = vmatpush1.bf16.msra.mxu0 %v8294
    %8424 = vmatprep.subr.bf16.mxu0 %v8297
    %8425 = vmatpush1.bf16.msra.mxu0 %v8296
    %8426 = vmatprep.subr.bf16.mxu0 %v8299
    %8427 = vmatpush1.bf16.msra.mxu0 %v8298
    %8428 = vmatprep.subr.bf16.mxu0 %v8301
    %8429 = vmatpush1.bf16.msra.mxu0 %v8300
    %8430 = vmatprep.subr.bf16.mxu0 %v8303
    %8431 = vmatpush1.bf16.msra.mxu0 %v8302
    %8432 = vmatprep.subr.bf16.mxu0 %v8305
    %8433 = vmatpush1.bf16.msra.mxu0 %v8304
    %8434 = vmatprep.mubr.bf16.mxu0 %v8003
    %8435 = vmatmul.mubr.bf16.gmra.mrb[0].mxu0 %v8002
    %v8436 = vpop.f32.mrb[0].mxu0
    %v8437 = vadd.f32 %v8075, %v8436
    %v8438 = vpop.f32.mrb[0].mxu0
    %v8439 = vadd.f32 %v8079, %v8438
    %v8440 = vpop.f32.mrb[0].mxu0
    %v8441 = vpop.f32.mrb[0].mxu0
    %8442 = vdwg.mxu0
    %8443 = vmatprep.subr.bf16.mxu0 %v8307
    %8444 = vmatpush1.bf16.msra.mxu0 %v8306
    %8445 = vmatprep.subr.bf16.mxu0 %v8309
    %8446 = vmatpush1.bf16.msra.mxu0 %v8308
    %8447 = vmatprep.subr.bf16.mxu0 %v8311
    %8448 = vmatpush1.bf16.msra.mxu0 %v8310
    %8449 = vmatprep.subr.bf16.mxu0 %v8313
    %8450 = vmatpush1.bf16.msra.mxu0 %v8312
    %8451 = vmatprep.subr.bf16.mxu0 %v8315
    %8452 = vmatpush1.bf16.msra.mxu0 %v8314
    %8453 = vmatprep.subr.bf16.mxu0 %v8317
    %8454 = vmatpush1.bf16.msra.mxu0 %v8316
    %8455 = vmatprep.subr.bf16.mxu0 %v8319
    %8456 = vmatpush1.bf16.msra.mxu0 %v8318
    %8457 = vmatprep.subr.bf16.mxu0 %v8321
    %8458 = vmatpush1.bf16.msra.mxu0 %v8320
    %8459 = vmatprep.subr.bf16.mxu0 %v8323
    %8460 = vmatpush1.bf16.msra.mxu0 %v8322
    %8461 = vmatprep.subr.bf16.mxu0 %v8325
    %8462 = vmatpush1.bf16.msra.mxu0 %v8324
    %8463 = vmatprep.subr.bf16.mxu0 %v8327
    %8464 = vmatpush1.bf16.msra.mxu0 %v8326
    %8465 = vmatprep.subr.bf16.mxu0 %v8329
    %8466 = vmatpush1.bf16.msra.mxu0 %v8328
    %8467 = vmatprep.subr.bf16.mxu0 %v8331
    %8468 = vmatpush1.bf16.msra.mxu0 %v8330
    %8469 = vmatprep.subr.bf16.mxu0 %v8333
    %8470 = vmatpush1.bf16.msra.mxu0 %v8332
    %8471 = vmatprep.subr.bf16.mxu0 %v8335
    %8472 = vmatpush1.bf16.msra.mxu0 %v8334
    %8473 = vmatprep.subr.bf16.mxu0 %v8337
    %8474 = vmatpush1.bf16.msra.mxu0 %v8336
    %8475 = vmatprep.mubr.bf16.mxu0 %v8005
    %8476 = vmatmul.mubr.bf16.gmra.mrb[0].mxu0 %v8004
    %v8477 = vpop.f32.mrb[0].mxu0
    %v8478 = vadd.f32 %v8437, %v8477
    %v8479 = vpop.f32.mrb[0].mxu0
    %v8480 = vadd.f32 %v8439, %v8479
    %v8481 = vpop.f32.mrb[0].mxu0
    %v8482 = vpop.f32.mrb[0].mxu0
    %8483 = vdwg.mxu0
    %v8484 = vmax.f32 %v8478, 0.0
    %v8485 = vmax.f32 %v8480, 0.0
    %v8486 = vpack.c.bf16 %v8484, %v8484
    %v8487 = vpack.c.bf16 %v8485, %v8485
    %v8488 = vld [vmem:[%s9] sm:$0xf]
    %v8489 = vld [vmem:[%s9 + $0x4] sm:$0xf]
    %v8490 = vld [vmem:[%s9 + $0x8] sm:$0xf]
    %v8491 = vld [vmem:[%s9 + $0xc] sm:$0xf]
    %v8492 = vld [vmem:[%s9 + $0x10] sm:$0xf]
    %v8493 = vld [vmem:[%s9 + $0x14] sm:$0xf]
    %v8494 = vld [vmem:[%s9 + $0x18] sm:$0xf]
    %v8495 = vld [vmem:[%s9 + $0x1c] sm:$0xf]
    %v8496 = vld [vmem:[%s9 + $0x20] sm:$0xf]
    %v8497 = vld [vmem:[%s9 + $0x24] sm:$0xf]
    %v8498 = vld [vmem:[%s9 + $0x28] sm:$0xf]
    %v8499 = vld [vmem:[%s9 + $0x2c] sm:$0xf]
    %v8500 = vld [vmem:[%s9 + $0x30] sm:$0xf]
    %v8501 = vld [vmem:[%s9 + $0x34] sm:$0xf]
    %v8502 = vld [vmem:[%s9 + $0x38] sm:$0xf]
    %v8503 = vld [vmem:[%s9 + $0x3c] sm:$0xf]
    %v8504 = vld [vmem:[%s9 + $0x40] sm:$0xf]
    %v8505 = vld [vmem:[%s9 + $0x44] sm:$0xf]
    %v8506 = vld [vmem:[%s9 + $0x48] sm:$0xf]
    %v8507 = vld [vmem:[%s9 + $0x4c] sm:$0xf]
    %v8508 = vld [vmem:[%s9 + $0x50] sm:$0xf]
    %v8509 = vld [vmem:[%s9 + $0x54] sm:$0xf]
    %v8510 = vld [vmem:[%s9 + $0x58] sm:$0xf]
    %v8511 = vld [vmem:[%s9 + $0x5c] sm:$0xf]
    %v8512 = vld [vmem:[%s9 + $0x60] sm:$0xf]
    %v8513 = vld [vmem:[%s9 + $0x64] sm:$0xf]
    %v8514 = vld [vmem:[%s9 + $0x68] sm:$0xf]
    %v8515 = vld [vmem:[%s9 + $0x6c] sm:$0xf]
    %v8516 = vld [vmem:[%s9 + $0x70] sm:$0xf]
    %v8517 = vld [vmem:[%s9 + $0x74] sm:$0xf]
    %v8518 = vld [vmem:[%s9 + $0x78] sm:$0xf]
    %v8519 = vld [vmem:[%s9 + $0x7c] sm:$0xf]
    %v8520 = vld [vmem:[%s10] sm:$0x1]
    %v8522 = vlaneseq
    %v8523 = vshrl.u32 %v8522, 7
    %v8524 = vsub.s32 0, %v8523
    %v8525 = vrot.slane %v8520, %v8524
    %v8559 = vunpack.c.l.b16 %v8488
    %v8560 = vunpack.c.l.b16 %v8489
    %v8561 = vunpack.c.l.b16 %v8490
    %v8562 = vunpack.c.l.b16 %v8491
    %v8563 = vunpack.c.l.b16 %v8492
    %v8564 = vunpack.c.l.b16 %v8493
    %v8565 = vunpack.c.l.b16 %v8494
    %v8566 = vunpack.c.l.b16 %v8495
    %v8567 = vunpack.c.l.b16 %v8496
    %v8568 = vunpack.c.l.b16 %v8497
    %v8569 = vunpack.c.l.b16 %v8498
    %v8570 = vunpack.c.l.b16 %v8499
    %v8571 = vunpack.c.l.b16 %v8500
    %v8572 = vunpack.c.l.b16 %v8501
    %v8573 = vunpack.c.l.b16 %v8502
    %v8574 = vunpack.c.l.b16 %v8503
    %v8575 = vunpack.c.l.b16 %v8504
    %v8576 = vunpack.c.l.b16 %v8505
    %v8577 = vunpack.c.l.b16 %v8506
    %v8578 = vunpack.c.l.b16 %v8507
    %v8579 = vunpack.c.l.b16 %v8508
    %v8580 = vunpack.c.l.b16 %v8509
    %v8581 = vunpack.c.l.b16 %v8510
    %v8582 = vunpack.c.l.b16 %v8511
    %v8583 = vunpack.c.l.b16 %v8512
    %v8584 = vunpack.c.l.b16 %v8513
    %v8585 = vunpack.c.l.b16 %v8514
    %v8586 = vunpack.c.l.b16 %v8515
    %v8587 = vunpack.c.l.b16 %v8516
    %v8588 = vunpack.c.l.b16 %v8517
    %v8589 = vunpack.c.l.b16 %v8518
    %v8590 = vunpack.c.l.b16 %v8519
    %v8591 = vpack.c.b16 %v8560, %v8559
    %v8592 = vpack.c.b16 %v8562, %v8561
    %v8593 = vpack.c.b16 %v8564, %v8563
    %v8594 = vpack.c.b16 %v8566, %v8565
    %v8595 = vpack.c.b16 %v8568, %v8567
    %v8596 = vpack.c.b16 %v8570, %v8569
    %v8597 = vpack.c.b16 %v8572, %v8571
    %v8598 = vpack.c.b16 %v8574, %v8573
    %v8599 = vpack.c.b16 %v8576, %v8575
    %v8600 = vpack.c.b16 %v8578, %v8577
    %v8601 = vpack.c.b16 %v8580, %v8579
    %v8602 = vpack.c.b16 %v8582, %v8581
    %v8603 = vpack.c.b16 %v8584, %v8583
    %v8604 = vpack.c.b16 %v8586, %v8585
    %v8605 = vpack.c.b16 %v8588, %v8587
    %v8606 = vpack.c.b16 %v8590, %v8589
    %8623 = vmatprep.subr.bf16.mxu0 0
    %8624 = vmatpush1.bf16.msra.mxu0 %v8591
    %8625 = vmatprep.subr.bf16.mxu0 0
    %8626 = vmatpush1.bf16.msra.mxu0 %v8592
    %8627 = vmatprep.subr.bf16.mxu0 0
    %8628 = vmatpush1.bf16.msra.mxu0 %v8593
    %8629 = vmatprep.subr.bf16.mxu0 0
    %8630 = vmatpush1.bf16.msra.mxu0 %v8594
    %8631 = vmatprep.subr.bf16.mxu0 0
    %8632 = vmatpush1.bf16.msra.mxu0 %v8595
    %8633 = vmatprep.subr.bf16.mxu0 0
    %8634 = vmatpush1.bf16.msra.mxu0 %v8596
    %8635 = vmatprep.subr.bf16.mxu0 0
    %8636 = vmatpush1.bf16.msra.mxu0 %v8597
    %8637 = vmatprep.subr.bf16.mxu0 0
    %8638 = vmatpush1.bf16.msra.mxu0 %v8598
    %8639 = vmatprep.subr.bf16.mxu0 0
    %8640 = vmatpush1.bf16.msra.mxu0 %v8599
    %8641 = vmatprep.subr.bf16.mxu0 0
    %8642 = vmatpush1.bf16.msra.mxu0 %v8600
    %8643 = vmatprep.subr.bf16.mxu0 0
    %8644 = vmatpush1.bf16.msra.mxu0 %v8601
    %8645 = vmatprep.subr.bf16.mxu0 0
    %8646 = vmatpush1.bf16.msra.mxu0 %v8602
    %8647 = vmatprep.subr.bf16.mxu0 0
    %8648 = vmatpush1.bf16.msra.mxu0 %v8603
    %8649 = vmatprep.subr.bf16.mxu0 0
    %8650 = vmatpush1.bf16.msra.mxu0 %v8604
    %8651 = vmatprep.subr.bf16.mxu0 0
    %8652 = vmatpush1.bf16.msra.mxu0 %v8605
    %8653 = vmatprep.subr.bf16.mxu0 0
    %8654 = vmatpush1.bf16.msra.mxu0 %v8606
    %8655 = vmatprep.mubr.bf16.mxu0 %v8487
    %8656 = vmatmul.mubr.bf16.gmra.mrb[0].mxu0 %v8486
    %v8657 = vpop.f32.mrb[0].mxu0
    %v8658 = vadd.f32 %v8525, %v8657
    %v8659 = vpop.f32.mrb[0].mxu0
    %v8660 = vpop.f32.mrb[0].mxu0
    %v8661 = vpop.f32.mrb[0].mxu0
    %8662 = vdwg.mxu0
    %8663 = vst [vmem:[#allocation2] sm:$0xff] %v8658
    // Predicated region
    $region46: #{combined_model_forward.1} parent=1 // pred_check
      _
    $region47: #{combined_model_forward.1} parent=1 // pred_check_branch
      %8665 = sbr.rel (0) target = $region49
    $region48: #{combined_model_forward.1} parent=1 // pred_region
      %s8667 = ssub.s32 128, 128
      %8668 = vsyncadd [#allocation3], %s8667
      %s8670 = sshll.u32 [#allocation2], 4
      %s8671 = int_to_ptr.vmem [resolvable:$true] %s8670
      %8673 = dma.vmem_to_hbm [thread:$0]  %s8671, 128, %s11, [#allocation3]
    $region49: #{combined_model_forward.1} parent=1 // pred_fallthru
      _
    // Predicated region
    $region50: #{combined_model_forward.1} parent=1 // pred_check
      _
    $region51: #{combined_model_forward.1} parent=1 // pred_check_branch
      %8675 = sbr.rel (0) target = $region53
    $region52: #{combined_model_forward.1} parent=1 // pred_region
      %8676 = dma.done [#allocation3], 128
    $region53: #{combined_model_forward.1} parent=1 // pred_fallthru
      _
    %8677 = vsyncpa [#allocation3], 1

</llo_original>
